<compile_context>
chip_gen: v7x
topology: tpu7x:2x2x1
jax: 0.10.0
libtpu: 0.0.40
codegen_flags: <defaults>
</compile_context>

<pallas_src>
import functools

import jax
import jax.numpy as jnp
from jax.experimental import pallas as pl
from jax.experimental.pallas import tpu as pltpu

EPS = 1e-5


# ----------------------------------------------------------------------------
# shared conv helper: 3x3 conv (pad=1, stride=1) over the flattened padded grid
# ----------------------------------------------------------------------------
def _conv3x3(read_tap, w_ref, lhs_ref, C, fused):
    """Returns (f32 accumulation (L, Cout), center-tap activation (L, C)).

    read_tap(k) must return the (L, C) activation slice for tap k (row-major
    kh*3+kw), already in the compute dtype.
    """
    center = None
    if fused:
        # Single GEMM with K = 9*C (lane-aligned staging; requires C % 128 == 0).
        for k in range(9):
            tap = read_tap(k)
            if k == 4:
                center = tap
            lhs_ref[:, k * C:(k + 1) * C] = tap
        acc = jnp.dot(lhs_ref[...], w_ref[...], preferred_element_type=jnp.float32)
    else:
        acc = None
        for k in range(9):
            tap = read_tap(k)
            if k == 4:
                center = tap
            p = jnp.dot(tap, w_ref[k], preferred_element_type=jnp.float32)
            acc = p if acc is None else acc + p
    return acc, center


# ----------------------------------------------------------------------------
# phase A: conv1 + shortcut 1x1 conv (stats only) + BN partial statistics
# ----------------------------------------------------------------------------
def _phase_a_kernel(H, W, Cin, Cout, fused, cdt,
                    x_ref, mask_ref, w1_ref, wsc_ref,
                    c1_ref, stat_ref, *scratch):
    Wp = W + 2
    L = H * Wp
    lhs_ref = scratch[0] if fused else None

    def read_tap(k):
        off = (k // 3) * Wp + (k % 3)
        return x_ref[0, pl.ds(off, L), :].astype(cdt)

    c1, x_center = _conv3x3(read_tap, w1_ref, lhs_ref, Cin, fused)
    # Shortcut 1x1 conv only feeds its BN statistics here; the (L,Cout) image is
    # NOT written back to HBM — phase C recomputes it from the x center tap.
    sc = jnp.dot(x_center, wsc_ref[...], preferred_element_type=jnp.float32)

    c1_ref[0] = c1.astype(c1_ref.dtype)          # inter-phase activation in cdt

    # BN partial stats over valid pixels, fused with the conv (no re-read pass),
    # packed into one (4, Cout) output block.
    maskb = jnp.broadcast_to(mask_ref[...], (L, Cout))   # hoisted broadcast
    c1m = c1 * maskb
    scm = sc * maskb
    stat_ref[0, 0:1, :] = jnp.sum(c1m, axis=0, keepdims=True)
    stat_ref[0, 1:2, :] = jnp.sum(c1m * c1, axis=0, keepdims=True)
    stat_ref[0, 2:3, :] = jnp.sum(scm, axis=0, keepdims=True)
    stat_ref[0, 3:4, :] = jnp.sum(scm * sc, axis=0, keepdims=True)


# ----------------------------------------------------------------------------
# phase B: BN1-apply + ReLU + conv2 + BN2 partial statistics
# ----------------------------------------------------------------------------
def _phase_b_kernel(H, W, Cout, fused, cdt,
                    c1_ref, mask_ref, scale1_ref, shift1_ref, w2_ref,
                    c2_ref, stat_ref,
                    mid_ref, *scratch):
    Wp = W + 2
    L = H * Wp
    Lmid = (H + 3) * Wp
    lhs_ref = scratch[0] if fused else None

    maskb = jnp.broadcast_to(mask_ref[...], (L, Cout))

    # BN1-apply + ReLU (f32 math) written onto the padded grid (compute dtype)
    # for conv2's shifted taps. Only the halo rows (~3*Wp rows) are zeroed; the
    # masked interior write doubles as the zero left/right halo columns.
    y = jnp.maximum(c1_ref[0].astype(jnp.float32) * scale1_ref[...]
                    + shift1_ref[...], 0.0) * maskb
    top = Wp + 1
    bot = Lmid - (top + L)
    mid_ref[pl.ds(0, top), :] = jnp.zeros((top, Cout), cdt)
    mid_ref[pl.ds(top + L, bot), :] = jnp.zeros((bot, Cout), cdt)
    mid_ref[pl.ds(top, L), :] = y.astype(cdt)

    def read_tap(k):
        off = (k // 3) * Wp + (k % 3)
        return mid_ref[pl.ds(off, L), :]

    c2, _ = _conv3x3(read_tap, w2_ref, lhs_ref, Cout, fused)
    c2_ref[0] = c2.astype(c2_ref.dtype)

    c2m = c2 * maskb
    stat_ref[0, 0:1, :] = jnp.sum(c2m, axis=0, keepdims=True)
    stat_ref[0, 1:2, :] = jnp.sum(c2m * c2, axis=0, keepdims=True)


# ----------------------------------------------------------------------------
# phase C: shortcut 1x1 recompute + BN2/BN_sc apply + residual add + ReLU + crop
# ----------------------------------------------------------------------------
def _phase_c_kernel(H, W,
                    c2_ref, x_ref, wsc_ref, scale2_ref, shift2_ref,
                    scalesc_ref, shiftsc_ref, out_ref):
    Wp = W + 2
    L = H * Wp

    # Recompute the shortcut projection from the x center tap (cheap: L x Cin GEMM)
    # instead of round-tripping an (L, Cout) image through HBM.
    x_center = x_ref[0, pl.ds(Wp + 1, L), :]
    sc = jnp.dot(x_center, wsc_ref[...], preferred_element_type=jnp.float32)

    y = (c2_ref[0].astype(jnp.float32) * scale2_ref[...] + shift2_ref[...]
         + sc * scalesc_ref[...] + shiftsc_ref[...])
    y = jnp.maximum(y, 0.0)

    # Fold the column crop into the kernel: store H row-slices of width W.
    for h in range(H):
        out_ref[0, h] = y[h * Wp:h * Wp + W, :].astype(out_ref.dtype)


# ----------------------------------------------------------------------------
# wrapper helpers
# ----------------------------------------------------------------------------
def _bn_affine(s, q, gamma, beta, cnt):
    mean = s / cnt
    var = jnp.maximum(q / cnt - mean * mean, 0.0)   # clamp: E[x^2]-E[x]^2 cancellation
    scale = gamma * jax.lax.rsqrt(var + EPS)
    shift = beta - mean * scale
    return scale, shift


def _chip_info():
    """(physical VMEM bytes, is_v5e) — generation-aware tuning with safe fallbacks."""
    kind = ""
    try:
        kind = jax.devices()[0].device_kind.lower()
    except Exception:
        pass
    vmem = None
    try:
        vmem = int(pltpu.get_tpu_info().vmem_capacity_bytes)
    except Exception:
        vmem = None
    if vmem is None:
        vmem = (64 << 20) if "v7" in kind else (128 << 20)
    is_v5e = ("v5 lite" in kind) or ("v5e" in kind) or ("v5lite" in kind)
    return vmem, is_v5e


def _cparams(block_bytes, const_bytes, temp_bytes, vmem_hi):
    # Double-buffered per-image blocks + resident weights/scratch + full-image
    # f32 compiler temporaries + slack; clamp to a generation-aware ceiling
    # (~100 MiB on 128-MiB chips, <=56 MiB on v7x's 64 MiB).
    est = 3 * block_bytes + const_bytes + temp_bytes + (8 << 20)
    return pltpu.CompilerParams(
        dimension_semantics=("parallel",),
        vmem_limit_bytes=int(min(max(est, 32 << 20), vmem_hi)))


# ----------------------------------------------------------------------------
# wrapper
# ----------------------------------------------------------------------------
def resblock_forward(x_nchw, params, *, compute_dtype=jnp.bfloat16):
    """ResBlock forward (stride=1, projection shortcut), NCHW in/out.

    compute_dtype controls the GEMM inputs AND the inter-phase activation
    storage (bf16 default — MXU-native on all generations and halves HBM
    traffic); accumulation, BN statistics and all BN elementwise math are f32.
    """
    N, Cin, H, W = x_nchw.shape
    Cout = params["w1"].shape[0]
    Wp = W + 2
    L = H * Wp
    Lmid = (H + 3) * Wp
    cnt = float(N * H * W)
    f32 = jnp.float32
    cdt = jnp.dtype(compute_dtype)
    bpe = cdt.itemsize

    vmem_cap, is_v5e = _chip_info()
    vmem_hi = (100 << 20) if vmem_cap >= (96 << 20) else (56 << 20)

    # --- glue: NCHW -> flattened, zero-padded channels-last layout (compute dtype) ---
    x = jnp.transpose(x_nchw, (0, 2, 3, 1))                    # NHWC
    x_pad = jnp.pad(x, ((0, 0), (1, 2), (1, 1), (0, 0)))       # (N, H+3, W+2, Cin)
    x_flat = x_pad.reshape(N, Lmid, Cin).astype(cdt)

    cols = jnp.arange(L, dtype=jnp.int32) % Wp
    mask = (cols < W).astype(f32).reshape(L, 1)                # valid-column mask

    # Fused K=9*C GEMM only when lane-aligned AND not on v5e (128-deep MXU:
    # per-tap GEMMs already fill it; staging burns v5e's single vst slot).
    fuse1 = (Cin % 128 == 0) and not is_v5e
    fuse2 = (Cout % 128 == 0) and not is_v5e
    w1 = jnp.transpose(params["w1"], (2, 3, 1, 0)).reshape(9, Cin, Cout).astype(cdt)
    w2 = jnp.transpose(params["w2"], (2, 3, 1, 0)).reshape(9, Cout, Cout).astype(cdt)
    wsc = jnp.transpose(params["wsc"][:, :, 0, 0], (1, 0)).astype(cdt)
    if fuse1:
        w1 = w1.reshape(9 * Cin, Cout)
    if fuse2:
        w2 = w2.reshape(9 * Cout, Cout)

    g1 = params["g1"].reshape(1, Cout); b1 = params["b1"].reshape(1, Cout)
    g2 = params["g2"].reshape(1, Cout); b2 = params["b2"].reshape(1, Cout)
    gsc = params["gsc"].reshape(1, Cout); bsc = params["bsc"].reshape(1, Cout)

    full = pl.BlockSpec(memory_space=pltpu.MemorySpace.VMEM)
    x_spec = pl.BlockSpec((1, Lmid, Cin), lambda n: (n, 0, 0))
    img_spec = pl.BlockSpec((1, L, Cout), lambda n: (n, 0, 0))
    img_shape = jax.ShapeDtypeStruct((N, L, Cout), cdt)        # inter-phase in cdt

    # ---- phase A: conv1 + shortcut BN stats + packed partial stats ----
    statA_spec = pl.BlockSpec((1, 4, Cout), lambda n: (n, 0, 0))
    statA_shape = jax.ShapeDtypeStruct((N, 4, Cout), f32)
    blk_a = bpe * Lmid * Cin + bpe * L * Cout + 4 * 4 * Cout
    cst_a = bpe * (9 * Cin * Cout + Cin * Cout) + 4 * L \
        + (bpe * L * 9 * Cin if fuse1 else 0)
    tmp_a = 5 * 4 * L * Cout                                   # c1, sc, maskb, products
    c1, statA = pl.pallas_call(
        functools.partial(_phase_a_kernel, H, W, Cin, Cout, fuse1, cdt),
        grid=(N,),
        in_specs=[x_spec, full, full, full],
        out_specs=(img_spec, statA_spec),
        out_shape=(img_shape, statA_shape),
        scratch_shapes=([pltpu.VMEM((L, 9 * Cin), cdt)] if fuse1 else []),
        compiler_params=_cparams(blk_a, cst_a, tmp_a, vmem_hi),
    )(x_flat, mask, w1, wsc)

    # Tiny O(Cout) BN parameter math (cross-image stat combine) as jnp glue.
    statA = jnp.sum(statA, axis=0)                             # (4, Cout)
    scale1, shift1 = _bn_affine(statA[0:1], statA[1:2], g1, b1, cnt)
    scalesc, shiftsc = _bn_affine(statA[2:3], statA[3:4], gsc, bsc, cnt)

    # ---- phase B: BN1-apply + ReLU + conv2 + packed partial BN2 stats ----
    statB_spec = pl.BlockSpec((1, 2, Cout), lambda n: (n, 0, 0))
    statB_shape = jax.ShapeDtypeStruct((N, 2, Cout), f32)
    blk_b = 2 * bpe * L * Cout + 4 * 2 * Cout
    cst_b = bpe * 9 * Cout * Cout + 4 * L + bpe * Lmid * Cout \
        + (bpe * L * 9 * Cout if fuse2 else 0)
    tmp_b = 4 * 4 * L * Cout                                   # y, c2, c2m, maskb
    scratch_b = [pltpu.VMEM((Lmid, Cout), cdt)]
    if fuse2:
        scratch_b.append(pltpu.VMEM((L, 9 * Cout), cdt))
    c2, statB = pl.pallas_call(
        functools.partial(_phase_b_kernel, H, W, Cout, fuse2, cdt),
        grid=(N,),
        in_specs=[img_spec, full, full, full, full],
        out_specs=(img_spec, statB_spec),
        out_shape=(img_shape, statB_shape),
        scratch_shapes=scratch_b,
        compiler_params=_cparams(blk_b, cst_b, tmp_b, vmem_hi),
    )(c1, mask, scale1, shift1, w2)

    statB = jnp.sum(statB, axis=0)
    scale2, shift2 = _bn_affine(statB[0:1], statB[1:2], g2, b2, cnt)

    # ---- phase C: shortcut recompute + BN-apply + residual add + ReLU + crop ----
    out_spec = pl.BlockSpec((1, H, W, Cout), lambda n: (n, 0, 0, 0))
    out_shape = jax.ShapeDtypeStruct((N, H, W, Cout), f32)
    blk_c = bpe * L * Cout + bpe * Lmid * Cin + 4 * H * W * Cout
    cst_c = bpe * Cin * Cout + 4 * 8 * Cout
    tmp_c = 3 * 4 * L * Cout                                   # sc, y, casts
    out_nhwc = pl.pallas_call(
        functools.partial(_phase_c_kernel, H, W),
        grid=(N,),
        in_specs=[img_spec, x_spec, full, full, full, full, full],
        out_specs=out_spec,
        out_shape=out_shape,
        compiler_params=_cparams(blk_c, cst_c, tmp_c, vmem_hi),
    )(c2, x_flat, wsc, scale2, shift2, scalesc, shiftsc)

    # --- glue: NHWC -> NCHW (crop already folded into phase C) ---
    return jnp.transpose(out_nhwc, (0, 3, 1, 2))


# ----------------------------------------------------------------------------
# parameters & pure-JAX reference
# ----------------------------------------------------------------------------
def init_params(key, inchannel, outchannel):
    ks = jax.random.split(key, 9)
    return {
        "w1": 0.2 * jax.random.normal(ks[0], (outchannel, inchannel, 3, 3), jnp.float32),
        "w2": 0.2 * jax.random.normal(ks[1], (outchannel, outchannel, 3, 3), jnp.float32),
        "wsc": 0.2 * jax.random.normal(ks[2], (outchannel, inchannel, 1, 1), jnp.float32),
        "g1": 0.5 + jax.random.uniform(ks[3], (outchannel,), jnp.float32),
        "b1": 0.1 * jax.random.normal(ks[4], (outchannel,), jnp.float32),
        "g2": 0.5 + jax.random.uniform(ks[5], (outchannel,), jnp.float32),
        "b2": 0.1 * jax.random.normal(ks[6], (outchannel,), jnp.float32),
        "gsc": 0.5 + jax.random.uniform(ks[7], (outchannel,), jnp.float32),
        "bsc": 0.1 * jax.random.normal(ks[8], (outchannel,), jnp.float32),
    }


def ref_forward(x, params):
    """Pure-JAX reference (training-mode BatchNorm), NCHW."""
    def conv(h, w, pad):
        return jax.lax.conv_general_dilated(
            h, w, (1, 1), ((pad, pad), (pad, pad)),
            dimension_numbers=("NCHW", "OIHW", "NCHW"))

    def bn(h, g, b):
        mean = jnp.mean(h, axis=(0, 2, 3), keepdims=True)
        var = jnp.mean((h - mean) ** 2, axis=(0, 2, 3), keepdims=True)
        return (h - mean) * jax.lax.rsqrt(var + EPS) * g.reshape(1, -1, 1, 1) \
            + b.reshape(1, -1, 1, 1)

    h = jax.nn.relu(bn(conv(x, params["w1"], 1), params["g1"], params["b1"]))
    h = bn(conv(h, params["w2"], 1), params["g2"], params["b2"])
    s = bn(conv(x, params["wsc"], 0), params["gsc"], params["bsc"])
    return jax.nn.relu(h + s)


if __name__ == "__main__":
    key = jax.random.PRNGKey(0)
    kx, kp = jax.random.split(key)

    N, Cin, Cout, H, W = 2, 4, 8, 16, 16   # stride=1, Cin != Cout -> projection shortcut
    x = jax.random.normal(kx, (N, Cin, H, W), jnp.float32)
    params = init_params(kp, Cin, Cout)

    ref = ref_forward(x, params)

    # Default path: bf16 MXU inputs + bf16 inter-phase activations, f32 BN math.
    out_bf16 = jax.block_until_ready(jax.jit(resblock_forward)(x, params))
    assert out_bf16.shape == (N, Cout, H, W), out_bf16.shape
    err_max = float(jnp.max(jnp.abs(out_bf16 - ref)))
    err_mean = float(jnp.mean(jnp.abs(out_bf16 - ref)))
    assert err_max < 0.5 and err_mean < 0.05, f"bf16 err max={err_max} mean={err_mean}"

    # f32 path: exact-precision check of the layout / BN / residual plumbing.
    out_f32 = jax.block_until_ready(
        jax.jit(functools.partial(resblock_forward, compute_dtype=jnp.float32))(x, params))
    err = float(jnp.max(jnp.abs(out_f32 - ref)))
    assert jnp.allclose(out_f32, ref, atol=1e-4, rtol=1e-4), f"f32 max abs err = {err}"

    print("KERNEL_OK")
</pallas_src>

<mosaic_0001>
module attributes {stable_mosaic.version = 11 : i64} {
  func.func @_phase_a_kernel(%arg0: i32, %arg1: memref<1x342x4xbf16, #tpu.memory_space<vmem>>, %arg2: memref<288x1xf32, #tpu.memory_space<vmem>>, %arg3: memref<9x4x8xbf16, #tpu.memory_space<vmem>>, %arg4: memref<4x8xbf16, #tpu.memory_space<vmem>>, %arg5: memref<1x288x8xbf16, #tpu.memory_space<vmem>>, %arg6: memref<1x4x8xf32, #tpu.memory_space<vmem>>) attributes {dimension_semantics = [#tpu.dimension_semantics<parallel>], iteration_bounds = array<i64: 2>, scalar_prefetch = 0 : i64, scratch_operands = 0 : i64, tpu.core_type = #tpu.core_type<tc>, window_params = [{transform_indices = @transform_0, window_bounds = array<i64: 1, 342, 4>}, {pipeline_mode = #tpu.pipeline_mode<synchronous>, transform_indices = @transform_1, window_bounds = array<i64: 288, 1>}, {pipeline_mode = #tpu.pipeline_mode<synchronous>, transform_indices = @transform_2, window_bounds = array<i64: 9, 4, 8>}, {pipeline_mode = #tpu.pipeline_mode<synchronous>, transform_indices = @transform_3, window_bounds = array<i64: 4, 8>}, {transform_indices = @transform_4, window_bounds = array<i64: 1, 288, 8>}, {transform_indices = @transform_5, window_bounds = array<i64: 1, 4, 8>}]} {
    %c0 = arith.constant 0 : index
    %c0_0 = arith.constant 0 : index
    %c0_1 = arith.constant 0 : index
    %0 = vector.load %arg1[%c0, %c0_0, %c0_1] : memref<1x342x4xbf16, #tpu.memory_space<vmem>>, vector<1x288x4xbf16>
    %1 = vector.shape_cast %0 : vector<1x288x4xbf16> to vector<288x4xbf16>
    %c0_2 = arith.constant 0 : index
    %c0_3 = arith.constant 0 : index
    %c0_4 = arith.constant 0 : index
    %2 = vector.load %arg3[%c0_2, %c0_3, %c0_4] : memref<9x4x8xbf16, #tpu.memory_space<vmem>>, vector<1x4x8xbf16>
    %3 = vector.shape_cast %2 : vector<1x4x8xbf16> to vector<4x8xbf16>
    %cst = arith.constant dense<0.000000e+00> : vector<288x8xf32>
    %4 = tpu.matmul %1, %3, %cst {dimension_numbers = #tpu.dot_dimension_numbers<[1], [0], [0], [1], [0, 0, 1, 1], [], []>} : vector<288x4xbf16>, vector<4x8xbf16>, vector<288x8xf32> -> vector<288x8xf32>
    %c0_5 = arith.constant 0 : index
    %c1 = arith.constant 1 : index
    %c0_6 = arith.constant 0 : index
    %5 = vector.load %arg1[%c0_5, %c1, %c0_6] : memref<1x342x4xbf16, #tpu.memory_space<vmem>>, vector<1x288x4xbf16>
    %6 = vector.shape_cast %5 : vector<1x288x4xbf16> to vector<288x4xbf16>
    %c1_7 = arith.constant 1 : index
    %c0_8 = arith.constant 0 : index
    %c0_9 = arith.constant 0 : index
    %7 = vector.load %arg3[%c1_7, %c0_8, %c0_9] : memref<9x4x8xbf16, #tpu.memory_space<vmem>>, vector<1x4x8xbf16>
    %8 = vector.shape_cast %7 : vector<1x4x8xbf16> to vector<4x8xbf16>
    %cst_10 = arith.constant dense<0.000000e+00> : vector<288x8xf32>
    %9 = tpu.matmul %6, %8, %cst_10 {dimension_numbers = #tpu.dot_dimension_numbers<[1], [0], [0], [1], [0, 0, 1, 1], [], []>} : vector<288x4xbf16>, vector<4x8xbf16>, vector<288x8xf32> -> vector<288x8xf32>
    %10 = arith.addf %4, %9 : vector<288x8xf32>
    %c0_11 = arith.constant 0 : index
    %c2 = arith.constant 2 : index
    %c0_12 = arith.constant 0 : index
    %11 = vector.load %arg1[%c0_11, %c2, %c0_12] : memref<1x342x4xbf16, #tpu.memory_space<vmem>>, vector<1x288x4xbf16>
    %12 = vector.shape_cast %11 : vector<1x288x4xbf16> to vector<288x4xbf16>
    %c2_13 = arith.constant 2 : index
    %c0_14 = arith.constant 0 : index
    %c0_15 = arith.constant 0 : index
    %13 = vector.load %arg3[%c2_13, %c0_14, %c0_15] : memref<9x4x8xbf16, #tpu.memory_space<vmem>>, vector<1x4x8xbf16>
    %14 = vector.shape_cast %13 : vector<1x4x8xbf16> to vector<4x8xbf16>
    %cst_16 = arith.constant dense<0.000000e+00> : vector<288x8xf32>
    %15 = tpu.matmul %12, %14, %cst_16 {dimension_numbers = #tpu.dot_dimension_numbers<[1], [0], [0], [1], [0, 0, 1, 1], [], []>} : vector<288x4xbf16>, vector<4x8xbf16>, vector<288x8xf32> -> vector<288x8xf32>
    %16 = arith.addf %10, %15 : vector<288x8xf32>
    %c0_17 = arith.constant 0 : index
    %c18 = arith.constant 18 : index
    %c0_18 = arith.constant 0 : index
    %17 = vector.load %arg1[%c0_17, %c18, %c0_18] : memref<1x342x4xbf16, #tpu.memory_space<vmem>>, vector<1x288x4xbf16>
    %18 = vector.shape_cast %17 : vector<1x288x4xbf16> to vector<288x4xbf16>
    %c3 = arith.constant 3 : index
    %c0_19 = arith.constant 0 : index
    %c0_20 = arith.constant 0 : index
    %19 = vector.load %arg3[%c3, %c0_19, %c0_20] : memref<9x4x8xbf16, #tpu.memory_space<vmem>>, vector<1x4x8xbf16>
    %20 = vector.shape_cast %19 : vector<1x4x8xbf16> to vector<4x8xbf16>
    %cst_21 = arith.constant dense<0.000000e+00> : vector<288x8xf32>
    %21 = tpu.matmul %18, %20, %cst_21 {dimension_numbers = #tpu.dot_dimension_numbers<[1], [0], [0], [1], [0, 0, 1, 1], [], []>} : vector<288x4xbf16>, vector<4x8xbf16>, vector<288x8xf32> -> vector<288x8xf32>
    %22 = arith.addf %16, %21 : vector<288x8xf32>
    %c0_22 = arith.constant 0 : index
    %c19 = arith.constant 19 : index
    %c0_23 = arith.constant 0 : index
    %23 = vector.load %arg1[%c0_22, %c19, %c0_23] : memref<1x342x4xbf16, #tpu.memory_space<vmem>>, vector<1x288x4xbf16>
    %24 = vector.shape_cast %23 : vector<1x288x4xbf16> to vector<288x4xbf16>
    %c4 = arith.constant 4 : index
    %c0_24 = arith.constant 0 : index
    %c0_25 = arith.constant 0 : index
    %25 = vector.load %arg3[%c4, %c0_24, %c0_25] : memref<9x4x8xbf16, #tpu.memory_space<vmem>>, vector<1x4x8xbf16>
    %26 = vector.shape_cast %25 : vector<1x4x8xbf16> to vector<4x8xbf16>
    %cst_26 = arith.constant dense<0.000000e+00> : vector<288x8xf32>
    %27 = tpu.matmul %24, %26, %cst_26 {dimension_numbers = #tpu.dot_dimension_numbers<[1], [0], [0], [1], [0, 0, 1, 1], [], []>} : vector<288x4xbf16>, vector<4x8xbf16>, vector<288x8xf32> -> vector<288x8xf32>
    %28 = arith.addf %22, %27 : vector<288x8xf32>
    %c0_27 = arith.constant 0 : index
    %c20 = arith.constant 20 : index
    %c0_28 = arith.constant 0 : index
    %29 = vector.load %arg1[%c0_27, %c20, %c0_28] : memref<1x342x4xbf16, #tpu.memory_space<vmem>>, vector<1x288x4xbf16>
    %30 = vector.shape_cast %29 : vector<1x288x4xbf16> to vector<288x4xbf16>
    %c5 = arith.constant 5 : index
    %c0_29 = arith.constant 0 : index
    %c0_30 = arith.constant 0 : index
    %31 = vector.load %arg3[%c5, %c0_29, %c0_30] : memref<9x4x8xbf16, #tpu.memory_space<vmem>>, vector<1x4x8xbf16>
    %32 = vector.shape_cast %31 : vector<1x4x8xbf16> to vector<4x8xbf16>
    %cst_31 = arith.constant dense<0.000000e+00> : vector<288x8xf32>
    %33 = tpu.matmul %30, %32, %cst_31 {dimension_numbers = #tpu.dot_dimension_numbers<[1], [0], [0], [1], [0, 0, 1, 1], [], []>} : vector<288x4xbf16>, vector<4x8xbf16>, vector<288x8xf32> -> vector<288x8xf32>
    %34 = arith.addf %28, %33 : vector<288x8xf32>
    %c0_32 = arith.constant 0 : index
    %c36 = arith.constant 36 : index
    %c0_33 = arith.constant 0 : index
    %35 = vector.load %arg1[%c0_32, %c36, %c0_33] : memref<1x342x4xbf16, #tpu.memory_space<vmem>>, vector<1x288x4xbf16>
    %36 = vector.shape_cast %35 : vector<1x288x4xbf16> to vector<288x4xbf16>
    %c6 = arith.constant 6 : index
    %c0_34 = arith.constant 0 : index
    %c0_35 = arith.constant 0 : index
    %37 = vector.load %arg3[%c6, %c0_34, %c0_35] : memref<9x4x8xbf16, #tpu.memory_space<vmem>>, vector<1x4x8xbf16>
    %38 = vector.shape_cast %37 : vector<1x4x8xbf16> to vector<4x8xbf16>
    %cst_36 = arith.constant dense<0.000000e+00> : vector<288x8xf32>
    %39 = tpu.matmul %36, %38, %cst_36 {dimension_numbers = #tpu.dot_dimension_numbers<[1], [0], [0], [1], [0, 0, 1, 1], [], []>} : vector<288x4xbf16>, vector<4x8xbf16>, vector<288x8xf32> -> vector<288x8xf32>
    %40 = arith.addf %34, %39 : vector<288x8xf32>
    %c0_37 = arith.constant 0 : index
    %c37 = arith.constant 37 : index
    %c0_38 = arith.constant 0 : index
    %41 = vector.load %arg1[%c0_37, %c37, %c0_38] : memref<1x342x4xbf16, #tpu.memory_space<vmem>>, vector<1x288x4xbf16>
    %42 = vector.shape_cast %41 : vector<1x288x4xbf16> to vector<288x4xbf16>
    %c7 = arith.constant 7 : index
    %c0_39 = arith.constant 0 : index
    %c0_40 = arith.constant 0 : index
    %43 = vector.load %arg3[%c7, %c0_39, %c0_40] : memref<9x4x8xbf16, #tpu.memory_space<vmem>>, vector<1x4x8xbf16>
    %44 = vector.shape_cast %43 : vector<1x4x8xbf16> to vector<4x8xbf16>
    %cst_41 = arith.constant dense<0.000000e+00> : vector<288x8xf32>
    %45 = tpu.matmul %42, %44, %cst_41 {dimension_numbers = #tpu.dot_dimension_numbers<[1], [0], [0], [1], [0, 0, 1, 1], [], []>} : vector<288x4xbf16>, vector<4x8xbf16>, vector<288x8xf32> -> vector<288x8xf32>
    %46 = arith.addf %40, %45 : vector<288x8xf32>
    %c0_42 = arith.constant 0 : index
    %c38 = arith.constant 38 : index
    %c0_43 = arith.constant 0 : index
    %47 = vector.load %arg1[%c0_42, %c38, %c0_43] : memref<1x342x4xbf16, #tpu.memory_space<vmem>>, vector<1x288x4xbf16>
    %48 = vector.shape_cast %47 : vector<1x288x4xbf16> to vector<288x4xbf16>
    %c8 = arith.constant 8 : index
    %c0_44 = arith.constant 0 : index
    %c0_45 = arith.constant 0 : index
    %49 = vector.load %arg3[%c8, %c0_44, %c0_45] : memref<9x4x8xbf16, #tpu.memory_space<vmem>>, vector<1x4x8xbf16>
    %50 = vector.shape_cast %49 : vector<1x4x8xbf16> to vector<4x8xbf16>
    %cst_46 = arith.constant dense<0.000000e+00> : vector<288x8xf32>
    %51 = tpu.matmul %48, %50, %cst_46 {dimension_numbers = #tpu.dot_dimension_numbers<[1], [0], [0], [1], [0, 0, 1, 1], [], []>} : vector<288x4xbf16>, vector<4x8xbf16>, vector<288x8xf32> -> vector<288x8xf32>
    %52 = arith.addf %46, %51 : vector<288x8xf32>
    %c0_47 = arith.constant 0 : index
    %c0_48 = arith.constant 0 : index
    %53 = vector.load %arg4[%c0_47, %c0_48] : memref<4x8xbf16, #tpu.memory_space<vmem>>, vector<4x8xbf16>
    %cst_49 = arith.constant dense<0.000000e+00> : vector<288x8xf32>
    %54 = tpu.matmul %24, %53, %cst_49 {dimension_numbers = #tpu.dot_dimension_numbers<[1], [0], [0], [1], [0, 0, 1, 1], [], []>} : vector<288x4xbf16>, vector<4x8xbf16>, vector<288x8xf32> -> vector<288x8xf32>
    %55 = arith.truncf %52 : vector<288x8xf32> to vector<288x8xbf16>
    %c0_50 = arith.constant 0 : index
    %c0_51 = arith.constant 0 : index
    %c0_52 = arith.constant 0 : index
    %56 = vector.load %arg5[%c0_50, %c0_51, %c0_52] : memref<1x288x8xbf16, #tpu.memory_space<vmem>>, vector<1x288x8xbf16>
    %57 = vector.shape_cast %56 : vector<1x288x8xbf16> to vector<288x8xbf16>
    %58 = vector.shape_cast %55 : vector<288x8xbf16> to vector<1x288x8xbf16>
    tpu.vector_store %arg5[%c0_50, %c0_51, %c0_52], %58 {strides = array<i32>} : memref<1x288x8xbf16, #tpu.memory_space<vmem>>, vector<1x288x8xbf16>,
    %c0_53 = arith.constant 0 : index
    %c0_54 = arith.constant 0 : index
    %59 = vector.load %arg2[%c0_53, %c0_54] : memref<288x1xf32, #tpu.memory_space<vmem>>, vector<288x1xf32>
    %60 = vector.shape_cast %59 : vector<288x1xf32> to vector<288x1xf32>
    %61 = vector.broadcast %60 : vector<288x1xf32> to vector<288x8xf32>
    %62 = arith.mulf %52, %61 : vector<288x8xf32>
    %63 = arith.mulf %54, %61 : vector<288x8xf32>
    %cst_55 = arith.constant dense<0.000000e+00> : vector<8xf32>
    %64 = vector.multi_reduction <add>, %62, %cst_55 [0] : vector<288x8xf32> to vector<8xf32>
    %65 = vector.shape_cast %64 : vector<8xf32> to vector<1x8xf32>
    %c0_56 = arith.constant 0 : index
    %c0_57 = arith.constant 0 : index
    %c0_58 = arith.constant 0 : index
    %66 = vector.load %arg6[%c0_56, %c0_57, %c0_58] : memref<1x4x8xf32, #tpu.memory_space<vmem>>, vector<1x1x8xf32>
    %67 = vector.shape_cast %66 : vector<1x1x8xf32> to vector<1x8xf32>
    %68 = vector.shape_cast %65 : vector<1x8xf32> to vector<1x1x8xf32>
    tpu.vector_store %arg6[%c0_56, %c0_57, %c0_58], %68 {strides = array<i32>} : memref<1x4x8xf32, #tpu.memory_space<vmem>>, vector<1x1x8xf32>,
    %69 = arith.mulf %62, %52 : vector<288x8xf32>
    %cst_59 = arith.constant dense<0.000000e+00> : vector<8xf32>
    %70 = vector.multi_reduction <add>, %69, %cst_59 [0] : vector<288x8xf32> to vector<8xf32>
    %71 = vector.shape_cast %70 : vector<8xf32> to vector<1x8xf32>
    %c0_60 = arith.constant 0 : index
    %c1_61 = arith.constant 1 : index
    %c0_62 = arith.constant 0 : index
    %72 = vector.load %arg6[%c0_60, %c1_61, %c0_62] : memref<1x4x8xf32, #tpu.memory_space<vmem>>, vector<1x1x8xf32>
    %73 = vector.shape_cast %72 : vector<1x1x8xf32> to vector<1x8xf32>
    %74 = vector.shape_cast %71 : vector<1x8xf32> to vector<1x1x8xf32>
    tpu.vector_store %arg6[%c0_60, %c1_61, %c0_62], %74 {strides = array<i32>} : memref<1x4x8xf32, #tpu.memory_space<vmem>>, vector<1x1x8xf32>,
    %cst_63 = arith.constant dense<0.000000e+00> : vector<8xf32>
    %75 = vector.multi_reduction <add>, %63, %cst_63 [0] : vector<288x8xf32> to vector<8xf32>
    %76 = vector.shape_cast %75 : vector<8xf32> to vector<1x8xf32>
    %c0_64 = arith.constant 0 : index
    %c2_65 = arith.constant 2 : index
    %c0_66 = arith.constant 0 : index
    %77 = vector.load %arg6[%c0_64, %c2_65, %c0_66] : memref<1x4x8xf32, #tpu.memory_space<vmem>>, vector<1x1x8xf32>
    %78 = vector.shape_cast %77 : vector<1x1x8xf32> to vector<1x8xf32>
    %79 = vector.shape_cast %76 : vector<1x8xf32> to vector<1x1x8xf32>
    tpu.vector_store %arg6[%c0_64, %c2_65, %c0_66], %79 {strides = array<i32>} : memref<1x4x8xf32, #tpu.memory_space<vmem>>, vector<1x1x8xf32>,
    %80 = arith.mulf %63, %54 : vector<288x8xf32>
    %cst_67 = arith.constant dense<0.000000e+00> : vector<8xf32>
    %81 = vector.multi_reduction <add>, %80, %cst_67 [0] : vector<288x8xf32> to vector<8xf32>
    %82 = vector.shape_cast %81 : vector<8xf32> to vector<1x8xf32>
    %c0_68 = arith.constant 0 : index
    %c3_69 = arith.constant 3 : index
    %c0_70 = arith.constant 0 : index
    %83 = vector.load %arg6[%c0_68, %c3_69, %c0_70] : memref<1x4x8xf32, #tpu.memory_space<vmem>>, vector<1x1x8xf32>
    %84 = vector.shape_cast %83 : vector<1x1x8xf32> to vector<1x8xf32>
    %85 = vector.shape_cast %82 : vector<1x8xf32> to vector<1x1x8xf32>
    tpu.vector_store %arg6[%c0_68, %c3_69, %c0_70], %85 {strides = array<i32>} : memref<1x4x8xf32, #tpu.memory_space<vmem>>, vector<1x1x8xf32>,
    return
  }
  func.func @transform_0(%arg0: i32) -> (i32, i32, i32) {
    %c0_i32 = arith.constant 0 : i32
    %c0_i32_0 = arith.constant 0 : i32
    %c0_i32_1 = arith.constant 0 : i32
    return %arg0, %c0_i32, %c0_i32_0 : i32, i32, i32
  }
  func.func @transform_1(%arg0: i32) -> (i32, i32) {
    %c0_i32 = arith.constant 0 : i32
    %c0_i32_0 = arith.constant 0 : i32
    %c0_i32_1 = arith.constant 0 : i32
    return %c0_i32, %c0_i32_0 : i32, i32
  }
  func.func @transform_2(%arg0: i32) -> (i32, i32, i32) {
    %c0_i32 = arith.constant 0 : i32
    %c0_i32_0 = arith.constant 0 : i32
    %c0_i32_1 = arith.constant 0 : i32
    %c0_i32_2 = arith.constant 0 : i32
    return %c0_i32, %c0_i32_0, %c0_i32_1 : i32, i32, i32
  }
  func.func @transform_3(%arg0: i32) -> (i32, i32) {
    %c0_i32 = arith.constant 0 : i32
    %c0_i32_0 = arith.constant 0 : i32
    %c0_i32_1 = arith.constant 0 : i32
    return %c0_i32, %c0_i32_0 : i32, i32
  }
  func.func @transform_4(%arg0: i32) -> (i32, i32, i32) {
    %c0_i32 = arith.constant 0 : i32
    %c0_i32_0 = arith.constant 0 : i32
    %c0_i32_1 = arith.constant 0 : i32
    return %arg0, %c0_i32, %c0_i32_0 : i32, i32, i32
  }
  func.func @transform_5(%arg0: i32) -> (i32, i32, i32) {
    %c0_i32 = arith.constant 0 : i32
    %c0_i32_0 = arith.constant 0 : i32
    %c0_i32_1 = arith.constant 0 : i32
    return %arg0, %c0_i32, %c0_i32_0 : i32, i32, i32
  }
}

module attributes {stable_mosaic.version = 11 : i64} {
  func.func @_phase_b_kernel(%arg0: i32, %arg1: memref<1x288x8xbf16, #tpu.memory_space<vmem>>, %arg2: memref<288x1xf32, #tpu.memory_space<vmem>>, %arg3: memref<1x8xf32, #tpu.memory_space<vmem>>, %arg4: memref<1x8xf32, #tpu.memory_space<vmem>>, %arg5: memref<9x8x8xbf16, #tpu.memory_space<vmem>>, %arg6: memref<1x288x8xbf16, #tpu.memory_space<vmem>>, %arg7: memref<1x2x8xf32, #tpu.memory_space<vmem>>, %arg8: memref<342x8xbf16, #tpu.memory_space<vmem>>) attributes {dimension_semantics = [#tpu.dimension_semantics<parallel>], iteration_bounds = array<i64: 2>, scalar_prefetch = 0 : i64, scratch_operands = 1 : i64, tpu.core_type = #tpu.core_type<tc>, window_params = [{transform_indices = @transform_0, window_bounds = array<i64: 1, 288, 8>}, {pipeline_mode = #tpu.pipeline_mode<synchronous>, transform_indices = @transform_1, window_bounds = array<i64: 288, 1>}, {pipeline_mode = #tpu.pipeline_mode<synchronous>, transform_indices = @transform_2, window_bounds = array<i64: 1, 8>}, {pipeline_mode = #tpu.pipeline_mode<synchronous>, transform_indices = @transform_3, window_bounds = array<i64: 1, 8>}, {pipeline_mode = #tpu.pipeline_mode<synchronous>, transform_indices = @transform_4, window_bounds = array<i64: 9, 8, 8>}, {transform_indices = @transform_5, window_bounds = array<i64: 1, 288, 8>}, {transform_indices = @transform_6, window_bounds = array<i64: 1, 2, 8>}]} {
    %c0 = arith.constant 0 : index
    %c0_0 = arith.constant 0 : index
    %0 = vector.load %arg2[%c0, %c0_0] : memref<288x1xf32, #tpu.memory_space<vmem>>, vector<288x1xf32>
    %1 = vector.shape_cast %0 : vector<288x1xf32> to vector<288x1xf32>
    %2 = vector.broadcast %1 : vector<288x1xf32> to vector<288x8xf32>
    %c0_1 = arith.constant 0 : index
    %c0_2 = arith.constant 0 : index
    %c0_3 = arith.constant 0 : index
    %3 = vector.load %arg1[%c0_1, %c0_2, %c0_3] : memref<1x288x8xbf16, #tpu.memory_space<vmem>>, vector<1x288x8xbf16>
    %4 = vector.shape_cast %3 : vector<1x288x8xbf16> to vector<288x8xbf16>
    %5 = arith.extf %4 : vector<288x8xbf16> to vector<288x8xf32>
    %c0_4 = arith.constant 0 : index
    %c0_5 = arith.constant 0 : index
    %6 = vector.load %arg3[%c0_4, %c0_5] : memref<1x8xf32, #tpu.memory_space<vmem>>, vector<1x8xf32>
    %7 = vector.broadcast %6 : vector<1x8xf32> to vector<288x8xf32>
    %8 = arith.mulf %5, %7 : vector<288x8xf32>
    %c0_6 = arith.constant 0 : index
    %c0_7 = arith.constant 0 : index
    %9 = vector.load %arg4[%c0_6, %c0_7] : memref<1x8xf32, #tpu.memory_space<vmem>>, vector<1x8xf32>
    %10 = vector.broadcast %9 : vector<1x8xf32> to vector<288x8xf32>
    %11 = arith.addf %8, %10 : vector<288x8xf32>
    %cst = arith.constant 0.000000e+00 : f32
    %12 = vector.broadcast %cst : f32 to vector<288x8xf32>
    %13 = arith.maximumf %11, %12 : vector<288x8xf32>
    %14 = arith.mulf %13, %2 : vector<288x8xf32>
    %cst_8 = arith.constant 0.000000e+00 : bf16
    %15 = vector.broadcast %cst_8 : bf16 to vector<19x8xbf16>
    %c0_9 = arith.constant 0 : index
    %c0_10 = arith.constant 0 : index
    %16 = vector.load %arg8[%c0_9, %c0_10] : memref<342x8xbf16, #tpu.memory_space<vmem>>, vector<19x8xbf16>
    tpu.vector_store %arg8[%c0_9, %c0_10], %15 {strides = array<i32>} : memref<342x8xbf16, #tpu.memory_space<vmem>>, vector<19x8xbf16>,
    %cst_11 = arith.constant 0.000000e+00 : bf16
    %17 = vector.broadcast %cst_11 : bf16 to vector<35x8xbf16>
    %c307 = arith.constant 307 : index
    %c0_12 = arith.constant 0 : index
    %18 = vector.load %arg8[%c307, %c0_12] : memref<342x8xbf16, #tpu.memory_space<vmem>>, vector<35x8xbf16>
    tpu.vector_store %arg8[%c307, %c0_12], %17 {strides = array<i32>} : memref<342x8xbf16, #tpu.memory_space<vmem>>, vector<35x8xbf16>,
    %19 = arith.truncf %14 : vector<288x8xf32> to vector<288x8xbf16>
    %c19 = arith.constant 19 : index
    %c0_13 = arith.constant 0 : index
    %20 = vector.load %arg8[%c19, %c0_13] : memref<342x8xbf16, #tpu.memory_space<vmem>>, vector<288x8xbf16>
    tpu.vector_store %arg8[%c19, %c0_13], %19 {strides = array<i32>} : memref<342x8xbf16, #tpu.memory_space<vmem>>, vector<288x8xbf16>,
    %c0_14 = arith.constant 0 : index
    %c0_15 = arith.constant 0 : index
    %21 = vector.load %arg8[%c0_14, %c0_15] : memref<342x8xbf16, #tpu.memory_space<vmem>>, vector<288x8xbf16>
    %c0_16 = arith.constant 0 : index
    %c0_17 = arith.constant 0 : index
    %c0_18 = arith.constant 0 : index
    %22 = vector.load %arg5[%c0_16, %c0_17, %c0_18] : memref<9x8x8xbf16, #tpu.memory_space<vmem>>, vector<1x8x8xbf16>
    %23 = vector.shape_cast %22 : vector<1x8x8xbf16> to vector<8x8xbf16>
    %cst_19 = arith.constant dense<0.000000e+00> : vector<288x8xf32>
    %24 = tpu.matmul %21, %23, %cst_19 {dimension_numbers = #tpu.dot_dimension_numbers<[1], [0], [0], [1], [0, 0, 1, 1], [], []>} : vector<288x8xbf16>, vector<8x8xbf16>, vector<288x8xf32> -> vector<288x8xf32>
    %c1 = arith.constant 1 : index
    %c0_20 = arith.constant 0 : index
    %25 = vector.load %arg8[%c1, %c0_20] : memref<342x8xbf16, #tpu.memory_space<vmem>>, vector<288x8xbf16>
    %c1_21 = arith.constant 1 : index
    %c0_22 = arith.constant 0 : index
    %c0_23 = arith.constant 0 : index
    %26 = vector.load %arg5[%c1_21, %c0_22, %c0_23] : memref<9x8x8xbf16, #tpu.memory_space<vmem>>, vector<1x8x8xbf16>
    %27 = vector.shape_cast %26 : vector<1x8x8xbf16> to vector<8x8xbf16>
    %cst_24 = arith.constant dense<0.000000e+00> : vector<288x8xf32>
    %28 = tpu.matmul %25, %27, %cst_24 {dimension_numbers = #tpu.dot_dimension_numbers<[1], [0], [0], [1], [0, 0, 1, 1], [], []>} : vector<288x8xbf16>, vector<8x8xbf16>, vector<288x8xf32> -> vector<288x8xf32>
    %29 = arith.addf %24, %28 : vector<288x8xf32>
    %c2 = arith.constant 2 : index
    %c0_25 = arith.constant 0 : index
    %30 = vector.load %arg8[%c2, %c0_25] : memref<342x8xbf16, #tpu.memory_space<vmem>>, vector<288x8xbf16>
    %c2_26 = arith.constant 2 : index
    %c0_27 = arith.constant 0 : index
    %c0_28 = arith.constant 0 : index
    %31 = vector.load %arg5[%c2_26, %c0_27, %c0_28] : memref<9x8x8xbf16, #tpu.memory_space<vmem>>, vector<1x8x8xbf16>
    %32 = vector.shape_cast %31 : vector<1x8x8xbf16> to vector<8x8xbf16>
    %cst_29 = arith.constant dense<0.000000e+00> : vector<288x8xf32>
    %33 = tpu.matmul %30, %32, %cst_29 {dimension_numbers = #tpu.dot_dimension_numbers<[1], [0], [0], [1], [0, 0, 1, 1], [], []>} : vector<288x8xbf16>, vector<8x8xbf16>, vector<288x8xf32> -> vector<288x8xf32>
    %34 = arith.addf %29, %33 : vector<288x8xf32>
    %c18 = arith.constant 18 : index
    %c0_30 = arith.constant 0 : index
    %35 = vector.load %arg8[%c18, %c0_30] : memref<342x8xbf16, #tpu.memory_space<vmem>>, vector<288x8xbf16>
    %c3 = arith.constant 3 : index
    %c0_31 = arith.constant 0 : index
    %c0_32 = arith.constant 0 : index
    %36 = vector.load %arg5[%c3, %c0_31, %c0_32] : memref<9x8x8xbf16, #tpu.memory_space<vmem>>, vector<1x8x8xbf16>
    %37 = vector.shape_cast %36 : vector<1x8x8xbf16> to vector<8x8xbf16>
    %cst_33 = arith.constant dense<0.000000e+00> : vector<288x8xf32>
    %38 = tpu.matmul %35, %37, %cst_33 {dimension_numbers = #tpu.dot_dimension_numbers<[1], [0], [0], [1], [0, 0, 1, 1], [], []>} : vector<288x8xbf16>, vector<8x8xbf16>, vector<288x8xf32> -> vector<288x8xf32>
    %39 = arith.addf %34, %38 : vector<288x8xf32>
    %c19_34 = arith.constant 19 : index
    %c0_35 = arith.constant 0 : index
    %40 = vector.load %arg8[%c19_34, %c0_35] : memref<342x8xbf16, #tpu.memory_space<vmem>>, vector<288x8xbf16>
    %c4 = arith.constant 4 : index
    %c0_36 = arith.constant 0 : index
    %c0_37 = arith.constant 0 : index
    %41 = vector.load %arg5[%c4, %c0_36, %c0_37] : memref<9x8x8xbf16, #tpu.memory_space<vmem>>, vector<1x8x8xbf16>
    %42 = vector.shape_cast %41 : vector<1x8x8xbf16> to vector<8x8xbf16>
    %cst_38 = arith.constant dense<0.000000e+00> : vector<288x8xf32>
    %43 = tpu.matmul %40, %42, %cst_38 {dimension_numbers = #tpu.dot_dimension_numbers<[1], [0], [0], [1], [0, 0, 1, 1], [], []>} : vector<288x8xbf16>, vector<8x8xbf16>, vector<288x8xf32> -> vector<288x8xf32>
    %44 = arith.addf %39, %43 : vector<288x8xf32>
    %c20 = arith.constant 20 : index
    %c0_39 = arith.constant 0 : index
    %45 = vector.load %arg8[%c20, %c0_39] : memref<342x8xbf16, #tpu.memory_space<vmem>>, vector<288x8xbf16>
    %c5 = arith.constant 5 : index
    %c0_40 = arith.constant 0 : index
    %c0_41 = arith.constant 0 : index
    %46 = vector.load %arg5[%c5, %c0_40, %c0_41] : memref<9x8x8xbf16, #tpu.memory_space<vmem>>, vector<1x8x8xbf16>
    %47 = vector.shape_cast %46 : vector<1x8x8xbf16> to vector<8x8xbf16>
    %cst_42 = arith.constant dense<0.000000e+00> : vector<288x8xf32>
    %48 = tpu.matmul %45, %47, %cst_42 {dimension_numbers = #tpu.dot_dimension_numbers<[1], [0], [0], [1], [0, 0, 1, 1], [], []>} : vector<288x8xbf16>, vector<8x8xbf16>, vector<288x8xf32> -> vector<288x8xf32>
    %49 = arith.addf %44, %48 : vector<288x8xf32>
    %c36 = arith.constant 36 : index
    %c0_43 = arith.constant 0 : index
    %50 = vector.load %arg8[%c36, %c0_43] : memref<342x8xbf16, #tpu.memory_space<vmem>>, vector<288x8xbf16>
    %c6 = arith.constant 6 : index
    %c0_44 = arith.constant 0 : index
    %c0_45 = arith.constant 0 : index
    %51 = vector.load %arg5[%c6, %c0_44, %c0_45] : memref<9x8x8xbf16, #tpu.memory_space<vmem>>, vector<1x8x8xbf16>
    %52 = vector.shape_cast %51 : vector<1x8x8xbf16> to vector<8x8xbf16>
    %cst_46 = arith.constant dense<0.000000e+00> : vector<288x8xf32>
    %53 = tpu.matmul %50, %52, %cst_46 {dimension_numbers = #tpu.dot_dimension_numbers<[1], [0], [0], [1], [0, 0, 1, 1], [], []>} : vector<288x8xbf16>, vector<8x8xbf16>, vector<288x8xf32> -> vector<288x8xf32>
    %54 = arith.addf %49, %53 : vector<288x8xf32>
    %c37 = arith.constant 37 : index
    %c0_47 = arith.constant 0 : index
    %55 = vector.load %arg8[%c37, %c0_47] : memref<342x8xbf16, #tpu.memory_space<vmem>>, vector<288x8xbf16>
    %c7 = arith.constant 7 : index
    %c0_48 = arith.constant 0 : index
    %c0_49 = arith.constant 0 : index
    %56 = vector.load %arg5[%c7, %c0_48, %c0_49] : memref<9x8x8xbf16, #tpu.memory_space<vmem>>, vector<1x8x8xbf16>
    %57 = vector.shape_cast %56 : vector<1x8x8xbf16> to vector<8x8xbf16>
    %cst_50 = arith.constant dense<0.000000e+00> : vector<288x8xf32>
    %58 = tpu.matmul %55, %57, %cst_50 {dimension_numbers = #tpu.dot_dimension_numbers<[1], [0], [0], [1], [0, 0, 1, 1], [], []>} : vector<288x8xbf16>, vector<8x8xbf16>, vector<288x8xf32> -> vector<288x8xf32>
    %59 = arith.addf %54, %58 : vector<288x8xf32>
    %c38 = arith.constant 38 : index
    %c0_51 = arith.constant 0 : index
    %60 = vector.load %arg8[%c38, %c0_51] : memref<342x8xbf16, #tpu.memory_space<vmem>>, vector<288x8xbf16>
    %c8 = arith.constant 8 : index
    %c0_52 = arith.constant 0 : index
    %c0_53 = arith.constant 0 : index
    %61 = vector.load %arg5[%c8, %c0_52, %c0_53] : memref<9x8x8xbf16, #tpu.memory_space<vmem>>, vector<1x8x8xbf16>
    %62 = vector.shape_cast %61 : vector<1x8x8xbf16> to vector<8x8xbf16>
    %cst_54 = arith.constant dense<0.000000e+00> : vector<288x8xf32>
    %63 = tpu.matmul %60, %62, %cst_54 {dimension_numbers = #tpu.dot_dimension_numbers<[1], [0], [0], [1], [0, 0, 1, 1], [], []>} : vector<288x8xbf16>, vector<8x8xbf16>, vector<288x8xf32> -> vector<288x8xf32>
    %64 = arith.addf %59, %63 : vector<288x8xf32>
    %65 = arith.truncf %64 : vector<288x8xf32> to vector<288x8xbf16>
    %c0_55 = arith.constant 0 : index
    %c0_56 = arith.constant 0 : index
    %c0_57 = arith.constant 0 : index
    %66 = vector.load %arg6[%c0_55, %c0_56, %c0_57] : memref<1x288x8xbf16, #tpu.memory_space<vmem>>, vector<1x288x8xbf16>
    %67 = vector.shape_cast %66 : vector<1x288x8xbf16> to vector<288x8xbf16>
    %68 = vector.shape_cast %65 : vector<288x8xbf16> to vector<1x288x8xbf16>
    tpu.vector_store %arg6[%c0_55, %c0_56, %c0_57], %68 {strides = array<i32>} : memref<1x288x8xbf16, #tpu.memory_space<vmem>>, vector<1x288x8xbf16>,
    %69 = arith.mulf %64, %2 : vector<288x8xf32>
    %cst_58 = arith.constant dense<0.000000e+00> : vector<8xf32>
    %70 = vector.multi_reduction <add>, %69, %cst_58 [0] : vector<288x8xf32> to vector<8xf32>
    %71 = vector.shape_cast %70 : vector<8xf32> to vector<1x8xf32>
    %c0_59 = arith.constant 0 : index
    %c0_60 = arith.constant 0 : index
    %c0_61 = arith.constant 0 : index
    %72 = vector.load %arg7[%c0_59, %c0_60, %c0_61] : memref<1x2x8xf32, #tpu.memory_space<vmem>>, vector<1x1x8xf32>
    %73 = vector.shape_cast %72 : vector<1x1x8xf32> to vector<1x8xf32>
    %74 = vector.shape_cast %71 : vector<1x8xf32> to vector<1x1x8xf32>
    tpu.vector_store %arg7[%c0_59, %c0_60, %c0_61], %74 {strides = array<i32>} : memref<1x2x8xf32, #tpu.memory_space<vmem>>, vector<1x1x8xf32>,
    %75 = arith.mulf %69, %64 : vector<288x8xf32>
    %cst_62 = arith.constant dense<0.000000e+00> : vector<8xf32>
    %76 = vector.multi_reduction <add>, %75, %cst_62 [0] : vector<288x8xf32> to vector<8xf32>
    %77 = vector.shape_cast %76 : vector<8xf32> to vector<1x8xf32>
    %c0_63 = arith.constant 0 : index
    %c1_64 = arith.constant 1 : index
    %c0_65 = arith.constant 0 : index
    %78 = vector.load %arg7[%c0_63, %c1_64, %c0_65] : memref<1x2x8xf32, #tpu.memory_space<vmem>>, vector<1x1x8xf32>
    %79 = vector.shape_cast %78 : vector<1x1x8xf32> to vector<1x8xf32>
    %80 = vector.shape_cast %77 : vector<1x8xf32> to vector<1x1x8xf32>
    tpu.vector_store %arg7[%c0_63, %c1_64, %c0_65], %80 {strides = array<i32>} : memref<1x2x8xf32, #tpu.memory_space<vmem>>, vector<1x1x8xf32>,
    return
  }
  func.func @transform_0(%arg0: i32) -> (i32, i32, i32) {
    %c0_i32 = arith.constant 0 : i32
    %c0_i32_0 = arith.constant 0 : i32
    %c0_i32_1 = arith.constant 0 : i32
    return %arg0, %c0_i32, %c0_i32_0 : i32, i32, i32
  }
  func.func @transform_1(%arg0: i32) -> (i32, i32) {
    %c0_i32 = arith.constant 0 : i32
    %c0_i32_0 = arith.constant 0 : i32
    %c0_i32_1 = arith.constant 0 : i32
    return %c0_i32, %c0_i32_0 : i32, i32
  }
  func.func @transform_2(%arg0: i32) -> (i32, i32) {
    %c0_i32 = arith.constant 0 : i32
    %c0_i32_0 = arith.constant 0 : i32
    %c0_i32_1 = arith.constant 0 : i32
    return %c0_i32, %c0_i32_0 : i32, i32
  }
  func.func @transform_3(%arg0: i32) -> (i32, i32) {
    %c0_i32 = arith.constant 0 : i32
    %c0_i32_0 = arith.constant 0 : i32
    %c0_i32_1 = arith.constant 0 : i32
    return %c0_i32, %c0_i32_0 : i32, i32
  }
  func.func @transform_4(%arg0: i32) -> (i32, i32, i32) {
    %c0_i32 = arith.constant 0 : i32
    %c0_i32_0 = arith.constant 0 : i32
    %c0_i32_1 = arith.constant 0 : i32
    %c0_i32_2 = arith.constant 0 : i32
    return %c0_i32, %c0_i32_0, %c0_i32_1 : i32, i32, i32
  }
  func.func @transform_5(%arg0: i32) -> (i32, i32, i32) {
    %c0_i32 = arith.constant 0 : i32
    %c0_i32_0 = arith.constant 0 : i32
    %c0_i32_1 = arith.constant 0 : i32
    return %arg0, %c0_i32, %c0_i32_0 : i32, i32, i32
  }
  func.func @transform_6(%arg0: i32) -> (i32, i32, i32) {
    %c0_i32 = arith.constant 0 : i32
    %c0_i32_0 = arith.constant 0 : i32
    %c0_i32_1 = arith.constant 0 : i32
    return %arg0, %c0_i32, %c0_i32_0 : i32, i32, i32
  }
}

module attributes {stable_mosaic.version = 11 : i64} {
  func.func @_phase_c_kernel(%arg0: i32, %arg1: memref<1x288x8xbf16, #tpu.memory_space<vmem>>, %arg2: memref<1x342x4xbf16, #tpu.memory_space<vmem>>, %arg3: memref<4x8xbf16, #tpu.memory_space<vmem>>, %arg4: memref<1x8xf32, #tpu.memory_space<vmem>>, %arg5: memref<1x8xf32, #tpu.memory_space<vmem>>, %arg6: memref<1x8xf32, #tpu.memory_space<vmem>>, %arg7: memref<1x8xf32, #tpu.memory_space<vmem>>, %arg8: memref<1x16x16x8xf32, #tpu.memory_space<vmem>>) attributes {dimension_semantics = [#tpu.dimension_semantics<parallel>], iteration_bounds = array<i64: 2>, scalar_prefetch = 0 : i64, scratch_operands = 0 : i64, tpu.core_type = #tpu.core_type<tc>, window_params = [{transform_indices = @transform_0, window_bounds = array<i64: 1, 288, 8>}, {transform_indices = @transform_1, window_bounds = array<i64: 1, 342, 4>}, {pipeline_mode = #tpu.pipeline_mode<synchronous>, transform_indices = @transform_2, window_bounds = array<i64: 4, 8>}, {pipeline_mode = #tpu.pipeline_mode<synchronous>, transform_indices = @transform_3, window_bounds = array<i64: 1, 8>}, {pipeline_mode = #tpu.pipeline_mode<synchronous>, transform_indices = @transform_4, window_bounds = array<i64: 1, 8>}, {pipeline_mode = #tpu.pipeline_mode<synchronous>, transform_indices = @transform_5, window_bounds = array<i64: 1, 8>}, {pipeline_mode = #tpu.pipeline_mode<synchronous>, transform_indices = @transform_6, window_bounds = array<i64: 1, 8>}, {transform_indices = @transform_7, window_bounds = array<i64: 1, 16, 16, 8>}]} {
    %c0 = arith.constant 0 : index
    %c19 = arith.constant 19 : index
    %c0_0 = arith.constant 0 : index
    %0 = vector.load %arg2[%c0, %c19, %c0_0] : memref<1x342x4xbf16, #tpu.memory_space<vmem>>, vector<1x288x4xbf16>
    %1 = vector.shape_cast %0 : vector<1x288x4xbf16> to vector<288x4xbf16>
    %c0_1 = arith.constant 0 : index
    %c0_2 = arith.constant 0 : index
    %2 = vector.load %arg3[%c0_1, %c0_2] : memref<4x8xbf16, #tpu.memory_space<vmem>>, vector<4x8xbf16>
    %cst = arith.constant dense<0.000000e+00> : vector<288x8xf32>
    %3 = tpu.matmul %1, %2, %cst {dimension_numbers = #tpu.dot_dimension_numbers<[1], [0], [0], [1], [0, 0, 1, 1], [], []>} : vector<288x4xbf16>, vector<4x8xbf16>, vector<288x8xf32> -> vector<288x8xf32>
    %c0_3 = arith.constant 0 : index
    %c0_4 = arith.constant 0 : index
    %c0_5 = arith.constant 0 : index
    %4 = vector.load %arg1[%c0_3, %c0_4, %c0_5] : memref<1x288x8xbf16, #tpu.memory_space<vmem>>, vector<1x288x8xbf16>
    %5 = vector.shape_cast %4 : vector<1x288x8xbf16> to vector<288x8xbf16>
    %6 = arith.extf %5 : vector<288x8xbf16> to vector<288x8xf32>
    %c0_6 = arith.constant 0 : index
    %c0_7 = arith.constant 0 : index
    %7 = vector.load %arg4[%c0_6, %c0_7] : memref<1x8xf32, #tpu.memory_space<vmem>>, vector<1x8xf32>
    %8 = vector.broadcast %7 : vector<1x8xf32> to vector<288x8xf32>
    %9 = arith.mulf %6, %8 : vector<288x8xf32>
    %c0_8 = arith.constant 0 : index
    %c0_9 = arith.constant 0 : index
    %10 = vector.load %arg5[%c0_8, %c0_9] : memref<1x8xf32, #tpu.memory_space<vmem>>, vector<1x8xf32>
    %11 = vector.broadcast %10 : vector<1x8xf32> to vector<288x8xf32>
    %12 = arith.addf %9, %11 : vector<288x8xf32>
    %c0_10 = arith.constant 0 : index
    %c0_11 = arith.constant 0 : index
    %13 = vector.load %arg6[%c0_10, %c0_11] : memref<1x8xf32, #tpu.memory_space<vmem>>, vector<1x8xf32>
    %14 = vector.broadcast %13 : vector<1x8xf32> to vector<288x8xf32>
    %15 = arith.mulf %3, %14 : vector<288x8xf32>
    %16 = arith.addf %12, %15 : vector<288x8xf32>
    %c0_12 = arith.constant 0 : index
    %c0_13 = arith.constant 0 : index
    %17 = vector.load %arg7[%c0_12, %c0_13] : memref<1x8xf32, #tpu.memory_space<vmem>>, vector<1x8xf32>
    %18 = vector.broadcast %17 : vector<1x8xf32> to vector<288x8xf32>
    %19 = arith.addf %16, %18 : vector<288x8xf32>
    %cst_14 = arith.constant 0.000000e+00 : f32
    %20 = vector.broadcast %cst_14 : f32 to vector<288x8xf32>
    %21 = arith.maximumf %19, %20 : vector<288x8xf32>
    %22 = vector.extract_strided_slice %21 {offsets = [0, 0], sizes = [16, 8], strides = [1, 1]} : vector<288x8xf32> to vector<16x8xf32>
    %c0_15 = arith.constant 0 : index
    %c0_16 = arith.constant 0 : index
    %c0_17 = arith.constant 0 : index
    %c0_18 = arith.constant 0 : index
    %23 = vector.load %arg8[%c0_15, %c0_16, %c0_17, %c0_18] : memref<1x16x16x8xf32, #tpu.memory_space<vmem>>, vector<1x1x16x8xf32>
    %24 = vector.shape_cast %23 : vector<1x1x16x8xf32> to vector<16x8xf32>
    %25 = vector.shape_cast %22 : vector<16x8xf32> to vector<1x1x16x8xf32>
    tpu.vector_store %arg8[%c0_15, %c0_16, %c0_17, %c0_18], %25 {strides = array<i32>} : memref<1x16x16x8xf32, #tpu.memory_space<vmem>>, vector<1x1x16x8xf32>,
    %26 = vector.extract_strided_slice %21 {offsets = [18, 0], sizes = [16, 8], strides = [1, 1]} : vector<288x8xf32> to vector<16x8xf32>
    %c0_19 = arith.constant 0 : index
    %c1 = arith.constant 1 : index
    %c0_20 = arith.constant 0 : index
    %c0_21 = arith.constant 0 : index
    %27 = vector.load %arg8[%c0_19, %c1, %c0_20, %c0_21] : memref<1x16x16x8xf32, #tpu.memory_space<vmem>>, vector<1x1x16x8xf32>
    %28 = vector.shape_cast %27 : vector<1x1x16x8xf32> to vector<16x8xf32>
    %29 = vector.shape_cast %26 : vector<16x8xf32> to vector<1x1x16x8xf32>
    tpu.vector_store %arg8[%c0_19, %c1, %c0_20, %c0_21], %29 {strides = array<i32>} : memref<1x16x16x8xf32, #tpu.memory_space<vmem>>, vector<1x1x16x8xf32>,
    %30 = vector.extract_strided_slice %21 {offsets = [36, 0], sizes = [16, 8], strides = [1, 1]} : vector<288x8xf32> to vector<16x8xf32>
    %c0_22 = arith.constant 0 : index
    %c2 = arith.constant 2 : index
    %c0_23 = arith.constant 0 : index
    %c0_24 = arith.constant 0 : index
    %31 = vector.load %arg8[%c0_22, %c2, %c0_23, %c0_24] : memref<1x16x16x8xf32, #tpu.memory_space<vmem>>, vector<1x1x16x8xf32>
    %32 = vector.shape_cast %31 : vector<1x1x16x8xf32> to vector<16x8xf32>
    %33 = vector.shape_cast %30 : vector<16x8xf32> to vector<1x1x16x8xf32>
    tpu.vector_store %arg8[%c0_22, %c2, %c0_23, %c0_24], %33 {strides = array<i32>} : memref<1x16x16x8xf32, #tpu.memory_space<vmem>>, vector<1x1x16x8xf32>,
    %34 = vector.extract_strided_slice %21 {offsets = [54, 0], sizes = [16, 8], strides = [1, 1]} : vector<288x8xf32> to vector<16x8xf32>
    %c0_25 = arith.constant 0 : index
    %c3 = arith.constant 3 : index
    %c0_26 = arith.constant 0 : index
    %c0_27 = arith.constant 0 : index
    %35 = vector.load %arg8[%c0_25, %c3, %c0_26, %c0_27] : memref<1x16x16x8xf32, #tpu.memory_space<vmem>>, vector<1x1x16x8xf32>
    %36 = vector.shape_cast %35 : vector<1x1x16x8xf32> to vector<16x8xf32>
    %37 = vector.shape_cast %34 : vector<16x8xf32> to vector<1x1x16x8xf32>
    tpu.vector_store %arg8[%c0_25, %c3, %c0_26, %c0_27], %37 {strides = array<i32>} : memref<1x16x16x8xf32, #tpu.memory_space<vmem>>, vector<1x1x16x8xf32>,
    %38 = vector.extract_strided_slice %21 {offsets = [72, 0], sizes = [16, 8], strides = [1, 1]} : vector<288x8xf32> to vector<16x8xf32>
    %c0_28 = arith.constant 0 : index
    %c4 = arith.constant 4 : index
    %c0_29 = arith.constant 0 : index
    %c0_30 = arith.constant 0 : index
    %39 = vector.load %arg8[%c0_28, %c4, %c0_29, %c0_30] : memref<1x16x16x8xf32, #tpu.memory_space<vmem>>, vector<1x1x16x8xf32>
    %40 = vector.shape_cast %39 : vector<1x1x16x8xf32> to vector<16x8xf32>
    %41 = vector.shape_cast %38 : vector<16x8xf32> to vector<1x1x16x8xf32>
    tpu.vector_store %arg8[%c0_28, %c4, %c0_29, %c0_30], %41 {strides = array<i32>} : memref<1x16x16x8xf32, #tpu.memory_space<vmem>>, vector<1x1x16x8xf32>,
    %42 = vector.extract_strided_slice %21 {offsets = [90, 0], sizes = [16, 8], strides = [1, 1]} : vector<288x8xf32> to vector<16x8xf32>
    %c0_31 = arith.constant 0 : index
    %c5 = arith.constant 5 : index
    %c0_32 = arith.constant 0 : index
    %c0_33 = arith.constant 0 : index
    %43 = vector.load %arg8[%c0_31, %c5, %c0_32, %c0_33] : memref<1x16x16x8xf32, #tpu.memory_space<vmem>>, vector<1x1x16x8xf32>
    %44 = vector.shape_cast %43 : vector<1x1x16x8xf32> to vector<16x8xf32>
    %45 = vector.shape_cast %42 : vector<16x8xf32> to vector<1x1x16x8xf32>
    tpu.vector_store %arg8[%c0_31, %c5, %c0_32, %c0_33], %45 {strides = array<i32>} : memref<1x16x16x8xf32, #tpu.memory_space<vmem>>, vector<1x1x16x8xf32>,
    %46 = vector.extract_strided_slice %21 {offsets = [108, 0], sizes = [16, 8], strides = [1, 1]} : vector<288x8xf32> to vector<16x8xf32>
    %c0_34 = arith.constant 0 : index
    %c6 = arith.constant 6 : index
    %c0_35 = arith.constant 0 : index
    %c0_36 = arith.constant 0 : index
    %47 = vector.load %arg8[%c0_34, %c6, %c0_35, %c0_36] : memref<1x16x16x8xf32, #tpu.memory_space<vmem>>, vector<1x1x16x8xf32>
    %48 = vector.shape_cast %47 : vector<1x1x16x8xf32> to vector<16x8xf32>
    %49 = vector.shape_cast %46 : vector<16x8xf32> to vector<1x1x16x8xf32>
    tpu.vector_store %arg8[%c0_34, %c6, %c0_35, %c0_36], %49 {strides = array<i32>} : memref<1x16x16x8xf32, #tpu.memory_space<vmem>>, vector<1x1x16x8xf32>,
    %50 = vector.extract_strided_slice %21 {offsets = [126, 0], sizes = [16, 8], strides = [1, 1]} : vector<288x8xf32> to vector<16x8xf32>
    %c0_37 = arith.constant 0 : index
    %c7 = arith.constant 7 : index
    %c0_38 = arith.constant 0 : index
    %c0_39 = arith.constant 0 : index
    %51 = vector.load %arg8[%c0_37, %c7, %c0_38, %c0_39] : memref<1x16x16x8xf32, #tpu.memory_space<vmem>>, vector<1x1x16x8xf32>
    %52 = vector.shape_cast %51 : vector<1x1x16x8xf32> to vector<16x8xf32>
    %53 = vector.shape_cast %50 : vector<16x8xf32> to vector<1x1x16x8xf32>
    tpu.vector_store %arg8[%c0_37, %c7, %c0_38, %c0_39], %53 {strides = array<i32>} : memref<1x16x16x8xf32, #tpu.memory_space<vmem>>, vector<1x1x16x8xf32>,
    %54 = vector.extract_strided_slice %21 {offsets = [144, 0], sizes = [16, 8], strides = [1, 1]} : vector<288x8xf32> to vector<16x8xf32>
    %c0_40 = arith.constant 0 : index
    %c8 = arith.constant 8 : index
    %c0_41 = arith.constant 0 : index
    %c0_42 = arith.constant 0 : index
    %55 = vector.load %arg8[%c0_40, %c8, %c0_41, %c0_42] : memref<1x16x16x8xf32, #tpu.memory_space<vmem>>, vector<1x1x16x8xf32>
    %56 = vector.shape_cast %55 : vector<1x1x16x8xf32> to vector<16x8xf32>
    %57 = vector.shape_cast %54 : vector<16x8xf32> to vector<1x1x16x8xf32>
    tpu.vector_store %arg8[%c0_40, %c8, %c0_41, %c0_42], %57 {strides = array<i32>} : memref<1x16x16x8xf32, #tpu.memory_space<vmem>>, vector<1x1x16x8xf32>,
    %58 = vector.extract_strided_slice %21 {offsets = [162, 0], sizes = [16, 8], strides = [1, 1]} : vector<288x8xf32> to vector<16x8xf32>
    %c0_43 = arith.constant 0 : index
    %c9 = arith.constant 9 : index
    %c0_44 = arith.constant 0 : index
    %c0_45 = arith.constant 0 : index
    %59 = vector.load %arg8[%c0_43, %c9, %c0_44, %c0_45] : memref<1x16x16x8xf32, #tpu.memory_space<vmem>>, vector<1x1x16x8xf32>
    %60 = vector.shape_cast %59 : vector<1x1x16x8xf32> to vector<16x8xf32>
    %61 = vector.shape_cast %58 : vector<16x8xf32> to vector<1x1x16x8xf32>
    tpu.vector_store %arg8[%c0_43, %c9, %c0_44, %c0_45], %61 {strides = array<i32>} : memref<1x16x16x8xf32, #tpu.memory_space<vmem>>, vector<1x1x16x8xf32>,
    %62 = vector.extract_strided_slice %21 {offsets = [180, 0], sizes = [16, 8], strides = [1, 1]} : vector<288x8xf32> to vector<16x8xf32>
    %c0_46 = arith.constant 0 : index
    %c10 = arith.constant 10 : index
    %c0_47 = arith.constant 0 : index
    %c0_48 = arith.constant 0 : index
    %63 = vector.load %arg8[%c0_46, %c10, %c0_47, %c0_48] : memref<1x16x16x8xf32, #tpu.memory_space<vmem>>, vector<1x1x16x8xf32>
    %64 = vector.shape_cast %63 : vector<1x1x16x8xf32> to vector<16x8xf32>
    %65 = vector.shape_cast %62 : vector<16x8xf32> to vector<1x1x16x8xf32>
    tpu.vector_store %arg8[%c0_46, %c10, %c0_47, %c0_48], %65 {strides = array<i32>} : memref<1x16x16x8xf32, #tpu.memory_space<vmem>>, vector<1x1x16x8xf32>,
    %66 = vector.extract_strided_slice %21 {offsets = [198, 0], sizes = [16, 8], strides = [1, 1]} : vector<288x8xf32> to vector<16x8xf32>
    %c0_49 = arith.constant 0 : index
    %c11 = arith.constant 11 : index
    %c0_50 = arith.constant 0 : index
    %c0_51 = arith.constant 0 : index
    %67 = vector.load %arg8[%c0_49, %c11, %c0_50, %c0_51] : memref<1x16x16x8xf32, #tpu.memory_space<vmem>>, vector<1x1x16x8xf32>
    %68 = vector.shape_cast %67 : vector<1x1x16x8xf32> to vector<16x8xf32>
    %69 = vector.shape_cast %66 : vector<16x8xf32> to vector<1x1x16x8xf32>
    tpu.vector_store %arg8[%c0_49, %c11, %c0_50, %c0_51], %69 {strides = array<i32>} : memref<1x16x16x8xf32, #tpu.memory_space<vmem>>, vector<1x1x16x8xf32>,
    %70 = vector.extract_strided_slice %21 {offsets = [216, 0], sizes = [16, 8], strides = [1, 1]} : vector<288x8xf32> to vector<16x8xf32>
    %c0_52 = arith.constant 0 : index
    %c12 = arith.constant 12 : index
    %c0_53 = arith.constant 0 : index
    %c0_54 = arith.constant 0 : index
    %71 = vector.load %arg8[%c0_52, %c12, %c0_53, %c0_54] : memref<1x16x16x8xf32, #tpu.memory_space<vmem>>, vector<1x1x16x8xf32>
    %72 = vector.shape_cast %71 : vector<1x1x16x8xf32> to vector<16x8xf32>
    %73 = vector.shape_cast %70 : vector<16x8xf32> to vector<1x1x16x8xf32>
    tpu.vector_store %arg8[%c0_52, %c12, %c0_53, %c0_54], %73 {strides = array<i32>} : memref<1x16x16x8xf32, #tpu.memory_space<vmem>>, vector<1x1x16x8xf32>,
    %74 = vector.extract_strided_slice %21 {offsets = [234, 0], sizes = [16, 8], strides = [1, 1]} : vector<288x8xf32> to vector<16x8xf32>
    %c0_55 = arith.constant 0 : index
    %c13 = arith.constant 13 : index
    %c0_56 = arith.constant 0 : index
    %c0_57 = arith.constant 0 : index
    %75 = vector.load %arg8[%c0_55, %c13, %c0_56, %c0_57] : memref<1x16x16x8xf32, #tpu.memory_space<vmem>>, vector<1x1x16x8xf32>
    %76 = vector.shape_cast %75 : vector<1x1x16x8xf32> to vector<16x8xf32>
    %77 = vector.shape_cast %74 : vector<16x8xf32> to vector<1x1x16x8xf32>
    tpu.vector_store %arg8[%c0_55, %c13, %c0_56, %c0_57], %77 {strides = array<i32>} : memref<1x16x16x8xf32, #tpu.memory_space<vmem>>, vector<1x1x16x8xf32>,
    %78 = vector.extract_strided_slice %21 {offsets = [252, 0], sizes = [16, 8], strides = [1, 1]} : vector<288x8xf32> to vector<16x8xf32>
    %c0_58 = arith.constant 0 : index
    %c14 = arith.constant 14 : index
    %c0_59 = arith.constant 0 : index
    %c0_60 = arith.constant 0 : index
    %79 = vector.load %arg8[%c0_58, %c14, %c0_59, %c0_60] : memref<1x16x16x8xf32, #tpu.memory_space<vmem>>, vector<1x1x16x8xf32>
    %80 = vector.shape_cast %79 : vector<1x1x16x8xf32> to vector<16x8xf32>
    %81 = vector.shape_cast %78 : vector<16x8xf32> to vector<1x1x16x8xf32>
    tpu.vector_store %arg8[%c0_58, %c14, %c0_59, %c0_60], %81 {strides = array<i32>} : memref<1x16x16x8xf32, #tpu.memory_space<vmem>>, vector<1x1x16x8xf32>,
    %82 = vector.extract_strided_slice %21 {offsets = [270, 0], sizes = [16, 8], strides = [1, 1]} : vector<288x8xf32> to vector<16x8xf32>
    %c0_61 = arith.constant 0 : index
    %c15 = arith.constant 15 : index
    %c0_62 = arith.constant 0 : index
    %c0_63 = arith.constant 0 : index
    %83 = vector.load %arg8[%c0_61, %c15, %c0_62, %c0_63] : memref<1x16x16x8xf32, #tpu.memory_space<vmem>>, vector<1x1x16x8xf32>
    %84 = vector.shape_cast %83 : vector<1x1x16x8xf32> to vector<16x8xf32>
    %85 = vector.shape_cast %82 : vector<16x8xf32> to vector<1x1x16x8xf32>
    tpu.vector_store %arg8[%c0_61, %c15, %c0_62, %c0_63], %85 {strides = array<i32>} : memref<1x16x16x8xf32, #tpu.memory_space<vmem>>, vector<1x1x16x8xf32>,
    return
  }
  func.func @transform_0(%arg0: i32) -> (i32, i32, i32) {
    %c0_i32 = arith.constant 0 : i32
    %c0_i32_0 = arith.constant 0 : i32
    %c0_i32_1 = arith.constant 0 : i32
    return %arg0, %c0_i32, %c0_i32_0 : i32, i32, i32
  }
  func.func @transform_1(%arg0: i32) -> (i32, i32, i32) {
    %c0_i32 = arith.constant 0 : i32
    %c0_i32_0 = arith.constant 0 : i32
    %c0_i32_1 = arith.constant 0 : i32
    return %arg0, %c0_i32, %c0_i32_0 : i32, i32, i32
  }
  func.func @transform_2(%arg0: i32) -> (i32, i32) {
    %c0_i32 = arith.constant 0 : i32
    %c0_i32_0 = arith.constant 0 : i32
    %c0_i32_1 = arith.constant 0 : i32
    return %c0_i32, %c0_i32_0 : i32, i32
  }
  func.func @transform_3(%arg0: i32) -> (i32, i32) {
    %c0_i32 = arith.constant 0 : i32
    %c0_i32_0 = arith.constant 0 : i32
    %c0_i32_1 = arith.constant 0 : i32
    return %c0_i32, %c0_i32_0 : i32, i32
  }
  func.func @transform_4(%arg0: i32) -> (i32, i32) {
    %c0_i32 = arith.constant 0 : i32
    %c0_i32_0 = arith.constant 0 : i32
    %c0_i32_1 = arith.constant 0 : i32
    return %c0_i32, %c0_i32_0 : i32, i32
  }
  func.func @transform_5(%arg0: i32) -> (i32, i32) {
    %c0_i32 = arith.constant 0 : i32
    %c0_i32_0 = arith.constant 0 : i32
    %c0_i32_1 = arith.constant 0 : i32
    return %c0_i32, %c0_i32_0 : i32, i32
  }
  func.func @transform_6(%arg0: i32) -> (i32, i32) {
    %c0_i32 = arith.constant 0 : i32
    %c0_i32_0 = arith.constant 0 : i32
    %c0_i32_1 = arith.constant 0 : i32
    return %c0_i32, %c0_i32_0 : i32, i32
  }
  func.func @transform_7(%arg0: i32) -> (i32, i32, i32, i32) {
    %c0_i32 = arith.constant 0 : i32
    %c0_i32_0 = arith.constant 0 : i32
    %c0_i32_1 = arith.constant 0 : i32
    %c0_i32_2 = arith.constant 0 : i32
    return %arg0, %c0_i32, %c0_i32_0, %c0_i32_1 : i32, i32, i32, i32
  }
}

</mosaic_0001>

<llo_original>
// kernel: resblock_forward.5
$region0: #{resblock_forward.5}
  #allocation0 [shape = 'u32[]', space=smem, size = 0x4, offset = 0x4, fixed_abs, tag = 'smem constant byte address 0x4 - core index']
  #allocation1 [shape = 'u32[144,128]{1,0:T(1,128)}', space=vmem, size = 0x12000, scoped, tag = 'internal scratch']
  %s0 = inlined_call_operand.vmem [shape: bf16[2,288,8], index: 0, kind: input, shape index: {}]
  %s1 = inlined_call_operand.vmem [shape: bf16[2,342,4], index: 1, kind: input, shape index: {}]
  %s2 = inlined_call_operand.vmem [shape: bf16[4,8], index: 2, kind: input, shape index: {}]
  %s3 = inlined_call_operand.vmem [shape: f32[1,8], index: 3, kind: input, shape index: {}]
  %s4 = inlined_call_operand.vmem [shape: f32[1,8], index: 4, kind: input, shape index: {}]
  %s5 = inlined_call_operand.vmem [shape: f32[1,8], index: 5, kind: input, shape index: {}]
  %s6 = inlined_call_operand.vmem [shape: f32[1,8], index: 6, kind: input, shape index: {}]
  %s7 = inlined_call_operand.vmem [shape: f32[2,16,16,8], index: 7, kind: output, shape index: {}]
  %s8 = sld [smem:[#allocation0]]
  $region61: #{resblock_forward.5} parent=0
    _
  %s10 = ssub.s32 1, %s8
  %s11 = scalar_select 0, %s10, %s8
  loop: start=0, step=1, limit=4
  $region2: #{resblock_forward.5} parent=0 // loop_pre_header
    _
  $region3: #{resblock_forward.5} parent=0 // loop_header
    %s13 = sphi 0, %s17
    %p14 = scmp.ge.s32.totalorder %s13, 4
    %s23 = sphi 0, %s25
    %s26 = sphi 0, %s23
    %s27 = sphi 0, %s26
    %s43 = sphi 0, %s27
    %s49 = sphi 0, %s51
    %s52 = sphi 0, %s49
    %s53 = sphi 0, %s52
    %s69 = sphi 0, %s53
    %s73 = sphi 0, %s73
    %s75 = sphi 0, %s73
    %s76 = sphi 0, %s75
    %s90 = sphi 0, %s76
    %s94 = sphi 0, %s94
    %s96 = sphi 0, %s94
    %s97 = sphi 0, %s96
    %s111 = sphi 0, %s97
    %s115 = sphi 0, %s115
    %s117 = sphi 0, %s115
    %s118 = sphi 0, %s117
    %s132 = sphi 0, %s118
    %s136 = sphi 0, %s136
    %s138 = sphi 0, %s136
    %s139 = sphi 0, %s138
    %s153 = sphi 0, %s139
    %s157 = sphi 0, %s157
    %s159 = sphi 0, %s157
    %s160 = sphi 0, %s159
    %s174 = sphi 0, %s160
    %s180 = sphi 0, %s182
    %s183 = sphi 0, %s180
    %s184 = sphi 0, %s183
    %s200 = sphi 0, %s184
  $region4: #{resblock_forward.5} parent=0 // loop_header_branch
    %16 = sbr.rel (%p14) target = $region8
  $region5: #{resblock_forward.5} parent=0 // loop_body
    %s18 = ssub.s32 %s13, 1
    %s19 = ssub.s32 %s13, 2
    %s20 = sadd.s32 %s13, 1
    %s21 = ssub.s32 %s13, %s20
    %p22 = scmp.eq.s32.totalorder %s21, 0
    %s24 = sadd.s32 %s23, 1
    %s25 = scalar_select %p22, %s23, %s24
    %p28 = pneg %p22
    %p29 = scmp.eq.s32.totalorder %s13, 1
    %p30 = por %p28, %p29
    %p31 = scmp.ne.s32.totalorder %s23, %s26
    %p32 = scmp.eq.s32.totalorder %s13, 0
    %p33 = por %p31, %p32
    %p34 = scmp.ne.s32.totalorder %s23, %s26
    %p35 = scmp.eq.s32.totalorder %s18, 1
    %p36 = por %p34, %p35
    %p37 = scmp.ne.s32.totalorder %s26, %s27
    %p38 = scmp.eq.s32.totalorder %s18, 0
    %p39 = por %p37, %p38
    %p40 = scmp.ne.s32.totalorder %s26, %s27
    %p41 = scmp.eq.s32.totalorder %s19, 1
    %p42 = por %p40, %p41
    %p44 = scmp.ne.s32.totalorder %s27, %s43
    %p45 = scmp.eq.s32.totalorder %s19, 0
    %p46 = por %p44, %p45
    %s47 = ssub.s32 %s13, %s20
    %p48 = scmp.eq.s32.totalorder %s47, 0
    %s50 = sadd.s32 %s49, 1
    %s51 = scalar_select %p48, %s49, %s50
    %p54 = pneg %p48
    %p55 = scmp.eq.s32.totalorder %s13, 1
    %p56 = por %p54, %p55
    %p57 = scmp.ne.s32.totalorder %s49, %s52
    %p58 = scmp.eq.s32.totalorder %s13, 0
    %p59 = por %p57, %p58
    %p60 = scmp.ne.s32.totalorder %s49, %s52
    %p61 = scmp.eq.s32.totalorder %s18, 1
    %p62 = por %p60, %p61
    %p63 = scmp.ne.s32.totalorder %s52, %s53
    %p64 = scmp.eq.s32.totalorder %s18, 0
    %p65 = por %p63, %p64
    %p66 = scmp.ne.s32.totalorder %s52, %s53
    %p67 = scmp.eq.s32.totalorder %s19, 1
    %p68 = por %p66, %p67
    %p70 = scmp.ne.s32.totalorder %s53, %s69
    %p71 = scmp.eq.s32.totalorder %s19, 0
    %p72 = por %p70, %p71
    %s74 = sadd.s32 %s73, 1
    %p77 = scmp.eq.s32.totalorder %s13, 1
    %p78 = scmp.ne.s32.totalorder %s73, %s75
    %p79 = scmp.eq.s32.totalorder %s13, 0
    %p80 = por %p78, %p79
    %p81 = scmp.ne.s32.totalorder %s73, %s75
    %p82 = scmp.eq.s32.totalorder %s18, 1
    %p83 = por %p81, %p82
    %p84 = scmp.ne.s32.totalorder %s75, %s76
    %p85 = scmp.eq.s32.totalorder %s18, 0
    %p86 = por %p84, %p85
    %p87 = scmp.ne.s32.totalorder %s75, %s76
    %p88 = scmp.eq.s32.totalorder %s19, 1
    %p89 = por %p87, %p88
    %p91 = scmp.ne.s32.totalorder %s76, %s90
    %p92 = scmp.eq.s32.totalorder %s19, 0
    %p93 = por %p91, %p92
    %s95 = sadd.s32 %s94, 1
    %p98 = scmp.eq.s32.totalorder %s13, 1
    %p99 = scmp.ne.s32.totalorder %s94, %s96
    %p100 = scmp.eq.s32.totalorder %s13, 0
    %p101 = por %p99, %p100
    %p102 = scmp.ne.s32.totalorder %s94, %s96
    %p103 = scmp.eq.s32.totalorder %s18, 1
    %p104 = por %p102, %p103
    %p105 = scmp.ne.s32.totalorder %s96, %s97
    %p106 = scmp.eq.s32.totalorder %s18, 0
    %p107 = por %p105, %p106
    %p108 = scmp.ne.s32.totalorder %s96, %s97
    %p109 = scmp.eq.s32.totalorder %s19, 1
    %p110 = por %p108, %p109
    %p112 = scmp.ne.s32.totalorder %s97, %s111
    %p113 = scmp.eq.s32.totalorder %s19, 0
    %p114 = por %p112, %p113
    %s116 = sadd.s32 %s115, 1
    %p119 = scmp.eq.s32.totalorder %s13, 1
    %p120 = scmp.ne.s32.totalorder %s115, %s117
    %p121 = scmp.eq.s32.totalorder %s13, 0
    %p122 = por %p120, %p121
    %p123 = scmp.ne.s32.totalorder %s115, %s117
    %p124 = scmp.eq.s32.totalorder %s18, 1
    %p125 = por %p123, %p124
    %p126 = scmp.ne.s32.totalorder %s117, %s118
    %p127 = scmp.eq.s32.totalorder %s18, 0
    %p128 = por %p126, %p127
    %p129 = scmp.ne.s32.totalorder %s117, %s118
    %p130 = scmp.eq.s32.totalorder %s19, 1
    %p131 = por %p129, %p130
    %p133 = scmp.ne.s32.totalorder %s118, %s132
    %p134 = scmp.eq.s32.totalorder %s19, 0
    %p135 = por %p133, %p134
    %s137 = sadd.s32 %s136, 1
    %p140 = scmp.eq.s32.totalorder %s13, 1
    %p141 = scmp.ne.s32.totalorder %s136, %s138
    %p142 = scmp.eq.s32.totalorder %s13, 0
    %p143 = por %p141, %p142
    %p144 = scmp.ne.s32.totalorder %s136, %s138
    %p145 = scmp.eq.s32.totalorder %s18, 1
    %p146 = por %p144, %p145
    %p147 = scmp.ne.s32.totalorder %s138, %s139
    %p148 = scmp.eq.s32.totalorder %s18, 0
    %p149 = por %p147, %p148
    %p150 = scmp.ne.s32.totalorder %s138, %s139
    %p151 = scmp.eq.s32.totalorder %s19, 1
    %p152 = por %p150, %p151
    %p154 = scmp.ne.s32.totalorder %s139, %s153
    %p155 = scmp.eq.s32.totalorder %s19, 0
    %p156 = por %p154, %p155
    %s158 = sadd.s32 %s157, 1
    %p161 = scmp.eq.s32.totalorder %s13, 1
    %p162 = scmp.ne.s32.totalorder %s157, %s159
    %p163 = scmp.eq.s32.totalorder %s13, 0
    %p164 = por %p162, %p163
    %p165 = scmp.ne.s32.totalorder %s157, %s159
    %p166 = scmp.eq.s32.totalorder %s18, 1
    %p167 = por %p165, %p166
    %p168 = scmp.ne.s32.totalorder %s159, %s160
    %p169 = scmp.eq.s32.totalorder %s18, 0
    %p170 = por %p168, %p169
    %p171 = scmp.ne.s32.totalorder %s159, %s160
    %p172 = scmp.eq.s32.totalorder %s19, 1
    %p173 = por %p171, %p172
    %p175 = scmp.ne.s32.totalorder %s160, %s174
    %p176 = scmp.eq.s32.totalorder %s19, 0
    %p177 = por %p175, %p176
    %s178 = ssub.s32 %s13, %s20
    %p179 = scmp.eq.s32.totalorder %s178, 0
    %s181 = sadd.s32 %s180, 1
    %s182 = scalar_select %p179, %s180, %s181
    %p185 = pneg %p179
    %p186 = scmp.eq.s32.totalorder %s13, 1
    %p187 = por %p185, %p186
    %p188 = scmp.ne.s32.totalorder %s180, %s183
    %p189 = scmp.eq.s32.totalorder %s13, 0
    %p190 = por %p188, %p189
    %p191 = scmp.ne.s32.totalorder %s180, %s183
    %p192 = scmp.eq.s32.totalorder %s18, 1
    %p193 = por %p191, %p192
    %p194 = scmp.ne.s32.totalorder %s183, %s184
    %p195 = scmp.eq.s32.totalorder %s18, 0
    %p196 = por %p194, %p195
    %p197 = scmp.ne.s32.totalorder %s183, %s184
    %p198 = scmp.eq.s32.totalorder %s19, 1
    %p199 = por %p197, %p198
    %p201 = scmp.ne.s32.totalorder %s184, %s200
    %p202 = scmp.eq.s32.totalorder %s19, 0
    %p203 = por %p201, %p202
    %p204 = scmp.le.s32.totalorder 1, %s13
    %p205 = scmp.lt.s32.totalorder %s13, 3
    %p206 = pnand %p204, %p205
    %p207 = pneg %p206
    // Predicated region
    $region9: #{resblock_forward.5} parent=5 // pred_check
      _
    $region10: #{resblock_forward.5} parent=5 // pred_check_branch
      %209 = sbr.rel (%p206) target = $region12
    $region11: #{resblock_forward.5} parent=5 // pred_region
      %s210 = ssub.s32 %s13, 1
      // Predicated region
      $region13: #{resblock_forward.5} parent=11 // pred_check
        %p211 = pneg %p86
      $region14: #{resblock_forward.5} parent=11 // pred_check_branch
        %213 = sbr.rel (%p211) target = $region16
      $region15: #{resblock_forward.5} parent=11 // pred_region
        _
      $region16: #{resblock_forward.5} parent=11 // pred_fallthru
        _
      // Predicated region
      $region17: #{resblock_forward.5} parent=11 // pred_check
        %p214 = pneg %p107
      $region18: #{resblock_forward.5} parent=11 // pred_check_branch
        %216 = sbr.rel (%p214) target = $region20
      $region19: #{resblock_forward.5} parent=11 // pred_region
        _
      $region20: #{resblock_forward.5} parent=11 // pred_fallthru
        _
      // Predicated region
      $region21: #{resblock_forward.5} parent=11 // pred_check
        %p217 = pneg %p128
      $region22: #{resblock_forward.5} parent=11 // pred_check_branch
        %219 = sbr.rel (%p217) target = $region24
      $region23: #{resblock_forward.5} parent=11 // pred_region
        _
      $region24: #{resblock_forward.5} parent=11 // pred_fallthru
        _
      // Predicated region
      $region25: #{resblock_forward.5} parent=11 // pred_check
        %p220 = pneg %p149
      $region26: #{resblock_forward.5} parent=11 // pred_check_branch
        %222 = sbr.rel (%p220) target = $region28
      $region27: #{resblock_forward.5} parent=11 // pred_region
        _
      $region28: #{resblock_forward.5} parent=11 // pred_fallthru
        _
      // Predicated region
      $region29: #{resblock_forward.5} parent=11 // pred_check
        %p223 = pneg %p170
      $region30: #{resblock_forward.5} parent=11 // pred_check_branch
        %225 = sbr.rel (%p223) target = $region32
      $region31: #{resblock_forward.5} parent=11 // pred_region
        _
      $region32: #{resblock_forward.5} parent=11 // pred_fallthru
        _
    $region12: #{resblock_forward.5} parent=5 // pred_fallthru
      _
    %p226 = scmp.lt.s32.totalorder %s13, 2
    // Predicated region
    $region33: #{resblock_forward.5} parent=5 // pred_check
      %p227 = pneg %p226
    $region34: #{resblock_forward.5} parent=5 // pred_check_branch
      %229 = sbr.rel (%p227) target = $region36
    $region35: #{resblock_forward.5} parent=5 // pred_region
      // Predicated region
      $region37: #{resblock_forward.5} parent=35 // pred_check
        %p230 = pneg %p33
      $region38: #{resblock_forward.5} parent=35 // pred_check_branch
        %232 = sbr.rel (%p230) target = $region40
      $region39: #{resblock_forward.5} parent=35 // pred_region
        %p233 = scmp.lt.s32.totalorder %s13, 1
        %s234 = scalar_select %p233, %s13, 1
        %s235 = smul.addr %s234, 36
        %s236 = smul.addr %s235, 4
        %s237 = scalar_lea.vmem %s0, %s236
      $region40: #{resblock_forward.5} parent=35 // pred_fallthru
        _
      // Predicated region
      $region41: #{resblock_forward.5} parent=35 // pred_check
        %p238 = pneg %p59
      $region42: #{resblock_forward.5} parent=35 // pred_check_branch
        %240 = sbr.rel (%p238) target = $region44
      $region43: #{resblock_forward.5} parent=35 // pred_region
        %p241 = scmp.lt.s32.totalorder %s13, 1
        %s242 = scalar_select %p241, %s13, 1
        %s243 = smul.addr %s242, 43
        %s244 = smul.addr %s243, 4
        %s245 = scalar_lea.vmem %s1, %s244
      $region44: #{resblock_forward.5} parent=35 // pred_fallthru
        _
    $region36: #{resblock_forward.5} parent=5 // pred_fallthru
      _
    %p246 = scmp.le.s32.totalorder 1, %s13
    %p247 = scmp.lt.s32.totalorder %s13, 3
    %p248 = pnand %p246, %p247
    %p249 = pneg %p248
    // Predicated region
    $region45: #{resblock_forward.5} parent=5 // pred_check
      _
    $region46: #{resblock_forward.5} parent=5 // pred_check_branch
      %251 = sbr.rel (%p248) target = $region48
    $region47: #{resblock_forward.5} parent=5 // pred_region
      %s252 = ssub.s32 %s13, 1
      %p253 = scmp.lt.s32.totalorder %s18, 1
      %s254 = scalar_select %p253, %s18, 1
      %s255 = smul.addr %s254, 36
      %s256 = smul.addr %s255, 4
      %s257 = scalar_lea.vmem %s0, %s256
      %p258 = pneg %p39
      %p259 = pneg %p36
      %p260 = scmp.lt.s32.totalorder %s18, 1
      %s261 = scalar_select %p260, %s18, 1
      %s262 = smul.addr %s261, 43
      %s263 = smul.addr %s262, 4
      %s264 = scalar_lea.vmem %s1, %s263
      %p265 = pneg %p65
      %p266 = pneg %p62
      %p267 = pneg %p86
      %p268 = pneg %p83
      %p269 = pneg %p107
      %p270 = pneg %p104
      %p271 = pneg %p128
      %p272 = pneg %p125
      %p273 = pneg %p149
      %p274 = pneg %p146
      %p275 = pneg %p170
      %p276 = pneg %p167
      %p277 = pneg %p196
      %p278 = pneg %p193
      %p279 = scmp.lt.s32.totalorder %s18, 1
      %s280 = scalar_select %p279, %s18, 1
      %s281 = smul.addr %s280, 32
      %s282 = smul.addr %s281, 8
      %s283 = scalar_lea.vmem %s7, %s282
      %p284 = scmp.lt.s32.totalorder %s18, 1
      %s285 = scalar_select %p284, %s18, 1
      %s286 = smul.addr %s285, 36
      %s287 = smul.addr %s286, 4
      %s288 = scalar_lea.vmem %s0, %s287
      %p289 = scmp.lt.s32.totalorder %s18, 1
      %s290 = scalar_select %p289, %s18, 1
      %s291 = smul.addr %s290, 43
      %s292 = smul.addr %s291, 4
      %s293 = scalar_lea.vmem %s1, %s292
      %p294 = scmp.lt.s32.totalorder %s18, 1
      %s295 = scalar_select %p294, %s18, 1
      %s296 = smul.addr %s295, 32
      %s297 = smul.addr %s296, 8
      %s298 = scalar_lea.vmem %s7, %s297
      %v300 = vld [vmem:[%s293 + $0x8] sm:$0xe]
      %v301 = vld [vmem:[%s293 + $0xc] sm:$0xf]
      %v302 = vld [vmem:[%s293 + $0x10] sm:$0xf]
      %v303 = vld [vmem:[%s293 + $0x14] sm:$0xf]
      %v304 = vld [vmem:[%s293 + $0x18] sm:$0xf]
      %v305 = vld [vmem:[%s293 + $0x1c] sm:$0xf]
      %v306 = vld [vmem:[%s293 + $0x20] sm:$0xf]
      %v307 = vld [vmem:[%s293 + $0x24] sm:$0xf]
      %v308 = vld [vmem:[%s293 + $0x28] sm:$0xf]
      %v309 = vld [vmem:[%s293 + $0x2c] sm:$0xf]
      %v310 = vld [vmem:[%s293 + $0x30] sm:$0xf]
      %v311 = vld [vmem:[%s293 + $0x34] sm:$0xf]
      %v312 = vld [vmem:[%s293 + $0x38] sm:$0xf]
      %v313 = vld [vmem:[%s293 + $0x3c] sm:$0xf]
      %v314 = vld [vmem:[%s293 + $0x40] sm:$0xf]
      %v315 = vld [vmem:[%s293 + $0x44] sm:$0xf]
      %v316 = vld [vmem:[%s293 + $0x48] sm:$0xf]
      %v317 = vld [vmem:[%s293 + $0x4c] sm:$0xf]
      %v318 = vld [vmem:[%s293 + $0x50] sm:$0xf]
      %v319 = vld [vmem:[%s293 + $0x54] sm:$0xf]
      %v320 = vld [vmem:[%s293 + $0x58] sm:$0xf]
      %v321 = vld [vmem:[%s293 + $0x5c] sm:$0xf]
      %v322 = vld [vmem:[%s293 + $0x60] sm:$0xf]
      %v323 = vld [vmem:[%s293 + $0x64] sm:$0xf]
      %v324 = vld [vmem:[%s293 + $0x68] sm:$0xf]
      %v325 = vld [vmem:[%s293 + $0x6c] sm:$0xf]
      %v326 = vld [vmem:[%s293 + $0x70] sm:$0xf]
      %v327 = vld [vmem:[%s293 + $0x74] sm:$0xf]
      %v328 = vld [vmem:[%s293 + $0x78] sm:$0xf]
      %v329 = vld [vmem:[%s293 + $0x7c] sm:$0xf]
      %v330 = vld [vmem:[%s293 + $0x80] sm:$0xf]
      %v331 = vld [vmem:[%s293 + $0x84] sm:$0xf]
      %v332 = vld [vmem:[%s293 + $0x88] sm:$0xf]
      %v333 = vld [vmem:[%s293 + $0x8c] sm:$0xf]
      %v334 = vld [vmem:[%s293 + $0x90] sm:$0xf]
      %v335 = vld [vmem:[%s293 + $0x94] sm:$0xf]
      %v336 = vld [vmem:[%s293 + $0x98] sm:$0x3]
      %v337 = vld [vmem:[%s2] sm:$0x3]
      %v375 = vunpack.c.l.b16 %v300
      %v376 = vunpack.c.l.b16 %v301
      %v377 = vunpack.c.l.b16 %v302
      %v378 = vunpack.c.l.b16 %v303
      %v379 = vunpack.c.l.b16 %v304
      %v380 = vunpack.c.l.b16 %v305
      %v381 = vunpack.c.l.b16 %v306
      %v382 = vunpack.c.l.b16 %v307
      %v383 = vunpack.c.l.b16 %v308
      %v384 = vunpack.c.l.b16 %v309
      %v385 = vunpack.c.l.b16 %v310
      %v386 = vunpack.c.l.b16 %v311
      %v387 = vunpack.c.l.b16 %v312
      %v388 = vunpack.c.l.b16 %v313
      %v389 = vunpack.c.l.b16 %v314
      %v390 = vunpack.c.l.b16 %v315
      %v391 = vunpack.c.l.b16 %v316
      %v392 = vunpack.c.l.b16 %v317
      %v393 = vunpack.c.l.b16 %v318
      %v394 = vunpack.c.l.b16 %v319
      %v395 = vunpack.c.l.b16 %v320
      %v396 = vunpack.c.l.b16 %v321
      %v397 = vunpack.c.l.b16 %v322
      %v398 = vunpack.c.l.b16 %v323
      %v399 = vunpack.c.l.b16 %v324
      %v400 = vunpack.c.l.b16 %v325
      %v401 = vunpack.c.l.b16 %v326
      %v402 = vunpack.c.l.b16 %v327
      %v403 = vunpack.c.l.b16 %v328
      %v404 = vunpack.c.l.b16 %v329
      %v405 = vunpack.c.l.b16 %v330
      %v406 = vunpack.c.l.b16 %v331
      %v407 = vunpack.c.l.b16 %v332
      %v408 = vunpack.c.l.b16 %v333
      %v409 = vunpack.c.l.b16 %v334
      %v410 = vunpack.c.l.b16 %v335
      %v411 = vunpack.c.l.b16 %v336
      %v412 = vpack.c.b16 %v376, %v375
      %v413 = vpack.c.b16 %v378, %v377
      %v414 = vpack.c.b16 %v380, %v379
      %v415 = vpack.c.b16 %v382, %v381
      %v416 = vpack.c.b16 %v384, %v383
      %v417 = vpack.c.b16 %v386, %v385
      %v418 = vpack.c.b16 %v388, %v387
      %v419 = vpack.c.b16 %v390, %v389
      %v420 = vpack.c.b16 %v392, %v391
      %v421 = vpack.c.b16 %v394, %v393
      %v422 = vpack.c.b16 %v396, %v395
      %v423 = vpack.c.b16 %v398, %v397
      %v424 = vpack.c.b16 %v400, %v399
      %v425 = vpack.c.b16 %v402, %v401
      %v426 = vpack.c.b16 %v404, %v403
      %v427 = vpack.c.b16 %v406, %v405
      %v428 = vpack.c.b16 %v408, %v407
      %v429 = vpack.c.b16 %v410, %v409
      %v430 = vpack.c.b16 %v411, %v411
      %vm431 = vsmask.f32 6400
      %v433 = vshrl.u32 %v412, 16
      %v435 = vrot.slane %v433, 1
      %v436 = vshll.u32 %v412, 16
      %v438 = vrot.slane %v436, 2
      %v439 = vor.u32 %v435, %v438
      %v441 = vshrl.u32 %v413, 16
      %v443 = vrot.slane %v441, 1
      %v444 = vshll.u32 %v413, 16
      %v446 = vrot.slane %v444, 2
      %v447 = vor.u32 %v443, %v446
      %v448 = vsel %vm431, %v439, %v447
      %v450 = vshrl.u32 %v414, 16
      %v452 = vrot.slane %v450, 1
      %v453 = vshll.u32 %v414, 16
      %v455 = vrot.slane %v453, 2
      %v456 = vor.u32 %v452, %v455
      %v457 = vsel %vm431, %v447, %v456
      %v459 = vshrl.u32 %v415, 16
      %v461 = vrot.slane %v459, 1
      %v462 = vshll.u32 %v415, 16
      %v464 = vrot.slane %v462, 2
      %v465 = vor.u32 %v461, %v464
      %v466 = vsel %vm431, %v456, %v465
      %v468 = vshrl.u32 %v416, 16
      %v470 = vrot.slane %v468, 1
      %v471 = vshll.u32 %v416, 16
      %v473 = vrot.slane %v471, 2
      %v474 = vor.u32 %v470, %v473
      %v475 = vsel %vm431, %v465, %v474
      %v477 = vshrl.u32 %v417, 16
      %v479 = vrot.slane %v477, 1
      %v480 = vshll.u32 %v417, 16
      %v482 = vrot.slane %v480, 2
      %v483 = vor.u32 %v479, %v482
      %v484 = vsel %vm431, %v474, %v483
      %v486 = vshrl.u32 %v418, 16
      %v488 = vrot.slane %v486, 1
      %v489 = vshll.u32 %v418, 16
      %v491 = vrot.slane %v489, 2
      %v492 = vor.u32 %v488, %v491
      %v493 = vsel %vm431, %v483, %v492
      %v495 = vshrl.u32 %v419, 16
      %v497 = vrot.slane %v495, 1
      %v498 = vshll.u32 %v419, 16
      %v500 = vrot.slane %v498, 2
      %v501 = vor.u32 %v497, %v500
      %v502 = vsel %vm431, %v492, %v501
      %v504 = vshrl.u32 %v420, 16
      %v506 = vrot.slane %v504, 1
      %v507 = vshll.u32 %v420, 16
      %v509 = vrot.slane %v507, 2
      %v510 = vor.u32 %v506, %v509
      %v511 = vsel %vm431, %v501, %v510
      %v513 = vshrl.u32 %v421, 16
      %v515 = vrot.slane %v513, 1
      %v516 = vshll.u32 %v421, 16
      %v518 = vrot.slane %v516, 2
      %v519 = vor.u32 %v515, %v518
      %v520 = vsel %vm431, %v510, %v519
      %v522 = vshrl.u32 %v422, 16
      %v524 = vrot.slane %v522, 1
      %v525 = vshll.u32 %v422, 16
      %v527 = vrot.slane %v525, 2
      %v528 = vor.u32 %v524, %v527
      %v529 = vsel %vm431, %v519, %v528
      %v531 = vshrl.u32 %v423, 16
      %v533 = vrot.slane %v531, 1
      %v534 = vshll.u32 %v423, 16
      %v536 = vrot.slane %v534, 2
      %v537 = vor.u32 %v533, %v536
      %v538 = vsel %vm431, %v528, %v537
      %v540 = vshrl.u32 %v424, 16
      %v542 = vrot.slane %v540, 1
      %v543 = vshll.u32 %v424, 16
      %v545 = vrot.slane %v543, 2
      %v546 = vor.u32 %v542, %v545
      %v547 = vsel %vm431, %v537, %v546
      %v549 = vshrl.u32 %v425, 16
      %v551 = vrot.slane %v549, 1
      %v552 = vshll.u32 %v425, 16
      %v554 = vrot.slane %v552, 2
      %v555 = vor.u32 %v551, %v554
      %v556 = vsel %vm431, %v546, %v555
      %v558 = vshrl.u32 %v426, 16
      %v560 = vrot.slane %v558, 1
      %v561 = vshll.u32 %v426, 16
      %v563 = vrot.slane %v561, 2
      %v564 = vor.u32 %v560, %v563
      %v565 = vsel %vm431, %v555, %v564
      %v567 = vshrl.u32 %v427, 16
      %v569 = vrot.slane %v567, 1
      %v570 = vshll.u32 %v427, 16
      %v572 = vrot.slane %v570, 2
      %v573 = vor.u32 %v569, %v572
      %v574 = vsel %vm431, %v564, %v573
      %v576 = vshrl.u32 %v428, 16
      %v578 = vrot.slane %v576, 1
      %v579 = vshll.u32 %v428, 16
      %v581 = vrot.slane %v579, 2
      %v582 = vor.u32 %v578, %v581
      %v583 = vsel %vm431, %v573, %v582
      %v585 = vshrl.u32 %v429, 16
      %v587 = vrot.slane %v585, 1
      %v588 = vshll.u32 %v429, 16
      %v590 = vrot.slane %v588, 2
      %v591 = vor.u32 %v587, %v590
      %v592 = vsel %vm431, %v582, %v591
      %v594 = vshrl.u32 %v430, 16
      %v596 = vrot.slane %v594, 1
      %v597 = vshll.u32 %v430, 16
      %v599 = vrot.slane %v597, 2
      %v600 = vor.u32 %v596, %v599
      %v601 = vsel %vm431, %v591, %v600
      %vm602 = vcmask 31744
      %v604 = vsel %vm602, %v448, 0
      %v607 = vsel %vm602, %v457, 0
      %v610 = vsel %vm602, %v466, 0
      %v613 = vsel %vm602, %v475, 0
      %v616 = vsel %vm602, %v484, 0
      %v619 = vsel %vm602, %v493, 0
      %v622 = vsel %vm602, %v502, 0
      %v625 = vsel %vm602, %v511, 0
      %v628 = vsel %vm602, %v520, 0
      %v631 = vsel %vm602, %v529, 0
      %v634 = vsel %vm602, %v538, 0
      %v637 = vsel %vm602, %v547, 0
      %v640 = vsel %vm602, %v556, 0
      %v643 = vsel %vm602, %v565, 0
      %v646 = vsel %vm602, %v574, 0
      %v649 = vsel %vm602, %v583, 0
      %v652 = vsel %vm602, %v592, 0
      %v655 = vsel %vm602, %v601, 0
      %vm657 = vcmask 1041408
      %v659 = vsel %vm657, %v337, 0
      %661 = vmatprep.subr.bf16.mxu0 0
      %662 = vmatpush1.bf16.msra.mxu0 %v659
      %663 = vmatprep.subr.bf16.mxu0 0
      %664 = vmatpush1.bf16.msra.mxu0 0
      %665 = vmatprep.subr.bf16.mxu0 0
      %666 = vmatpush1.bf16.msra.mxu0 0
      %667 = vmatprep.subr.bf16.mxu0 0
      %668 = vmatpush1.bf16.msra.mxu0 0
      %669 = vmatprep.subr.bf16.mxu0 0
      %670 = vmatpush1.bf16.msra.mxu0 0
      %671 = vmatprep.subr.bf16.mxu0 0
      %672 = vmatpush1.bf16.msra.mxu0 0
      %673 = vmatprep.subr.bf16.mxu0 0
      %674 = vmatpush1.bf16.msra.mxu0 0
      %675 = vmatprep.subr.bf16.mxu0 0
      %676 = vmatpush1.bf16.msra.mxu0 0
      %677 = vmatprep.subr.bf16.mxu0 0
      %678 = vmatpush1.bf16.msra.mxu0 0
      %679 = vmatprep.subr.bf16.mxu0 0
      %680 = vmatpush1.bf16.msra.mxu0 0
      %681 = vmatprep.subr.bf16.mxu0 0
      %682 = vmatpush1.bf16.msra.mxu0 0
      %683 = vmatprep.subr.bf16.mxu0 0
      %684 = vmatpush1.bf16.msra.mxu0 0
      %685 = vmatprep.subr.bf16.mxu0 0
      %686 = vmatpush1.bf16.msra.mxu0 0
      %687 = vmatprep.subr.bf16.mxu0 0
      %688 = vmatpush1.bf16.msra.mxu0 0
      %689 = vmatprep.subr.bf16.mxu0 0
      %690 = vmatpush1.bf16.msra.mxu0 0
      %691 = vmatprep.subr.bf16.mxu0 0
      %692 = vmatpush1.bf16.msra.mxu0 0
      %693 = vmatprep.mubr.bf16.mxu0 0
      %694 = vmatmul.mubr.bf16.gmra.mrb[0].mxu0 %v604
      %v695 = vpop.f32.mrb[0].mxu0
      %v696 = vadd.f32 0.0, %v695
      %v697 = vpop.f32.mrb[0].mxu0
      %v698 = vpop.f32.mrb[0].mxu0
      %v699 = vadd.f32 0.0, %v698
      %v700 = vpop.f32.mrb[0].mxu0
      %701 = vmatprep.mubr.bf16.mxu0 0
      %702 = vmatmul.mubr.bf16.gmra.mrb[0].mxu0 %v607
      %v703 = vpop.f32.mrb[0].mxu0
      %v704 = vadd.f32 0.0, %v703
      %v705 = vpop.f32.mrb[0].mxu0
      %v706 = vpop.f32.mrb[0].mxu0
      %v707 = vadd.f32 0.0, %v706
      %v708 = vpop.f32.mrb[0].mxu0
      %709 = vmatprep.mubr.bf16.mxu0 0
      %710 = vmatmul.mubr.bf16.gmra.mrb[0].mxu0 %v610
      %v711 = vpop.f32.mrb[0].mxu0
      %v712 = vadd.f32 0.0, %v711
      %v713 = vpop.f32.mrb[0].mxu0
      %v714 = vpop.f32.mrb[0].mxu0
      %v715 = vadd.f32 0.0, %v714
      %v716 = vpop.f32.mrb[0].mxu0
      %717 = vmatprep.mubr.bf16.mxu0 0
      %718 = vmatmul.mubr.bf16.gmra.mrb[0].mxu0 %v613
      %v719 = vpop.f32.mrb[0].mxu0
      %v720 = vadd.f32 0.0, %v719
      %v721 = vpop.f32.mrb[0].mxu0
      %v722 = vpop.f32.mrb[0].mxu0
      %v723 = vadd.f32 0.0, %v722
      %v724 = vpop.f32.mrb[0].mxu0
      %725 = vmatprep.mubr.bf16.mxu0 0
      %726 = vmatmul.mubr.bf16.gmra.mrb[0].mxu0 %v616
      %v727 = vpop.f32.mrb[0].mxu0
      %v728 = vadd.f32 0.0, %v727
      %v729 = vpop.f32.mrb[0].mxu0
      %v730 = vpop.f32.mrb[0].mxu0
      %v731 = vadd.f32 0.0, %v730
      %v732 = vpop.f32.mrb[0].mxu0
      %733 = vmatprep.mubr.bf16.mxu0 0
      %734 = vmatmul.mubr.bf16.gmra.mrb[0].mxu0 %v619
      %v735 = vpop.f32.mrb[0].mxu0
      %v736 = vadd.f32 0.0, %v735
      %v737 = vpop.f32.mrb[0].mxu0
      %v738 = vpop.f32.mrb[0].mxu0
      %v739 = vadd.f32 0.0, %v738
      %v740 = vpop.f32.mrb[0].mxu0
      %741 = vmatprep.mubr.bf16.mxu0 0
      %742 = vmatmul.mubr.bf16.gmra.mrb[0].mxu0 %v622
      %v743 = vpop.f32.mrb[0].mxu0
      %v744 = vadd.f32 0.0, %v743
      %v745 = vpop.f32.mrb[0].mxu0
      %v746 = vpop.f32.mrb[0].mxu0
      %v747 = vadd.f32 0.0, %v746
      %v748 = vpop.f32.mrb[0].mxu0
      %749 = vmatprep.mubr.bf16.mxu0 0
      %750 = vmatmul.mubr.bf16.gmra.mrb[0].mxu0 %v625
      %v751 = vpop.f32.mrb[0].mxu0
      %v752 = vadd.f32 0.0, %v751
      %v753 = vpop.f32.mrb[0].mxu0
      %v754 = vpop.f32.mrb[0].mxu0
      %v755 = vadd.f32 0.0, %v754
      %v756 = vpop.f32.mrb[0].mxu0
      %757 = vmatprep.mubr.bf16.mxu0 0
      %758 = vmatmul.mubr.bf16.gmra.mrb[0].mxu0 %v628
      %v759 = vpop.f32.mrb[0].mxu0
      %v760 = vadd.f32 0.0, %v759
      %v761 = vpop.f32.mrb[0].mxu0
      %v762 = vpop.f32.mrb[0].mxu0
      %v763 = vadd.f32 0.0, %v762
      %v764 = vpop.f32.mrb[0].mxu0
      %765 = vmatprep.mubr.bf16.mxu0 0
      %766 = vmatmul.mubr.bf16.gmra.mrb[0].mxu0 %v631
      %v767 = vpop.f32.mrb[0].mxu0
      %v768 = vadd.f32 0.0, %v767
      %v769 = vpop.f32.mrb[0].mxu0
      %v770 = vpop.f32.mrb[0].mxu0
      %v771 = vadd.f32 0.0, %v770
      %v772 = vpop.f32.mrb[0].mxu0
      %773 = vmatprep.mubr.bf16.mxu0 0
      %774 = vmatmul.mubr.bf16.gmra.mrb[0].mxu0 %v634
      %v775 = vpop.f32.mrb[0].mxu0
      %v776 = vadd.f32 0.0, %v775
      %v777 = vpop.f32.mrb[0].mxu0
      %v778 = vpop.f32.mrb[0].mxu0
      %v779 = vadd.f32 0.0, %v778
      %v780 = vpop.f32.mrb[0].mxu0
      %781 = vmatprep.mubr.bf16.mxu0 0
      %782 = vmatmul.mubr.bf16.gmra.mrb[0].mxu0 %v637
      %v783 = vpop.f32.mrb[0].mxu0
      %v784 = vadd.f32 0.0, %v783
      %v785 = vpop.f32.mrb[0].mxu0
      %v786 = vpop.f32.mrb[0].mxu0
      %v787 = vadd.f32 0.0, %v786
      %v788 = vpop.f32.mrb[0].mxu0
      %789 = vmatprep.mubr.bf16.mxu0 0
      %790 = vmatmul.mubr.bf16.gmra.mrb[0].mxu0 %v640
      %v791 = vpop.f32.mrb[0].mxu0
      %v792 = vadd.f32 0.0, %v791
      %v793 = vpop.f32.mrb[0].mxu0
      %v794 = vpop.f32.mrb[0].mxu0
      %v795 = vadd.f32 0.0, %v794
      %v796 = vpop.f32.mrb[0].mxu0
      %797 = vmatprep.mubr.bf16.mxu0 0
      %798 = vmatmul.mubr.bf16.gmra.mrb[0].mxu0 %v643
      %v799 = vpop.f32.mrb[0].mxu0
      %v800 = vadd.f32 0.0, %v799
      %v801 = vpop.f32.mrb[0].mxu0
      %v802 = vpop.f32.mrb[0].mxu0
      %v803 = vadd.f32 0.0, %v802
      %v804 = vpop.f32.mrb[0].mxu0
      %805 = vmatprep.mubr.bf16.mxu0 0
      %806 = vmatmul.mubr.bf16.gmra.mrb[0].mxu0 %v646
      %v807 = vpop.f32.mrb[0].mxu0
      %v808 = vadd.f32 0.0, %v807
      %v809 = vpop.f32.mrb[0].mxu0
      %v810 = vpop.f32.mrb[0].mxu0
      %v811 = vadd.f32 0.0, %v810
      %v812 = vpop.f32.mrb[0].mxu0
      %813 = vmatprep.mubr.bf16.mxu0 0
      %814 = vmatmul.mubr.bf16.gmra.mrb[0].mxu0 %v649
      %v815 = vpop.f32.mrb[0].mxu0
      %v816 = vadd.f32 0.0, %v815
      %v817 = vpop.f32.mrb[0].mxu0
      %v818 = vpop.f32.mrb[0].mxu0
      %v819 = vadd.f32 0.0, %v818
      %v820 = vpop.f32.mrb[0].mxu0
      %821 = vmatprep.mubr.bf16.mxu0 0
      %822 = vmatmul.mubr.bf16.gmra.mrb[0].mxu0 %v652
      %v823 = vpop.f32.mrb[0].mxu0
      %v824 = vadd.f32 0.0, %v823
      %v825 = vpop.f32.mrb[0].mxu0
      %v826 = vpop.f32.mrb[0].mxu0
      %v827 = vadd.f32 0.0, %v826
      %v828 = vpop.f32.mrb[0].mxu0
      %829 = vmatprep.mubr.bf16.mxu0 0
      %830 = vmatmul.mubr.bf16.gmra.mrb[0].mxu0 %v655
      %v831 = vpop.f32.mrb[0].mxu0
      %v832 = vadd.f32 0.0, %v831
      %v833 = vpop.f32.mrb[0].mxu0
      %v834 = vpop.f32.mrb[0].mxu0
      %v835 = vadd.f32 0.0, %v834
      %v836 = vpop.f32.mrb[0].mxu0
      %837 = vdwg.mxu0
      %v838 = vld [vmem:[%s288] sm:$0xf]
      %v839 = vld [vmem:[%s288 + $0x4] sm:$0xf]
      %v840 = vld [vmem:[%s288 + $0x8] sm:$0xf]
      %v841 = vld [vmem:[%s288 + $0xc] sm:$0xf]
      %v842 = vld [vmem:[%s288 + $0x10] sm:$0xf]
      %v843 = vld [vmem:[%s288 + $0x14] sm:$0xf]
      %v844 = vld [vmem:[%s288 + $0x18] sm:$0xf]
      %v845 = vld [vmem:[%s288 + $0x1c] sm:$0xf]
      %v846 = vld [vmem:[%s288 + $0x20] sm:$0xf]
      %v847 = vld [vmem:[%s288 + $0x24] sm:$0xf]
      %v848 = vld [vmem:[%s288 + $0x28] sm:$0xf]
      %v849 = vld [vmem:[%s288 + $0x2c] sm:$0xf]
      %v850 = vld [vmem:[%s288 + $0x30] sm:$0xf]
      %v851 = vld [vmem:[%s288 + $0x34] sm:$0xf]
      %v852 = vld [vmem:[%s288 + $0x38] sm:$0xf]
      %v853 = vld [vmem:[%s288 + $0x3c] sm:$0xf]
      %v854 = vld [vmem:[%s288 + $0x40] sm:$0xf]
      %v855 = vld [vmem:[%s288 + $0x44] sm:$0xf]
      %v856 = vld [vmem:[%s288 + $0x48] sm:$0xf]
      %v857 = vld [vmem:[%s288 + $0x4c] sm:$0xf]
      %v858 = vld [vmem:[%s288 + $0x50] sm:$0xf]
      %v859 = vld [vmem:[%s288 + $0x54] sm:$0xf]
      %v860 = vld [vmem:[%s288 + $0x58] sm:$0xf]
      %v861 = vld [vmem:[%s288 + $0x5c] sm:$0xf]
      %v862 = vld [vmem:[%s288 + $0x60] sm:$0xf]
      %v863 = vld [vmem:[%s288 + $0x64] sm:$0xf]
      %v864 = vld [vmem:[%s288 + $0x68] sm:$0xf]
      %v865 = vld [vmem:[%s288 + $0x6c] sm:$0xf]
      %v866 = vld [vmem:[%s288 + $0x70] sm:$0xf]
      %v867 = vld [vmem:[%s288 + $0x74] sm:$0xf]
      %v868 = vld [vmem:[%s288 + $0x78] sm:$0xf]
      %v869 = vld [vmem:[%s288 + $0x7c] sm:$0xf]
      %v870 = vld [vmem:[%s288 + $0x80] sm:$0xf]
      %v871 = vld [vmem:[%s288 + $0x84] sm:$0xf]
      %v872 = vld [vmem:[%s288 + $0x88] sm:$0xf]
      %v873 = vld [vmem:[%s288 + $0x8c] sm:$0xf]
      %v874 = vunpack.c.l.bf16 %v838
      %v875 = vunpack.c.l.bf16 %v839
      %v876 = vunpack.c.l.bf16 %v840
      %v877 = vunpack.c.l.bf16 %v841
      %v878 = vunpack.c.l.bf16 %v842
      %v879 = vunpack.c.l.bf16 %v843
      %v880 = vunpack.c.l.bf16 %v844
      %v881 = vunpack.c.l.bf16 %v845
      %v882 = vunpack.c.l.bf16 %v846
      %v883 = vunpack.c.l.bf16 %v847
      %v884 = vunpack.c.l.bf16 %v848
      %v885 = vunpack.c.l.bf16 %v849
      %v886 = vunpack.c.l.bf16 %v850
      %v887 = vunpack.c.l.bf16 %v851
      %v888 = vunpack.c.l.bf16 %v852
      %v889 = vunpack.c.l.bf16 %v853
      %v890 = vunpack.c.l.bf16 %v854
      %v891 = vunpack.c.l.bf16 %v855
      %v892 = vunpack.c.l.bf16 %v856
      %v893 = vunpack.c.l.bf16 %v857
      %v894 = vunpack.c.l.bf16 %v858
      %v895 = vunpack.c.l.bf16 %v859
      %v896 = vunpack.c.l.bf16 %v860
      %v897 = vunpack.c.l.bf16 %v861
      %v898 = vunpack.c.l.bf16 %v862
      %v899 = vunpack.c.l.bf16 %v863
      %v900 = vunpack.c.l.bf16 %v864
      %v901 = vunpack.c.l.bf16 %v865
      %v902 = vunpack.c.l.bf16 %v866
      %v903 = vunpack.c.l.bf16 %v867
      %v904 = vunpack.c.l.bf16 %v868
      %v905 = vunpack.c.l.bf16 %v869
      %v906 = vunpack.c.l.bf16 %v870
      %v907 = vunpack.c.l.bf16 %v871
      %v908 = vunpack.c.l.bf16 %v872
      %v909 = vunpack.c.l.bf16 %v873
      %v910 = vld [vmem:[%s3] sm:$0x1]
      %v912 = vlaneseq
      %v913 = vshrl.u32 %v912, 7
      %v914 = vsub.s32 0, %v913
      %v915 = vrot.slane %v910, %v914
      %v917 = vmul.f32 %v874, %v915
      %v918 = vmul.f32 %v875, %v915
      %v919 = vmul.f32 %v876, %v915
      %v920 = vmul.f32 %v877, %v915
      %v921 = vmul.f32 %v878, %v915
      %v922 = vmul.f32 %v879, %v915
      %v923 = vmul.f32 %v880, %v915
      %v924 = vmul.f32 %v881, %v915
      %v925 = vmul.f32 %v882, %v915
      %v926 = vmul.f32 %v883, %v915
      %v927 = vmul.f32 %v884, %v915
      %v928 = vmul.f32 %v885, %v915
      %v929 = vmul.f32 %v886, %v915
      %v930 = vmul.f32 %v887, %v915
      %v931 = vmul.f32 %v888, %v915
      %v932 = vmul.f32 %v889, %v915
      %v933 = vmul.f32 %v890, %v915
      %v934 = vmul.f32 %v891, %v915
      %v935 = vmul.f32 %v892, %v915
      %v936 = vmul.f32 %v893, %v915
      %v937 = vmul.f32 %v894, %v915
      %v938 = vmul.f32 %v895, %v915
      %v939 = vmul.f32 %v896, %v915
      %v940 = vmul.f32 %v897, %v915
      %v941 = vmul.f32 %v898, %v915
      %v942 = vmul.f32 %v899, %v915
      %v943 = vmul.f32 %v900, %v915
      %v944 = vmul.f32 %v901, %v915
      %v945 = vmul.f32 %v902, %v915
      %v946 = vmul.f32 %v903, %v915
      %v947 = vmul.f32 %v904, %v915
      %v948 = vmul.f32 %v905, %v915
      %v949 = vmul.f32 %v906, %v915
      %v950 = vmul.f32 %v907, %v915
      %v951 = vmul.f32 %v908, %v915
      %v952 = vmul.f32 %v909, %v915
      %v953 = vld [vmem:[%s4] sm:$0x1]
      %v955 = vlaneseq
      %v956 = vshrl.u32 %v955, 7
      %v957 = vsub.s32 0, %v956
      %v958 = vrot.slane %v953, %v957
      %v960 = vadd.f32 %v917, %v958
      %v961 = vadd.f32 %v918, %v958
      %v962 = vadd.f32 %v919, %v958
      %v963 = vadd.f32 %v920, %v958
      %v964 = vadd.f32 %v921, %v958
      %v965 = vadd.f32 %v922, %v958
      %v966 = vadd.f32 %v923, %v958
      %v967 = vadd.f32 %v924, %v958
      %v968 = vadd.f32 %v925, %v958
      %v969 = vadd.f32 %v926, %v958
      %v970 = vadd.f32 %v927, %v958
      %v971 = vadd.f32 %v928, %v958
      %v972 = vadd.f32 %v929, %v958
      %v973 = vadd.f32 %v930, %v958
      %v974 = vadd.f32 %v931, %v958
      %v975 = vadd.f32 %v932, %v958
      %v976 = vadd.f32 %v933, %v958
      %v977 = vadd.f32 %v934, %v958
      %v978 = vadd.f32 %v935, %v958
      %v979 = vadd.f32 %v936, %v958
      %v980 = vadd.f32 %v937, %v958
      %v981 = vadd.f32 %v938, %v958
      %v982 = vadd.f32 %v939, %v958
      %v983 = vadd.f32 %v940, %v958
      %v984 = vadd.f32 %v941, %v958
      %v985 = vadd.f32 %v942, %v958
      %v986 = vadd.f32 %v943, %v958
      %v987 = vadd.f32 %v944, %v958
      %v988 = vadd.f32 %v945, %v958
      %v989 = vadd.f32 %v946, %v958
      %v990 = vadd.f32 %v947, %v958
      %v991 = vadd.f32 %v948, %v958
      %v992 = vadd.f32 %v949, %v958
      %v993 = vadd.f32 %v950, %v958
      %v994 = vadd.f32 %v951, %v958
      %v995 = vadd.f32 %v952, %v958
      %v996 = vld [vmem:[%s5] sm:$0x1]
      %v998 = vlaneseq
      %v999 = vshrl.u32 %v998, 7
      %v1000 = vsub.s32 0, %v999
      %v1001 = vrot.slane %v996, %v1000
      %v1003 = vmul.f32 %v696, %v1001
      %v1004 = vmul.f32 %v699, %v1001
      %v1005 = vmul.f32 %v704, %v1001
      %v1006 = vmul.f32 %v707, %v1001
      %v1007 = vmul.f32 %v712, %v1001
      %v1008 = vmul.f32 %v715, %v1001
      %v1009 = vmul.f32 %v720, %v1001
      %v1010 = vmul.f32 %v723, %v1001
      %v1011 = vmul.f32 %v728, %v1001
      %v1012 = vmul.f32 %v731, %v1001
      %v1013 = vmul.f32 %v736, %v1001
      %v1014 = vmul.f32 %v739, %v1001
      %v1015 = vmul.f32 %v744, %v1001
      %v1016 = vmul.f32 %v747, %v1001
      %v1017 = vmul.f32 %v752, %v1001
      %v1018 = vmul.f32 %v755, %v1001
      %v1019 = vmul.f32 %v760, %v1001
      %v1020 = vmul.f32 %v763, %v1001
      %v1021 = vmul.f32 %v768, %v1001
      %v1022 = vmul.f32 %v771, %v1001
      %v1023 = vmul.f32 %v776, %v1001
      %v1024 = vmul.f32 %v779, %v1001
      %v1025 = vmul.f32 %v784, %v1001
      %v1026 = vmul.f32 %v787, %v1001
      %v1027 = vmul.f32 %v792, %v1001
      %v1028 = vmul.f32 %v795, %v1001
      %v1029 = vmul.f32 %v800, %v1001
      %v1030 = vmul.f32 %v803, %v1001
      %v1031 = vmul.f32 %v808, %v1001
      %v1032 = vmul.f32 %v811, %v1001
      %v1033 = vmul.f32 %v816, %v1001
      %v1034 = vmul.f32 %v819, %v1001
      %v1035 = vmul.f32 %v824, %v1001
      %v1036 = vmul.f32 %v827, %v1001
      %v1037 = vmul.f32 %v832, %v1001
      %v1038 = vmul.f32 %v835, %v1001
      %v1039 = vadd.f32 %v960, %v1003
      %v1040 = vadd.f32 %v961, %v1004
      %v1041 = vadd.f32 %v962, %v1005
      %v1042 = vadd.f32 %v963, %v1006
      %v1043 = vadd.f32 %v964, %v1007
      %v1044 = vadd.f32 %v965, %v1008
      %v1045 = vadd.f32 %v966, %v1009
      %v1046 = vadd.f32 %v967, %v1010
      %v1047 = vadd.f32 %v968, %v1011
      %v1048 = vadd.f32 %v969, %v1012
      %v1049 = vadd.f32 %v970, %v1013
      %v1050 = vadd.f32 %v971, %v1014
      %v1051 = vadd.f32 %v972, %v1015
      %v1052 = vadd.f32 %v973, %v1016
      %v1053 = vadd.f32 %v974, %v1017
      %v1054 = vadd.f32 %v975, %v1018
      %v1055 = vadd.f32 %v976, %v1019
      %v1056 = vadd.f32 %v977, %v1020
      %v1057 = vadd.f32 %v978, %v1021
      %v1058 = vadd.f32 %v979, %v1022
      %v1059 = vadd.f32 %v980, %v1023
      %v1060 = vadd.f32 %v981, %v1024
      %v1061 = vadd.f32 %v982, %v1025
      %v1062 = vadd.f32 %v983, %v1026
      %v1063 = vadd.f32 %v984, %v1027
      %v1064 = vadd.f32 %v985, %v1028
      %v1065 = vadd.f32 %v986, %v1029
      %v1066 = vadd.f32 %v987, %v1030
      %v1067 = vadd.f32 %v988, %v1031
      %v1068 = vadd.f32 %v989, %v1032
      %v1069 = vadd.f32 %v990, %v1033
      %v1070 = vadd.f32 %v991, %v1034
      %v1071 = vadd.f32 %v992, %v1035
      %v1072 = vadd.f32 %v993, %v1036
      %v1073 = vadd.f32 %v994, %v1037
      %v1074 = vadd.f32 %v995, %v1038
      %v1075 = vld [vmem:[%s6] sm:$0x1]
      %v1077 = vlaneseq
      %v1078 = vshrl.u32 %v1077, 7
      %v1079 = vsub.s32 0, %v1078
      %v1080 = vrot.slane %v1075, %v1079
      %v1082 = vadd.f32 %v1039, %v1080
      %v1083 = vadd.f32 %v1040, %v1080
      %v1084 = vadd.f32 %v1041, %v1080
      %v1085 = vadd.f32 %v1042, %v1080
      %v1086 = vadd.f32 %v1043, %v1080
      %v1087 = vadd.f32 %v1044, %v1080
      %v1088 = vadd.f32 %v1045, %v1080
      %v1089 = vadd.f32 %v1046, %v1080
      %v1090 = vadd.f32 %v1047, %v1080
      %v1091 = vadd.f32 %v1048, %v1080
      %v1092 = vadd.f32 %v1049, %v1080
      %v1093 = vadd.f32 %v1050, %v1080
      %v1094 = vadd.f32 %v1051, %v1080
      %v1095 = vadd.f32 %v1052, %v1080
      %v1096 = vadd.f32 %v1053, %v1080
      %v1097 = vadd.f32 %v1054, %v1080
      %v1098 = vadd.f32 %v1055, %v1080
      %v1099 = vadd.f32 %v1056, %v1080
      %v1100 = vadd.f32 %v1057, %v1080
      %v1101 = vadd.f32 %v1058, %v1080
      %v1102 = vadd.f32 %v1059, %v1080
      %v1103 = vadd.f32 %v1060, %v1080
      %v1104 = vadd.f32 %v1061, %v1080
      %v1105 = vadd.f32 %v1062, %v1080
      %v1106 = vadd.f32 %v1063, %v1080
      %v1107 = vadd.f32 %v1064, %v1080
      %v1108 = vadd.f32 %v1065, %v1080
      %v1109 = vadd.f32 %v1066, %v1080
      %v1110 = vadd.f32 %v1067, %v1080
      %v1111 = vadd.f32 %v1068, %v1080
      %v1112 = vadd.f32 %v1069, %v1080
      %v1113 = vadd.f32 %v1070, %v1080
      %v1114 = vadd.f32 %v1071, %v1080
      %v1115 = vadd.f32 %v1072, %v1080
      %v1116 = vadd.f32 %v1073, %v1080
      %v1117 = vadd.f32 %v1074, %v1080
      %v1118 = vmax.f32 %v1082, 0.0
      %v1119 = vmax.f32 %v1083, 0.0
      %v1120 = vmax.f32 %v1084, 0.0
      %v1121 = vmax.f32 %v1085, 0.0
      %v1122 = vmax.f32 %v1086, 0.0
      %v1123 = vmax.f32 %v1087, 0.0
      %v1124 = vmax.f32 %v1088, 0.0
      %v1125 = vmax.f32 %v1089, 0.0
      %v1126 = vmax.f32 %v1090, 0.0
      %v1127 = vmax.f32 %v1091, 0.0
      %v1128 = vmax.f32 %v1092, 0.0
      %v1129 = vmax.f32 %v1093, 0.0
      %v1130 = vmax.f32 %v1094, 0.0
      %v1131 = vmax.f32 %v1095, 0.0
      %v1132 = vmax.f32 %v1096, 0.0
      %v1133 = vmax.f32 %v1097, 0.0
      %v1134 = vmax.f32 %v1098, 0.0
      %v1135 = vmax.f32 %v1099, 0.0
      %v1136 = vmax.f32 %v1100, 0.0
      %v1137 = vmax.f32 %v1101, 0.0
      %v1138 = vmax.f32 %v1102, 0.0
      %v1139 = vmax.f32 %v1103, 0.0
      %v1140 = vmax.f32 %v1104, 0.0
      %v1141 = vmax.f32 %v1105, 0.0
      %v1142 = vmax.f32 %v1106, 0.0
      %v1143 = vmax.f32 %v1107, 0.0
      %v1144 = vmax.f32 %v1108, 0.0
      %v1145 = vmax.f32 %v1109, 0.0
      %v1146 = vmax.f32 %v1110, 0.0
      %v1147 = vmax.f32 %v1111, 0.0
      %v1148 = vmax.f32 %v1112, 0.0
      %v1149 = vmax.f32 %v1113, 0.0
      %v1150 = vmax.f32 %v1114, 0.0
      %v1151 = vmax.f32 %v1115, 0.0
      %v1152 = vmax.f32 %v1116, 0.0
      %v1153 = vmax.f32 %v1117, 0.0
      %vm1154 = vcmask 64512
      %1155 = vst.msk [vmem:[%s298] sm:$0xff] %vm1154, %v1118
      %1156 = vst.msk [vmem:[%s298 + $0x8] sm:$0xff] %vm1154, %v1119
      %s1157 = scalar_lea.vmem %s298, 16
      %vm1158 = vcmask 64514
      %1159 = vst.msk [vmem:[%s1157 - $0x2] sm:$0xfc] %vm1158, %v1120
      %1160 = vst.msk [vmem:[%s1157 + $0x6] sm:$0xff] %vm1154, %v1121
      %vm1161 = vcmask 58368
      %1162 = vst.msk [vmem:[%s1157 + $0xe] sm:$0x3] %vm1161, %v1122
      %s1163 = scalar_lea.vmem %s298, 32
      %vm1164 = vcmask 64516
      %1165 = vst.msk [vmem:[%s1163 - $0x4] sm:$0xf0] %vm1164, %v1122
      %1166 = vst.msk [vmem:[%s1163 + $0x4] sm:$0xff] %vm1154, %v1123
      %vm1167 = vcmask 60416
      %1168 = vst.msk [vmem:[%s1163 + $0xc] sm:$0xf] %vm1167, %v1124
      %s1169 = scalar_lea.vmem %s298, 48
      %vm1170 = vcmask 64518
      %1171 = vst.msk [vmem:[%s1169 - $0x6] sm:$0xc0] %vm1170, %v1124
      %1172 = vst.msk [vmem:[%s1169 + $0x2] sm:$0xff] %vm1154, %v1125
      %vm1173 = vcmask 62464
      %1174 = vst.msk [vmem:[%s1169 + $0xa] sm:$0x3f] %vm1173, %v1126
      %s1175 = scalar_lea.vmem %s298, 64
      %1176 = vst.msk [vmem:[%s1175] sm:$0xff] %vm1154, %v1127
      %1177 = vst.msk [vmem:[%s1175 + $0x8] sm:$0xff] %vm1154, %v1128
      %s1178 = scalar_lea.vmem %s298, 80
      %1179 = vst.msk [vmem:[%s1178 - $0x2] sm:$0xfc] %vm1158, %v1129
      %1180 = vst.msk [vmem:[%s1178 + $0x6] sm:$0xff] %vm1154, %v1130
      %1181 = vst.msk [vmem:[%s1178 + $0xe] sm:$0x3] %vm1161, %v1131
      %s1182 = scalar_lea.vmem %s298, 96
      %1183 = vst.msk [vmem:[%s1182 - $0x4] sm:$0xf0] %vm1164, %v1131
      %1184 = vst.msk [vmem:[%s1182 + $0x4] sm:$0xff] %vm1154, %v1132
      %1185 = vst.msk [vmem:[%s1182 + $0xc] sm:$0xf] %vm1167, %v1133
      %s1186 = scalar_lea.vmem %s298, 112
      %1187 = vst.msk [vmem:[%s1186 - $0x6] sm:$0xc0] %vm1170, %v1133
      %1188 = vst.msk [vmem:[%s1186 + $0x2] sm:$0xff] %vm1154, %v1134
      %1189 = vst.msk [vmem:[%s1186 + $0xa] sm:$0x3f] %vm1173, %v1135
      %s1190 = scalar_lea.vmem %s298, 128
      %1191 = vst.msk [vmem:[%s1190] sm:$0xff] %vm1154, %v1136
      %1192 = vst.msk [vmem:[%s1190 + $0x8] sm:$0xff] %vm1154, %v1137
      %s1193 = scalar_lea.vmem %s298, 144
      %1194 = vst.msk [vmem:[%s1193 - $0x2] sm:$0xfc] %vm1158, %v1138
      %1195 = vst.msk [vmem:[%s1193 + $0x6] sm:$0xff] %vm1154, %v1139
      %1196 = vst.msk [vmem:[%s1193 + $0xe] sm:$0x3] %vm1161, %v1140
      %s1197 = scalar_lea.vmem %s298, 160
      %1198 = vst.msk [vmem:[%s1197 - $0x4] sm:$0xf0] %vm1164, %v1140
      %1199 = vst.msk [vmem:[%s1197 + $0x4] sm:$0xff] %vm1154, %v1141
      %1200 = vst.msk [vmem:[%s1197 + $0xc] sm:$0xf] %vm1167, %v1142
      %s1201 = scalar_lea.vmem %s298, 176
      %1202 = vst.msk [vmem:[%s1201 - $0x6] sm:$0xc0] %vm1170, %v1142
      %1203 = vst.msk [vmem:[%s1201 + $0x2] sm:$0xff] %vm1154, %v1143
      %1204 = vst.msk [vmem:[%s1201 + $0xa] sm:$0x3f] %vm1173, %v1144
      %s1205 = scalar_lea.vmem %s298, 192
      %1206 = vst.msk [vmem:[%s1205] sm:$0xff] %vm1154, %v1145
      %1207 = vst.msk [vmem:[%s1205 + $0x8] sm:$0xff] %vm1154, %v1146
      %s1208 = scalar_lea.vmem %s298, 208
      %1209 = vst.msk [vmem:[%s1208 - $0x2] sm:$0xfc] %vm1158, %v1147
      %1210 = vst.msk [vmem:[%s1208 + $0x6] sm:$0xff] %vm1154, %v1148
      %1211 = vst.msk [vmem:[%s1208 + $0xe] sm:$0x3] %vm1161, %v1149
      %s1212 = scalar_lea.vmem %s298, 224
      %1213 = vst.msk [vmem:[%s1212 - $0x4] sm:$0xf0] %vm1164, %v1149
      %1214 = vst.msk [vmem:[%s1212 + $0x4] sm:$0xff] %vm1154, %v1150
      %1215 = vst.msk [vmem:[%s1212 + $0xc] sm:$0xf] %vm1167, %v1151
      %s1216 = scalar_lea.vmem %s298, 240
      %1217 = vst.msk [vmem:[%s1216 - $0x6] sm:$0xc0] %vm1170, %v1151
      %1218 = vst.msk [vmem:[%s1216 + $0x2] sm:$0xff] %vm1154, %v1152
      %1219 = vst.msk [vmem:[%s1216 + $0xa] sm:$0x3f] %vm1173, %v1153
      %p1220 = scmp.lt.s32.totalorder %s18, 1
      %s1221 = scalar_select %p1220, %s18, 1
      %s1222 = smul.addr %s1221, 32
      %s1223 = smul.addr %s1222, 8
      %s1224 = scalar_lea.vmem %s7, %s1223
      // Predicated region
      $region49: #{resblock_forward.5} parent=47 // pred_check
        %p1225 = pneg %p193
      $region50: #{resblock_forward.5} parent=47 // pred_check_branch
        %1227 = sbr.rel (%p1225) target = $region52
      $region51: #{resblock_forward.5} parent=47 // pred_region
        _
      $region52: #{resblock_forward.5} parent=47 // pred_fallthru
        _
    $region48: #{resblock_forward.5} parent=5 // pred_fallthru
      _
    %p1228 = scmp.le.s32.totalorder 2, %s13
    // Predicated region
    $region53: #{resblock_forward.5} parent=5 // pred_check
      %p1229 = pneg %p1228
    $region54: #{resblock_forward.5} parent=5 // pred_check_branch
      %1231 = sbr.rel (%p1229) target = $region56
    $region55: #{resblock_forward.5} parent=5 // pred_region
      %s1232 = ssub.s32 %s13, 2
      // Predicated region
      $region57: #{resblock_forward.5} parent=55 // pred_check
        %p1233 = pneg %p199
      $region58: #{resblock_forward.5} parent=55 // pred_check_branch
        %1235 = sbr.rel (%p1233) target = $region60
      $region59: #{resblock_forward.5} parent=55 // pred_region
        %p1236 = scmp.lt.s32.totalorder %s19, 1
        %s1237 = scalar_select %p1236, %s19, 1
        %s1238 = smul.addr %s1237, 32
        %s1239 = smul.addr %s1238, 8
        %s1240 = scalar_lea.vmem %s7, %s1239
      $region60: #{resblock_forward.5} parent=55 // pred_fallthru
        _
    $region56: #{resblock_forward.5} parent=5 // pred_fallthru
      _
  $region6: #{resblock_forward.5} parent=0 // loop_footer
    %s17 = sadd.s32 1, %s13
  $region7: #{resblock_forward.5} parent=0 // loop_footer_branch
    %12 = sbr.rel target = $region3
  $region8: #{resblock_forward.5} parent=0 // loop_exit
    _

// kernel: resblock_forward.3
$region0: #{resblock_forward.3}
  #allocation0 [shape = 'u32[]', space=smem, size = 0x4, offset = 0x4, fixed_abs, tag = 'smem constant byte address 0x4 - core index']
  #allocation1 [shape = 'u32[144,128]{1,0:T(1,128)}', space=vmem, size = 0x12000, scoped, tag = 'internal scratch']
  %s0 = inlined_call_operand.vmem [shape: bf16[2,342,4], index: 0, kind: input, shape index: {}]
  %s1 = inlined_call_operand.vmem [shape: f32[288,1], index: 1, kind: input, shape index: {}]
  %s2 = inlined_call_operand.vmem [shape: bf16[9,4,8], index: 2, kind: input, shape index: {}]
  %s3 = inlined_call_operand.vmem [shape: bf16[4,8], index: 3, kind: input, shape index: {}]
  %s4 = inlined_call_operand.vmem [shape: bf16[2,288,8], index: 4, kind: output, shape index: {0}]
  %s5 = inlined_call_operand.vmem [shape: f32[2,4,8], index: 5, kind: output, shape index: {1}]
  %6 = xla_tuple %s4, %s5
  %s7 = sld [smem:[#allocation0]]
  $region57: #{resblock_forward.3} parent=0
    _
  %s9 = ssub.s32 1, %s7
  %s10 = scalar_select 0, %s9, %s7
  loop: start=0, step=1, limit=4
  $region2: #{resblock_forward.3} parent=0 // loop_pre_header
    _
  $region3: #{resblock_forward.3} parent=0 // loop_header
    %s12 = sphi 0, %s16
    %p13 = scmp.ge.s32.totalorder %s12, 4
    %s22 = sphi 0, %s24
    %s25 = sphi 0, %s22
    %s26 = sphi 0, %s25
    %s42 = sphi 0, %s26
    %s46 = sphi 0, %s46
    %s48 = sphi 0, %s46
    %s49 = sphi 0, %s48
    %s63 = sphi 0, %s49
    %s67 = sphi 0, %s67
    %s69 = sphi 0, %s67
    %s70 = sphi 0, %s69
    %s84 = sphi 0, %s70
    %s88 = sphi 0, %s88
    %s90 = sphi 0, %s88
    %s91 = sphi 0, %s90
    %s105 = sphi 0, %s91
    %s111 = sphi 0, %s113
    %s114 = sphi 0, %s111
    %s115 = sphi 0, %s114
    %s131 = sphi 0, %s115
    %s137 = sphi 0, %s139
    %s140 = sphi 0, %s137
    %s141 = sphi 0, %s140
    %s157 = sphi 0, %s141
  $region4: #{resblock_forward.3} parent=0 // loop_header_branch
    %15 = sbr.rel (%p13) target = $region8
  $region5: #{resblock_forward.3} parent=0 // loop_body
    %s17 = ssub.s32 %s12, 1
    %s18 = ssub.s32 %s12, 2
    %s19 = sadd.s32 %s12, 1
    %s20 = ssub.s32 %s12, %s19
    %p21 = scmp.eq.s32.totalorder %s20, 0
    %s23 = sadd.s32 %s22, 1
    %s24 = scalar_select %p21, %s22, %s23
    %p27 = pneg %p21
    %p28 = scmp.eq.s32.totalorder %s12, 1
    %p29 = por %p27, %p28
    %p30 = scmp.ne.s32.totalorder %s22, %s25
    %p31 = scmp.eq.s32.totalorder %s12, 0
    %p32 = por %p30, %p31
    %p33 = scmp.ne.s32.totalorder %s22, %s25
    %p34 = scmp.eq.s32.totalorder %s17, 1
    %p35 = por %p33, %p34
    %p36 = scmp.ne.s32.totalorder %s25, %s26
    %p37 = scmp.eq.s32.totalorder %s17, 0
    %p38 = por %p36, %p37
    %p39 = scmp.ne.s32.totalorder %s25, %s26
    %p40 = scmp.eq.s32.totalorder %s18, 1
    %p41 = por %p39, %p40
    %p43 = scmp.ne.s32.totalorder %s26, %s42
    %p44 = scmp.eq.s32.totalorder %s18, 0
    %p45 = por %p43, %p44
    %s47 = sadd.s32 %s46, 1
    %p50 = scmp.eq.s32.totalorder %s12, 1
    %p51 = scmp.ne.s32.totalorder %s46, %s48
    %p52 = scmp.eq.s32.totalorder %s12, 0
    %p53 = por %p51, %p52
    %p54 = scmp.ne.s32.totalorder %s46, %s48
    %p55 = scmp.eq.s32.totalorder %s17, 1
    %p56 = por %p54, %p55
    %p57 = scmp.ne.s32.totalorder %s48, %s49
    %p58 = scmp.eq.s32.totalorder %s17, 0
    %p59 = por %p57, %p58
    %p60 = scmp.ne.s32.totalorder %s48, %s49
    %p61 = scmp.eq.s32.totalorder %s18, 1
    %p62 = por %p60, %p61
    %p64 = scmp.ne.s32.totalorder %s49, %s63
    %p65 = scmp.eq.s32.totalorder %s18, 0
    %p66 = por %p64, %p65
    %s68 = sadd.s32 %s67, 1
    %p71 = scmp.eq.s32.totalorder %s12, 1
    %p72 = scmp.ne.s32.totalorder %s67, %s69
    %p73 = scmp.eq.s32.totalorder %s12, 0
    %p74 = por %p72, %p73
    %p75 = scmp.ne.s32.totalorder %s67, %s69
    %p76 = scmp.eq.s32.totalorder %s17, 1
    %p77 = por %p75, %p76
    %p78 = scmp.ne.s32.totalorder %s69, %s70
    %p79 = scmp.eq.s32.totalorder %s17, 0
    %p80 = por %p78, %p79
    %p81 = scmp.ne.s32.totalorder %s69, %s70
    %p82 = scmp.eq.s32.totalorder %s18, 1
    %p83 = por %p81, %p82
    %p85 = scmp.ne.s32.totalorder %s70, %s84
    %p86 = scmp.eq.s32.totalorder %s18, 0
    %p87 = por %p85, %p86
    %s89 = sadd.s32 %s88, 1
    %p92 = scmp.eq.s32.totalorder %s12, 1
    %p93 = scmp.ne.s32.totalorder %s88, %s90
    %p94 = scmp.eq.s32.totalorder %s12, 0
    %p95 = por %p93, %p94
    %p96 = scmp.ne.s32.totalorder %s88, %s90
    %p97 = scmp.eq.s32.totalorder %s17, 1
    %p98 = por %p96, %p97
    %p99 = scmp.ne.s32.totalorder %s90, %s91
    %p100 = scmp.eq.s32.totalorder %s17, 0
    %p101 = por %p99, %p100
    %p102 = scmp.ne.s32.totalorder %s90, %s91
    %p103 = scmp.eq.s32.totalorder %s18, 1
    %p104 = por %p102, %p103
    %p106 = scmp.ne.s32.totalorder %s91, %s105
    %p107 = scmp.eq.s32.totalorder %s18, 0
    %p108 = por %p106, %p107
    %s109 = ssub.s32 %s12, %s19
    %p110 = scmp.eq.s32.totalorder %s109, 0
    %s112 = sadd.s32 %s111, 1
    %s113 = scalar_select %p110, %s111, %s112
    %p116 = pneg %p110
    %p117 = scmp.eq.s32.totalorder %s12, 1
    %p118 = por %p116, %p117
    %p119 = scmp.ne.s32.totalorder %s111, %s114
    %p120 = scmp.eq.s32.totalorder %s12, 0
    %p121 = por %p119, %p120
    %p122 = scmp.ne.s32.totalorder %s111, %s114
    %p123 = scmp.eq.s32.totalorder %s17, 1
    %p124 = por %p122, %p123
    %p125 = scmp.ne.s32.totalorder %s114, %s115
    %p126 = scmp.eq.s32.totalorder %s17, 0
    %p127 = por %p125, %p126
    %p128 = scmp.ne.s32.totalorder %s114, %s115
    %p129 = scmp.eq.s32.totalorder %s18, 1
    %p130 = por %p128, %p129
    %p132 = scmp.ne.s32.totalorder %s115, %s131
    %p133 = scmp.eq.s32.totalorder %s18, 0
    %p134 = por %p132, %p133
    %s135 = ssub.s32 %s12, %s19
    %p136 = scmp.eq.s32.totalorder %s135, 0
    %s138 = sadd.s32 %s137, 1
    %s139 = scalar_select %p136, %s137, %s138
    %p142 = pneg %p136
    %p143 = scmp.eq.s32.totalorder %s12, 1
    %p144 = por %p142, %p143
    %p145 = scmp.ne.s32.totalorder %s137, %s140
    %p146 = scmp.eq.s32.totalorder %s12, 0
    %p147 = por %p145, %p146
    %p148 = scmp.ne.s32.totalorder %s137, %s140
    %p149 = scmp.eq.s32.totalorder %s17, 1
    %p150 = por %p148, %p149
    %p151 = scmp.ne.s32.totalorder %s140, %s141
    %p152 = scmp.eq.s32.totalorder %s17, 0
    %p153 = por %p151, %p152
    %p154 = scmp.ne.s32.totalorder %s140, %s141
    %p155 = scmp.eq.s32.totalorder %s18, 1
    %p156 = por %p154, %p155
    %p158 = scmp.ne.s32.totalorder %s141, %s157
    %p159 = scmp.eq.s32.totalorder %s18, 0
    %p160 = por %p158, %p159
    %p161 = scmp.le.s32.totalorder 1, %s12
    %p162 = scmp.lt.s32.totalorder %s12, 3
    %p163 = pnand %p161, %p162
    %p164 = pneg %p163
    // Predicated region
    $region9: #{resblock_forward.3} parent=5 // pred_check
      _
    $region10: #{resblock_forward.3} parent=5 // pred_check_branch
      %166 = sbr.rel (%p163) target = $region12
    $region11: #{resblock_forward.3} parent=5 // pred_region
      %s167 = ssub.s32 %s12, 1
      // Predicated region
      $region13: #{resblock_forward.3} parent=11 // pred_check
        %p168 = pneg %p59
      $region14: #{resblock_forward.3} parent=11 // pred_check_branch
        %170 = sbr.rel (%p168) target = $region16
      $region15: #{resblock_forward.3} parent=11 // pred_region
        _
      $region16: #{resblock_forward.3} parent=11 // pred_fallthru
        _
      // Predicated region
      $region17: #{resblock_forward.3} parent=11 // pred_check
        %p171 = pneg %p80
      $region18: #{resblock_forward.3} parent=11 // pred_check_branch
        %173 = sbr.rel (%p171) target = $region20
      $region19: #{resblock_forward.3} parent=11 // pred_region
        _
      $region20: #{resblock_forward.3} parent=11 // pred_fallthru
        _
      // Predicated region
      $region21: #{resblock_forward.3} parent=11 // pred_check
        %p174 = pneg %p101
      $region22: #{resblock_forward.3} parent=11 // pred_check_branch
        %176 = sbr.rel (%p174) target = $region24
      $region23: #{resblock_forward.3} parent=11 // pred_region
        _
      $region24: #{resblock_forward.3} parent=11 // pred_fallthru
        _
    $region12: #{resblock_forward.3} parent=5 // pred_fallthru
      _
    %p177 = scmp.lt.s32.totalorder %s12, 2
    // Predicated region
    $region25: #{resblock_forward.3} parent=5 // pred_check
      %p178 = pneg %p177
    $region26: #{resblock_forward.3} parent=5 // pred_check_branch
      %180 = sbr.rel (%p178) target = $region28
    $region27: #{resblock_forward.3} parent=5 // pred_region
      // Predicated region
      $region29: #{resblock_forward.3} parent=27 // pred_check
        %p181 = pneg %p32
      $region30: #{resblock_forward.3} parent=27 // pred_check_branch
        %183 = sbr.rel (%p181) target = $region32
      $region31: #{resblock_forward.3} parent=27 // pred_region
        %p184 = scmp.lt.s32.totalorder %s12, 1
        %s185 = scalar_select %p184, %s12, 1
        %s186 = smul.addr %s185, 43
        %s187 = smul.addr %s186, 4
        %s188 = scalar_lea.vmem %s0, %s187
      $region32: #{resblock_forward.3} parent=27 // pred_fallthru
        _
    $region28: #{resblock_forward.3} parent=5 // pred_fallthru
      _
    %p189 = scmp.le.s32.totalorder 1, %s12
    %p190 = scmp.lt.s32.totalorder %s12, 3
    %p191 = pnand %p189, %p190
    %p192 = pneg %p191
    // Predicated region
    $region33: #{resblock_forward.3} parent=5 // pred_check
      _
    $region34: #{resblock_forward.3} parent=5 // pred_check_branch
      %194 = sbr.rel (%p191) target = $region36
    $region35: #{resblock_forward.3} parent=5 // pred_region
      %s195 = ssub.s32 %s12, 1
      %p196 = scmp.lt.s32.totalorder %s17, 1
      %s197 = scalar_select %p196, %s17, 1
      %s198 = smul.addr %s197, 43
      %s199 = smul.addr %s198, 4
      %s200 = scalar_lea.vmem %s0, %s199
      %p201 = pneg %p38
      %p202 = pneg %p35
      %p203 = pneg %p59
      %p204 = pneg %p56
      %p205 = pneg %p80
      %p206 = pneg %p77
      %p207 = pneg %p101
      %p208 = pneg %p98
      %p209 = pneg %p127
      %p210 = pneg %p124
      %p211 = scmp.lt.s32.totalorder %s17, 1
      %s212 = scalar_select %p211, %s17, 1
      %s213 = smul.addr %s212, 36
      %s214 = smul.addr %s213, 4
      %s215 = scalar_lea.vmem %s4, %s214
      %p216 = pneg %p153
      %p217 = pneg %p150
      %p218 = scmp.lt.s32.totalorder %s17, 1
      %s219 = scalar_select %p218, %s17, 1
      %s220 = smul.addr %s219, 4
      %s221 = scalar_lea.vmem %s5, %s220
      %p222 = scmp.lt.s32.totalorder %s17, 1
      %s223 = scalar_select %p222, %s17, 1
      %s224 = smul.addr %s223, 43
      %s225 = smul.addr %s224, 4
      %s226 = scalar_lea.vmem %s0, %s225
      %p227 = scmp.lt.s32.totalorder %s17, 1
      %s228 = scalar_select %p227, %s17, 1
      %s229 = smul.addr %s228, 36
      %s230 = smul.addr %s229, 4
      %s231 = scalar_lea.vmem %s4, %s230
      %p232 = scmp.lt.s32.totalorder %s17, 1
      %s233 = scalar_select %p232, %s17, 1
      %s234 = smul.addr %s233, 4
      %s235 = scalar_lea.vmem %s5, %s234
      %v237 = vld [vmem:[%s226] sm:$0xf]
      %v238 = vld [vmem:[%s226 + $0x4] sm:$0xf]
      %v239 = vld [vmem:[%s226 + $0x8] sm:$0xf]
      %v240 = vld [vmem:[%s226 + $0xc] sm:$0xf]
      %v241 = vld [vmem:[%s226 + $0x10] sm:$0xf]
      %v242 = vld [vmem:[%s226 + $0x14] sm:$0xf]
      %v243 = vld [vmem:[%s226 + $0x18] sm:$0xf]
      %v244 = vld [vmem:[%s226 + $0x1c] sm:$0xf]
      %v245 = vld [vmem:[%s226 + $0x20] sm:$0xf]
      %v246 = vld [vmem:[%s226 + $0x24] sm:$0xf]
      %v247 = vld [vmem:[%s226 + $0x28] sm:$0xf]
      %v248 = vld [vmem:[%s226 + $0x2c] sm:$0xf]
      %v249 = vld [vmem:[%s226 + $0x30] sm:$0xf]
      %v250 = vld [vmem:[%s226 + $0x34] sm:$0xf]
      %v251 = vld [vmem:[%s226 + $0x38] sm:$0xf]
      %v252 = vld [vmem:[%s226 + $0x3c] sm:$0xf]
      %v253 = vld [vmem:[%s226 + $0x40] sm:$0xf]
      %v254 = vld [vmem:[%s226 + $0x44] sm:$0xf]
      %v255 = vld [vmem:[%s226 + $0x48] sm:$0xf]
      %v256 = vld [vmem:[%s226 + $0x4c] sm:$0xf]
      %v257 = vld [vmem:[%s226 + $0x50] sm:$0xf]
      %v258 = vld [vmem:[%s226 + $0x54] sm:$0xf]
      %v259 = vld [vmem:[%s226 + $0x58] sm:$0xf]
      %v260 = vld [vmem:[%s226 + $0x5c] sm:$0xf]
      %v261 = vld [vmem:[%s226 + $0x60] sm:$0xf]
      %v262 = vld [vmem:[%s226 + $0x64] sm:$0xf]
      %v263 = vld [vmem:[%s226 + $0x68] sm:$0xf]
      %v264 = vld [vmem:[%s226 + $0x6c] sm:$0xf]
      %v265 = vld [vmem:[%s226 + $0x70] sm:$0xf]
      %v266 = vld [vmem:[%s226 + $0x74] sm:$0xf]
      %v267 = vld [vmem:[%s226 + $0x78] sm:$0xf]
      %v268 = vld [vmem:[%s226 + $0x7c] sm:$0xf]
      %v269 = vld [vmem:[%s226 + $0x80] sm:$0xf]
      %v270 = vld [vmem:[%s226 + $0x84] sm:$0xf]
      %v271 = vld [vmem:[%s226 + $0x88] sm:$0xf]
      %v272 = vld [vmem:[%s226 + $0x8c] sm:$0xf]
      %v273 = vld [vmem:[%s2] sm:$0x3]
      %v274 = vld [vmem:[%s226 + $0x90] sm:$0x1]
      %s275 = scalar_lea.vmem %s2, 2
      %v276 = vld [vmem:[%s275] sm:$0x3]
      %v314 = vunpack.c.l.b16 %v237
      %v315 = vunpack.c.l.b16 %v238
      %v316 = vunpack.c.l.b16 %v239
      %v317 = vunpack.c.l.b16 %v240
      %v318 = vunpack.c.l.b16 %v241
      %v319 = vunpack.c.l.b16 %v242
      %v320 = vunpack.c.l.b16 %v243
      %v321 = vunpack.c.l.b16 %v244
      %v322 = vunpack.c.l.b16 %v245
      %v323 = vunpack.c.l.b16 %v246
      %v324 = vunpack.c.l.b16 %v247
      %v325 = vunpack.c.l.b16 %v248
      %v326 = vunpack.c.l.b16 %v249
      %v327 = vunpack.c.l.b16 %v250
      %v328 = vunpack.c.l.b16 %v251
      %v329 = vunpack.c.l.b16 %v252
      %v330 = vunpack.c.l.b16 %v253
      %v331 = vunpack.c.l.b16 %v254
      %v332 = vunpack.c.l.b16 %v255
      %v333 = vunpack.c.l.b16 %v256
      %v334 = vunpack.c.l.b16 %v257
      %v335 = vunpack.c.l.b16 %v258
      %v336 = vunpack.c.l.b16 %v259
      %v337 = vunpack.c.l.b16 %v260
      %v338 = vunpack.c.l.b16 %v261
      %v339 = vunpack.c.l.b16 %v262
      %v340 = vunpack.c.l.b16 %v263
      %v341 = vunpack.c.l.b16 %v264
      %v342 = vunpack.c.l.b16 %v265
      %v343 = vunpack.c.l.b16 %v266
      %v344 = vunpack.c.l.b16 %v267
      %v345 = vunpack.c.l.b16 %v268
      %v346 = vunpack.c.l.b16 %v269
      %v347 = vunpack.c.l.b16 %v270
      %v348 = vunpack.c.l.b16 %v271
      %v349 = vunpack.c.l.b16 %v272
      %v350 = vunpack.c.l.b16 %v274
      %v351 = vpack.c.b16 %v315, %v314
      %v352 = vpack.c.b16 %v317, %v316
      %v353 = vpack.c.b16 %v319, %v318
      %v354 = vpack.c.b16 %v321, %v320
      %v355 = vpack.c.b16 %v323, %v322
      %v356 = vpack.c.b16 %v325, %v324
      %v357 = vpack.c.b16 %v327, %v326
      %v358 = vpack.c.b16 %v329, %v328
      %v359 = vpack.c.b16 %v331, %v330
      %v360 = vpack.c.b16 %v333, %v332
      %v361 = vpack.c.b16 %v335, %v334
      %v362 = vpack.c.b16 %v337, %v336
      %v363 = vpack.c.b16 %v339, %v338
      %v364 = vpack.c.b16 %v341, %v340
      %v365 = vpack.c.b16 %v343, %v342
      %v366 = vpack.c.b16 %v345, %v344
      %v367 = vpack.c.b16 %v347, %v346
      %v368 = vpack.c.b16 %v349, %v348
      %v369 = vpack.c.b16 %v350, %v350
      %vm370 = vsmask.f32 7424
      %v372 = vshrl.u32 %v351, 16
      %v374 = vshll.u32 %v351, 16
      %v376 = vrot.slane %v374, 1
      %v377 = vor.u32 %v372, %v376
      %v379 = vshll.u32 %v352, 16
      %v381 = vrot.slane %v379, 1
      %v382 = vsel %vm370, %v377, %v381
      %v383 = vshrl.u32 %v352, 16
      %v385 = vor.u32 %v383, %v381
      %v387 = vshll.u32 %v353, 16
      %v389 = vrot.slane %v387, 1
      %v390 = vsel %vm370, %v385, %v389
      %v391 = vshrl.u32 %v353, 16
      %v393 = vor.u32 %v391, %v389
      %v395 = vshll.u32 %v354, 16
      %v397 = vrot.slane %v395, 1
      %v398 = vsel %vm370, %v393, %v397
      %v399 = vshrl.u32 %v354, 16
      %v401 = vor.u32 %v399, %v397
      %v403 = vshll.u32 %v355, 16
      %v405 = vrot.slane %v403, 1
      %v406 = vsel %vm370, %v401, %v405
      %v407 = vshrl.u32 %v355, 16
      %v409 = vor.u32 %v407, %v405
      %v411 = vshll.u32 %v356, 16
      %v413 = vrot.slane %v411, 1
      %v414 = vsel %vm370, %v409, %v413
      %v415 = vshrl.u32 %v356, 16
      %v417 = vor.u32 %v415, %v413
      %v419 = vshll.u32 %v357, 16
      %v421 = vrot.slane %v419, 1
      %v422 = vsel %vm370, %v417, %v421
      %v423 = vshrl.u32 %v357, 16
      %v425 = vor.u32 %v423, %v421
      %v427 = vshll.u32 %v358, 16
      %v429 = vrot.slane %v427, 1
      %v430 = vsel %vm370, %v425, %v429
      %v431 = vshrl.u32 %v358, 16
      %v433 = vor.u32 %v431, %v429
      %v435 = vshll.u32 %v359, 16
      %v437 = vrot.slane %v435, 1
      %v438 = vsel %vm370, %v433, %v437
      %v439 = vshrl.u32 %v359, 16
      %v441 = vor.u32 %v439, %v437
      %v443 = vshll.u32 %v360, 16
      %v445 = vrot.slane %v443, 1
      %v446 = vsel %vm370, %v441, %v445
      %v447 = vshrl.u32 %v360, 16
      %v449 = vor.u32 %v447, %v445
      %v451 = vshll.u32 %v361, 16
      %v453 = vrot.slane %v451, 1
      %v454 = vsel %vm370, %v449, %v453
      %v455 = vshrl.u32 %v361, 16
      %v457 = vor.u32 %v455, %v453
      %v459 = vshll.u32 %v362, 16
      %v461 = vrot.slane %v459, 1
      %v462 = vsel %vm370, %v457, %v461
      %v463 = vshrl.u32 %v362, 16
      %v465 = vor.u32 %v463, %v461
      %v467 = vshll.u32 %v363, 16
      %v469 = vrot.slane %v467, 1
      %v470 = vsel %vm370, %v465, %v469
      %v471 = vshrl.u32 %v363, 16
      %v473 = vor.u32 %v471, %v469
      %v475 = vshll.u32 %v364, 16
      %v477 = vrot.slane %v475, 1
      %v478 = vsel %vm370, %v473, %v477
      %v479 = vshrl.u32 %v364, 16
      %v481 = vor.u32 %v479, %v477
      %v483 = vshll.u32 %v365, 16
      %v485 = vrot.slane %v483, 1
      %v486 = vsel %vm370, %v481, %v485
      %v487 = vshrl.u32 %v365, 16
      %v489 = vor.u32 %v487, %v485
      %v491 = vshll.u32 %v366, 16
      %v493 = vrot.slane %v491, 1
      %v494 = vsel %vm370, %v489, %v493
      %v495 = vshrl.u32 %v366, 16
      %v497 = vor.u32 %v495, %v493
      %v499 = vshll.u32 %v367, 16
      %v501 = vrot.slane %v499, 1
      %v502 = vsel %vm370, %v497, %v501
      %v503 = vshrl.u32 %v367, 16
      %v505 = vor.u32 %v503, %v501
      %v507 = vshll.u32 %v368, 16
      %v509 = vrot.slane %v507, 1
      %v510 = vsel %vm370, %v505, %v509
      %v511 = vshrl.u32 %v368, 16
      %v513 = vor.u32 %v511, %v509
      %v515 = vshll.u32 %v369, 16
      %v517 = vrot.slane %v515, 1
      %v518 = vsel %vm370, %v513, %v517
      %vm519 = vcmask 31744
      %v521 = vsel %vm519, %v382, 0
      %v524 = vsel %vm519, %v390, 0
      %v527 = vsel %vm519, %v398, 0
      %v530 = vsel %vm519, %v406, 0
      %v533 = vsel %vm519, %v414, 0
      %v536 = vsel %vm519, %v422, 0
      %v539 = vsel %vm519, %v430, 0
      %v542 = vsel %vm519, %v438, 0
      %v545 = vsel %vm519, %v446, 0
      %v548 = vsel %vm519, %v454, 0
      %v551 = vsel %vm519, %v462, 0
      %v554 = vsel %vm519, %v470, 0
      %v557 = vsel %vm519, %v478, 0
      %v560 = vsel %vm519, %v486, 0
      %v563 = vsel %vm519, %v494, 0
      %v566 = vsel %vm519, %v502, 0
      %v569 = vsel %vm519, %v510, 0
      %v572 = vsel %vm519, %v518, 0
      %vm574 = vcmask 1041408
      %v576 = vsel %vm574, %v276, 0
      %578 = vmatprep.subr.bf16.mxu0 0
      %579 = vmatpush1.bf16.msra.mxu0 %v576
      %580 = vmatprep.subr.bf16.mxu0 0
      %581 = vmatpush1.bf16.msra.mxu0 0
      %582 = vmatprep.subr.bf16.mxu0 0
      %583 = vmatpush1.bf16.msra.mxu0 0
      %584 = vmatprep.subr.bf16.mxu0 0
      %585 = vmatpush1.bf16.msra.mxu0 0
      %586 = vmatprep.subr.bf16.mxu0 0
      %587 = vmatpush1.bf16.msra.mxu0 0
      %588 = vmatprep.subr.bf16.mxu0 0
      %589 = vmatpush1.bf16.msra.mxu0 0
      %590 = vmatprep.subr.bf16.mxu0 0
      %591 = vmatpush1.bf16.msra.mxu0 0
      %592 = vmatprep.subr.bf16.mxu0 0
      %593 = vmatpush1.bf16.msra.mxu0 0
      %594 = vmatprep.subr.bf16.mxu0 0
      %595 = vmatpush1.bf16.msra.mxu0 0
      %596 = vmatprep.subr.bf16.mxu0 0
      %597 = vmatpush1.bf16.msra.mxu0 0
      %598 = vmatprep.subr.bf16.mxu0 0
      %599 = vmatpush1.bf16.msra.mxu0 0
      %600 = vmatprep.subr.bf16.mxu0 0
      %601 = vmatpush1.bf16.msra.mxu0 0
      %602 = vmatprep.subr.bf16.mxu0 0
      %603 = vmatpush1.bf16.msra.mxu0 0
      %604 = vmatprep.subr.bf16.mxu0 0
      %605 = vmatpush1.bf16.msra.mxu0 0
      %606 = vmatprep.subr.bf16.mxu0 0
      %607 = vmatpush1.bf16.msra.mxu0 0
      %608 = vmatprep.subr.bf16.mxu0 0
      %609 = vmatpush1.bf16.msra.mxu0 0
      %610 = vmatprep.mubr.bf16.mxu0 0
      %611 = vmatmul.mubr.bf16.gmra.mrb[0].mxu0 %v521
      %v612 = vpop.f32.mrb[0].mxu0
      %v613 = vadd.f32 0.0, %v612
      %v614 = vpop.f32.mrb[0].mxu0
      %v615 = vpop.f32.mrb[0].mxu0
      %v616 = vadd.f32 0.0, %v615
      %v617 = vpop.f32.mrb[0].mxu0
      %618 = vmatprep.mubr.bf16.mxu0 0
      %619 = vmatmul.mubr.bf16.gmra.mrb[0].mxu0 %v524
      %v620 = vpop.f32.mrb[0].mxu0
      %v621 = vadd.f32 0.0, %v620
      %v622 = vpop.f32.mrb[0].mxu0
      %v623 = vpop.f32.mrb[0].mxu0
      %v624 = vadd.f32 0.0, %v623
      %v625 = vpop.f32.mrb[0].mxu0
      %626 = vmatprep.mubr.bf16.mxu0 0
      %627 = vmatmul.mubr.bf16.gmra.mrb[0].mxu0 %v527
      %v628 = vpop.f32.mrb[0].mxu0
      %v629 = vadd.f32 0.0, %v628
      %v630 = vpop.f32.mrb[0].mxu0
      %v631 = vpop.f32.mrb[0].mxu0
      %v632 = vadd.f32 0.0, %v631
      %v633 = vpop.f32.mrb[0].mxu0
      %634 = vmatprep.mubr.bf16.mxu0 0
      %635 = vmatmul.mubr.bf16.gmra.mrb[0].mxu0 %v530
      %v636 = vpop.f32.mrb[0].mxu0
      %v637 = vadd.f32 0.0, %v636
      %v638 = vpop.f32.mrb[0].mxu0
      %v639 = vpop.f32.mrb[0].mxu0
      %v640 = vadd.f32 0.0, %v639
      %v641 = vpop.f32.mrb[0].mxu0
      %642 = vmatprep.mubr.bf16.mxu0 0
      %643 = vmatmul.mubr.bf16.gmra.mrb[0].mxu0 %v533
      %v644 = vpop.f32.mrb[0].mxu0
      %v645 = vadd.f32 0.0, %v644
      %v646 = vpop.f32.mrb[0].mxu0
      %v647 = vpop.f32.mrb[0].mxu0
      %v648 = vadd.f32 0.0, %v647
      %v649 = vpop.f32.mrb[0].mxu0
      %650 = vmatprep.mubr.bf16.mxu0 0
      %651 = vmatmul.mubr.bf16.gmra.mrb[0].mxu0 %v536
      %v652 = vpop.f32.mrb[0].mxu0
      %v653 = vadd.f32 0.0, %v652
      %v654 = vpop.f32.mrb[0].mxu0
      %v655 = vpop.f32.mrb[0].mxu0
      %v656 = vadd.f32 0.0, %v655
      %v657 = vpop.f32.mrb[0].mxu0
      %658 = vmatprep.mubr.bf16.mxu0 0
      %659 = vmatmul.mubr.bf16.gmra.mrb[0].mxu0 %v539
      %v660 = vpop.f32.mrb[0].mxu0
      %v661 = vadd.f32 0.0, %v660
      %v662 = vpop.f32.mrb[0].mxu0
      %v663 = vpop.f32.mrb[0].mxu0
      %v664 = vadd.f32 0.0, %v663
      %v665 = vpop.f32.mrb[0].mxu0
      %666 = vmatprep.mubr.bf16.mxu0 0
      %667 = vmatmul.mubr.bf16.gmra.mrb[0].mxu0 %v542
      %v668 = vpop.f32.mrb[0].mxu0
      %v669 = vadd.f32 0.0, %v668
      %v670 = vpop.f32.mrb[0].mxu0
      %v671 = vpop.f32.mrb[0].mxu0
      %v672 = vadd.f32 0.0, %v671
      %v673 = vpop.f32.mrb[0].mxu0
      %674 = vmatprep.mubr.bf16.mxu0 0
      %675 = vmatmul.mubr.bf16.gmra.mrb[0].mxu0 %v545
      %v676 = vpop.f32.mrb[0].mxu0
      %v677 = vadd.f32 0.0, %v676
      %v678 = vpop.f32.mrb[0].mxu0
      %v679 = vpop.f32.mrb[0].mxu0
      %v680 = vadd.f32 0.0, %v679
      %v681 = vpop.f32.mrb[0].mxu0
      %682 = vmatprep.mubr.bf16.mxu0 0
      %683 = vmatmul.mubr.bf16.gmra.mrb[0].mxu0 %v548
      %v684 = vpop.f32.mrb[0].mxu0
      %v685 = vadd.f32 0.0, %v684
      %v686 = vpop.f32.mrb[0].mxu0
      %v687 = vpop.f32.mrb[0].mxu0
      %v688 = vadd.f32 0.0, %v687
      %v689 = vpop.f32.mrb[0].mxu0
      %690 = vmatprep.mubr.bf16.mxu0 0
      %691 = vmatmul.mubr.bf16.gmra.mrb[0].mxu0 %v551
      %v692 = vpop.f32.mrb[0].mxu0
      %v693 = vadd.f32 0.0, %v692
      %v694 = vpop.f32.mrb[0].mxu0
      %v695 = vpop.f32.mrb[0].mxu0
      %v696 = vadd.f32 0.0, %v695
      %v697 = vpop.f32.mrb[0].mxu0
      %698 = vmatprep.mubr.bf16.mxu0 0
      %699 = vmatmul.mubr.bf16.gmra.mrb[0].mxu0 %v554
      %v700 = vpop.f32.mrb[0].mxu0
      %v701 = vadd.f32 0.0, %v700
      %v702 = vpop.f32.mrb[0].mxu0
      %v703 = vpop.f32.mrb[0].mxu0
      %v704 = vadd.f32 0.0, %v703
      %v705 = vpop.f32.mrb[0].mxu0
      %706 = vmatprep.mubr.bf16.mxu0 0
      %707 = vmatmul.mubr.bf16.gmra.mrb[0].mxu0 %v557
      %v708 = vpop.f32.mrb[0].mxu0
      %v709 = vadd.f32 0.0, %v708
      %v710 = vpop.f32.mrb[0].mxu0
      %v711 = vpop.f32.mrb[0].mxu0
      %v712 = vadd.f32 0.0, %v711
      %v713 = vpop.f32.mrb[0].mxu0
      %714 = vmatprep.mubr.bf16.mxu0 0
      %715 = vmatmul.mubr.bf16.gmra.mrb[0].mxu0 %v560
      %v716 = vpop.f32.mrb[0].mxu0
      %v717 = vadd.f32 0.0, %v716
      %v718 = vpop.f32.mrb[0].mxu0
      %v719 = vpop.f32.mrb[0].mxu0
      %v720 = vadd.f32 0.0, %v719
      %v721 = vpop.f32.mrb[0].mxu0
      %722 = vmatprep.mubr.bf16.mxu0 0
      %723 = vmatmul.mubr.bf16.gmra.mrb[0].mxu0 %v563
      %v724 = vpop.f32.mrb[0].mxu0
      %v725 = vadd.f32 0.0, %v724
      %v726 = vpop.f32.mrb[0].mxu0
      %v727 = vpop.f32.mrb[0].mxu0
      %v728 = vadd.f32 0.0, %v727
      %v729 = vpop.f32.mrb[0].mxu0
      %730 = vmatprep.mubr.bf16.mxu0 0
      %731 = vmatmul.mubr.bf16.gmra.mrb[0].mxu0 %v566
      %v732 = vpop.f32.mrb[0].mxu0
      %v733 = vadd.f32 0.0, %v732
      %v734 = vpop.f32.mrb[0].mxu0
      %v735 = vpop.f32.mrb[0].mxu0
      %v736 = vadd.f32 0.0, %v735
      %v737 = vpop.f32.mrb[0].mxu0
      %738 = vmatprep.mubr.bf16.mxu0 0
      %739 = vmatmul.mubr.bf16.gmra.mrb[0].mxu0 %v569
      %v740 = vpop.f32.mrb[0].mxu0
      %v741 = vadd.f32 0.0, %v740
      %v742 = vpop.f32.mrb[0].mxu0
      %v743 = vpop.f32.mrb[0].mxu0
      %v744 = vadd.f32 0.0, %v743
      %v745 = vpop.f32.mrb[0].mxu0
      %746 = vmatprep.mubr.bf16.mxu0 0
      %747 = vmatmul.mubr.bf16.gmra.mrb[0].mxu0 %v572
      %v748 = vpop.f32.mrb[0].mxu0
      %v749 = vadd.f32 0.0, %v748
      %v750 = vpop.f32.mrb[0].mxu0
      %v751 = vpop.f32.mrb[0].mxu0
      %v752 = vadd.f32 0.0, %v751
      %v753 = vpop.f32.mrb[0].mxu0
      %754 = vdwg.mxu0
      %v755 = vsel %vm519, %v351, 0
      %v757 = vsel %vm519, %v352, 0
      %v759 = vsel %vm519, %v353, 0
      %v761 = vsel %vm519, %v354, 0
      %v763 = vsel %vm519, %v355, 0
      %v765 = vsel %vm519, %v356, 0
      %v767 = vsel %vm519, %v357, 0
      %v769 = vsel %vm519, %v358, 0
      %v771 = vsel %vm519, %v359, 0
      %v773 = vsel %vm519, %v360, 0
      %v775 = vsel %vm519, %v361, 0
      %v777 = vsel %vm519, %v362, 0
      %v779 = vsel %vm519, %v363, 0
      %v781 = vsel %vm519, %v364, 0
      %v783 = vsel %vm519, %v365, 0
      %v785 = vsel %vm519, %v366, 0
      %v787 = vsel %vm519, %v367, 0
      %v789 = vsel %vm519, %v368, 0
      %v792 = vsel %vm574, %v273, 0
      %794 = vmatprep.subr.bf16.mxu0 0
      %795 = vmatpush1.bf16.msra.mxu0 %v792
      %796 = vmatprep.subr.bf16.mxu0 0
      %797 = vmatpush1.bf16.msra.mxu0 0
      %798 = vmatprep.subr.bf16.mxu0 0
      %799 = vmatpush1.bf16.msra.mxu0 0
      %800 = vmatprep.subr.bf16.mxu0 0
      %801 = vmatpush1.bf16.msra.mxu0 0
      %802 = vmatprep.subr.bf16.mxu0 0
      %803 = vmatpush1.bf16.msra.mxu0 0
      %804 = vmatprep.subr.bf16.mxu0 0
      %805 = vmatpush1.bf16.msra.mxu0 0
      %806 = vmatprep.subr.bf16.mxu0 0
      %807 = vmatpush1.bf16.msra.mxu0 0
      %808 = vmatprep.subr.bf16.mxu0 0
      %809 = vmatpush1.bf16.msra.mxu0 0
      %810 = vmatprep.subr.bf16.mxu0 0
      %811 = vmatpush1.bf16.msra.mxu0 0
      %812 = vmatprep.subr.bf16.mxu0 0
      %813 = vmatpush1.bf16.msra.mxu0 0
      %814 = vmatprep.subr.bf16.mxu0 0
      %815 = vmatpush1.bf16.msra.mxu0 0
      %816 = vmatprep.subr.bf16.mxu0 0
      %817 = vmatpush1.bf16.msra.mxu0 0
      %818 = vmatprep.subr.bf16.mxu0 0
      %819 = vmatpush1.bf16.msra.mxu0 0
      %820 = vmatprep.subr.bf16.mxu0 0
      %821 = vmatpush1.bf16.msra.mxu0 0
      %822 = vmatprep.subr.bf16.mxu0 0
      %823 = vmatpush1.bf16.msra.mxu0 0
      %824 = vmatprep.subr.bf16.mxu0 0
      %825 = vmatpush1.bf16.msra.mxu0 0
      %826 = vmatprep.mubr.bf16.mxu0 0
      %827 = vmatmul.mubr.bf16.gmra.mrb[0].mxu0 %v755
      %v828 = vpop.f32.mrb[0].mxu0
      %v829 = vadd.f32 %v613, %v828
      %v830 = vpop.f32.mrb[0].mxu0
      %v831 = vpop.f32.mrb[0].mxu0
      %v832 = vadd.f32 %v616, %v831
      %v833 = vpop.f32.mrb[0].mxu0
      %834 = vmatprep.mubr.bf16.mxu0 0
      %835 = vmatmul.mubr.bf16.gmra.mrb[0].mxu0 %v757
      %v836 = vpop.f32.mrb[0].mxu0
      %v837 = vadd.f32 %v621, %v836
      %v838 = vpop.f32.mrb[0].mxu0
      %v839 = vpop.f32.mrb[0].mxu0
      %v840 = vadd.f32 %v624, %v839
      %v841 = vpop.f32.mrb[0].mxu0
      %842 = vmatprep.mubr.bf16.mxu0 0
      %843 = vmatmul.mubr.bf16.gmra.mrb[0].mxu0 %v759
      %v844 = vpop.f32.mrb[0].mxu0
      %v845 = vadd.f32 %v629, %v844
      %v846 = vpop.f32.mrb[0].mxu0
      %v847 = vpop.f32.mrb[0].mxu0
      %v848 = vadd.f32 %v632, %v847
      %v849 = vpop.f32.mrb[0].mxu0
      %850 = vmatprep.mubr.bf16.mxu0 0
      %851 = vmatmul.mubr.bf16.gmra.mrb[0].mxu0 %v761
      %v852 = vpop.f32.mrb[0].mxu0
      %v853 = vadd.f32 %v637, %v852
      %v854 = vpop.f32.mrb[0].mxu0
      %v855 = vpop.f32.mrb[0].mxu0
      %v856 = vadd.f32 %v640, %v855
      %v857 = vpop.f32.mrb[0].mxu0
      %858 = vmatprep.mubr.bf16.mxu0 0
      %859 = vmatmul.mubr.bf16.gmra.mrb[0].mxu0 %v763
      %v860 = vpop.f32.mrb[0].mxu0
      %v861 = vadd.f32 %v645, %v860
      %v862 = vpop.f32.mrb[0].mxu0
      %v863 = vpop.f32.mrb[0].mxu0
      %v864 = vadd.f32 %v648, %v863
      %v865 = vpop.f32.mrb[0].mxu0
      %866 = vmatprep.mubr.bf16.mxu0 0
      %867 = vmatmul.mubr.bf16.gmra.mrb[0].mxu0 %v765
      %v868 = vpop.f32.mrb[0].mxu0
      %v869 = vadd.f32 %v653, %v868
      %v870 = vpop.f32.mrb[0].mxu0
      %v871 = vpop.f32.mrb[0].mxu0
      %v872 = vadd.f32 %v656, %v871
      %v873 = vpop.f32.mrb[0].mxu0
      %874 = vmatprep.mubr.bf16.mxu0 0
      %875 = vmatmul.mubr.bf16.gmra.mrb[0].mxu0 %v767
      %v876 = vpop.f32.mrb[0].mxu0
      %v877 = vadd.f32 %v661, %v876
      %v878 = vpop.f32.mrb[0].mxu0
      %v879 = vpop.f32.mrb[0].mxu0
      %v880 = vadd.f32 %v664, %v879
      %v881 = vpop.f32.mrb[0].mxu0
      %882 = vmatprep.mubr.bf16.mxu0 0
      %883 = vmatmul.mubr.bf16.gmra.mrb[0].mxu0 %v769
      %v884 = vpop.f32.mrb[0].mxu0
      %v885 = vadd.f32 %v669, %v884
      %v886 = vpop.f32.mrb[0].mxu0
      %v887 = vpop.f32.mrb[0].mxu0
      %v888 = vadd.f32 %v672, %v887
      %v889 = vpop.f32.mrb[0].mxu0
      %890 = vmatprep.mubr.bf16.mxu0 0
      %891 = vmatmul.mubr.bf16.gmra.mrb[0].mxu0 %v771
      %v892 = vpop.f32.mrb[0].mxu0
      %v893 = vadd.f32 %v677, %v892
      %v894 = vpop.f32.mrb[0].mxu0
      %v895 = vpop.f32.mrb[0].mxu0
      %v896 = vadd.f32 %v680, %v895
      %v897 = vpop.f32.mrb[0].mxu0
      %898 = vmatprep.mubr.bf16.mxu0 0
      %899 = vmatmul.mubr.bf16.gmra.mrb[0].mxu0 %v773
      %v900 = vpop.f32.mrb[0].mxu0
      %v901 = vadd.f32 %v685, %v900
      %v902 = vpop.f32.mrb[0].mxu0
      %v903 = vpop.f32.mrb[0].mxu0
      %v904 = vadd.f32 %v688, %v903
      %v905 = vpop.f32.mrb[0].mxu0
      %906 = vmatprep.mubr.bf16.mxu0 0
      %907 = vmatmul.mubr.bf16.gmra.mrb[0].mxu0 %v775
      %v908 = vpop.f32.mrb[0].mxu0
      %v909 = vadd.f32 %v693, %v908
      %v910 = vpop.f32.mrb[0].mxu0
      %v911 = vpop.f32.mrb[0].mxu0
      %v912 = vadd.f32 %v696, %v911
      %v913 = vpop.f32.mrb[0].mxu0
      %914 = vmatprep.mubr.bf16.mxu0 0
      %915 = vmatmul.mubr.bf16.gmra.mrb[0].mxu0 %v777
      %v916 = vpop.f32.mrb[0].mxu0
      %v917 = vadd.f32 %v701, %v916
      %v918 = vpop.f32.mrb[0].mxu0
      %v919 = vpop.f32.mrb[0].mxu0
      %v920 = vadd.f32 %v704, %v919
      %v921 = vpop.f32.mrb[0].mxu0
      %922 = vmatprep.mubr.bf16.mxu0 0
      %923 = vmatmul.mubr.bf16.gmra.mrb[0].mxu0 %v779
      %v924 = vpop.f32.mrb[0].mxu0
      %v925 = vadd.f32 %v709, %v924
      %v926 = vpop.f32.mrb[0].mxu0
      %v927 = vpop.f32.mrb[0].mxu0
      %v928 = vadd.f32 %v712, %v927
      %v929 = vpop.f32.mrb[0].mxu0
      %930 = vmatprep.mubr.bf16.mxu0 0
      %931 = vmatmul.mubr.bf16.gmra.mrb[0].mxu0 %v781
      %v932 = vpop.f32.mrb[0].mxu0
      %v933 = vadd.f32 %v717, %v932
      %v934 = vpop.f32.mrb[0].mxu0
      %v935 = vpop.f32.mrb[0].mxu0
      %v936 = vadd.f32 %v720, %v935
      %v937 = vpop.f32.mrb[0].mxu0
      %938 = vmatprep.mubr.bf16.mxu0 0
      %939 = vmatmul.mubr.bf16.gmra.mrb[0].mxu0 %v783
      %v940 = vpop.f32.mrb[0].mxu0
      %v941 = vadd.f32 %v725, %v940
      %v942 = vpop.f32.mrb[0].mxu0
      %v943 = vpop.f32.mrb[0].mxu0
      %v944 = vadd.f32 %v728, %v943
      %v945 = vpop.f32.mrb[0].mxu0
      %946 = vmatprep.mubr.bf16.mxu0 0
      %947 = vmatmul.mubr.bf16.gmra.mrb[0].mxu0 %v785
      %v948 = vpop.f32.mrb[0].mxu0
      %v949 = vadd.f32 %v733, %v948
      %v950 = vpop.f32.mrb[0].mxu0
      %v951 = vpop.f32.mrb[0].mxu0
      %v952 = vadd.f32 %v736, %v951
      %v953 = vpop.f32.mrb[0].mxu0
      %954 = vmatprep.mubr.bf16.mxu0 0
      %955 = vmatmul.mubr.bf16.gmra.mrb[0].mxu0 %v787
      %v956 = vpop.f32.mrb[0].mxu0
      %v957 = vadd.f32 %v741, %v956
      %v958 = vpop.f32.mrb[0].mxu0
      %v959 = vpop.f32.mrb[0].mxu0
      %v960 = vadd.f32 %v744, %v959
      %v961 = vpop.f32.mrb[0].mxu0
      %962 = vmatprep.mubr.bf16.mxu0 0
      %963 = vmatmul.mubr.bf16.gmra.mrb[0].mxu0 %v789
      %v964 = vpop.f32.mrb[0].mxu0
      %v965 = vadd.f32 %v749, %v964
      %v966 = vpop.f32.mrb[0].mxu0
      %v967 = vpop.f32.mrb[0].mxu0
      %v968 = vadd.f32 %v752, %v967
      %v969 = vpop.f32.mrb[0].mxu0
      %970 = vdwg.mxu0
      %v971 = vld [vmem:[%s226] sm:$0xe]
      %s972 = scalar_lea.vmem %s2, 4
      %v973 = vld [vmem:[%s972] sm:$0x3]
      %v975 = vunpack.c.l.b16 %v971
      %v976 = vpack.c.b16 %v315, %v975
      %vm977 = vcmask 1046528
      %v978 = vrot.slane %v976, 1
      %v979 = vrot.slane %v352, 1
      %v980 = vsel %vm977, %v978, %v979
      %v981 = vrot.slane %v353, 1
      %v982 = vsel %vm977, %v979, %v981
      %v983 = vrot.slane %v354, 1
      %v984 = vsel %vm977, %v981, %v983
      %v985 = vrot.slane %v355, 1
      %v986 = vsel %vm977, %v983, %v985
      %v987 = vrot.slane %v356, 1
      %v988 = vsel %vm977, %v985, %v987
      %v989 = vrot.slane %v357, 1
      %v990 = vsel %vm977, %v987, %v989
      %v991 = vrot.slane %v358, 1
      %v992 = vsel %vm977, %v989, %v991
      %v993 = vrot.slane %v359, 1
      %v994 = vsel %vm977, %v991, %v993
      %v995 = vrot.slane %v360, 1
      %v996 = vsel %vm977, %v993, %v995
      %v997 = vrot.slane %v361, 1
      %v998 = vsel %vm977, %v995, %v997
      %v999 = vrot.slane %v362, 1
      %v1000 = vsel %vm977, %v997, %v999
      %v1001 = vrot.slane %v363, 1
      %v1002 = vsel %vm977, %v999, %v1001
      %v1003 = vrot.slane %v364, 1
      %v1004 = vsel %vm977, %v1001, %v1003
      %v1005 = vrot.slane %v365, 1
      %v1006 = vsel %vm977, %v1003, %v1005
      %v1007 = vrot.slane %v366, 1
      %v1008 = vsel %vm977, %v1005, %v1007
      %v1009 = vrot.slane %v367, 1
      %v1010 = vsel %vm977, %v1007, %v1009
      %v1011 = vrot.slane %v368, 1
      %v1012 = vsel %vm977, %v1009, %v1011
      %v1013 = vrot.slane %v369, 1
      %v1014 = vsel %vm977, %v1011, %v1013
      %v1016 = vsel %vm519, %v980, 0
      %v1019 = vsel %vm519, %v982, 0
      %v1022 = vsel %vm519, %v984, 0
      %v1025 = vsel %vm519, %v986, 0
      %v1028 = vsel %vm519, %v988, 0
      %v1031 = vsel %vm519, %v990, 0
      %v1034 = vsel %vm519, %v992, 0
      %v1037 = vsel %vm519, %v994, 0
      %v1040 = vsel %vm519, %v996, 0
      %v1043 = vsel %vm519, %v998, 0
      %v1046 = vsel %vm519, %v1000, 0
      %v1049 = vsel %vm519, %v1002, 0
      %v1052 = vsel %vm519, %v1004, 0
      %v1055 = vsel %vm519, %v1006, 0
      %v1058 = vsel %vm519, %v1008, 0
      %v1061 = vsel %vm519, %v1010, 0
      %v1064 = vsel %vm519, %v1012, 0
      %v1067 = vsel %vm519, %v1014, 0
      %v1070 = vsel %vm574, %v973, 0
      %1072 = vmatprep.subr.bf16.mxu0 0
      %1073 = vmatpush1.bf16.msra.mxu0 %v1070
      %1074 = vmatprep.subr.bf16.mxu0 0
      %1075 = vmatpush1.bf16.msra.mxu0 0
      %1076 = vmatprep.subr.bf16.mxu0 0
      %1077 = vmatpush1.bf16.msra.mxu0 0
      %1078 = vmatprep.subr.bf16.mxu0 0
      %1079 = vmatpush1.bf16.msra.mxu0 0
      %1080 = vmatprep.subr.bf16.mxu0 0
      %1081 = vmatpush1.bf16.msra.mxu0 0
      %1082 = vmatprep.subr.bf16.mxu0 0
      %1083 = vmatpush1.bf16.msra.mxu0 0
      %1084 = vmatprep.subr.bf16.mxu0 0
      %1085 = vmatpush1.bf16.msra.mxu0 0
      %1086 = vmatprep.subr.bf16.mxu0 0
      %1087 = vmatpush1.bf16.msra.mxu0 0
      %1088 = vmatprep.subr.bf16.mxu0 0
      %1089 = vmatpush1.bf16.msra.mxu0 0
      %1090 = vmatprep.subr.bf16.mxu0 0
      %1091 = vmatpush1.bf16.msra.mxu0 0
      %1092 = vmatprep.subr.bf16.mxu0 0
      %1093 = vmatpush1.bf16.msra.mxu0 0
      %1094 = vmatprep.subr.bf16.mxu0 0
      %1095 = vmatpush1.bf16.msra.mxu0 0
      %1096 = vmatprep.subr.bf16.mxu0 0
      %1097 = vmatpush1.bf16.msra.mxu0 0
      %1098 = vmatprep.subr.bf16.mxu0 0
      %1099 = vmatpush1.bf16.msra.mxu0 0
      %1100 = vmatprep.subr.bf16.mxu0 0
      %1101 = vmatpush1.bf16.msra.mxu0 0
      %1102 = vmatprep.subr.bf16.mxu0 0
      %1103 = vmatpush1.bf16.msra.mxu0 0
      %1104 = vmatprep.mubr.bf16.mxu0 0
      %1105 = vmatmul.mubr.bf16.gmra.mrb[0].mxu0 %v1016
      %v1106 = vpop.f32.mrb[0].mxu0
      %v1107 = vadd.f32 0.0, %v1106
      %v1108 = vpop.f32.mrb[0].mxu0
      %v1109 = vpop.f32.mrb[0].mxu0
      %v1110 = vadd.f32 0.0, %v1109
      %v1111 = vpop.f32.mrb[0].mxu0
      %1112 = vmatprep.mubr.bf16.mxu0 0
      %1113 = vmatmul.mubr.bf16.gmra.mrb[0].mxu0 %v1019
      %v1114 = vpop.f32.mrb[0].mxu0
      %v1115 = vadd.f32 0.0, %v1114
      %v1116 = vpop.f32.mrb[0].mxu0
      %v1117 = vpop.f32.mrb[0].mxu0
      %v1118 = vadd.f32 0.0, %v1117
      %v1119 = vpop.f32.mrb[0].mxu0
      %1120 = vmatprep.mubr.bf16.mxu0 0
      %1121 = vmatmul.mubr.bf16.gmra.mrb[0].mxu0 %v1022
      %v1122 = vpop.f32.mrb[0].mxu0
      %v1123 = vadd.f32 0.0, %v1122
      %v1124 = vpop.f32.mrb[0].mxu0
      %v1125 = vpop.f32.mrb[0].mxu0
      %v1126 = vadd.f32 0.0, %v1125
      %v1127 = vpop.f32.mrb[0].mxu0
      %1128 = vmatprep.mubr.bf16.mxu0 0
      %1129 = vmatmul.mubr.bf16.gmra.mrb[0].mxu0 %v1025
      %v1130 = vpop.f32.mrb[0].mxu0
      %v1131 = vadd.f32 0.0, %v1130
      %v1132 = vpop.f32.mrb[0].mxu0
      %v1133 = vpop.f32.mrb[0].mxu0
      %v1134 = vadd.f32 0.0, %v1133
      %v1135 = vpop.f32.mrb[0].mxu0
      %1136 = vmatprep.mubr.bf16.mxu0 0
      %1137 = vmatmul.mubr.bf16.gmra.mrb[0].mxu0 %v1028
      %v1138 = vpop.f32.mrb[0].mxu0
      %v1139 = vadd.f32 0.0, %v1138
      %v1140 = vpop.f32.mrb[0].mxu0
      %v1141 = vpop.f32.mrb[0].mxu0
      %v1142 = vadd.f32 0.0, %v1141
      %v1143 = vpop.f32.mrb[0].mxu0
      %1144 = vmatprep.mubr.bf16.mxu0 0
      %1145 = vmatmul.mubr.bf16.gmra.mrb[0].mxu0 %v1031
      %v1146 = vpop.f32.mrb[0].mxu0
      %v1147 = vadd.f32 0.0, %v1146
      %v1148 = vpop.f32.mrb[0].mxu0
      %v1149 = vpop.f32.mrb[0].mxu0
      %v1150 = vadd.f32 0.0, %v1149
      %v1151 = vpop.f32.mrb[0].mxu0
      %1152 = vmatprep.mubr.bf16.mxu0 0
      %1153 = vmatmul.mubr.bf16.gmra.mrb[0].mxu0 %v1034
      %v1154 = vpop.f32.mrb[0].mxu0
      %v1155 = vadd.f32 0.0, %v1154
      %v1156 = vpop.f32.mrb[0].mxu0
      %v1157 = vpop.f32.mrb[0].mxu0
      %v1158 = vadd.f32 0.0, %v1157
      %v1159 = vpop.f32.mrb[0].mxu0
      %1160 = vmatprep.mubr.bf16.mxu0 0
      %1161 = vmatmul.mubr.bf16.gmra.mrb[0].mxu0 %v1037
      %v1162 = vpop.f32.mrb[0].mxu0
      %v1163 = vadd.f32 0.0, %v1162
      %v1164 = vpop.f32.mrb[0].mxu0
      %v1165 = vpop.f32.mrb[0].mxu0
      %v1166 = vadd.f32 0.0, %v1165
      %v1167 = vpop.f32.mrb[0].mxu0
      %1168 = vmatprep.mubr.bf16.mxu0 0
      %1169 = vmatmul.mubr.bf16.gmra.mrb[0].mxu0 %v1040
      %v1170 = vpop.f32.mrb[0].mxu0
      %v1171 = vadd.f32 0.0, %v1170
      %v1172 = vpop.f32.mrb[0].mxu0
      %v1173 = vpop.f32.mrb[0].mxu0
      %v1174 = vadd.f32 0.0, %v1173
      %v1175 = vpop.f32.mrb[0].mxu0
      %1176 = vmatprep.mubr.bf16.mxu0 0
      %1177 = vmatmul.mubr.bf16.gmra.mrb[0].mxu0 %v1043
      %v1178 = vpop.f32.mrb[0].mxu0
      %v1179 = vadd.f32 0.0, %v1178
      %v1180 = vpop.f32.mrb[0].mxu0
      %v1181 = vpop.f32.mrb[0].mxu0
      %v1182 = vadd.f32 0.0, %v1181
      %v1183 = vpop.f32.mrb[0].mxu0
      %1184 = vmatprep.mubr.bf16.mxu0 0
      %1185 = vmatmul.mubr.bf16.gmra.mrb[0].mxu0 %v1046
      %v1186 = vpop.f32.mrb[0].mxu0
      %v1187 = vadd.f32 0.0, %v1186
      %v1188 = vpop.f32.mrb[0].mxu0
      %v1189 = vpop.f32.mrb[0].mxu0
      %v1190 = vadd.f32 0.0, %v1189
      %v1191 = vpop.f32.mrb[0].mxu0
      %1192 = vmatprep.mubr.bf16.mxu0 0
      %1193 = vmatmul.mubr.bf16.gmra.mrb[0].mxu0 %v1049
      %v1194 = vpop.f32.mrb[0].mxu0
      %v1195 = vadd.f32 0.0, %v1194
      %v1196 = vpop.f32.mrb[0].mxu0
      %v1197 = vpop.f32.mrb[0].mxu0
      %v1198 = vadd.f32 0.0, %v1197
      %v1199 = vpop.f32.mrb[0].mxu0
      %1200 = vmatprep.mubr.bf16.mxu0 0
      %1201 = vmatmul.mubr.bf16.gmra.mrb[0].mxu0 %v1052
      %v1202 = vpop.f32.mrb[0].mxu0
      %v1203 = vadd.f32 0.0, %v1202
      %v1204 = vpop.f32.mrb[0].mxu0
      %v1205 = vpop.f32.mrb[0].mxu0
      %v1206 = vadd.f32 0.0, %v1205
      %v1207 = vpop.f32.mrb[0].mxu0
      %1208 = vmatprep.mubr.bf16.mxu0 0
      %1209 = vmatmul.mubr.bf16.gmra.mrb[0].mxu0 %v1055
      %v1210 = vpop.f32.mrb[0].mxu0
      %v1211 = vadd.f32 0.0, %v1210
      %v1212 = vpop.f32.mrb[0].mxu0
      %v1213 = vpop.f32.mrb[0].mxu0
      %v1214 = vadd.f32 0.0, %v1213
      %v1215 = vpop.f32.mrb[0].mxu0
      %1216 = vmatprep.mubr.bf16.mxu0 0
      %1217 = vmatmul.mubr.bf16.gmra.mrb[0].mxu0 %v1058
      %v1218 = vpop.f32.mrb[0].mxu0
      %v1219 = vadd.f32 0.0, %v1218
      %v1220 = vpop.f32.mrb[0].mxu0
      %v1221 = vpop.f32.mrb[0].mxu0
      %v1222 = vadd.f32 0.0, %v1221
      %v1223 = vpop.f32.mrb[0].mxu0
      %1224 = vmatprep.mubr.bf16.mxu0 0
      %1225 = vmatmul.mubr.bf16.gmra.mrb[0].mxu0 %v1061
      %v1226 = vpop.f32.mrb[0].mxu0
      %v1227 = vadd.f32 0.0, %v1226
      %v1228 = vpop.f32.mrb[0].mxu0
      %v1229 = vpop.f32.mrb[0].mxu0
      %v1230 = vadd.f32 0.0, %v1229
      %v1231 = vpop.f32.mrb[0].mxu0
      %1232 = vmatprep.mubr.bf16.mxu0 0
      %1233 = vmatmul.mubr.bf16.gmra.mrb[0].mxu0 %v1064
      %v1234 = vpop.f32.mrb[0].mxu0
      %v1235 = vadd.f32 0.0, %v1234
      %v1236 = vpop.f32.mrb[0].mxu0
      %v1237 = vpop.f32.mrb[0].mxu0
      %v1238 = vadd.f32 0.0, %v1237
      %v1239 = vpop.f32.mrb[0].mxu0
      %1240 = vmatprep.mubr.bf16.mxu0 0
      %1241 = vmatmul.mubr.bf16.gmra.mrb[0].mxu0 %v1067
      %v1242 = vpop.f32.mrb[0].mxu0
      %v1243 = vadd.f32 0.0, %v1242
      %v1244 = vpop.f32.mrb[0].mxu0
      %v1245 = vpop.f32.mrb[0].mxu0
      %v1246 = vadd.f32 0.0, %v1245
      %v1247 = vpop.f32.mrb[0].mxu0
      %1248 = vdwg.mxu0
      %v1249 = vadd.f32 %v829, %v1107
      %v1250 = vadd.f32 %v832, %v1110
      %v1251 = vadd.f32 %v837, %v1115
      %v1252 = vadd.f32 %v840, %v1118
      %v1253 = vadd.f32 %v845, %v1123
      %v1254 = vadd.f32 %v848, %v1126
      %v1255 = vadd.f32 %v853, %v1131
      %v1256 = vadd.f32 %v856, %v1134
      %v1257 = vadd.f32 %v861, %v1139
      %v1258 = vadd.f32 %v864, %v1142
      %v1259 = vadd.f32 %v869, %v1147
      %v1260 = vadd.f32 %v872, %v1150
      %v1261 = vadd.f32 %v877, %v1155
      %v1262 = vadd.f32 %v880, %v1158
      %v1263 = vadd.f32 %v885, %v1163
      %v1264 = vadd.f32 %v888, %v1166
      %v1265 = vadd.f32 %v893, %v1171
      %v1266 = vadd.f32 %v896, %v1174
      %v1267 = vadd.f32 %v901, %v1179
      %v1268 = vadd.f32 %v904, %v1182
      %v1269 = vadd.f32 %v909, %v1187
      %v1270 = vadd.f32 %v912, %v1190
      %v1271 = vadd.f32 %v917, %v1195
      %v1272 = vadd.f32 %v920, %v1198
      %v1273 = vadd.f32 %v925, %v1203
      %v1274 = vadd.f32 %v928, %v1206
      %v1275 = vadd.f32 %v933, %v1211
      %v1276 = vadd.f32 %v936, %v1214
      %v1277 = vadd.f32 %v941, %v1219
      %v1278 = vadd.f32 %v944, %v1222
      %v1279 = vadd.f32 %v949, %v1227
      %v1280 = vadd.f32 %v952, %v1230
      %v1281 = vadd.f32 %v957, %v1235
      %v1282 = vadd.f32 %v960, %v1238
      %v1283 = vadd.f32 %v965, %v1243
      %v1284 = vadd.f32 %v968, %v1246
      %v1285 = vld [vmem:[%s226 + $0x8] sm:$0xe]
      %v1286 = vld [vmem:[%s226 + $0xc] sm:$0xf]
      %v1287 = vld [vmem:[%s226 + $0x10] sm:$0xf]
      %v1288 = vld [vmem:[%s226 + $0x14] sm:$0xf]
      %v1289 = vld [vmem:[%s226 + $0x18] sm:$0xf]
      %v1290 = vld [vmem:[%s226 + $0x1c] sm:$0xf]
      %v1291 = vld [vmem:[%s226 + $0x20] sm:$0xf]
      %v1292 = vld [vmem:[%s226 + $0x24] sm:$0xf]
      %v1293 = vld [vmem:[%s226 + $0x28] sm:$0xf]
      %v1294 = vld [vmem:[%s226 + $0x2c] sm:$0xf]
      %v1295 = vld [vmem:[%s226 + $0x30] sm:$0xf]
      %v1296 = vld [vmem:[%s226 + $0x34] sm:$0xf]
      %v1297 = vld [vmem:[%s226 + $0x38] sm:$0xf]
      %v1298 = vld [vmem:[%s226 + $0x3c] sm:$0xf]
      %v1299 = vld [vmem:[%s226 + $0x40] sm:$0xf]
      %v1300 = vld [vmem:[%s226 + $0x44] sm:$0xf]
      %v1301 = vld [vmem:[%s226 + $0x48] sm:$0xf]
      %v1302 = vld [vmem:[%s226 + $0x4c] sm:$0xf]
      %v1303 = vld [vmem:[%s226 + $0x50] sm:$0xf]
      %v1304 = vld [vmem:[%s226 + $0x54] sm:$0xf]
      %v1305 = vld [vmem:[%s226 + $0x58] sm:$0xf]
      %v1306 = vld [vmem:[%s226 + $0x5c] sm:$0xf]
      %v1307 = vld [vmem:[%s226 + $0x60] sm:$0xf]
      %v1308 = vld [vmem:[%s226 + $0x64] sm:$0xf]
      %v1309 = vld [vmem:[%s226 + $0x68] sm:$0xf]
      %v1310 = vld [vmem:[%s226 + $0x6c] sm:$0xf]
      %v1311 = vld [vmem:[%s226 + $0x70] sm:$0xf]
      %v1312 = vld [vmem:[%s226 + $0x74] sm:$0xf]
      %v1313 = vld [vmem:[%s226 + $0x78] sm:$0xf]
      %v1314 = vld [vmem:[%s226 + $0x7c] sm:$0xf]
      %v1315 = vld [vmem:[%s226 + $0x80] sm:$0xf]
      %v1316 = vld [vmem:[%s226 + $0x84] sm:$0xf]
      %v1317 = vld [vmem:[%s226 + $0x88] sm:$0xf]
      %v1318 = vld [vmem:[%s226 + $0x8c] sm:$0xf]
      %v1319 = vld [vmem:[%s226 + $0x90] sm:$0xf]
      %v1320 = vld [vmem:[%s226 + $0x94] sm:$0xf]
      %v1321 = vld [vmem:[%s226 + $0x98] sm:$0x1]
      %s1322 = scalar_lea.vmem %s2, 6
      %v1323 = vld [vmem:[%s1322] sm:$0x3]
      %v1361 = vunpack.c.l.b16 %v1285
      %v1362 = vunpack.c.l.b16 %v1286
      %v1363 = vunpack.c.l.b16 %v1287
      %v1364 = vunpack.c.l.b16 %v1288
      %v1365 = vunpack.c.l.b16 %v1289
      %v1366 = vunpack.c.l.b16 %v1290
      %v1367 = vunpack.c.l.b16 %v1291
      %v1368 = vunpack.c.l.b16 %v1292
      %v1369 = vunpack.c.l.b16 %v1293
      %v1370 = vunpack.c.l.b16 %v1294
      %v1371 = vunpack.c.l.b16 %v1295
      %v1372 = vunpack.c.l.b16 %v1296
      %v1373 = vunpack.c.l.b16 %v1297
      %v1374 = vunpack.c.l.b16 %v1298
      %v1375 = vunpack.c.l.b16 %v1299
      %v1376 = vunpack.c.l.b16 %v1300
      %v1377 = vunpack.c.l.b16 %v1301
      %v1378 = vunpack.c.l.b16 %v1302
      %v1379 = vunpack.c.l.b16 %v1303
      %v1380 = vunpack.c.l.b16 %v1304
      %v1381 = vunpack.c.l.b16 %v1305
      %v1382 = vunpack.c.l.b16 %v1306
      %v1383 = vunpack.c.l.b16 %v1307
      %v1384 = vunpack.c.l.b16 %v1308
      %v1385 = vunpack.c.l.b16 %v1309
      %v1386 = vunpack.c.l.b16 %v1310
      %v1387 = vunpack.c.l.b16 %v1311
      %v1388 = vunpack.c.l.b16 %v1312
      %v1389 = vunpack.c.l.b16 %v1313
      %v1390 = vunpack.c.l.b16 %v1314
      %v1391 = vunpack.c.l.b16 %v1315
      %v1392 = vunpack.c.l.b16 %v1316
      %v1393 = vunpack.c.l.b16 %v1317
      %v1394 = vunpack.c.l.b16 %v1318
      %v1395 = vunpack.c.l.b16 %v1319
      %v1396 = vunpack.c.l.b16 %v1320
      %v1397 = vunpack.c.l.b16 %v1321
      %v1398 = vpack.c.b16 %v1362, %v1361
      %v1399 = vpack.c.b16 %v1364, %v1363
      %v1400 = vpack.c.b16 %v1366, %v1365
      %v1401 = vpack.c.b16 %v1368, %v1367
      %v1402 = vpack.c.b16 %v1370, %v1369
      %v1403 = vpack.c.b16 %v1372, %v1371
      %v1404 = vpack.c.b16 %v1374, %v1373
      %v1405 = vpack.c.b16 %v1376, %v1375
      %v1406 = vpack.c.b16 %v1378, %v1377
      %v1407 = vpack.c.b16 %v1380, %v1379
      %v1408 = vpack.c.b16 %v1382, %v1381
      %v1409 = vpack.c.b16 %v1384, %v1383
      %v1410 = vpack.c.b16 %v1386, %v1385
      %v1411 = vpack.c.b16 %v1388, %v1387
      %v1412 = vpack.c.b16 %v1390, %v1389
      %v1413 = vpack.c.b16 %v1392, %v1391
      %v1414 = vpack.c.b16 %v1394, %v1393
      %v1415 = vpack.c.b16 %v1396, %v1395
      %v1416 = vpack.c.b16 %v1397, %v1397
      %v1417 = vrot.slane %v1398, 1
      %v1418 = vrot.slane %v1399, 1
      %v1419 = vsel %vm977, %v1417, %v1418
      %v1420 = vrot.slane %v1400, 1
      %v1421 = vsel %vm977, %v1418, %v1420
      %v1422 = vrot.slane %v1401, 1
      %v1423 = vsel %vm977, %v1420, %v1422
      %v1424 = vrot.slane %v1402, 1
      %v1425 = vsel %vm977, %v1422, %v1424
      %v1426 = vrot.slane %v1403, 1
      %v1427 = vsel %vm977, %v1424, %v1426
      %v1428 = vrot.slane %v1404, 1
      %v1429 = vsel %vm977, %v1426, %v1428
      %v1430 = vrot.slane %v1405, 1
      %v1431 = vsel %vm977, %v1428, %v1430
      %v1432 = vrot.slane %v1406, 1
      %v1433 = vsel %vm977, %v1430, %v1432
      %v1434 = vrot.slane %v1407, 1
      %v1435 = vsel %vm977, %v1432, %v1434
      %v1436 = vrot.slane %v1408, 1
      %v1437 = vsel %vm977, %v1434, %v1436
      %v1438 = vrot.slane %v1409, 1
      %v1439 = vsel %vm977, %v1436, %v1438
      %v1440 = vrot.slane %v1410, 1
      %v1441 = vsel %vm977, %v1438, %v1440
      %v1442 = vrot.slane %v1411, 1
      %v1443 = vsel %vm977, %v1440, %v1442
      %v1444 = vrot.slane %v1412, 1
      %v1445 = vsel %vm977, %v1442, %v1444
      %v1446 = vrot.slane %v1413, 1
      %v1447 = vsel %vm977, %v1444, %v1446
      %v1448 = vrot.slane %v1414, 1
      %v1449 = vsel %vm977, %v1446, %v1448
      %v1450 = vrot.slane %v1415, 1
      %v1451 = vsel %vm977, %v1448, %v1450
      %v1452 = vrot.slane %v1416, 1
      %v1453 = vsel %vm977, %v1450, %v1452
      %v1455 = vsel %vm519, %v1419, 0
      %v1458 = vsel %vm519, %v1421, 0
      %v1461 = vsel %vm519, %v1423, 0
      %v1464 = vsel %vm519, %v1425, 0
      %v1467 = vsel %vm519, %v1427, 0
      %v1470 = vsel %vm519, %v1429, 0
      %v1473 = vsel %vm519, %v1431, 0
      %v1476 = vsel %vm519, %v1433, 0
      %v1479 = vsel %vm519, %v1435, 0
      %v1482 = vsel %vm519, %v1437, 0
      %v1485 = vsel %vm519, %v1439, 0
      %v1488 = vsel %vm519, %v1441, 0
      %v1491 = vsel %vm519, %v1443, 0
      %v1494 = vsel %vm519, %v1445, 0
      %v1497 = vsel %vm519, %v1447, 0
      %v1500 = vsel %vm519, %v1449, 0
      %v1503 = vsel %vm519, %v1451, 0
      %v1506 = vsel %vm519, %v1453, 0
      %v1509 = vsel %vm574, %v1323, 0
      %1511 = vmatprep.subr.bf16.mxu0 0
      %1512 = vmatpush1.bf16.msra.mxu0 %v1509
      %1513 = vmatprep.subr.bf16.mxu0 0
      %1514 = vmatpush1.bf16.msra.mxu0 0
      %1515 = vmatprep.subr.bf16.mxu0 0
      %1516 = vmatpush1.bf16.msra.mxu0 0
      %1517 = vmatprep.subr.bf16.mxu0 0
      %1518 = vmatpush1.bf16.msra.mxu0 0
      %1519 = vmatprep.subr.bf16.mxu0 0
      %1520 = vmatpush1.bf16.msra.mxu0 0
      %1521 = vmatprep.subr.bf16.mxu0 0
      %1522 = vmatpush1.bf16.msra.mxu0 0
      %1523 = vmatprep.subr.bf16.mxu0 0
      %1524 = vmatpush1.bf16.msra.mxu0 0
      %1525 = vmatprep.subr.bf16.mxu0 0
      %1526 = vmatpush1.bf16.msra.mxu0 0
      %1527 = vmatprep.subr.bf16.mxu0 0
      %1528 = vmatpush1.bf16.msra.mxu0 0
      %1529 = vmatprep.subr.bf16.mxu0 0
      %1530 = vmatpush1.bf16.msra.mxu0 0
      %1531 = vmatprep.subr.bf16.mxu0 0
      %1532 = vmatpush1.bf16.msra.mxu0 0
      %1533 = vmatprep.subr.bf16.mxu0 0
      %1534 = vmatpush1.bf16.msra.mxu0 0
      %1535 = vmatprep.subr.bf16.mxu0 0
      %1536 = vmatpush1.bf16.msra.mxu0 0
      %1537 = vmatprep.subr.bf16.mxu0 0
      %1538 = vmatpush1.bf16.msra.mxu0 0
      %1539 = vmatprep.subr.bf16.mxu0 0
      %1540 = vmatpush1.bf16.msra.mxu0 0
      %1541 = vmatprep.subr.bf16.mxu0 0
      %1542 = vmatpush1.bf16.msra.mxu0 0
      %1543 = vmatprep.mubr.bf16.mxu0 0
      %1544 = vmatmul.mubr.bf16.gmra.mrb[0].mxu0 %v1455
      %v1545 = vpop.f32.mrb[0].mxu0
      %v1546 = vadd.f32 0.0, %v1545
      %v1547 = vpop.f32.mrb[0].mxu0
      %v1548 = vpop.f32.mrb[0].mxu0
      %v1549 = vadd.f32 0.0, %v1548
      %v1550 = vpop.f32.mrb[0].mxu0
      %1551 = vmatprep.mubr.bf16.mxu0 0
      %1552 = vmatmul.mubr.bf16.gmra.mrb[0].mxu0 %v1458
      %v1553 = vpop.f32.mrb[0].mxu0
      %v1554 = vadd.f32 0.0, %v1553
      %v1555 = vpop.f32.mrb[0].mxu0
      %v1556 = vpop.f32.mrb[0].mxu0
      %v1557 = vadd.f32 0.0, %v1556
      %v1558 = vpop.f32.mrb[0].mxu0
      %1559 = vmatprep.mubr.bf16.mxu0 0
      %1560 = vmatmul.mubr.bf16.gmra.mrb[0].mxu0 %v1461
      %v1561 = vpop.f32.mrb[0].mxu0
      %v1562 = vadd.f32 0.0, %v1561
      %v1563 = vpop.f32.mrb[0].mxu0
      %v1564 = vpop.f32.mrb[0].mxu0
      %v1565 = vadd.f32 0.0, %v1564
      %v1566 = vpop.f32.mrb[0].mxu0
      %1567 = vmatprep.mubr.bf16.mxu0 0
      %1568 = vmatmul.mubr.bf16.gmra.mrb[0].mxu0 %v1464
      %v1569 = vpop.f32.mrb[0].mxu0
      %v1570 = vadd.f32 0.0, %v1569
      %v1571 = vpop.f32.mrb[0].mxu0
      %v1572 = vpop.f32.mrb[0].mxu0
      %v1573 = vadd.f32 0.0, %v1572
      %v1574 = vpop.f32.mrb[0].mxu0
      %1575 = vmatprep.mubr.bf16.mxu0 0
      %1576 = vmatmul.mubr.bf16.gmra.mrb[0].mxu0 %v1467
      %v1577 = vpop.f32.mrb[0].mxu0
      %v1578 = vadd.f32 0.0, %v1577
      %v1579 = vpop.f32.mrb[0].mxu0
      %v1580 = vpop.f32.mrb[0].mxu0
      %v1581 = vadd.f32 0.0, %v1580
      %v1582 = vpop.f32.mrb[0].mxu0
      %1583 = vmatprep.mubr.bf16.mxu0 0
      %1584 = vmatmul.mubr.bf16.gmra.mrb[0].mxu0 %v1470
      %v1585 = vpop.f32.mrb[0].mxu0
      %v1586 = vadd.f32 0.0, %v1585
      %v1587 = vpop.f32.mrb[0].mxu0
      %v1588 = vpop.f32.mrb[0].mxu0
      %v1589 = vadd.f32 0.0, %v1588
      %v1590 = vpop.f32.mrb[0].mxu0
      %1591 = vmatprep.mubr.bf16.mxu0 0
      %1592 = vmatmul.mubr.bf16.gmra.mrb[0].mxu0 %v1473
      %v1593 = vpop.f32.mrb[0].mxu0
      %v1594 = vadd.f32 0.0, %v1593
      %v1595 = vpop.f32.mrb[0].mxu0
      %v1596 = vpop.f32.mrb[0].mxu0
      %v1597 = vadd.f32 0.0, %v1596
      %v1598 = vpop.f32.mrb[0].mxu0
      %1599 = vmatprep.mubr.bf16.mxu0 0
      %1600 = vmatmul.mubr.bf16.gmra.mrb[0].mxu0 %v1476
      %v1601 = vpop.f32.mrb[0].mxu0
      %v1602 = vadd.f32 0.0, %v1601
      %v1603 = vpop.f32.mrb[0].mxu0
      %v1604 = vpop.f32.mrb[0].mxu0
      %v1605 = vadd.f32 0.0, %v1604
      %v1606 = vpop.f32.mrb[0].mxu0
      %1607 = vmatprep.mubr.bf16.mxu0 0
      %1608 = vmatmul.mubr.bf16.gmra.mrb[0].mxu0 %v1479
      %v1609 = vpop.f32.mrb[0].mxu0
      %v1610 = vadd.f32 0.0, %v1609
      %v1611 = vpop.f32.mrb[0].mxu0
      %v1612 = vpop.f32.mrb[0].mxu0
      %v1613 = vadd.f32 0.0, %v1612
      %v1614 = vpop.f32.mrb[0].mxu0
      %1615 = vmatprep.mubr.bf16.mxu0 0
      %1616 = vmatmul.mubr.bf16.gmra.mrb[0].mxu0 %v1482
      %v1617 = vpop.f32.mrb[0].mxu0
      %v1618 = vadd.f32 0.0, %v1617
      %v1619 = vpop.f32.mrb[0].mxu0
      %v1620 = vpop.f32.mrb[0].mxu0
      %v1621 = vadd.f32 0.0, %v1620
      %v1622 = vpop.f32.mrb[0].mxu0
      %1623 = vmatprep.mubr.bf16.mxu0 0
      %1624 = vmatmul.mubr.bf16.gmra.mrb[0].mxu0 %v1485
      %v1625 = vpop.f32.mrb[0].mxu0
      %v1626 = vadd.f32 0.0, %v1625
      %v1627 = vpop.f32.mrb[0].mxu0
      %v1628 = vpop.f32.mrb[0].mxu0
      %v1629 = vadd.f32 0.0, %v1628
      %v1630 = vpop.f32.mrb[0].mxu0
      %1631 = vmatprep.mubr.bf16.mxu0 0
      %1632 = vmatmul.mubr.bf16.gmra.mrb[0].mxu0 %v1488
      %v1633 = vpop.f32.mrb[0].mxu0
      %v1634 = vadd.f32 0.0, %v1633
      %v1635 = vpop.f32.mrb[0].mxu0
      %v1636 = vpop.f32.mrb[0].mxu0
      %v1637 = vadd.f32 0.0, %v1636
      %v1638 = vpop.f32.mrb[0].mxu0
      %1639 = vmatprep.mubr.bf16.mxu0 0
      %1640 = vmatmul.mubr.bf16.gmra.mrb[0].mxu0 %v1491
      %v1641 = vpop.f32.mrb[0].mxu0
      %v1642 = vadd.f32 0.0, %v1641
      %v1643 = vpop.f32.mrb[0].mxu0
      %v1644 = vpop.f32.mrb[0].mxu0
      %v1645 = vadd.f32 0.0, %v1644
      %v1646 = vpop.f32.mrb[0].mxu0
      %1647 = vmatprep.mubr.bf16.mxu0 0
      %1648 = vmatmul.mubr.bf16.gmra.mrb[0].mxu0 %v1494
      %v1649 = vpop.f32.mrb[0].mxu0
      %v1650 = vadd.f32 0.0, %v1649
      %v1651 = vpop.f32.mrb[0].mxu0
      %v1652 = vpop.f32.mrb[0].mxu0
      %v1653 = vadd.f32 0.0, %v1652
      %v1654 = vpop.f32.mrb[0].mxu0
      %1655 = vmatprep.mubr.bf16.mxu0 0
      %1656 = vmatmul.mubr.bf16.gmra.mrb[0].mxu0 %v1497
      %v1657 = vpop.f32.mrb[0].mxu0
      %v1658 = vadd.f32 0.0, %v1657
      %v1659 = vpop.f32.mrb[0].mxu0
      %v1660 = vpop.f32.mrb[0].mxu0
      %v1661 = vadd.f32 0.0, %v1660
      %v1662 = vpop.f32.mrb[0].mxu0
      %1663 = vmatprep.mubr.bf16.mxu0 0
      %1664 = vmatmul.mubr.bf16.gmra.mrb[0].mxu0 %v1500
      %v1665 = vpop.f32.mrb[0].mxu0
      %v1666 = vadd.f32 0.0, %v1665
      %v1667 = vpop.f32.mrb[0].mxu0
      %v1668 = vpop.f32.mrb[0].mxu0
      %v1669 = vadd.f32 0.0, %v1668
      %v1670 = vpop.f32.mrb[0].mxu0
      %1671 = vmatprep.mubr.bf16.mxu0 0
      %1672 = vmatmul.mubr.bf16.gmra.mrb[0].mxu0 %v1503
      %v1673 = vpop.f32.mrb[0].mxu0
      %v1674 = vadd.f32 0.0, %v1673
      %v1675 = vpop.f32.mrb[0].mxu0
      %v1676 = vpop.f32.mrb[0].mxu0
      %v1677 = vadd.f32 0.0, %v1676
      %v1678 = vpop.f32.mrb[0].mxu0
      %1679 = vmatprep.mubr.bf16.mxu0 0
      %1680 = vmatmul.mubr.bf16.gmra.mrb[0].mxu0 %v1506
      %v1681 = vpop.f32.mrb[0].mxu0
      %v1682 = vadd.f32 0.0, %v1681
      %v1683 = vpop.f32.mrb[0].mxu0
      %v1684 = vpop.f32.mrb[0].mxu0
      %v1685 = vadd.f32 0.0, %v1684
      %v1686 = vpop.f32.mrb[0].mxu0
      %1687 = vdwg.mxu0
      %v1688 = vadd.f32 %v1249, %v1546
      %v1689 = vadd.f32 %v1250, %v1549
      %v1690 = vadd.f32 %v1251, %v1554
      %v1691 = vadd.f32 %v1252, %v1557
      %v1692 = vadd.f32 %v1253, %v1562
      %v1693 = vadd.f32 %v1254, %v1565
      %v1694 = vadd.f32 %v1255, %v1570
      %v1695 = vadd.f32 %v1256, %v1573
      %v1696 = vadd.f32 %v1257, %v1578
      %v1697 = vadd.f32 %v1258, %v1581
      %v1698 = vadd.f32 %v1259, %v1586
      %v1699 = vadd.f32 %v1260, %v1589
      %v1700 = vadd.f32 %v1261, %v1594
      %v1701 = vadd.f32 %v1262, %v1597
      %v1702 = vadd.f32 %v1263, %v1602
      %v1703 = vadd.f32 %v1264, %v1605
      %v1704 = vadd.f32 %v1265, %v1610
      %v1705 = vadd.f32 %v1266, %v1613
      %v1706 = vadd.f32 %v1267, %v1618
      %v1707 = vadd.f32 %v1268, %v1621
      %v1708 = vadd.f32 %v1269, %v1626
      %v1709 = vadd.f32 %v1270, %v1629
      %v1710 = vadd.f32 %v1271, %v1634
      %v1711 = vadd.f32 %v1272, %v1637
      %v1712 = vadd.f32 %v1273, %v1642
      %v1713 = vadd.f32 %v1274, %v1645
      %v1714 = vadd.f32 %v1275, %v1650
      %v1715 = vadd.f32 %v1276, %v1653
      %v1716 = vadd.f32 %v1277, %v1658
      %v1717 = vadd.f32 %v1278, %v1661
      %v1718 = vadd.f32 %v1279, %v1666
      %v1719 = vadd.f32 %v1280, %v1669
      %v1720 = vadd.f32 %v1281, %v1674
      %v1721 = vadd.f32 %v1282, %v1677
      %v1722 = vadd.f32 %v1283, %v1682
      %v1723 = vadd.f32 %v1284, %v1685
      %v1724 = vld [vmem:[%s226 + $0x98] sm:$0x3]
      %s1725 = scalar_lea.vmem %s2, 8
      %v1726 = vld [vmem:[%s1725] sm:$0x3]
      %v1728 = vunpack.c.l.b16 %v1724
      %v1729 = vpack.c.b16 %v1728, %v1728
      %vm1730 = vsmask.f32 6400
      %v1732 = vshrl.u32 %v1398, 16
      %v1734 = vrot.slane %v1732, 1
      %v1735 = vshll.u32 %v1398, 16
      %v1737 = vrot.slane %v1735, 2
      %v1738 = vor.u32 %v1734, %v1737
      %v1740 = vshrl.u32 %v1399, 16
      %v1742 = vrot.slane %v1740, 1
      %v1743 = vshll.u32 %v1399, 16
      %v1745 = vrot.slane %v1743, 2
      %v1746 = vor.u32 %v1742, %v1745
      %v1747 = vsel %vm1730, %v1738, %v1746
      %v1749 = vshrl.u32 %v1400, 16
      %v1751 = vrot.slane %v1749, 1
      %v1752 = vshll.u32 %v1400, 16
      %v1754 = vrot.slane %v1752, 2
      %v1755 = vor.u32 %v1751, %v1754
      %v1756 = vsel %vm1730, %v1746, %v1755
      %v1758 = vshrl.u32 %v1401, 16
      %v1760 = vrot.slane %v1758, 1
      %v1761 = vshll.u32 %v1401, 16
      %v1763 = vrot.slane %v1761, 2
      %v1764 = vor.u32 %v1760, %v1763
      %v1765 = vsel %vm1730, %v1755, %v1764
      %v1767 = vshrl.u32 %v1402, 16
      %v1769 = vrot.slane %v1767, 1
      %v1770 = vshll.u32 %v1402, 16
      %v1772 = vrot.slane %v1770, 2
      %v1773 = vor.u32 %v1769, %v1772
      %v1774 = vsel %vm1730, %v1764, %v1773
      %v1776 = vshrl.u32 %v1403, 16
      %v1778 = vrot.slane %v1776, 1
      %v1779 = vshll.u32 %v1403, 16
      %v1781 = vrot.slane %v1779, 2
      %v1782 = vor.u32 %v1778, %v1781
      %v1783 = vsel %vm1730, %v1773, %v1782
      %v1785 = vshrl.u32 %v1404, 16
      %v1787 = vrot.slane %v1785, 1
      %v1788 = vshll.u32 %v1404, 16
      %v1790 = vrot.slane %v1788, 2
      %v1791 = vor.u32 %v1787, %v1790
      %v1792 = vsel %vm1730, %v1782, %v1791
      %v1794 = vshrl.u32 %v1405, 16
      %v1796 = vrot.slane %v1794, 1
      %v1797 = vshll.u32 %v1405, 16
      %v1799 = vrot.slane %v1797, 2
      %v1800 = vor.u32 %v1796, %v1799
      %v1801 = vsel %vm1730, %v1791, %v1800
      %v1803 = vshrl.u32 %v1406, 16
      %v1805 = vrot.slane %v1803, 1
      %v1806 = vshll.u32 %v1406, 16
      %v1808 = vrot.slane %v1806, 2
      %v1809 = vor.u32 %v1805, %v1808
      %v1810 = vsel %vm1730, %v1800, %v1809
      %v1812 = vshrl.u32 %v1407, 16
      %v1814 = vrot.slane %v1812, 1
      %v1815 = vshll.u32 %v1407, 16
      %v1817 = vrot.slane %v1815, 2
      %v1818 = vor.u32 %v1814, %v1817
      %v1819 = vsel %vm1730, %v1809, %v1818
      %v1821 = vshrl.u32 %v1408, 16
      %v1823 = vrot.slane %v1821, 1
      %v1824 = vshll.u32 %v1408, 16
      %v1826 = vrot.slane %v1824, 2
      %v1827 = vor.u32 %v1823, %v1826
      %v1828 = vsel %vm1730, %v1818, %v1827
      %v1830 = vshrl.u32 %v1409, 16
      %v1832 = vrot.slane %v1830, 1
      %v1833 = vshll.u32 %v1409, 16
      %v1835 = vrot.slane %v1833, 2
      %v1836 = vor.u32 %v1832, %v1835
      %v1837 = vsel %vm1730, %v1827, %v1836
      %v1839 = vshrl.u32 %v1410, 16
      %v1841 = vrot.slane %v1839, 1
      %v1842 = vshll.u32 %v1410, 16
      %v1844 = vrot.slane %v1842, 2
      %v1845 = vor.u32 %v1841, %v1844
      %v1846 = vsel %vm1730, %v1836, %v1845
      %v1848 = vshrl.u32 %v1411, 16
      %v1850 = vrot.slane %v1848, 1
      %v1851 = vshll.u32 %v1411, 16
      %v1853 = vrot.slane %v1851, 2
      %v1854 = vor.u32 %v1850, %v1853
      %v1855 = vsel %vm1730, %v1845, %v1854
      %v1857 = vshrl.u32 %v1412, 16
      %v1859 = vrot.slane %v1857, 1
      %v1860 = vshll.u32 %v1412, 16
      %v1862 = vrot.slane %v1860, 2
      %v1863 = vor.u32 %v1859, %v1862
      %v1864 = vsel %vm1730, %v1854, %v1863
      %v1866 = vshrl.u32 %v1413, 16
      %v1868 = vrot.slane %v1866, 1
      %v1869 = vshll.u32 %v1413, 16
      %v1871 = vrot.slane %v1869, 2
      %v1872 = vor.u32 %v1868, %v1871
      %v1873 = vsel %vm1730, %v1863, %v1872
      %v1875 = vshrl.u32 %v1414, 16
      %v1877 = vrot.slane %v1875, 1
      %v1878 = vshll.u32 %v1414, 16
      %v1880 = vrot.slane %v1878, 2
      %v1881 = vor.u32 %v1877, %v1880
      %v1882 = vsel %vm1730, %v1872, %v1881
      %v1884 = vshrl.u32 %v1415, 16
      %v1886 = vrot.slane %v1884, 1
      %v1887 = vshll.u32 %v1415, 16
      %v1889 = vrot.slane %v1887, 2
      %v1890 = vor.u32 %v1886, %v1889
      %v1891 = vsel %vm1730, %v1881, %v1890
      %v1893 = vshrl.u32 %v1729, 16
      %v1895 = vrot.slane %v1893, 1
      %v1896 = vshll.u32 %v1729, 16
      %v1898 = vrot.slane %v1896, 2
      %v1899 = vor.u32 %v1895, %v1898
      %v1900 = vsel %vm1730, %v1890, %v1899
      %v1902 = vsel %vm519, %v1747, 0
      %v1905 = vsel %vm519, %v1756, 0
      %v1908 = vsel %vm519, %v1765, 0
      %v1911 = vsel %vm519, %v1774, 0
      %v1914 = vsel %vm519, %v1783, 0
      %v1917 = vsel %vm519, %v1792, 0
      %v1920 = vsel %vm519, %v1801, 0
      %v1923 = vsel %vm519, %v1810, 0
      %v1926 = vsel %vm519, %v1819, 0
      %v1929 = vsel %vm519, %v1828, 0
      %v1932 = vsel %vm519, %v1837, 0
      %v1935 = vsel %vm519, %v1846, 0
      %v1938 = vsel %vm519, %v1855, 0
      %v1941 = vsel %vm519, %v1864, 0
      %v1944 = vsel %vm519, %v1873, 0
      %v1947 = vsel %vm519, %v1882, 0
      %v1950 = vsel %vm519, %v1891, 0
      %v1953 = vsel %vm519, %v1900, 0
      %v1956 = vsel %vm574, %v1726, 0
      %1958 = vmatprep.subr.bf16.mxu0 0
      %1959 = vmatpush1.bf16.msra.mxu0 %v1956
      %1960 = vmatprep.subr.bf16.mxu0 0
      %1961 = vmatpush1.bf16.msra.mxu0 0
      %1962 = vmatprep.subr.bf16.mxu0 0
      %1963 = vmatpush1.bf16.msra.mxu0 0
      %1964 = vmatprep.subr.bf16.mxu0 0
      %1965 = vmatpush1.bf16.msra.mxu0 0
      %1966 = vmatprep.subr.bf16.mxu0 0
      %1967 = vmatpush1.bf16.msra.mxu0 0
      %1968 = vmatprep.subr.bf16.mxu0 0
      %1969 = vmatpush1.bf16.msra.mxu0 0
      %1970 = vmatprep.subr.bf16.mxu0 0
      %1971 = vmatpush1.bf16.msra.mxu0 0
      %1972 = vmatprep.subr.bf16.mxu0 0
      %1973 = vmatpush1.bf16.msra.mxu0 0
      %1974 = vmatprep.subr.bf16.mxu0 0
      %1975 = vmatpush1.bf16.msra.mxu0 0
      %1976 = vmatprep.subr.bf16.mxu0 0
      %1977 = vmatpush1.bf16.msra.mxu0 0
      %1978 = vmatprep.subr.bf16.mxu0 0
      %1979 = vmatpush1.bf16.msra.mxu0 0
      %1980 = vmatprep.subr.bf16.mxu0 0
      %1981 = vmatpush1.bf16.msra.mxu0 0
      %1982 = vmatprep.subr.bf16.mxu0 0
      %1983 = vmatpush1.bf16.msra.mxu0 0
      %1984 = vmatprep.subr.bf16.mxu0 0
      %1985 = vmatpush1.bf16.msra.mxu0 0
      %1986 = vmatprep.subr.bf16.mxu0 0
      %1987 = vmatpush1.bf16.msra.mxu0 0
      %1988 = vmatprep.subr.bf16.mxu0 0
      %1989 = vmatpush1.bf16.msra.mxu0 0
      %1990 = vmatprep.mubr.bf16.mxu0 0
      %1991 = vmatmul.mubr.bf16.gmra.mrb[0].mxu0 %v1902
      %v1992 = vpop.f32.mrb[0].mxu0
      %v1993 = vadd.f32 0.0, %v1992
      %v1994 = vpop.f32.mrb[0].mxu0
      %v1995 = vpop.f32.mrb[0].mxu0
      %v1996 = vadd.f32 0.0, %v1995
      %v1997 = vpop.f32.mrb[0].mxu0
      %1998 = vmatprep.mubr.bf16.mxu0 0
      %1999 = vmatmul.mubr.bf16.gmra.mrb[0].mxu0 %v1905
      %v2000 = vpop.f32.mrb[0].mxu0
      %v2001 = vadd.f32 0.0, %v2000
      %v2002 = vpop.f32.mrb[0].mxu0
      %v2003 = vpop.f32.mrb[0].mxu0
      %v2004 = vadd.f32 0.0, %v2003
      %v2005 = vpop.f32.mrb[0].mxu0
      %2006 = vmatprep.mubr.bf16.mxu0 0
      %2007 = vmatmul.mubr.bf16.gmra.mrb[0].mxu0 %v1908
      %v2008 = vpop.f32.mrb[0].mxu0
      %v2009 = vadd.f32 0.0, %v2008
      %v2010 = vpop.f32.mrb[0].mxu0
      %v2011 = vpop.f32.mrb[0].mxu0
      %v2012 = vadd.f32 0.0, %v2011
      %v2013 = vpop.f32.mrb[0].mxu0
      %2014 = vmatprep.mubr.bf16.mxu0 0
      %2015 = vmatmul.mubr.bf16.gmra.mrb[0].mxu0 %v1911
      %v2016 = vpop.f32.mrb[0].mxu0
      %v2017 = vadd.f32 0.0, %v2016
      %v2018 = vpop.f32.mrb[0].mxu0
      %v2019 = vpop.f32.mrb[0].mxu0
      %v2020 = vadd.f32 0.0, %v2019
      %v2021 = vpop.f32.mrb[0].mxu0
      %2022 = vmatprep.mubr.bf16.mxu0 0
      %2023 = vmatmul.mubr.bf16.gmra.mrb[0].mxu0 %v1914
      %v2024 = vpop.f32.mrb[0].mxu0
      %v2025 = vadd.f32 0.0, %v2024
      %v2026 = vpop.f32.mrb[0].mxu0
      %v2027 = vpop.f32.mrb[0].mxu0
      %v2028 = vadd.f32 0.0, %v2027
      %v2029 = vpop.f32.mrb[0].mxu0
      %2030 = vmatprep.mubr.bf16.mxu0 0
      %2031 = vmatmul.mubr.bf16.gmra.mrb[0].mxu0 %v1917
      %v2032 = vpop.f32.mrb[0].mxu0
      %v2033 = vadd.f32 0.0, %v2032
      %v2034 = vpop.f32.mrb[0].mxu0
      %v2035 = vpop.f32.mrb[0].mxu0
      %v2036 = vadd.f32 0.0, %v2035
      %v2037 = vpop.f32.mrb[0].mxu0
      %2038 = vmatprep.mubr.bf16.mxu0 0
      %2039 = vmatmul.mubr.bf16.gmra.mrb[0].mxu0 %v1920
      %v2040 = vpop.f32.mrb[0].mxu0
      %v2041 = vadd.f32 0.0, %v2040
      %v2042 = vpop.f32.mrb[0].mxu0
      %v2043 = vpop.f32.mrb[0].mxu0
      %v2044 = vadd.f32 0.0, %v2043
      %v2045 = vpop.f32.mrb[0].mxu0
      %2046 = vmatprep.mubr.bf16.mxu0 0
      %2047 = vmatmul.mubr.bf16.gmra.mrb[0].mxu0 %v1923
      %v2048 = vpop.f32.mrb[0].mxu0
      %v2049 = vadd.f32 0.0, %v2048
      %v2050 = vpop.f32.mrb[0].mxu0
      %v2051 = vpop.f32.mrb[0].mxu0
      %v2052 = vadd.f32 0.0, %v2051
      %v2053 = vpop.f32.mrb[0].mxu0
      %2054 = vmatprep.mubr.bf16.mxu0 0
      %2055 = vmatmul.mubr.bf16.gmra.mrb[0].mxu0 %v1926
      %v2056 = vpop.f32.mrb[0].mxu0
      %v2057 = vadd.f32 0.0, %v2056
      %v2058 = vpop.f32.mrb[0].mxu0
      %v2059 = vpop.f32.mrb[0].mxu0
      %v2060 = vadd.f32 0.0, %v2059
      %v2061 = vpop.f32.mrb[0].mxu0
      %2062 = vmatprep.mubr.bf16.mxu0 0
      %2063 = vmatmul.mubr.bf16.gmra.mrb[0].mxu0 %v1929
      %v2064 = vpop.f32.mrb[0].mxu0
      %v2065 = vadd.f32 0.0, %v2064
      %v2066 = vpop.f32.mrb[0].mxu0
      %v2067 = vpop.f32.mrb[0].mxu0
      %v2068 = vadd.f32 0.0, %v2067
      %v2069 = vpop.f32.mrb[0].mxu0
      %2070 = vmatprep.mubr.bf16.mxu0 0
      %2071 = vmatmul.mubr.bf16.gmra.mrb[0].mxu0 %v1932
      %v2072 = vpop.f32.mrb[0].mxu0
      %v2073 = vadd.f32 0.0, %v2072
      %v2074 = vpop.f32.mrb[0].mxu0
      %v2075 = vpop.f32.mrb[0].mxu0
      %v2076 = vadd.f32 0.0, %v2075
      %v2077 = vpop.f32.mrb[0].mxu0
      %2078 = vmatprep.mubr.bf16.mxu0 0
      %2079 = vmatmul.mubr.bf16.gmra.mrb[0].mxu0 %v1935
      %v2080 = vpop.f32.mrb[0].mxu0
      %v2081 = vadd.f32 0.0, %v2080
      %v2082 = vpop.f32.mrb[0].mxu0
      %v2083 = vpop.f32.mrb[0].mxu0
      %v2084 = vadd.f32 0.0, %v2083
      %v2085 = vpop.f32.mrb[0].mxu0
      %2086 = vmatprep.mubr.bf16.mxu0 0
      %2087 = vmatmul.mubr.bf16.gmra.mrb[0].mxu0 %v1938
      %v2088 = vpop.f32.mrb[0].mxu0
      %v2089 = vadd.f32 0.0, %v2088
      %v2090 = vpop.f32.mrb[0].mxu0
      %v2091 = vpop.f32.mrb[0].mxu0
      %v2092 = vadd.f32 0.0, %v2091
      %v2093 = vpop.f32.mrb[0].mxu0
      %2094 = vmatprep.mubr.bf16.mxu0 0
      %2095 = vmatmul.mubr.bf16.gmra.mrb[0].mxu0 %v1941
      %v2096 = vpop.f32.mrb[0].mxu0
      %v2097 = vadd.f32 0.0, %v2096
      %v2098 = vpop.f32.mrb[0].mxu0
      %v2099 = vpop.f32.mrb[0].mxu0
      %v2100 = vadd.f32 0.0, %v2099
      %v2101 = vpop.f32.mrb[0].mxu0
      %2102 = vmatprep.mubr.bf16.mxu0 0
      %2103 = vmatmul.mubr.bf16.gmra.mrb[0].mxu0 %v1944
      %v2104 = vpop.f32.mrb[0].mxu0
      %v2105 = vadd.f32 0.0, %v2104
      %v2106 = vpop.f32.mrb[0].mxu0
      %v2107 = vpop.f32.mrb[0].mxu0
      %v2108 = vadd.f32 0.0, %v2107
      %v2109 = vpop.f32.mrb[0].mxu0
      %2110 = vmatprep.mubr.bf16.mxu0 0
      %2111 = vmatmul.mubr.bf16.gmra.mrb[0].mxu0 %v1947
      %v2112 = vpop.f32.mrb[0].mxu0
      %v2113 = vadd.f32 0.0, %v2112
      %v2114 = vpop.f32.mrb[0].mxu0
      %v2115 = vpop.f32.mrb[0].mxu0
      %v2116 = vadd.f32 0.0, %v2115
      %v2117 = vpop.f32.mrb[0].mxu0
      %2118 = vmatprep.mubr.bf16.mxu0 0
      %2119 = vmatmul.mubr.bf16.gmra.mrb[0].mxu0 %v1950
      %v2120 = vpop.f32.mrb[0].mxu0
      %v2121 = vadd.f32 0.0, %v2120
      %v2122 = vpop.f32.mrb[0].mxu0
      %v2123 = vpop.f32.mrb[0].mxu0
      %v2124 = vadd.f32 0.0, %v2123
      %v2125 = vpop.f32.mrb[0].mxu0
      %2126 = vmatprep.mubr.bf16.mxu0 0
      %2127 = vmatmul.mubr.bf16.gmra.mrb[0].mxu0 %v1953
      %v2128 = vpop.f32.mrb[0].mxu0
      %v2129 = vadd.f32 0.0, %v2128
      %v2130 = vpop.f32.mrb[0].mxu0
      %v2131 = vpop.f32.mrb[0].mxu0
      %v2132 = vadd.f32 0.0, %v2131
      %v2133 = vpop.f32.mrb[0].mxu0
      %2134 = vdwg.mxu0
      %v2135 = vadd.f32 %v1688, %v1993
      %v2136 = vadd.f32 %v1689, %v1996
      %v2137 = vadd.f32 %v1690, %v2001
      %v2138 = vadd.f32 %v1691, %v2004
      %v2139 = vadd.f32 %v1692, %v2009
      %v2140 = vadd.f32 %v1693, %v2012
      %v2141 = vadd.f32 %v1694, %v2017
      %v2142 = vadd.f32 %v1695, %v2020
      %v2143 = vadd.f32 %v1696, %v2025
      %v2144 = vadd.f32 %v1697, %v2028
      %v2145 = vadd.f32 %v1698, %v2033
      %v2146 = vadd.f32 %v1699, %v2036
      %v2147 = vadd.f32 %v1700, %v2041
      %v2148 = vadd.f32 %v1701, %v2044
      %v2149 = vadd.f32 %v1702, %v2049
      %v2150 = vadd.f32 %v1703, %v2052
      %v2151 = vadd.f32 %v1704, %v2057
      %v2152 = vadd.f32 %v1705, %v2060
      %v2153 = vadd.f32 %v1706, %v2065
      %v2154 = vadd.f32 %v1707, %v2068
      %v2155 = vadd.f32 %v1708, %v2073
      %v2156 = vadd.f32 %v1709, %v2076
      %v2157 = vadd.f32 %v1710, %v2081
      %v2158 = vadd.f32 %v1711, %v2084
      %v2159 = vadd.f32 %v1712, %v2089
      %v2160 = vadd.f32 %v1713, %v2092
      %v2161 = vadd.f32 %v1714, %v2097
      %v2162 = vadd.f32 %v1715, %v2100
      %v2163 = vadd.f32 %v1716, %v2105
      %v2164 = vadd.f32 %v1717, %v2108
      %v2165 = vadd.f32 %v1718, %v2113
      %v2166 = vadd.f32 %v1719, %v2116
      %v2167 = vadd.f32 %v1720, %v2121
      %v2168 = vadd.f32 %v1721, %v2124
      %v2169 = vadd.f32 %v1722, %v2129
      %v2170 = vadd.f32 %v1723, %v2132
      %v2171 = vld [vmem:[%s226 + $0x8] sm:$0xc]
      %s2172 = scalar_lea.vmem %s2, 10
      %v2173 = vld [vmem:[%s2172] sm:$0x3]
      %v2175 = vunpack.c.l.b16 %v2171
      %v2176 = vpack.c.b16 %v1362, %v2175
      %vm2177 = vcmask 1045504
      %v2178 = vrot.slane %v2176, 2
      %v2179 = vrot.slane %v1399, 2
      %v2180 = vsel %vm2177, %v2178, %v2179
      %v2181 = vrot.slane %v1400, 2
      %v2182 = vsel %vm2177, %v2179, %v2181
      %v2183 = vrot.slane %v1401, 2
      %v2184 = vsel %vm2177, %v2181, %v2183
      %v2185 = vrot.slane %v1402, 2
      %v2186 = vsel %vm2177, %v2183, %v2185
      %v2187 = vrot.slane %v1403, 2
      %v2188 = vsel %vm2177, %v2185, %v2187
      %v2189 = vrot.slane %v1404, 2
      %v2190 = vsel %vm2177, %v2187, %v2189
      %v2191 = vrot.slane %v1405, 2
      %v2192 = vsel %vm2177, %v2189, %v2191
      %v2193 = vrot.slane %v1406, 2
      %v2194 = vsel %vm2177, %v2191, %v2193
      %v2195 = vrot.slane %v1407, 2
      %v2196 = vsel %vm2177, %v2193, %v2195
      %v2197 = vrot.slane %v1408, 2
      %v2198 = vsel %vm2177, %v2195, %v2197
      %v2199 = vrot.slane %v1409, 2
      %v2200 = vsel %vm2177, %v2197, %v2199
      %v2201 = vrot.slane %v1410, 2
      %v2202 = vsel %vm2177, %v2199, %v2201
      %v2203 = vrot.slane %v1411, 2
      %v2204 = vsel %vm2177, %v2201, %v2203
      %v2205 = vrot.slane %v1412, 2
      %v2206 = vsel %vm2177, %v2203, %v2205
      %v2207 = vrot.slane %v1413, 2
      %v2208 = vsel %vm2177, %v2205, %v2207
      %v2209 = vrot.slane %v1414, 2
      %v2210 = vsel %vm2177, %v2207, %v2209
      %v2211 = vrot.slane %v1415, 2
      %v2212 = vsel %vm2177, %v2209, %v2211
      %v2213 = vrot.slane %v1729, 2
      %v2214 = vsel %vm2177, %v2211, %v2213
      %v2216 = vsel %vm519, %v2180, 0
      %v2219 = vsel %vm519, %v2182, 0
      %v2222 = vsel %vm519, %v2184, 0
      %v2225 = vsel %vm519, %v2186, 0
      %v2228 = vsel %vm519, %v2188, 0
      %v2231 = vsel %vm519, %v2190, 0
      %v2234 = vsel %vm519, %v2192, 0
      %v2237 = vsel %vm519, %v2194, 0
      %v2240 = vsel %vm519, %v2196, 0
      %v2243 = vsel %vm519, %v2198, 0
      %v2246 = vsel %vm519, %v2200, 0
      %v2249 = vsel %vm519, %v2202, 0
      %v2252 = vsel %vm519, %v2204, 0
      %v2255 = vsel %vm519, %v2206, 0
      %v2258 = vsel %vm519, %v2208, 0
      %v2261 = vsel %vm519, %v2210, 0
      %v2264 = vsel %vm519, %v2212, 0
      %v2267 = vsel %vm519, %v2214, 0
      %v2270 = vsel %vm574, %v2173, 0
      %2272 = vmatprep.subr.bf16.mxu0 0
      %2273 = vmatpush1.bf16.msra.mxu0 %v2270
      %2274 = vmatprep.subr.bf16.mxu0 0
      %2275 = vmatpush1.bf16.msra.mxu0 0
      %2276 = vmatprep.subr.bf16.mxu0 0
      %2277 = vmatpush1.bf16.msra.mxu0 0
      %2278 = vmatprep.subr.bf16.mxu0 0
      %2279 = vmatpush1.bf16.msra.mxu0 0
      %2280 = vmatprep.subr.bf16.mxu0 0
      %2281 = vmatpush1.bf16.msra.mxu0 0
      %2282 = vmatprep.subr.bf16.mxu0 0
      %2283 = vmatpush1.bf16.msra.mxu0 0
      %2284 = vmatprep.subr.bf16.mxu0 0
      %2285 = vmatpush1.bf16.msra.mxu0 0
      %2286 = vmatprep.subr.bf16.mxu0 0
      %2287 = vmatpush1.bf16.msra.mxu0 0
      %2288 = vmatprep.subr.bf16.mxu0 0
      %2289 = vmatpush1.bf16.msra.mxu0 0
      %2290 = vmatprep.subr.bf16.mxu0 0
      %2291 = vmatpush1.bf16.msra.mxu0 0
      %2292 = vmatprep.subr.bf16.mxu0 0
      %2293 = vmatpush1.bf16.msra.mxu0 0
      %2294 = vmatprep.subr.bf16.mxu0 0
      %2295 = vmatpush1.bf16.msra.mxu0 0
      %2296 = vmatprep.subr.bf16.mxu0 0
      %2297 = vmatpush1.bf16.msra.mxu0 0
      %2298 = vmatprep.subr.bf16.mxu0 0
      %2299 = vmatpush1.bf16.msra.mxu0 0
      %2300 = vmatprep.subr.bf16.mxu0 0
      %2301 = vmatpush1.bf16.msra.mxu0 0
      %2302 = vmatprep.subr.bf16.mxu0 0
      %2303 = vmatpush1.bf16.msra.mxu0 0
      %2304 = vmatprep.mubr.bf16.mxu0 0
      %2305 = vmatmul.mubr.bf16.gmra.mrb[0].mxu0 %v2216
      %v2306 = vpop.f32.mrb[0].mxu0
      %v2307 = vadd.f32 0.0, %v2306
      %v2308 = vpop.f32.mrb[0].mxu0
      %v2309 = vpop.f32.mrb[0].mxu0
      %v2310 = vadd.f32 0.0, %v2309
      %v2311 = vpop.f32.mrb[0].mxu0
      %2312 = vmatprep.mubr.bf16.mxu0 0
      %2313 = vmatmul.mubr.bf16.gmra.mrb[0].mxu0 %v2219
      %v2314 = vpop.f32.mrb[0].mxu0
      %v2315 = vadd.f32 0.0, %v2314
      %v2316 = vpop.f32.mrb[0].mxu0
      %v2317 = vpop.f32.mrb[0].mxu0
      %v2318 = vadd.f32 0.0, %v2317
      %v2319 = vpop.f32.mrb[0].mxu0
      %2320 = vmatprep.mubr.bf16.mxu0 0
      %2321 = vmatmul.mubr.bf16.gmra.mrb[0].mxu0 %v2222
      %v2322 = vpop.f32.mrb[0].mxu0
      %v2323 = vadd.f32 0.0, %v2322
      %v2324 = vpop.f32.mrb[0].mxu0
      %v2325 = vpop.f32.mrb[0].mxu0
      %v2326 = vadd.f32 0.0, %v2325
      %v2327 = vpop.f32.mrb[0].mxu0
      %2328 = vmatprep.mubr.bf16.mxu0 0
      %2329 = vmatmul.mubr.bf16.gmra.mrb[0].mxu0 %v2225
      %v2330 = vpop.f32.mrb[0].mxu0
      %v2331 = vadd.f32 0.0, %v2330
      %v2332 = vpop.f32.mrb[0].mxu0
      %v2333 = vpop.f32.mrb[0].mxu0
      %v2334 = vadd.f32 0.0, %v2333
      %v2335 = vpop.f32.mrb[0].mxu0
      %2336 = vmatprep.mubr.bf16.mxu0 0
      %2337 = vmatmul.mubr.bf16.gmra.mrb[0].mxu0 %v2228
      %v2338 = vpop.f32.mrb[0].mxu0
      %v2339 = vadd.f32 0.0, %v2338
      %v2340 = vpop.f32.mrb[0].mxu0
      %v2341 = vpop.f32.mrb[0].mxu0
      %v2342 = vadd.f32 0.0, %v2341
      %v2343 = vpop.f32.mrb[0].mxu0
      %2344 = vmatprep.mubr.bf16.mxu0 0
      %2345 = vmatmul.mubr.bf16.gmra.mrb[0].mxu0 %v2231
      %v2346 = vpop.f32.mrb[0].mxu0
      %v2347 = vadd.f32 0.0, %v2346
      %v2348 = vpop.f32.mrb[0].mxu0
      %v2349 = vpop.f32.mrb[0].mxu0
      %v2350 = vadd.f32 0.0, %v2349
      %v2351 = vpop.f32.mrb[0].mxu0
      %2352 = vmatprep.mubr.bf16.mxu0 0
      %2353 = vmatmul.mubr.bf16.gmra.mrb[0].mxu0 %v2234
      %v2354 = vpop.f32.mrb[0].mxu0
      %v2355 = vadd.f32 0.0, %v2354
      %v2356 = vpop.f32.mrb[0].mxu0
      %v2357 = vpop.f32.mrb[0].mxu0
      %v2358 = vadd.f32 0.0, %v2357
      %v2359 = vpop.f32.mrb[0].mxu0
      %2360 = vmatprep.mubr.bf16.mxu0 0
      %2361 = vmatmul.mubr.bf16.gmra.mrb[0].mxu0 %v2237
      %v2362 = vpop.f32.mrb[0].mxu0
      %v2363 = vadd.f32 0.0, %v2362
      %v2364 = vpop.f32.mrb[0].mxu0
      %v2365 = vpop.f32.mrb[0].mxu0
      %v2366 = vadd.f32 0.0, %v2365
      %v2367 = vpop.f32.mrb[0].mxu0
      %2368 = vmatprep.mubr.bf16.mxu0 0
      %2369 = vmatmul.mubr.bf16.gmra.mrb[0].mxu0 %v2240
      %v2370 = vpop.f32.mrb[0].mxu0
      %v2371 = vadd.f32 0.0, %v2370
      %v2372 = vpop.f32.mrb[0].mxu0
      %v2373 = vpop.f32.mrb[0].mxu0
      %v2374 = vadd.f32 0.0, %v2373
      %v2375 = vpop.f32.mrb[0].mxu0
      %2376 = vmatprep.mubr.bf16.mxu0 0
      %2377 = vmatmul.mubr.bf16.gmra.mrb[0].mxu0 %v2243
      %v2378 = vpop.f32.mrb[0].mxu0
      %v2379 = vadd.f32 0.0, %v2378
      %v2380 = vpop.f32.mrb[0].mxu0
      %v2381 = vpop.f32.mrb[0].mxu0
      %v2382 = vadd.f32 0.0, %v2381
      %v2383 = vpop.f32.mrb[0].mxu0
      %2384 = vmatprep.mubr.bf16.mxu0 0
      %2385 = vmatmul.mubr.bf16.gmra.mrb[0].mxu0 %v2246
      %v2386 = vpop.f32.mrb[0].mxu0
      %v2387 = vadd.f32 0.0, %v2386
      %v2388 = vpop.f32.mrb[0].mxu0
      %v2389 = vpop.f32.mrb[0].mxu0
      %v2390 = vadd.f32 0.0, %v2389
      %v2391 = vpop.f32.mrb[0].mxu0
      %2392 = vmatprep.mubr.bf16.mxu0 0
      %2393 = vmatmul.mubr.bf16.gmra.mrb[0].mxu0 %v2249
      %v2394 = vpop.f32.mrb[0].mxu0
      %v2395 = vadd.f32 0.0, %v2394
      %v2396 = vpop.f32.mrb[0].mxu0
      %v2397 = vpop.f32.mrb[0].mxu0
      %v2398 = vadd.f32 0.0, %v2397
      %v2399 = vpop.f32.mrb[0].mxu0
      %2400 = vmatprep.mubr.bf16.mxu0 0
      %2401 = vmatmul.mubr.bf16.gmra.mrb[0].mxu0 %v2252
      %v2402 = vpop.f32.mrb[0].mxu0
      %v2403 = vadd.f32 0.0, %v2402
      %v2404 = vpop.f32.mrb[0].mxu0
      %v2405 = vpop.f32.mrb[0].mxu0
      %v2406 = vadd.f32 0.0, %v2405
      %v2407 = vpop.f32.mrb[0].mxu0
      %2408 = vmatprep.mubr.bf16.mxu0 0
      %2409 = vmatmul.mubr.bf16.gmra.mrb[0].mxu0 %v2255
      %v2410 = vpop.f32.mrb[0].mxu0
      %v2411 = vadd.f32 0.0, %v2410
      %v2412 = vpop.f32.mrb[0].mxu0
      %v2413 = vpop.f32.mrb[0].mxu0
      %v2414 = vadd.f32 0.0, %v2413
      %v2415 = vpop.f32.mrb[0].mxu0
      %2416 = vmatprep.mubr.bf16.mxu0 0
      %2417 = vmatmul.mubr.bf16.gmra.mrb[0].mxu0 %v2258
      %v2418 = vpop.f32.mrb[0].mxu0
      %v2419 = vadd.f32 0.0, %v2418
      %v2420 = vpop.f32.mrb[0].mxu0
      %v2421 = vpop.f32.mrb[0].mxu0
      %v2422 = vadd.f32 0.0, %v2421
      %v2423 = vpop.f32.mrb[0].mxu0
      %2424 = vmatprep.mubr.bf16.mxu0 0
      %2425 = vmatmul.mubr.bf16.gmra.mrb[0].mxu0 %v2261
      %v2426 = vpop.f32.mrb[0].mxu0
      %v2427 = vadd.f32 0.0, %v2426
      %v2428 = vpop.f32.mrb[0].mxu0
      %v2429 = vpop.f32.mrb[0].mxu0
      %v2430 = vadd.f32 0.0, %v2429
      %v2431 = vpop.f32.mrb[0].mxu0
      %2432 = vmatprep.mubr.bf16.mxu0 0
      %2433 = vmatmul.mubr.bf16.gmra.mrb[0].mxu0 %v2264
      %v2434 = vpop.f32.mrb[0].mxu0
      %v2435 = vadd.f32 0.0, %v2434
      %v2436 = vpop.f32.mrb[0].mxu0
      %v2437 = vpop.f32.mrb[0].mxu0
      %v2438 = vadd.f32 0.0, %v2437
      %v2439 = vpop.f32.mrb[0].mxu0
      %2440 = vmatprep.mubr.bf16.mxu0 0
      %2441 = vmatmul.mubr.bf16.gmra.mrb[0].mxu0 %v2267
      %v2442 = vpop.f32.mrb[0].mxu0
      %v2443 = vadd.f32 0.0, %v2442
      %v2444 = vpop.f32.mrb[0].mxu0
      %v2445 = vpop.f32.mrb[0].mxu0
      %v2446 = vadd.f32 0.0, %v2445
      %v2447 = vpop.f32.mrb[0].mxu0
      %2448 = vdwg.mxu0
      %v2449 = vadd.f32 %v2135, %v2307
      %v2450 = vadd.f32 %v2136, %v2310
      %v2451 = vadd.f32 %v2137, %v2315
      %v2452 = vadd.f32 %v2138, %v2318
      %v2453 = vadd.f32 %v2139, %v2323
      %v2454 = vadd.f32 %v2140, %v2326
      %v2455 = vadd.f32 %v2141, %v2331
      %v2456 = vadd.f32 %v2142, %v2334
      %v2457 = vadd.f32 %v2143, %v2339
      %v2458 = vadd.f32 %v2144, %v2342
      %v2459 = vadd.f32 %v2145, %v2347
      %v2460 = vadd.f32 %v2146, %v2350
      %v2461 = vadd.f32 %v2147, %v2355
      %v2462 = vadd.f32 %v2148, %v2358
      %v2463 = vadd.f32 %v2149, %v2363
      %v2464 = vadd.f32 %v2150, %v2366
      %v2465 = vadd.f32 %v2151, %v2371
      %v2466 = vadd.f32 %v2152, %v2374
      %v2467 = vadd.f32 %v2153, %v2379
      %v2468 = vadd.f32 %v2154, %v2382
      %v2469 = vadd.f32 %v2155, %v2387
      %v2470 = vadd.f32 %v2156, %v2390
      %v2471 = vadd.f32 %v2157, %v2395
      %v2472 = vadd.f32 %v2158, %v2398
      %v2473 = vadd.f32 %v2159, %v2403
      %v2474 = vadd.f32 %v2160, %v2406
      %v2475 = vadd.f32 %v2161, %v2411
      %v2476 = vadd.f32 %v2162, %v2414
      %v2477 = vadd.f32 %v2163, %v2419
      %v2478 = vadd.f32 %v2164, %v2422
      %v2479 = vadd.f32 %v2165, %v2427
      %v2480 = vadd.f32 %v2166, %v2430
      %v2481 = vadd.f32 %v2167, %v2435
      %v2482 = vadd.f32 %v2168, %v2438
      %v2483 = vadd.f32 %v2169, %v2443
      %v2484 = vadd.f32 %v2170, %v2446
      %v2485 = vld [vmem:[%s226 + $0x10] sm:$0xc]
      %v2486 = vld [vmem:[%s226 + $0x14] sm:$0xf]
      %v2487 = vld [vmem:[%s226 + $0x18] sm:$0xf]
      %v2488 = vld [vmem:[%s226 + $0x1c] sm:$0xf]
      %v2489 = vld [vmem:[%s226 + $0x20] sm:$0xf]
      %v2490 = vld [vmem:[%s226 + $0x24] sm:$0xf]
      %v2491 = vld [vmem:[%s226 + $0x28] sm:$0xf]
      %v2492 = vld [vmem:[%s226 + $0x2c] sm:$0xf]
      %v2493 = vld [vmem:[%s226 + $0x30] sm:$0xf]
      %v2494 = vld [vmem:[%s226 + $0x34] sm:$0xf]
      %v2495 = vld [vmem:[%s226 + $0x38] sm:$0xf]
      %v2496 = vld [vmem:[%s226 + $0x3c] sm:$0xf]
      %v2497 = vld [vmem:[%s226 + $0x40] sm:$0xf]
      %v2498 = vld [vmem:[%s226 + $0x44] sm:$0xf]
      %v2499 = vld [vmem:[%s226 + $0x48] sm:$0xf]
      %v2500 = vld [vmem:[%s226 + $0x4c] sm:$0xf]
      %v2501 = vld [vmem:[%s226 + $0x50] sm:$0xf]
      %v2502 = vld [vmem:[%s226 + $0x54] sm:$0xf]
      %v2503 = vld [vmem:[%s226 + $0x58] sm:$0xf]
      %v2504 = vld [vmem:[%s226 + $0x5c] sm:$0xf]
      %v2505 = vld [vmem:[%s226 + $0x60] sm:$0xf]
      %v2506 = vld [vmem:[%s226 + $0x64] sm:$0xf]
      %v2507 = vld [vmem:[%s226 + $0x68] sm:$0xf]
      %v2508 = vld [vmem:[%s226 + $0x6c] sm:$0xf]
      %v2509 = vld [vmem:[%s226 + $0x70] sm:$0xf]
      %v2510 = vld [vmem:[%s226 + $0x74] sm:$0xf]
      %v2511 = vld [vmem:[%s226 + $0x78] sm:$0xf]
      %v2512 = vld [vmem:[%s226 + $0x7c] sm:$0xf]
      %v2513 = vld [vmem:[%s226 + $0x80] sm:$0xf]
      %v2514 = vld [vmem:[%s226 + $0x84] sm:$0xf]
      %v2515 = vld [vmem:[%s226 + $0x88] sm:$0xf]
      %v2516 = vld [vmem:[%s226 + $0x8c] sm:$0xf]
      %v2517 = vld [vmem:[%s226 + $0x90] sm:$0xf]
      %v2518 = vld [vmem:[%s226 + $0x94] sm:$0xf]
      %v2519 = vld [vmem:[%s226 + $0x98] sm:$0xf]
      %v2520 = vld [vmem:[%s226 + $0x9c] sm:$0xf]
      %v2521 = vld [vmem:[%s226 + $0xa0] sm:$0x3]
      %s2522 = scalar_lea.vmem %s2, 12
      %v2523 = vld [vmem:[%s2522] sm:$0x3]
      %v2561 = vunpack.c.l.b16 %v2485
      %v2562 = vunpack.c.l.b16 %v2486
      %v2563 = vunpack.c.l.b16 %v2487
      %v2564 = vunpack.c.l.b16 %v2488
      %v2565 = vunpack.c.l.b16 %v2489
      %v2566 = vunpack.c.l.b16 %v2490
      %v2567 = vunpack.c.l.b16 %v2491
      %v2568 = vunpack.c.l.b16 %v2492
      %v2569 = vunpack.c.l.b16 %v2493
      %v2570 = vunpack.c.l.b16 %v2494
      %v2571 = vunpack.c.l.b16 %v2495
      %v2572 = vunpack.c.l.b16 %v2496
      %v2573 = vunpack.c.l.b16 %v2497
      %v2574 = vunpack.c.l.b16 %v2498
      %v2575 = vunpack.c.l.b16 %v2499
      %v2576 = vunpack.c.l.b16 %v2500
      %v2577 = vunpack.c.l.b16 %v2501
      %v2578 = vunpack.c.l.b16 %v2502
      %v2579 = vunpack.c.l.b16 %v2503
      %v2580 = vunpack.c.l.b16 %v2504
      %v2581 = vunpack.c.l.b16 %v2505
      %v2582 = vunpack.c.l.b16 %v2506
      %v2583 = vunpack.c.l.b16 %v2507
      %v2584 = vunpack.c.l.b16 %v2508
      %v2585 = vunpack.c.l.b16 %v2509
      %v2586 = vunpack.c.l.b16 %v2510
      %v2587 = vunpack.c.l.b16 %v2511
      %v2588 = vunpack.c.l.b16 %v2512
      %v2589 = vunpack.c.l.b16 %v2513
      %v2590 = vunpack.c.l.b16 %v2514
      %v2591 = vunpack.c.l.b16 %v2515
      %v2592 = vunpack.c.l.b16 %v2516
      %v2593 = vunpack.c.l.b16 %v2517
      %v2594 = vunpack.c.l.b16 %v2518
      %v2595 = vunpack.c.l.b16 %v2519
      %v2596 = vunpack.c.l.b16 %v2520
      %v2597 = vunpack.c.l.b16 %v2521
      %v2598 = vpack.c.b16 %v2562, %v2561
      %v2599 = vpack.c.b16 %v2564, %v2563
      %v2600 = vpack.c.b16 %v2566, %v2565
      %v2601 = vpack.c.b16 %v2568, %v2567
      %v2602 = vpack.c.b16 %v2570, %v2569
      %v2603 = vpack.c.b16 %v2572, %v2571
      %v2604 = vpack.c.b16 %v2574, %v2573
      %v2605 = vpack.c.b16 %v2576, %v2575
      %v2606 = vpack.c.b16 %v2578, %v2577
      %v2607 = vpack.c.b16 %v2580, %v2579
      %v2608 = vpack.c.b16 %v2582, %v2581
      %v2609 = vpack.c.b16 %v2584, %v2583
      %v2610 = vpack.c.b16 %v2586, %v2585
      %v2611 = vpack.c.b16 %v2588, %v2587
      %v2612 = vpack.c.b16 %v2590, %v2589
      %v2613 = vpack.c.b16 %v2592, %v2591
      %v2614 = vpack.c.b16 %v2594, %v2593
      %v2615 = vpack.c.b16 %v2596, %v2595
      %v2616 = vpack.c.b16 %v2597, %v2597
      %v2617 = vrot.slane %v2598, 2
      %v2618 = vrot.slane %v2599, 2
      %v2619 = vsel %vm2177, %v2617, %v2618
      %v2620 = vrot.slane %v2600, 2
      %v2621 = vsel %vm2177, %v2618, %v2620
      %v2622 = vrot.slane %v2601, 2
      %v2623 = vsel %vm2177, %v2620, %v2622
      %v2624 = vrot.slane %v2602, 2
      %v2625 = vsel %vm2177, %v2622, %v2624
      %v2626 = vrot.slane %v2603, 2
      %v2627 = vsel %vm2177, %v2624, %v2626
      %v2628 = vrot.slane %v2604, 2
      %v2629 = vsel %vm2177, %v2626, %v2628
      %v2630 = vrot.slane %v2605, 2
      %v2631 = vsel %vm2177, %v2628, %v2630
      %v2632 = vrot.slane %v2606, 2
      %v2633 = vsel %vm2177, %v2630, %v2632
      %v2634 = vrot.slane %v2607, 2
      %v2635 = vsel %vm2177, %v2632, %v2634
      %v2636 = vrot.slane %v2608, 2
      %v2637 = vsel %vm2177, %v2634, %v2636
      %v2638 = vrot.slane %v2609, 2
      %v2639 = vsel %vm2177, %v2636, %v2638
      %v2640 = vrot.slane %v2610, 2
      %v2641 = vsel %vm2177, %v2638, %v2640
      %v2642 = vrot.slane %v2611, 2
      %v2643 = vsel %vm2177, %v2640, %v2642
      %v2644 = vrot.slane %v2612, 2
      %v2645 = vsel %vm2177, %v2642, %v2644
      %v2646 = vrot.slane %v2613, 2
      %v2647 = vsel %vm2177, %v2644, %v2646
      %v2648 = vrot.slane %v2614, 2
      %v2649 = vsel %vm2177, %v2646, %v2648
      %v2650 = vrot.slane %v2615, 2
      %v2651 = vsel %vm2177, %v2648, %v2650
      %v2652 = vrot.slane %v2616, 2
      %v2653 = vsel %vm2177, %v2650, %v2652
      %v2655 = vsel %vm519, %v2619, 0
      %v2658 = vsel %vm519, %v2621, 0
      %v2661 = vsel %vm519, %v2623, 0
      %v2664 = vsel %vm519, %v2625, 0
      %v2667 = vsel %vm519, %v2627, 0
      %v2670 = vsel %vm519, %v2629, 0
      %v2673 = vsel %vm519, %v2631, 0
      %v2676 = vsel %vm519, %v2633, 0
      %v2679 = vsel %vm519, %v2635, 0
      %v2682 = vsel %vm519, %v2637, 0
      %v2685 = vsel %vm519, %v2639, 0
      %v2688 = vsel %vm519, %v2641, 0
      %v2691 = vsel %vm519, %v2643, 0
      %v2694 = vsel %vm519, %v2645, 0
      %v2697 = vsel %vm519, %v2647, 0
      %v2700 = vsel %vm519, %v2649, 0
      %v2703 = vsel %vm519, %v2651, 0
      %v2706 = vsel %vm519, %v2653, 0
      %v2709 = vsel %vm574, %v2523, 0
      %2711 = vmatprep.subr.bf16.mxu0 0
      %2712 = vmatpush1.bf16.msra.mxu0 %v2709
      %2713 = vmatprep.subr.bf16.mxu0 0
      %2714 = vmatpush1.bf16.msra.mxu0 0
      %2715 = vmatprep.subr.bf16.mxu0 0
      %2716 = vmatpush1.bf16.msra.mxu0 0
      %2717 = vmatprep.subr.bf16.mxu0 0
      %2718 = vmatpush1.bf16.msra.mxu0 0
      %2719 = vmatprep.subr.bf16.mxu0 0
      %2720 = vmatpush1.bf16.msra.mxu0 0
      %2721 = vmatprep.subr.bf16.mxu0 0
      %2722 = vmatpush1.bf16.msra.mxu0 0
      %2723 = vmatprep.subr.bf16.mxu0 0
      %2724 = vmatpush1.bf16.msra.mxu0 0
      %2725 = vmatprep.subr.bf16.mxu0 0
      %2726 = vmatpush1.bf16.msra.mxu0 0
      %2727 = vmatprep.subr.bf16.mxu0 0
      %2728 = vmatpush1.bf16.msra.mxu0 0
      %2729 = vmatprep.subr.bf16.mxu0 0
      %2730 = vmatpush1.bf16.msra.mxu0 0
      %2731 = vmatprep.subr.bf16.mxu0 0
      %2732 = vmatpush1.bf16.msra.mxu0 0
      %2733 = vmatprep.subr.bf16.mxu0 0
      %2734 = vmatpush1.bf16.msra.mxu0 0
      %2735 = vmatprep.subr.bf16.mxu0 0
      %2736 = vmatpush1.bf16.msra.mxu0 0
      %2737 = vmatprep.subr.bf16.mxu0 0
      %2738 = vmatpush1.bf16.msra.mxu0 0
      %2739 = vmatprep.subr.bf16.mxu0 0
      %2740 = vmatpush1.bf16.msra.mxu0 0
      %2741 = vmatprep.subr.bf16.mxu0 0
      %2742 = vmatpush1.bf16.msra.mxu0 0
      %2743 = vmatprep.mubr.bf16.mxu0 0
      %2744 = vmatmul.mubr.bf16.gmra.mrb[0].mxu0 %v2655
      %v2745 = vpop.f32.mrb[0].mxu0
      %v2746 = vadd.f32 0.0, %v2745
      %v2747 = vpop.f32.mrb[0].mxu0
      %v2748 = vpop.f32.mrb[0].mxu0
      %v2749 = vadd.f32 0.0, %v2748
      %v2750 = vpop.f32.mrb[0].mxu0
      %2751 = vmatprep.mubr.bf16.mxu0 0
      %2752 = vmatmul.mubr.bf16.gmra.mrb[0].mxu0 %v2658
      %v2753 = vpop.f32.mrb[0].mxu0
      %v2754 = vadd.f32 0.0, %v2753
      %v2755 = vpop.f32.mrb[0].mxu0
      %v2756 = vpop.f32.mrb[0].mxu0
      %v2757 = vadd.f32 0.0, %v2756
      %v2758 = vpop.f32.mrb[0].mxu0
      %2759 = vmatprep.mubr.bf16.mxu0 0
      %2760 = vmatmul.mubr.bf16.gmra.mrb[0].mxu0 %v2661
      %v2761 = vpop.f32.mrb[0].mxu0
      %v2762 = vadd.f32 0.0, %v2761
      %v2763 = vpop.f32.mrb[0].mxu0
      %v2764 = vpop.f32.mrb[0].mxu0
      %v2765 = vadd.f32 0.0, %v2764
      %v2766 = vpop.f32.mrb[0].mxu0
      %2767 = vmatprep.mubr.bf16.mxu0 0
      %2768 = vmatmul.mubr.bf16.gmra.mrb[0].mxu0 %v2664
      %v2769 = vpop.f32.mrb[0].mxu0
      %v2770 = vadd.f32 0.0, %v2769
      %v2771 = vpop.f32.mrb[0].mxu0
      %v2772 = vpop.f32.mrb[0].mxu0
      %v2773 = vadd.f32 0.0, %v2772
      %v2774 = vpop.f32.mrb[0].mxu0
      %2775 = vmatprep.mubr.bf16.mxu0 0
      %2776 = vmatmul.mubr.bf16.gmra.mrb[0].mxu0 %v2667
      %v2777 = vpop.f32.mrb[0].mxu0
      %v2778 = vadd.f32 0.0, %v2777
      %v2779 = vpop.f32.mrb[0].mxu0
      %v2780 = vpop.f32.mrb[0].mxu0
      %v2781 = vadd.f32 0.0, %v2780
      %v2782 = vpop.f32.mrb[0].mxu0
      %2783 = vmatprep.mubr.bf16.mxu0 0
      %2784 = vmatmul.mubr.bf16.gmra.mrb[0].mxu0 %v2670
      %v2785 = vpop.f32.mrb[0].mxu0
      %v2786 = vadd.f32 0.0, %v2785
      %v2787 = vpop.f32.mrb[0].mxu0
      %v2788 = vpop.f32.mrb[0].mxu0
      %v2789 = vadd.f32 0.0, %v2788
      %v2790 = vpop.f32.mrb[0].mxu0
      %2791 = vmatprep.mubr.bf16.mxu0 0
      %2792 = vmatmul.mubr.bf16.gmra.mrb[0].mxu0 %v2673
      %v2793 = vpop.f32.mrb[0].mxu0
      %v2794 = vadd.f32 0.0, %v2793
      %v2795 = vpop.f32.mrb[0].mxu0
      %v2796 = vpop.f32.mrb[0].mxu0
      %v2797 = vadd.f32 0.0, %v2796
      %v2798 = vpop.f32.mrb[0].mxu0
      %2799 = vmatprep.mubr.bf16.mxu0 0
      %2800 = vmatmul.mubr.bf16.gmra.mrb[0].mxu0 %v2676
      %v2801 = vpop.f32.mrb[0].mxu0
      %v2802 = vadd.f32 0.0, %v2801
      %v2803 = vpop.f32.mrb[0].mxu0
      %v2804 = vpop.f32.mrb[0].mxu0
      %v2805 = vadd.f32 0.0, %v2804
      %v2806 = vpop.f32.mrb[0].mxu0
      %2807 = vmatprep.mubr.bf16.mxu0 0
      %2808 = vmatmul.mubr.bf16.gmra.mrb[0].mxu0 %v2679
      %v2809 = vpop.f32.mrb[0].mxu0
      %v2810 = vadd.f32 0.0, %v2809
      %v2811 = vpop.f32.mrb[0].mxu0
      %v2812 = vpop.f32.mrb[0].mxu0
      %v2813 = vadd.f32 0.0, %v2812
      %v2814 = vpop.f32.mrb[0].mxu0
      %2815 = vmatprep.mubr.bf16.mxu0 0
      %2816 = vmatmul.mubr.bf16.gmra.mrb[0].mxu0 %v2682
      %v2817 = vpop.f32.mrb[0].mxu0
      %v2818 = vadd.f32 0.0, %v2817
      %v2819 = vpop.f32.mrb[0].mxu0
      %v2820 = vpop.f32.mrb[0].mxu0
      %v2821 = vadd.f32 0.0, %v2820
      %v2822 = vpop.f32.mrb[0].mxu0
      %2823 = vmatprep.mubr.bf16.mxu0 0
      %2824 = vmatmul.mubr.bf16.gmra.mrb[0].mxu0 %v2685
      %v2825 = vpop.f32.mrb[0].mxu0
      %v2826 = vadd.f32 0.0, %v2825
      %v2827 = vpop.f32.mrb[0].mxu0
      %v2828 = vpop.f32.mrb[0].mxu0
      %v2829 = vadd.f32 0.0, %v2828
      %v2830 = vpop.f32.mrb[0].mxu0
      %2831 = vmatprep.mubr.bf16.mxu0 0
      %2832 = vmatmul.mubr.bf16.gmra.mrb[0].mxu0 %v2688
      %v2833 = vpop.f32.mrb[0].mxu0
      %v2834 = vadd.f32 0.0, %v2833
      %v2835 = vpop.f32.mrb[0].mxu0
      %v2836 = vpop.f32.mrb[0].mxu0
      %v2837 = vadd.f32 0.0, %v2836
      %v2838 = vpop.f32.mrb[0].mxu0
      %2839 = vmatprep.mubr.bf16.mxu0 0
      %2840 = vmatmul.mubr.bf16.gmra.mrb[0].mxu0 %v2691
      %v2841 = vpop.f32.mrb[0].mxu0
      %v2842 = vadd.f32 0.0, %v2841
      %v2843 = vpop.f32.mrb[0].mxu0
      %v2844 = vpop.f32.mrb[0].mxu0
      %v2845 = vadd.f32 0.0, %v2844
      %v2846 = vpop.f32.mrb[0].mxu0
      %2847 = vmatprep.mubr.bf16.mxu0 0
      %2848 = vmatmul.mubr.bf16.gmra.mrb[0].mxu0 %v2694
      %v2849 = vpop.f32.mrb[0].mxu0
      %v2850 = vadd.f32 0.0, %v2849
      %v2851 = vpop.f32.mrb[0].mxu0
      %v2852 = vpop.f32.mrb[0].mxu0
      %v2853 = vadd.f32 0.0, %v2852
      %v2854 = vpop.f32.mrb[0].mxu0
      %2855 = vmatprep.mubr.bf16.mxu0 0
      %2856 = vmatmul.mubr.bf16.gmra.mrb[0].mxu0 %v2697
      %v2857 = vpop.f32.mrb[0].mxu0
      %v2858 = vadd.f32 0.0, %v2857
      %v2859 = vpop.f32.mrb[0].mxu0
      %v2860 = vpop.f32.mrb[0].mxu0
      %v2861 = vadd.f32 0.0, %v2860
      %v2862 = vpop.f32.mrb[0].mxu0
      %2863 = vmatprep.mubr.bf16.mxu0 0
      %2864 = vmatmul.mubr.bf16.gmra.mrb[0].mxu0 %v2700
      %v2865 = vpop.f32.mrb[0].mxu0
      %v2866 = vadd.f32 0.0, %v2865
      %v2867 = vpop.f32.mrb[0].mxu0
      %v2868 = vpop.f32.mrb[0].mxu0
      %v2869 = vadd.f32 0.0, %v2868
      %v2870 = vpop.f32.mrb[0].mxu0
      %2871 = vmatprep.mubr.bf16.mxu0 0
      %2872 = vmatmul.mubr.bf16.gmra.mrb[0].mxu0 %v2703
      %v2873 = vpop.f32.mrb[0].mxu0
      %v2874 = vadd.f32 0.0, %v2873
      %v2875 = vpop.f32.mrb[0].mxu0
      %v2876 = vpop.f32.mrb[0].mxu0
      %v2877 = vadd.f32 0.0, %v2876
      %v2878 = vpop.f32.mrb[0].mxu0
      %2879 = vmatprep.mubr.bf16.mxu0 0
      %2880 = vmatmul.mubr.bf16.gmra.mrb[0].mxu0 %v2706
      %v2881 = vpop.f32.mrb[0].mxu0
      %v2882 = vadd.f32 0.0, %v2881
      %v2883 = vpop.f32.mrb[0].mxu0
      %v2884 = vpop.f32.mrb[0].mxu0
      %v2885 = vadd.f32 0.0, %v2884
      %v2886 = vpop.f32.mrb[0].mxu0
      %2887 = vdwg.mxu0
      %v2888 = vadd.f32 %v2449, %v2746
      %v2889 = vadd.f32 %v2450, %v2749
      %v2890 = vadd.f32 %v2451, %v2754
      %v2891 = vadd.f32 %v2452, %v2757
      %v2892 = vadd.f32 %v2453, %v2762
      %v2893 = vadd.f32 %v2454, %v2765
      %v2894 = vadd.f32 %v2455, %v2770
      %v2895 = vadd.f32 %v2456, %v2773
      %v2896 = vadd.f32 %v2457, %v2778
      %v2897 = vadd.f32 %v2458, %v2781
      %v2898 = vadd.f32 %v2459, %v2786
      %v2899 = vadd.f32 %v2460, %v2789
      %v2900 = vadd.f32 %v2461, %v2794
      %v2901 = vadd.f32 %v2462, %v2797
      %v2902 = vadd.f32 %v2463, %v2802
      %v2903 = vadd.f32 %v2464, %v2805
      %v2904 = vadd.f32 %v2465, %v2810
      %v2905 = vadd.f32 %v2466, %v2813
      %v2906 = vadd.f32 %v2467, %v2818
      %v2907 = vadd.f32 %v2468, %v2821
      %v2908 = vadd.f32 %v2469, %v2826
      %v2909 = vadd.f32 %v2470, %v2829
      %v2910 = vadd.f32 %v2471, %v2834
      %v2911 = vadd.f32 %v2472, %v2837
      %v2912 = vadd.f32 %v2473, %v2842
      %v2913 = vadd.f32 %v2474, %v2845
      %v2914 = vadd.f32 %v2475, %v2850
      %v2915 = vadd.f32 %v2476, %v2853
      %v2916 = vadd.f32 %v2477, %v2858
      %v2917 = vadd.f32 %v2478, %v2861
      %v2918 = vadd.f32 %v2479, %v2866
      %v2919 = vadd.f32 %v2480, %v2869
      %v2920 = vadd.f32 %v2481, %v2874
      %v2921 = vadd.f32 %v2482, %v2877
      %v2922 = vadd.f32 %v2483, %v2882
      %v2923 = vadd.f32 %v2484, %v2885
      %v2924 = vld [vmem:[%s226 + $0xa0] sm:$0x7]
      %s2925 = scalar_lea.vmem %s2, 14
      %v2926 = vld [vmem:[%s2925] sm:$0x3]
      %v2928 = vunpack.c.l.b16 %v2924
      %v2929 = vpack.c.b16 %v2928, %v2928
      %vm2930 = vsmask.f32 5376
      %v2932 = vshrl.u32 %v2598, 16
      %v2934 = vrot.slane %v2932, 2
      %v2935 = vshll.u32 %v2598, 16
      %v2937 = vrot.slane %v2935, 3
      %v2938 = vor.u32 %v2934, %v2937
      %v2940 = vshrl.u32 %v2599, 16
      %v2942 = vrot.slane %v2940, 2
      %v2943 = vshll.u32 %v2599, 16
      %v2945 = vrot.slane %v2943, 3
      %v2946 = vor.u32 %v2942, %v2945
      %v2947 = vsel %vm2930, %v2938, %v2946
      %v2949 = vshrl.u32 %v2600, 16
      %v2951 = vrot.slane %v2949, 2
      %v2952 = vshll.u32 %v2600, 16
      %v2954 = vrot.slane %v2952, 3
      %v2955 = vor.u32 %v2951, %v2954
      %v2956 = vsel %vm2930, %v2946, %v2955
      %v2958 = vshrl.u32 %v2601, 16
      %v2960 = vrot.slane %v2958, 2
      %v2961 = vshll.u32 %v2601, 16
      %v2963 = vrot.slane %v2961, 3
      %v2964 = vor.u32 %v2960, %v2963
      %v2965 = vsel %vm2930, %v2955, %v2964
      %v2967 = vshrl.u32 %v2602, 16
      %v2969 = vrot.slane %v2967, 2
      %v2970 = vshll.u32 %v2602, 16
      %v2972 = vrot.slane %v2970, 3
      %v2973 = vor.u32 %v2969, %v2972
      %v2974 = vsel %vm2930, %v2964, %v2973
      %v2976 = vshrl.u32 %v2603, 16
      %v2978 = vrot.slane %v2976, 2
      %v2979 = vshll.u32 %v2603, 16
      %v2981 = vrot.slane %v2979, 3
      %v2982 = vor.u32 %v2978, %v2981
      %v2983 = vsel %vm2930, %v2973, %v2982
      %v2985 = vshrl.u32 %v2604, 16
      %v2987 = vrot.slane %v2985, 2
      %v2988 = vshll.u32 %v2604, 16
      %v2990 = vrot.slane %v2988, 3
      %v2991 = vor.u32 %v2987, %v2990
      %v2992 = vsel %vm2930, %v2982, %v2991
      %v2994 = vshrl.u32 %v2605, 16
      %v2996 = vrot.slane %v2994, 2
      %v2997 = vshll.u32 %v2605, 16
      %v2999 = vrot.slane %v2997, 3
      %v3000 = vor.u32 %v2996, %v2999
      %v3001 = vsel %vm2930, %v2991, %v3000
      %v3003 = vshrl.u32 %v2606, 16
      %v3005 = vrot.slane %v3003, 2
      %v3006 = vshll.u32 %v2606, 16
      %v3008 = vrot.slane %v3006, 3
      %v3009 = vor.u32 %v3005, %v3008
      %v3010 = vsel %vm2930, %v3000, %v3009
      %v3012 = vshrl.u32 %v2607, 16
      %v3014 = vrot.slane %v3012, 2
      %v3015 = vshll.u32 %v2607, 16
      %v3017 = vrot.slane %v3015, 3
      %v3018 = vor.u32 %v3014, %v3017
      %v3019 = vsel %vm2930, %v3009, %v3018
      %v3021 = vshrl.u32 %v2608, 16
      %v3023 = vrot.slane %v3021, 2
      %v3024 = vshll.u32 %v2608, 16
      %v3026 = vrot.slane %v3024, 3
      %v3027 = vor.u32 %v3023, %v3026
      %v3028 = vsel %vm2930, %v3018, %v3027
      %v3030 = vshrl.u32 %v2609, 16
      %v3032 = vrot.slane %v3030, 2
      %v3033 = vshll.u32 %v2609, 16
      %v3035 = vrot.slane %v3033, 3
      %v3036 = vor.u32 %v3032, %v3035
      %v3037 = vsel %vm2930, %v3027, %v3036
      %v3039 = vshrl.u32 %v2610, 16
      %v3041 = vrot.slane %v3039, 2
      %v3042 = vshll.u32 %v2610, 16
      %v3044 = vrot.slane %v3042, 3
      %v3045 = vor.u32 %v3041, %v3044
      %v3046 = vsel %vm2930, %v3036, %v3045
      %v3048 = vshrl.u32 %v2611, 16
      %v3050 = vrot.slane %v3048, 2
      %v3051 = vshll.u32 %v2611, 16
      %v3053 = vrot.slane %v3051, 3
      %v3054 = vor.u32 %v3050, %v3053
      %v3055 = vsel %vm2930, %v3045, %v3054
      %v3057 = vshrl.u32 %v2612, 16
      %v3059 = vrot.slane %v3057, 2
      %v3060 = vshll.u32 %v2612, 16
      %v3062 = vrot.slane %v3060, 3
      %v3063 = vor.u32 %v3059, %v3062
      %v3064 = vsel %vm2930, %v3054, %v3063
      %v3066 = vshrl.u32 %v2613, 16
      %v3068 = vrot.slane %v3066, 2
      %v3069 = vshll.u32 %v2613, 16
      %v3071 = vrot.slane %v3069, 3
      %v3072 = vor.u32 %v3068, %v3071
      %v3073 = vsel %vm2930, %v3063, %v3072
      %v3075 = vshrl.u32 %v2614, 16
      %v3077 = vrot.slane %v3075, 2
      %v3078 = vshll.u32 %v2614, 16
      %v3080 = vrot.slane %v3078, 3
      %v3081 = vor.u32 %v3077, %v3080
      %v3082 = vsel %vm2930, %v3072, %v3081
      %v3084 = vshrl.u32 %v2615, 16
      %v3086 = vrot.slane %v3084, 2
      %v3087 = vshll.u32 %v2615, 16
      %v3089 = vrot.slane %v3087, 3
      %v3090 = vor.u32 %v3086, %v3089
      %v3091 = vsel %vm2930, %v3081, %v3090
      %v3093 = vshrl.u32 %v2929, 16
      %v3095 = vrot.slane %v3093, 2
      %v3096 = vshll.u32 %v2929, 16
      %v3098 = vrot.slane %v3096, 3
      %v3099 = vor.u32 %v3095, %v3098
      %v3100 = vsel %vm2930, %v3090, %v3099
      %v3102 = vsel %vm519, %v2947, 0
      %v3105 = vsel %vm519, %v2956, 0
      %v3108 = vsel %vm519, %v2965, 0
      %v3111 = vsel %vm519, %v2974, 0
      %v3114 = vsel %vm519, %v2983, 0
      %v3117 = vsel %vm519, %v2992, 0
      %v3120 = vsel %vm519, %v3001, 0
      %v3123 = vsel %vm519, %v3010, 0
      %v3126 = vsel %vm519, %v3019, 0
      %v3129 = vsel %vm519, %v3028, 0
      %v3132 = vsel %vm519, %v3037, 0
      %v3135 = vsel %vm519, %v3046, 0
      %v3138 = vsel %vm519, %v3055, 0
      %v3141 = vsel %vm519, %v3064, 0
      %v3144 = vsel %vm519, %v3073, 0
      %v3147 = vsel %vm519, %v3082, 0
      %v3150 = vsel %vm519, %v3091, 0
      %v3153 = vsel %vm519, %v3100, 0
      %v3156 = vsel %vm574, %v2926, 0
      %3158 = vmatprep.subr.bf16.mxu0 0
      %3159 = vmatpush1.bf16.msra.mxu0 %v3156
      %3160 = vmatprep.subr.bf16.mxu0 0
      %3161 = vmatpush1.bf16.msra.mxu0 0
      %3162 = vmatprep.subr.bf16.mxu0 0
      %3163 = vmatpush1.bf16.msra.mxu0 0
      %3164 = vmatprep.subr.bf16.mxu0 0
      %3165 = vmatpush1.bf16.msra.mxu0 0
      %3166 = vmatprep.subr.bf16.mxu0 0
      %3167 = vmatpush1.bf16.msra.mxu0 0
      %3168 = vmatprep.subr.bf16.mxu0 0
      %3169 = vmatpush1.bf16.msra.mxu0 0
      %3170 = vmatprep.subr.bf16.mxu0 0
      %3171 = vmatpush1.bf16.msra.mxu0 0
      %3172 = vmatprep.subr.bf16.mxu0 0
      %3173 = vmatpush1.bf16.msra.mxu0 0
      %3174 = vmatprep.subr.bf16.mxu0 0
      %3175 = vmatpush1.bf16.msra.mxu0 0
      %3176 = vmatprep.subr.bf16.mxu0 0
      %3177 = vmatpush1.bf16.msra.mxu0 0
      %3178 = vmatprep.subr.bf16.mxu0 0
      %3179 = vmatpush1.bf16.msra.mxu0 0
      %3180 = vmatprep.subr.bf16.mxu0 0
      %3181 = vmatpush1.bf16.msra.mxu0 0
      %3182 = vmatprep.subr.bf16.mxu0 0
      %3183 = vmatpush1.bf16.msra.mxu0 0
      %3184 = vmatprep.subr.bf16.mxu0 0
      %3185 = vmatpush1.bf16.msra.mxu0 0
      %3186 = vmatprep.subr.bf16.mxu0 0
      %3187 = vmatpush1.bf16.msra.mxu0 0
      %3188 = vmatprep.subr.bf16.mxu0 0
      %3189 = vmatpush1.bf16.msra.mxu0 0
      %3190 = vmatprep.mubr.bf16.mxu0 0
      %3191 = vmatmul.mubr.bf16.gmra.mrb[0].mxu0 %v3102
      %v3192 = vpop.f32.mrb[0].mxu0
      %v3193 = vadd.f32 0.0, %v3192
      %v3194 = vpop.f32.mrb[0].mxu0
      %v3195 = vpop.f32.mrb[0].mxu0
      %v3196 = vadd.f32 0.0, %v3195
      %v3197 = vpop.f32.mrb[0].mxu0
      %3198 = vmatprep.mubr.bf16.mxu0 0
      %3199 = vmatmul.mubr.bf16.gmra.mrb[0].mxu0 %v3105
      %v3200 = vpop.f32.mrb[0].mxu0
      %v3201 = vadd.f32 0.0, %v3200
      %v3202 = vpop.f32.mrb[0].mxu0
      %v3203 = vpop.f32.mrb[0].mxu0
      %v3204 = vadd.f32 0.0, %v3203
      %v3205 = vpop.f32.mrb[0].mxu0
      %3206 = vmatprep.mubr.bf16.mxu0 0
      %3207 = vmatmul.mubr.bf16.gmra.mrb[0].mxu0 %v3108
      %v3208 = vpop.f32.mrb[0].mxu0
      %v3209 = vadd.f32 0.0, %v3208
      %v3210 = vpop.f32.mrb[0].mxu0
      %v3211 = vpop.f32.mrb[0].mxu0
      %v3212 = vadd.f32 0.0, %v3211
      %v3213 = vpop.f32.mrb[0].mxu0
      %3214 = vmatprep.mubr.bf16.mxu0 0
      %3215 = vmatmul.mubr.bf16.gmra.mrb[0].mxu0 %v3111
      %v3216 = vpop.f32.mrb[0].mxu0
      %v3217 = vadd.f32 0.0, %v3216
      %v3218 = vpop.f32.mrb[0].mxu0
      %v3219 = vpop.f32.mrb[0].mxu0
      %v3220 = vadd.f32 0.0, %v3219
      %v3221 = vpop.f32.mrb[0].mxu0
      %3222 = vmatprep.mubr.bf16.mxu0 0
      %3223 = vmatmul.mubr.bf16.gmra.mrb[0].mxu0 %v3114
      %v3224 = vpop.f32.mrb[0].mxu0
      %v3225 = vadd.f32 0.0, %v3224
      %v3226 = vpop.f32.mrb[0].mxu0
      %v3227 = vpop.f32.mrb[0].mxu0
      %v3228 = vadd.f32 0.0, %v3227
      %v3229 = vpop.f32.mrb[0].mxu0
      %3230 = vmatprep.mubr.bf16.mxu0 0
      %3231 = vmatmul.mubr.bf16.gmra.mrb[0].mxu0 %v3117
      %v3232 = vpop.f32.mrb[0].mxu0
      %v3233 = vadd.f32 0.0, %v3232
      %v3234 = vpop.f32.mrb[0].mxu0
      %v3235 = vpop.f32.mrb[0].mxu0
      %v3236 = vadd.f32 0.0, %v3235
      %v3237 = vpop.f32.mrb[0].mxu0
      %3238 = vmatprep.mubr.bf16.mxu0 0
      %3239 = vmatmul.mubr.bf16.gmra.mrb[0].mxu0 %v3120
      %v3240 = vpop.f32.mrb[0].mxu0
      %v3241 = vadd.f32 0.0, %v3240
      %v3242 = vpop.f32.mrb[0].mxu0
      %v3243 = vpop.f32.mrb[0].mxu0
      %v3244 = vadd.f32 0.0, %v3243
      %v3245 = vpop.f32.mrb[0].mxu0
      %3246 = vmatprep.mubr.bf16.mxu0 0
      %3247 = vmatmul.mubr.bf16.gmra.mrb[0].mxu0 %v3123
      %v3248 = vpop.f32.mrb[0].mxu0
      %v3249 = vadd.f32 0.0, %v3248
      %v3250 = vpop.f32.mrb[0].mxu0
      %v3251 = vpop.f32.mrb[0].mxu0
      %v3252 = vadd.f32 0.0, %v3251
      %v3253 = vpop.f32.mrb[0].mxu0
      %3254 = vmatprep.mubr.bf16.mxu0 0
      %3255 = vmatmul.mubr.bf16.gmra.mrb[0].mxu0 %v3126
      %v3256 = vpop.f32.mrb[0].mxu0
      %v3257 = vadd.f32 0.0, %v3256
      %v3258 = vpop.f32.mrb[0].mxu0
      %v3259 = vpop.f32.mrb[0].mxu0
      %v3260 = vadd.f32 0.0, %v3259
      %v3261 = vpop.f32.mrb[0].mxu0
      %3262 = vmatprep.mubr.bf16.mxu0 0
      %3263 = vmatmul.mubr.bf16.gmra.mrb[0].mxu0 %v3129
      %v3264 = vpop.f32.mrb[0].mxu0
      %v3265 = vadd.f32 0.0, %v3264
      %v3266 = vpop.f32.mrb[0].mxu0
      %v3267 = vpop.f32.mrb[0].mxu0
      %v3268 = vadd.f32 0.0, %v3267
      %v3269 = vpop.f32.mrb[0].mxu0
      %3270 = vmatprep.mubr.bf16.mxu0 0
      %3271 = vmatmul.mubr.bf16.gmra.mrb[0].mxu0 %v3132
      %v3272 = vpop.f32.mrb[0].mxu0
      %v3273 = vadd.f32 0.0, %v3272
      %v3274 = vpop.f32.mrb[0].mxu0
      %v3275 = vpop.f32.mrb[0].mxu0
      %v3276 = vadd.f32 0.0, %v3275
      %v3277 = vpop.f32.mrb[0].mxu0
      %3278 = vmatprep.mubr.bf16.mxu0 0
      %3279 = vmatmul.mubr.bf16.gmra.mrb[0].mxu0 %v3135
      %v3280 = vpop.f32.mrb[0].mxu0
      %v3281 = vadd.f32 0.0, %v3280
      %v3282 = vpop.f32.mrb[0].mxu0
      %v3283 = vpop.f32.mrb[0].mxu0
      %v3284 = vadd.f32 0.0, %v3283
      %v3285 = vpop.f32.mrb[0].mxu0
      %3286 = vmatprep.mubr.bf16.mxu0 0
      %3287 = vmatmul.mubr.bf16.gmra.mrb[0].mxu0 %v3138
      %v3288 = vpop.f32.mrb[0].mxu0
      %v3289 = vadd.f32 0.0, %v3288
      %v3290 = vpop.f32.mrb[0].mxu0
      %v3291 = vpop.f32.mrb[0].mxu0
      %v3292 = vadd.f32 0.0, %v3291
      %v3293 = vpop.f32.mrb[0].mxu0
      %3294 = vmatprep.mubr.bf16.mxu0 0
      %3295 = vmatmul.mubr.bf16.gmra.mrb[0].mxu0 %v3141
      %v3296 = vpop.f32.mrb[0].mxu0
      %v3297 = vadd.f32 0.0, %v3296
      %v3298 = vpop.f32.mrb[0].mxu0
      %v3299 = vpop.f32.mrb[0].mxu0
      %v3300 = vadd.f32 0.0, %v3299
      %v3301 = vpop.f32.mrb[0].mxu0
      %3302 = vmatprep.mubr.bf16.mxu0 0
      %3303 = vmatmul.mubr.bf16.gmra.mrb[0].mxu0 %v3144
      %v3304 = vpop.f32.mrb[0].mxu0
      %v3305 = vadd.f32 0.0, %v3304
      %v3306 = vpop.f32.mrb[0].mxu0
      %v3307 = vpop.f32.mrb[0].mxu0
      %v3308 = vadd.f32 0.0, %v3307
      %v3309 = vpop.f32.mrb[0].mxu0
      %3310 = vmatprep.mubr.bf16.mxu0 0
      %3311 = vmatmul.mubr.bf16.gmra.mrb[0].mxu0 %v3147
      %v3312 = vpop.f32.mrb[0].mxu0
      %v3313 = vadd.f32 0.0, %v3312
      %v3314 = vpop.f32.mrb[0].mxu0
      %v3315 = vpop.f32.mrb[0].mxu0
      %v3316 = vadd.f32 0.0, %v3315
      %v3317 = vpop.f32.mrb[0].mxu0
      %3318 = vmatprep.mubr.bf16.mxu0 0
      %3319 = vmatmul.mubr.bf16.gmra.mrb[0].mxu0 %v3150
      %v3320 = vpop.f32.mrb[0].mxu0
      %v3321 = vadd.f32 0.0, %v3320
      %v3322 = vpop.f32.mrb[0].mxu0
      %v3323 = vpop.f32.mrb[0].mxu0
      %v3324 = vadd.f32 0.0, %v3323
      %v3325 = vpop.f32.mrb[0].mxu0
      %3326 = vmatprep.mubr.bf16.mxu0 0
      %3327 = vmatmul.mubr.bf16.gmra.mrb[0].mxu0 %v3153
      %v3328 = vpop.f32.mrb[0].mxu0
      %v3329 = vadd.f32 0.0, %v3328
      %v3330 = vpop.f32.mrb[0].mxu0
      %v3331 = vpop.f32.mrb[0].mxu0
      %v3332 = vadd.f32 0.0, %v3331
      %v3333 = vpop.f32.mrb[0].mxu0
      %3334 = vdwg.mxu0
      %v3335 = vadd.f32 %v2888, %v3193
      %v3336 = vadd.f32 %v2889, %v3196
      %v3337 = vadd.f32 %v2890, %v3201
      %v3338 = vadd.f32 %v2891, %v3204
      %v3339 = vadd.f32 %v2892, %v3209
      %v3340 = vadd.f32 %v2893, %v3212
      %v3341 = vadd.f32 %v2894, %v3217
      %v3342 = vadd.f32 %v2895, %v3220
      %v3343 = vadd.f32 %v2896, %v3225
      %v3344 = vadd.f32 %v2897, %v3228
      %v3345 = vadd.f32 %v2898, %v3233
      %v3346 = vadd.f32 %v2899, %v3236
      %v3347 = vadd.f32 %v2900, %v3241
      %v3348 = vadd.f32 %v2901, %v3244
      %v3349 = vadd.f32 %v2902, %v3249
      %v3350 = vadd.f32 %v2903, %v3252
      %v3351 = vadd.f32 %v2904, %v3257
      %v3352 = vadd.f32 %v2905, %v3260
      %v3353 = vadd.f32 %v2906, %v3265
      %v3354 = vadd.f32 %v2907, %v3268
      %v3355 = vadd.f32 %v2908, %v3273
      %v3356 = vadd.f32 %v2909, %v3276
      %v3357 = vadd.f32 %v2910, %v3281
      %v3358 = vadd.f32 %v2911, %v3284
      %v3359 = vadd.f32 %v2912, %v3289
      %v3360 = vadd.f32 %v2913, %v3292
      %v3361 = vadd.f32 %v2914, %v3297
      %v3362 = vadd.f32 %v2915, %v3300
      %v3363 = vadd.f32 %v2916, %v3305
      %v3364 = vadd.f32 %v2917, %v3308
      %v3365 = vadd.f32 %v2918, %v3313
      %v3366 = vadd.f32 %v2919, %v3316
      %v3367 = vadd.f32 %v2920, %v3321
      %v3368 = vadd.f32 %v2921, %v3324
      %v3369 = vadd.f32 %v2922, %v3329
      %v3370 = vadd.f32 %v2923, %v3332
      %v3371 = vld [vmem:[%s226 + $0x10] sm:$0x8]
      %s3372 = scalar_lea.vmem %s2, 16
      %v3373 = vld [vmem:[%s3372] sm:$0x3]
      %v3375 = vunpack.c.l.b16 %v3371
      %v3376 = vpack.c.b16 %v2562, %v3375
      %vm3377 = vcmask 1044480
      %v3378 = vrot.slane %v3376, 3
      %v3379 = vrot.slane %v2599, 3
      %v3380 = vsel %vm3377, %v3378, %v3379
      %v3381 = vrot.slane %v2600, 3
      %v3382 = vsel %vm3377, %v3379, %v3381
      %v3383 = vrot.slane %v2601, 3
      %v3384 = vsel %vm3377, %v3381, %v3383
      %v3385 = vrot.slane %v2602, 3
      %v3386 = vsel %vm3377, %v3383, %v3385
      %v3387 = vrot.slane %v2603, 3
      %v3388 = vsel %vm3377, %v3385, %v3387
      %v3389 = vrot.slane %v2604, 3
      %v3390 = vsel %vm3377, %v3387, %v3389
      %v3391 = vrot.slane %v2605, 3
      %v3392 = vsel %vm3377, %v3389, %v3391
      %v3393 = vrot.slane %v2606, 3
      %v3394 = vsel %vm3377, %v3391, %v3393
      %v3395 = vrot.slane %v2607, 3
      %v3396 = vsel %vm3377, %v3393, %v3395
      %v3397 = vrot.slane %v2608, 3
      %v3398 = vsel %vm3377, %v3395, %v3397
      %v3399 = vrot.slane %v2609, 3
      %v3400 = vsel %vm3377, %v3397, %v3399
      %v3401 = vrot.slane %v2610, 3
      %v3402 = vsel %vm3377, %v3399, %v3401
      %v3403 = vrot.slane %v2611, 3
      %v3404 = vsel %vm3377, %v3401, %v3403
      %v3405 = vrot.slane %v2612, 3
      %v3406 = vsel %vm3377, %v3403, %v3405
      %v3407 = vrot.slane %v2613, 3
      %v3408 = vsel %vm3377, %v3405, %v3407
      %v3409 = vrot.slane %v2614, 3
      %v3410 = vsel %vm3377, %v3407, %v3409
      %v3411 = vrot.slane %v2615, 3
      %v3412 = vsel %vm3377, %v3409, %v3411
      %v3413 = vrot.slane %v2929, 3
      %v3414 = vsel %vm3377, %v3411, %v3413
      %v3416 = vsel %vm519, %v3380, 0
      %v3419 = vsel %vm519, %v3382, 0
      %v3422 = vsel %vm519, %v3384, 0
      %v3425 = vsel %vm519, %v3386, 0
      %v3428 = vsel %vm519, %v3388, 0
      %v3431 = vsel %vm519, %v3390, 0
      %v3434 = vsel %vm519, %v3392, 0
      %v3437 = vsel %vm519, %v3394, 0
      %v3440 = vsel %vm519, %v3396, 0
      %v3443 = vsel %vm519, %v3398, 0
      %v3446 = vsel %vm519, %v3400, 0
      %v3449 = vsel %vm519, %v3402, 0
      %v3452 = vsel %vm519, %v3404, 0
      %v3455 = vsel %vm519, %v3406, 0
      %v3458 = vsel %vm519, %v3408, 0
      %v3461 = vsel %vm519, %v3410, 0
      %v3464 = vsel %vm519, %v3412, 0
      %v3467 = vsel %vm519, %v3414, 0
      %v3470 = vsel %vm574, %v3373, 0
      %3472 = vmatprep.subr.bf16.mxu0 0
      %3473 = vmatpush1.bf16.msra.mxu0 %v3470
      %3474 = vmatprep.subr.bf16.mxu0 0
      %3475 = vmatpush1.bf16.msra.mxu0 0
      %3476 = vmatprep.subr.bf16.mxu0 0
      %3477 = vmatpush1.bf16.msra.mxu0 0
      %3478 = vmatprep.subr.bf16.mxu0 0
      %3479 = vmatpush1.bf16.msra.mxu0 0
      %3480 = vmatprep.subr.bf16.mxu0 0
      %3481 = vmatpush1.bf16.msra.mxu0 0
      %3482 = vmatprep.subr.bf16.mxu0 0
      %3483 = vmatpush1.bf16.msra.mxu0 0
      %3484 = vmatprep.subr.bf16.mxu0 0
      %3485 = vmatpush1.bf16.msra.mxu0 0
      %3486 = vmatprep.subr.bf16.mxu0 0
      %3487 = vmatpush1.bf16.msra.mxu0 0
      %3488 = vmatprep.subr.bf16.mxu0 0
      %3489 = vmatpush1.bf16.msra.mxu0 0
      %3490 = vmatprep.subr.bf16.mxu0 0
      %3491 = vmatpush1.bf16.msra.mxu0 0
      %3492 = vmatprep.subr.bf16.mxu0 0
      %3493 = vmatpush1.bf16.msra.mxu0 0
      %3494 = vmatprep.subr.bf16.mxu0 0
      %3495 = vmatpush1.bf16.msra.mxu0 0
      %3496 = vmatprep.subr.bf16.mxu0 0
      %3497 = vmatpush1.bf16.msra.mxu0 0
      %3498 = vmatprep.subr.bf16.mxu0 0
      %3499 = vmatpush1.bf16.msra.mxu0 0
      %3500 = vmatprep.subr.bf16.mxu0 0
      %3501 = vmatpush1.bf16.msra.mxu0 0
      %3502 = vmatprep.subr.bf16.mxu0 0
      %3503 = vmatpush1.bf16.msra.mxu0 0
      %3504 = vmatprep.mubr.bf16.mxu0 0
      %3505 = vmatmul.mubr.bf16.gmra.mrb[0].mxu0 %v3416
      %v3506 = vpop.f32.mrb[0].mxu0
      %v3507 = vadd.f32 0.0, %v3506
      %v3508 = vpop.f32.mrb[0].mxu0
      %v3509 = vpop.f32.mrb[0].mxu0
      %v3510 = vadd.f32 0.0, %v3509
      %v3511 = vpop.f32.mrb[0].mxu0
      %3512 = vmatprep.mubr.bf16.mxu0 0
      %3513 = vmatmul.mubr.bf16.gmra.mrb[0].mxu0 %v3419
      %v3514 = vpop.f32.mrb[0].mxu0
      %v3515 = vadd.f32 0.0, %v3514
      %v3516 = vpop.f32.mrb[0].mxu0
      %v3517 = vpop.f32.mrb[0].mxu0
      %v3518 = vadd.f32 0.0, %v3517
      %v3519 = vpop.f32.mrb[0].mxu0
      %3520 = vmatprep.mubr.bf16.mxu0 0
      %3521 = vmatmul.mubr.bf16.gmra.mrb[0].mxu0 %v3422
      %v3522 = vpop.f32.mrb[0].mxu0
      %v3523 = vadd.f32 0.0, %v3522
      %v3524 = vpop.f32.mrb[0].mxu0
      %v3525 = vpop.f32.mrb[0].mxu0
      %v3526 = vadd.f32 0.0, %v3525
      %v3527 = vpop.f32.mrb[0].mxu0
      %3528 = vmatprep.mubr.bf16.mxu0 0
      %3529 = vmatmul.mubr.bf16.gmra.mrb[0].mxu0 %v3425
      %v3530 = vpop.f32.mrb[0].mxu0
      %v3531 = vadd.f32 0.0, %v3530
      %v3532 = vpop.f32.mrb[0].mxu0
      %v3533 = vpop.f32.mrb[0].mxu0
      %v3534 = vadd.f32 0.0, %v3533
      %v3535 = vpop.f32.mrb[0].mxu0
      %3536 = vmatprep.mubr.bf16.mxu0 0
      %3537 = vmatmul.mubr.bf16.gmra.mrb[0].mxu0 %v3428
      %v3538 = vpop.f32.mrb[0].mxu0
      %v3539 = vadd.f32 0.0, %v3538
      %v3540 = vpop.f32.mrb[0].mxu0
      %v3541 = vpop.f32.mrb[0].mxu0
      %v3542 = vadd.f32 0.0, %v3541
      %v3543 = vpop.f32.mrb[0].mxu0
      %3544 = vmatprep.mubr.bf16.mxu0 0
      %3545 = vmatmul.mubr.bf16.gmra.mrb[0].mxu0 %v3431
      %v3546 = vpop.f32.mrb[0].mxu0
      %v3547 = vadd.f32 0.0, %v3546
      %v3548 = vpop.f32.mrb[0].mxu0
      %v3549 = vpop.f32.mrb[0].mxu0
      %v3550 = vadd.f32 0.0, %v3549
      %v3551 = vpop.f32.mrb[0].mxu0
      %3552 = vmatprep.mubr.bf16.mxu0 0
      %3553 = vmatmul.mubr.bf16.gmra.mrb[0].mxu0 %v3434
      %v3554 = vpop.f32.mrb[0].mxu0
      %v3555 = vadd.f32 0.0, %v3554
      %v3556 = vpop.f32.mrb[0].mxu0
      %v3557 = vpop.f32.mrb[0].mxu0
      %v3558 = vadd.f32 0.0, %v3557
      %v3559 = vpop.f32.mrb[0].mxu0
      %3560 = vmatprep.mubr.bf16.mxu0 0
      %3561 = vmatmul.mubr.bf16.gmra.mrb[0].mxu0 %v3437
      %v3562 = vpop.f32.mrb[0].mxu0
      %v3563 = vadd.f32 0.0, %v3562
      %v3564 = vpop.f32.mrb[0].mxu0
      %v3565 = vpop.f32.mrb[0].mxu0
      %v3566 = vadd.f32 0.0, %v3565
      %v3567 = vpop.f32.mrb[0].mxu0
      %3568 = vmatprep.mubr.bf16.mxu0 0
      %3569 = vmatmul.mubr.bf16.gmra.mrb[0].mxu0 %v3440
      %v3570 = vpop.f32.mrb[0].mxu0
      %v3571 = vadd.f32 0.0, %v3570
      %v3572 = vpop.f32.mrb[0].mxu0
      %v3573 = vpop.f32.mrb[0].mxu0
      %v3574 = vadd.f32 0.0, %v3573
      %v3575 = vpop.f32.mrb[0].mxu0
      %3576 = vmatprep.mubr.bf16.mxu0 0
      %3577 = vmatmul.mubr.bf16.gmra.mrb[0].mxu0 %v3443
      %v3578 = vpop.f32.mrb[0].mxu0
      %v3579 = vadd.f32 0.0, %v3578
      %v3580 = vpop.f32.mrb[0].mxu0
      %v3581 = vpop.f32.mrb[0].mxu0
      %v3582 = vadd.f32 0.0, %v3581
      %v3583 = vpop.f32.mrb[0].mxu0
      %3584 = vmatprep.mubr.bf16.mxu0 0
      %3585 = vmatmul.mubr.bf16.gmra.mrb[0].mxu0 %v3446
      %v3586 = vpop.f32.mrb[0].mxu0
      %v3587 = vadd.f32 0.0, %v3586
      %v3588 = vpop.f32.mrb[0].mxu0
      %v3589 = vpop.f32.mrb[0].mxu0
      %v3590 = vadd.f32 0.0, %v3589
      %v3591 = vpop.f32.mrb[0].mxu0
      %3592 = vmatprep.mubr.bf16.mxu0 0
      %3593 = vmatmul.mubr.bf16.gmra.mrb[0].mxu0 %v3449
      %v3594 = vpop.f32.mrb[0].mxu0
      %v3595 = vadd.f32 0.0, %v3594
      %v3596 = vpop.f32.mrb[0].mxu0
      %v3597 = vpop.f32.mrb[0].mxu0
      %v3598 = vadd.f32 0.0, %v3597
      %v3599 = vpop.f32.mrb[0].mxu0
      %3600 = vmatprep.mubr.bf16.mxu0 0
      %3601 = vmatmul.mubr.bf16.gmra.mrb[0].mxu0 %v3452
      %v3602 = vpop.f32.mrb[0].mxu0
      %v3603 = vadd.f32 0.0, %v3602
      %v3604 = vpop.f32.mrb[0].mxu0
      %v3605 = vpop.f32.mrb[0].mxu0
      %v3606 = vadd.f32 0.0, %v3605
      %v3607 = vpop.f32.mrb[0].mxu0
      %3608 = vmatprep.mubr.bf16.mxu0 0
      %3609 = vmatmul.mubr.bf16.gmra.mrb[0].mxu0 %v3455
      %v3610 = vpop.f32.mrb[0].mxu0
      %v3611 = vadd.f32 0.0, %v3610
      %v3612 = vpop.f32.mrb[0].mxu0
      %v3613 = vpop.f32.mrb[0].mxu0
      %v3614 = vadd.f32 0.0, %v3613
      %v3615 = vpop.f32.mrb[0].mxu0
      %3616 = vmatprep.mubr.bf16.mxu0 0
      %3617 = vmatmul.mubr.bf16.gmra.mrb[0].mxu0 %v3458
      %v3618 = vpop.f32.mrb[0].mxu0
      %v3619 = vadd.f32 0.0, %v3618
      %v3620 = vpop.f32.mrb[0].mxu0
      %v3621 = vpop.f32.mrb[0].mxu0
      %v3622 = vadd.f32 0.0, %v3621
      %v3623 = vpop.f32.mrb[0].mxu0
      %3624 = vmatprep.mubr.bf16.mxu0 0
      %3625 = vmatmul.mubr.bf16.gmra.mrb[0].mxu0 %v3461
      %v3626 = vpop.f32.mrb[0].mxu0
      %v3627 = vadd.f32 0.0, %v3626
      %v3628 = vpop.f32.mrb[0].mxu0
      %v3629 = vpop.f32.mrb[0].mxu0
      %v3630 = vadd.f32 0.0, %v3629
      %v3631 = vpop.f32.mrb[0].mxu0
      %3632 = vmatprep.mubr.bf16.mxu0 0
      %3633 = vmatmul.mubr.bf16.gmra.mrb[0].mxu0 %v3464
      %v3634 = vpop.f32.mrb[0].mxu0
      %v3635 = vadd.f32 0.0, %v3634
      %v3636 = vpop.f32.mrb[0].mxu0
      %v3637 = vpop.f32.mrb[0].mxu0
      %v3638 = vadd.f32 0.0, %v3637
      %v3639 = vpop.f32.mrb[0].mxu0
      %3640 = vmatprep.mubr.bf16.mxu0 0
      %3641 = vmatmul.mubr.bf16.gmra.mrb[0].mxu0 %v3467
      %v3642 = vpop.f32.mrb[0].mxu0
      %v3643 = vadd.f32 0.0, %v3642
      %v3644 = vpop.f32.mrb[0].mxu0
      %v3645 = vpop.f32.mrb[0].mxu0
      %v3646 = vadd.f32 0.0, %v3645
      %v3647 = vpop.f32.mrb[0].mxu0
      %3648 = vdwg.mxu0
      %v3649 = vadd.f32 %v3335, %v3507
      %v3650 = vadd.f32 %v3336, %v3510
      %v3651 = vadd.f32 %v3337, %v3515
      %v3652 = vadd.f32 %v3338, %v3518
      %v3653 = vadd.f32 %v3339, %v3523
      %v3654 = vadd.f32 %v3340, %v3526
      %v3655 = vadd.f32 %v3341, %v3531
      %v3656 = vadd.f32 %v3342, %v3534
      %v3657 = vadd.f32 %v3343, %v3539
      %v3658 = vadd.f32 %v3344, %v3542
      %v3659 = vadd.f32 %v3345, %v3547
      %v3660 = vadd.f32 %v3346, %v3550
      %v3661 = vadd.f32 %v3347, %v3555
      %v3662 = vadd.f32 %v3348, %v3558
      %v3663 = vadd.f32 %v3349, %v3563
      %v3664 = vadd.f32 %v3350, %v3566
      %v3665 = vadd.f32 %v3351, %v3571
      %v3666 = vadd.f32 %v3352, %v3574
      %v3667 = vadd.f32 %v3353, %v3579
      %v3668 = vadd.f32 %v3354, %v3582
      %v3669 = vadd.f32 %v3355, %v3587
      %v3670 = vadd.f32 %v3356, %v3590
      %v3671 = vadd.f32 %v3357, %v3595
      %v3672 = vadd.f32 %v3358, %v3598
      %v3673 = vadd.f32 %v3359, %v3603
      %v3674 = vadd.f32 %v3360, %v3606
      %v3675 = vadd.f32 %v3361, %v3611
      %v3676 = vadd.f32 %v3362, %v3614
      %v3677 = vadd.f32 %v3363, %v3619
      %v3678 = vadd.f32 %v3364, %v3622
      %v3679 = vadd.f32 %v3365, %v3627
      %v3680 = vadd.f32 %v3366, %v3630
      %v3681 = vadd.f32 %v3367, %v3635
      %v3682 = vadd.f32 %v3368, %v3638
      %v3683 = vadd.f32 %v3369, %v3643
      %v3684 = vadd.f32 %v3370, %v3646
      %v3685 = vld [vmem:[%s3] sm:$0x3]
      %v3687 = vsel %vm574, %v3685, 0
      %3689 = vmatprep.subr.bf16.mxu0 0
      %3690 = vmatpush1.bf16.msra.mxu0 %v3687
      %3691 = vmatprep.subr.bf16.mxu0 0
      %3692 = vmatpush1.bf16.msra.mxu0 0
      %3693 = vmatprep.subr.bf16.mxu0 0
      %3694 = vmatpush1.bf16.msra.mxu0 0
      %3695 = vmatprep.subr.bf16.mxu0 0
      %3696 = vmatpush1.bf16.msra.mxu0 0
      %3697 = vmatprep.subr.bf16.mxu0 0
      %3698 = vmatpush1.bf16.msra.mxu0 0
      %3699 = vmatprep.subr.bf16.mxu0 0
      %3700 = vmatpush1.bf16.msra.mxu0 0
      %3701 = vmatprep.subr.bf16.mxu0 0
      %3702 = vmatpush1.bf16.msra.mxu0 0
      %3703 = vmatprep.subr.bf16.mxu0 0
      %3704 = vmatpush1.bf16.msra.mxu0 0
      %3705 = vmatprep.subr.bf16.mxu0 0
      %3706 = vmatpush1.bf16.msra.mxu0 0
      %3707 = vmatprep.subr.bf16.mxu0 0
      %3708 = vmatpush1.bf16.msra.mxu0 0
      %3709 = vmatprep.subr.bf16.mxu0 0
      %3710 = vmatpush1.bf16.msra.mxu0 0
      %3711 = vmatprep.subr.bf16.mxu0 0
      %3712 = vmatpush1.bf16.msra.mxu0 0
      %3713 = vmatprep.subr.bf16.mxu0 0
      %3714 = vmatpush1.bf16.msra.mxu0 0
      %3715 = vmatprep.subr.bf16.mxu0 0
      %3716 = vmatpush1.bf16.msra.mxu0 0
      %3717 = vmatprep.subr.bf16.mxu0 0
      %3718 = vmatpush1.bf16.msra.mxu0 0
      %3719 = vmatprep.subr.bf16.mxu0 0
      %3720 = vmatpush1.bf16.msra.mxu0 0
      %3721 = vmatprep.mubr.bf16.mxu0 0
      %3722 = vmatmul.mubr.bf16.gmra.mrb[0].mxu0 %v1902
      %v3723 = vpop.f32.mrb[0].mxu0
      %v3724 = vadd.f32 0.0, %v3723
      %v3725 = vpop.f32.mrb[0].mxu0
      %v3726 = vpop.f32.mrb[0].mxu0
      %v3727 = vadd.f32 0.0, %v3726
      %v3728 = vpop.f32.mrb[0].mxu0
      %3729 = vmatprep.mubr.bf16.mxu0 0
      %3730 = vmatmul.mubr.bf16.gmra.mrb[0].mxu0 %v1905
      %v3731 = vpop.f32.mrb[0].mxu0
      %v3732 = vadd.f32 0.0, %v3731
      %v3733 = vpop.f32.mrb[0].mxu0
      %v3734 = vpop.f32.mrb[0].mxu0
      %v3735 = vadd.f32 0.0, %v3734
      %v3736 = vpop.f32.mrb[0].mxu0
      %3737 = vmatprep.mubr.bf16.mxu0 0
      %3738 = vmatmul.mubr.bf16.gmra.mrb[0].mxu0 %v1908
      %v3739 = vpop.f32.mrb[0].mxu0
      %v3740 = vadd.f32 0.0, %v3739
      %v3741 = vpop.f32.mrb[0].mxu0
      %v3742 = vpop.f32.mrb[0].mxu0
      %v3743 = vadd.f32 0.0, %v3742
      %v3744 = vpop.f32.mrb[0].mxu0
      %3745 = vmatprep.mubr.bf16.mxu0 0
      %3746 = vmatmul.mubr.bf16.gmra.mrb[0].mxu0 %v1911
      %v3747 = vpop.f32.mrb[0].mxu0
      %v3748 = vadd.f32 0.0, %v3747
      %v3749 = vpop.f32.mrb[0].mxu0
      %v3750 = vpop.f32.mrb[0].mxu0
      %v3751 = vadd.f32 0.0, %v3750
      %v3752 = vpop.f32.mrb[0].mxu0
      %3753 = vmatprep.mubr.bf16.mxu0 0
      %3754 = vmatmul.mubr.bf16.gmra.mrb[0].mxu0 %v1914
      %v3755 = vpop.f32.mrb[0].mxu0
      %v3756 = vadd.f32 0.0, %v3755
      %v3757 = vpop.f32.mrb[0].mxu0
      %v3758 = vpop.f32.mrb[0].mxu0
      %v3759 = vadd.f32 0.0, %v3758
      %v3760 = vpop.f32.mrb[0].mxu0
      %3761 = vmatprep.mubr.bf16.mxu0 0
      %3762 = vmatmul.mubr.bf16.gmra.mrb[0].mxu0 %v1917
      %v3763 = vpop.f32.mrb[0].mxu0
      %v3764 = vadd.f32 0.0, %v3763
      %v3765 = vpop.f32.mrb[0].mxu0
      %v3766 = vpop.f32.mrb[0].mxu0
      %v3767 = vadd.f32 0.0, %v3766
      %v3768 = vpop.f32.mrb[0].mxu0
      %3769 = vmatprep.mubr.bf16.mxu0 0
      %3770 = vmatmul.mubr.bf16.gmra.mrb[0].mxu0 %v1920
      %v3771 = vpop.f32.mrb[0].mxu0
      %v3772 = vadd.f32 0.0, %v3771
      %v3773 = vpop.f32.mrb[0].mxu0
      %v3774 = vpop.f32.mrb[0].mxu0
      %v3775 = vadd.f32 0.0, %v3774
      %v3776 = vpop.f32.mrb[0].mxu0
      %3777 = vmatprep.mubr.bf16.mxu0 0
      %3778 = vmatmul.mubr.bf16.gmra.mrb[0].mxu0 %v1923
      %v3779 = vpop.f32.mrb[0].mxu0
      %v3780 = vadd.f32 0.0, %v3779
      %v3781 = vpop.f32.mrb[0].mxu0
      %v3782 = vpop.f32.mrb[0].mxu0
      %v3783 = vadd.f32 0.0, %v3782
      %v3784 = vpop.f32.mrb[0].mxu0
      %3785 = vmatprep.mubr.bf16.mxu0 0
      %3786 = vmatmul.mubr.bf16.gmra.mrb[0].mxu0 %v1926
      %v3787 = vpop.f32.mrb[0].mxu0
      %v3788 = vadd.f32 0.0, %v3787
      %v3789 = vpop.f32.mrb[0].mxu0
      %v3790 = vpop.f32.mrb[0].mxu0
      %v3791 = vadd.f32 0.0, %v3790
      %v3792 = vpop.f32.mrb[0].mxu0
      %3793 = vmatprep.mubr.bf16.mxu0 0
      %3794 = vmatmul.mubr.bf16.gmra.mrb[0].mxu0 %v1929
      %v3795 = vpop.f32.mrb[0].mxu0
      %v3796 = vadd.f32 0.0, %v3795
      %v3797 = vpop.f32.mrb[0].mxu0
      %v3798 = vpop.f32.mrb[0].mxu0
      %v3799 = vadd.f32 0.0, %v3798
      %v3800 = vpop.f32.mrb[0].mxu0
      %3801 = vmatprep.mubr.bf16.mxu0 0
      %3802 = vmatmul.mubr.bf16.gmra.mrb[0].mxu0 %v1932
      %v3803 = vpop.f32.mrb[0].mxu0
      %v3804 = vadd.f32 0.0, %v3803
      %v3805 = vpop.f32.mrb[0].mxu0
      %v3806 = vpop.f32.mrb[0].mxu0
      %v3807 = vadd.f32 0.0, %v3806
      %v3808 = vpop.f32.mrb[0].mxu0
      %3809 = vmatprep.mubr.bf16.mxu0 0
      %3810 = vmatmul.mubr.bf16.gmra.mrb[0].mxu0 %v1935
      %v3811 = vpop.f32.mrb[0].mxu0
      %v3812 = vadd.f32 0.0, %v3811
      %v3813 = vpop.f32.mrb[0].mxu0
      %v3814 = vpop.f32.mrb[0].mxu0
      %v3815 = vadd.f32 0.0, %v3814
      %v3816 = vpop.f32.mrb[0].mxu0
      %3817 = vmatprep.mubr.bf16.mxu0 0
      %3818 = vmatmul.mubr.bf16.gmra.mrb[0].mxu0 %v1938
      %v3819 = vpop.f32.mrb[0].mxu0
      %v3820 = vadd.f32 0.0, %v3819
      %v3821 = vpop.f32.mrb[0].mxu0
      %v3822 = vpop.f32.mrb[0].mxu0
      %v3823 = vadd.f32 0.0, %v3822
      %v3824 = vpop.f32.mrb[0].mxu0
      %3825 = vmatprep.mubr.bf16.mxu0 0
      %3826 = vmatmul.mubr.bf16.gmra.mrb[0].mxu0 %v1941
      %v3827 = vpop.f32.mrb[0].mxu0
      %v3828 = vadd.f32 0.0, %v3827
      %v3829 = vpop.f32.mrb[0].mxu0
      %v3830 = vpop.f32.mrb[0].mxu0
      %v3831 = vadd.f32 0.0, %v3830
      %v3832 = vpop.f32.mrb[0].mxu0
      %3833 = vmatprep.mubr.bf16.mxu0 0
      %3834 = vmatmul.mubr.bf16.gmra.mrb[0].mxu0 %v1944
      %v3835 = vpop.f32.mrb[0].mxu0
      %v3836 = vadd.f32 0.0, %v3835
      %v3837 = vpop.f32.mrb[0].mxu0
      %v3838 = vpop.f32.mrb[0].mxu0
      %v3839 = vadd.f32 0.0, %v3838
      %v3840 = vpop.f32.mrb[0].mxu0
      %3841 = vmatprep.mubr.bf16.mxu0 0
      %3842 = vmatmul.mubr.bf16.gmra.mrb[0].mxu0 %v1947
      %v3843 = vpop.f32.mrb[0].mxu0
      %v3844 = vadd.f32 0.0, %v3843
      %v3845 = vpop.f32.mrb[0].mxu0
      %v3846 = vpop.f32.mrb[0].mxu0
      %v3847 = vadd.f32 0.0, %v3846
      %v3848 = vpop.f32.mrb[0].mxu0
      %3849 = vmatprep.mubr.bf16.mxu0 0
      %3850 = vmatmul.mubr.bf16.gmra.mrb[0].mxu0 %v1950
      %v3851 = vpop.f32.mrb[0].mxu0
      %v3852 = vadd.f32 0.0, %v3851
      %v3853 = vpop.f32.mrb[0].mxu0
      %v3854 = vpop.f32.mrb[0].mxu0
      %v3855 = vadd.f32 0.0, %v3854
      %v3856 = vpop.f32.mrb[0].mxu0
      %3857 = vmatprep.mubr.bf16.mxu0 0
      %3858 = vmatmul.mubr.bf16.gmra.mrb[0].mxu0 %v1953
      %v3859 = vpop.f32.mrb[0].mxu0
      %v3860 = vadd.f32 0.0, %v3859
      %v3861 = vpop.f32.mrb[0].mxu0
      %v3862 = vpop.f32.mrb[0].mxu0
      %v3863 = vadd.f32 0.0, %v3862
      %v3864 = vpop.f32.mrb[0].mxu0
      %3865 = vdwg.mxu0
      %v3866 = vpack.c.bf16 %v3650, %v3649
      %v3867 = vpack.c.bf16 %v3652, %v3651
      %v3868 = vpack.c.bf16 %v3654, %v3653
      %v3869 = vpack.c.bf16 %v3656, %v3655
      %v3870 = vpack.c.bf16 %v3658, %v3657
      %v3871 = vpack.c.bf16 %v3660, %v3659
      %v3872 = vpack.c.bf16 %v3662, %v3661
      %v3873 = vpack.c.bf16 %v3664, %v3663
      %v3874 = vpack.c.bf16 %v3666, %v3665
      %v3875 = vpack.c.bf16 %v3668, %v3667
      %v3876 = vpack.c.bf16 %v3670, %v3669
      %v3877 = vpack.c.bf16 %v3672, %v3671
      %v3878 = vpack.c.bf16 %v3674, %v3673
      %v3879 = vpack.c.bf16 %v3676, %v3675
      %v3880 = vpack.c.bf16 %v3678, %v3677
      %v3881 = vpack.c.bf16 %v3680, %v3679
      %v3882 = vpack.c.bf16 %v3682, %v3681
      %v3883 = vpack.c.bf16 %v3684, %v3683
      %v3902 = vunpack.c.l.b16 %v3866
      %v3903 = vunpack.c.h.b16 %v3866
      %v3904 = vunpack.c.l.b16 %v3867
      %v3905 = vunpack.c.h.b16 %v3867
      %v3906 = vunpack.c.l.b16 %v3868
      %v3907 = vunpack.c.h.b16 %v3868
      %v3908 = vunpack.c.l.b16 %v3869
      %v3909 = vunpack.c.h.b16 %v3869
      %v3910 = vunpack.c.l.b16 %v3870
      %v3911 = vunpack.c.h.b16 %v3870
      %v3912 = vunpack.c.l.b16 %v3871
      %v3913 = vunpack.c.h.b16 %v3871
      %v3914 = vunpack.c.l.b16 %v3872
      %v3915 = vunpack.c.h.b16 %v3872
      %v3916 = vunpack.c.l.b16 %v3873
      %v3917 = vunpack.c.h.b16 %v3873
      %v3918 = vunpack.c.l.b16 %v3874
      %v3919 = vunpack.c.h.b16 %v3874
      %v3920 = vunpack.c.l.b16 %v3875
      %v3921 = vunpack.c.h.b16 %v3875
      %v3922 = vunpack.c.l.b16 %v3876
      %v3923 = vunpack.c.h.b16 %v3876
      %v3924 = vunpack.c.l.b16 %v3877
      %v3925 = vunpack.c.h.b16 %v3877
      %v3926 = vunpack.c.l.b16 %v3878
      %v3927 = vunpack.c.h.b16 %v3878
      %v3928 = vunpack.c.l.b16 %v3879
      %v3929 = vunpack.c.h.b16 %v3879
      %v3930 = vunpack.c.l.b16 %v3880
      %v3931 = vunpack.c.h.b16 %v3880
      %v3932 = vunpack.c.l.b16 %v3881
      %v3933 = vunpack.c.h.b16 %v3881
      %v3934 = vunpack.c.l.b16 %v3882
      %v3935 = vunpack.c.h.b16 %v3882
      %v3936 = vunpack.c.l.b16 %v3883
      %v3937 = vunpack.c.h.b16 %v3883
      %v3938 = vpack.c.b16 %v3902, %v3902
      %v3939 = vpack.c.b16 %v3903, %v3903
      %v3940 = vpack.c.b16 %v3904, %v3904
      %v3941 = vpack.c.b16 %v3905, %v3905
      %v3942 = vpack.c.b16 %v3906, %v3906
      %v3943 = vpack.c.b16 %v3907, %v3907
      %v3944 = vpack.c.b16 %v3908, %v3908
      %v3945 = vpack.c.b16 %v3909, %v3909
      %v3946 = vpack.c.b16 %v3910, %v3910
      %v3947 = vpack.c.b16 %v3911, %v3911
      %v3948 = vpack.c.b16 %v3912, %v3912
      %v3949 = vpack.c.b16 %v3913, %v3913
      %v3950 = vpack.c.b16 %v3914, %v3914
      %v3951 = vpack.c.b16 %v3915, %v3915
      %v3952 = vpack.c.b16 %v3916, %v3916
      %v3953 = vpack.c.b16 %v3917, %v3917
      %v3954 = vpack.c.b16 %v3918, %v3918
      %v3955 = vpack.c.b16 %v3919, %v3919
      %v3956 = vpack.c.b16 %v3920, %v3920
      %v3957 = vpack.c.b16 %v3921, %v3921
      %v3958 = vpack.c.b16 %v3922, %v3922
      %v3959 = vpack.c.b16 %v3923, %v3923
      %v3960 = vpack.c.b16 %v3924, %v3924
      %v3961 = vpack.c.b16 %v3925, %v3925
      %v3962 = vpack.c.b16 %v3926, %v3926
      %v3963 = vpack.c.b16 %v3927, %v3927
      %v3964 = vpack.c.b16 %v3928, %v3928
      %v3965 = vpack.c.b16 %v3929, %v3929
      %v3966 = vpack.c.b16 %v3930, %v3930
      %v3967 = vpack.c.b16 %v3931, %v3931
      %v3968 = vpack.c.b16 %v3932, %v3932
      %v3969 = vpack.c.b16 %v3933, %v3933
      %v3970 = vpack.c.b16 %v3934, %v3934
      %v3971 = vpack.c.b16 %v3935, %v3935
      %v3972 = vpack.c.b16 %v3936, %v3936
      %v3973 = vpack.c.b16 %v3937, %v3937
      %vm4010 = vcmask 60416
      %4011 = vst.msk [vmem:[%s231] sm:$0xf] %vm4010, %v3938
      %4012 = vst.msk [vmem:[%s231 + $0x4] sm:$0xf] %vm4010, %v3939
      %4013 = vst.msk [vmem:[%s231 + $0x8] sm:$0xf] %vm4010, %v3940
      %4014 = vst.msk [vmem:[%s231 + $0xc] sm:$0xf] %vm4010, %v3941
      %4015 = vst.msk [vmem:[%s231 + $0x10] sm:$0xf] %vm4010, %v3942
      %4016 = vst.msk [vmem:[%s231 + $0x14] sm:$0xf] %vm4010, %v3943
      %4017 = vst.msk [vmem:[%s231 + $0x18] sm:$0xf] %vm4010, %v3944
      %4018 = vst.msk [vmem:[%s231 + $0x1c] sm:$0xf] %vm4010, %v3945
      %4019 = vst.msk [vmem:[%s231 + $0x20] sm:$0xf] %vm4010, %v3946
      %4020 = vst.msk [vmem:[%s231 + $0x24] sm:$0xf] %vm4010, %v3947
      %4021 = vst.msk [vmem:[%s231 + $0x28] sm:$0xf] %vm4010, %v3948
      %4022 = vst.msk [vmem:[%s231 + $0x2c] sm:$0xf] %vm4010, %v3949
      %4023 = vst.msk [vmem:[%s231 + $0x30] sm:$0xf] %vm4010, %v3950
      %4024 = vst.msk [vmem:[%s231 + $0x34] sm:$0xf] %vm4010, %v3951
      %4025 = vst.msk [vmem:[%s231 + $0x38] sm:$0xf] %vm4010, %v3952
      %4026 = vst.msk [vmem:[%s231 + $0x3c] sm:$0xf] %vm4010, %v3953
      %4027 = vst.msk [vmem:[%s231 + $0x40] sm:$0xf] %vm4010, %v3954
      %4028 = vst.msk [vmem:[%s231 + $0x44] sm:$0xf] %vm4010, %v3955
      %4029 = vst.msk [vmem:[%s231 + $0x48] sm:$0xf] %vm4010, %v3956
      %4030 = vst.msk [vmem:[%s231 + $0x4c] sm:$0xf] %vm4010, %v3957
      %4031 = vst.msk [vmem:[%s231 + $0x50] sm:$0xf] %vm4010, %v3958
      %4032 = vst.msk [vmem:[%s231 + $0x54] sm:$0xf] %vm4010, %v3959
      %4033 = vst.msk [vmem:[%s231 + $0x58] sm:$0xf] %vm4010, %v3960
      %4034 = vst.msk [vmem:[%s231 + $0x5c] sm:$0xf] %vm4010, %v3961
      %4035 = vst.msk [vmem:[%s231 + $0x60] sm:$0xf] %vm4010, %v3962
      %4036 = vst.msk [vmem:[%s231 + $0x64] sm:$0xf] %vm4010, %v3963
      %4037 = vst.msk [vmem:[%s231 + $0x68] sm:$0xf] %vm4010, %v3964
      %4038 = vst.msk [vmem:[%s231 + $0x6c] sm:$0xf] %vm4010, %v3965
      %4039 = vst.msk [vmem:[%s231 + $0x70] sm:$0xf] %vm4010, %v3966
      %4040 = vst.msk [vmem:[%s231 + $0x74] sm:$0xf] %vm4010, %v3967
      %4041 = vst.msk [vmem:[%s231 + $0x78] sm:$0xf] %vm4010, %v3968
      %4042 = vst.msk [vmem:[%s231 + $0x7c] sm:$0xf] %vm4010, %v3969
      %4043 = vst.msk [vmem:[%s231 + $0x80] sm:$0xf] %vm4010, %v3970
      %4044 = vst.msk [vmem:[%s231 + $0x84] sm:$0xf] %vm4010, %v3971
      %4045 = vst.msk [vmem:[%s231 + $0x88] sm:$0xf] %vm4010, %v3972
      %4046 = vst.msk [vmem:[%s231 + $0x8c] sm:$0xf] %vm4010, %v3973
      %v4047 = vld [vmem:[%s1] sm:$0xff]
      %v4048 = vld [vmem:[%s1 + $0x8] sm:$0xff]
      %v4049 = vld [vmem:[%s1 + $0x10] sm:$0xff]
      %v4050 = vld [vmem:[%s1 + $0x18] sm:$0xff]
      %v4051 = vld [vmem:[%s1 + $0x20] sm:$0xff]
      %v4052 = vld [vmem:[%s1 + $0x28] sm:$0xff]
      %v4053 = vld [vmem:[%s1 + $0x30] sm:$0xff]
      %v4054 = vld [vmem:[%s1 + $0x38] sm:$0xff]
      %v4055 = vld [vmem:[%s1 + $0x40] sm:$0xff]
      %v4056 = vld [vmem:[%s1 + $0x48] sm:$0xff]
      %v4057 = vld [vmem:[%s1 + $0x50] sm:$0xff]
      %v4058 = vld [vmem:[%s1 + $0x58] sm:$0xff]
      %v4059 = vld [vmem:[%s1 + $0x60] sm:$0xff]
      %v4060 = vld [vmem:[%s1 + $0x68] sm:$0xff]
      %v4061 = vld [vmem:[%s1 + $0x70] sm:$0xff]
      %v4062 = vld [vmem:[%s1 + $0x78] sm:$0xff]
      %v4063 = vld [vmem:[%s1 + $0x80] sm:$0xff]
      %v4064 = vld [vmem:[%s1 + $0x88] sm:$0xff]
      %v4065 = vld [vmem:[%s1 + $0x90] sm:$0xff]
      %v4066 = vld [vmem:[%s1 + $0x98] sm:$0xff]
      %v4067 = vld [vmem:[%s1 + $0xa0] sm:$0xff]
      %v4068 = vld [vmem:[%s1 + $0xa8] sm:$0xff]
      %v4069 = vld [vmem:[%s1 + $0xb0] sm:$0xff]
      %v4070 = vld [vmem:[%s1 + $0xb8] sm:$0xff]
      %v4071 = vld [vmem:[%s1 + $0xc0] sm:$0xff]
      %v4072 = vld [vmem:[%s1 + $0xc8] sm:$0xff]
      %v4073 = vld [vmem:[%s1 + $0xd0] sm:$0xff]
      %v4074 = vld [vmem:[%s1 + $0xd8] sm:$0xff]
      %v4075 = vld [vmem:[%s1 + $0xe0] sm:$0xff]
      %v4076 = vld [vmem:[%s1 + $0xe8] sm:$0xff]
      %v4077 = vld [vmem:[%s1 + $0xf0] sm:$0xff]
      %v4078 = vld [vmem:[%s1 + $0xf8] sm:$0xff]
      %v4079 = vld [vmem:[%s1 + $0x100] sm:$0xff]
      %v4080 = vld [vmem:[%s1 + $0x108] sm:$0xff]
      %v4081 = vld [vmem:[%s1 + $0x110] sm:$0xff]
      %v4082 = vld [vmem:[%s1 + $0x118] sm:$0xff]
      %4084 = vset.pattern.permute.xlu0 0
      %4085 = vperm.xlu0 %4084, %v4047
      %v4086 = vpop.permute.xlu0 %4085
      %4089 = vset.pattern.permute.xlu0 0
      %4090 = vperm.xlu0 %4089, %v4048
      %v4091 = vpop.permute.xlu0 %4090
      %4094 = vset.pattern.permute.xlu0 0
      %4095 = vperm.xlu0 %4094, %v4049
      %v4096 = vpop.permute.xlu0 %4095
      %4099 = vset.pattern.permute.xlu0 0
      %4100 = vperm.xlu0 %4099, %v4050
      %v4101 = vpop.permute.xlu0 %4100
      %4104 = vset.pattern.permute.xlu0 0
      %4105 = vperm.xlu0 %4104, %v4051
      %v4106 = vpop.permute.xlu0 %4105
      %4109 = vset.pattern.permute.xlu0 0
      %4110 = vperm.xlu0 %4109, %v4052
      %v4111 = vpop.permute.xlu0 %4110
      %4114 = vset.pattern.permute.xlu0 0
      %4115 = vperm.xlu0 %4114, %v4053
      %v4116 = vpop.permute.xlu0 %4115
      %4119 = vset.pattern.permute.xlu0 0
      %4120 = vperm.xlu0 %4119, %v4054
      %v4121 = vpop.permute.xlu0 %4120
      %4124 = vset.pattern.permute.xlu0 0
      %4125 = vperm.xlu0 %4124, %v4055
      %v4126 = vpop.permute.xlu0 %4125
      %4129 = vset.pattern.permute.xlu0 0
      %4130 = vperm.xlu0 %4129, %v4056
      %v4131 = vpop.permute.xlu0 %4130
      %4134 = vset.pattern.permute.xlu0 0
      %4135 = vperm.xlu0 %4134, %v4057
      %v4136 = vpop.permute.xlu0 %4135
      %4139 = vset.pattern.permute.xlu0 0
      %4140 = vperm.xlu0 %4139, %v4058
      %v4141 = vpop.permute.xlu0 %4140
      %4144 = vset.pattern.permute.xlu0 0
      %4145 = vperm.xlu0 %4144, %v4059
      %v4146 = vpop.permute.xlu0 %4145
      %4149 = vset.pattern.permute.xlu0 0
      %4150 = vperm.xlu0 %4149, %v4060
      %v4151 = vpop.permute.xlu0 %4150
      %4154 = vset.pattern.permute.xlu0 0
      %4155 = vperm.xlu0 %4154, %v4061
      %v4156 = vpop.permute.xlu0 %4155
      %4159 = vset.pattern.permute.xlu0 0
      %4160 = vperm.xlu0 %4159, %v4062
      %v4161 = vpop.permute.xlu0 %4160
      %4164 = vset.pattern.permute.xlu0 0
      %4165 = vperm.xlu0 %4164, %v4063
      %v4166 = vpop.permute.xlu0 %4165
      %4169 = vset.pattern.permute.xlu0 0
      %4170 = vperm.xlu0 %4169, %v4064
      %v4171 = vpop.permute.xlu0 %4170
      %4174 = vset.pattern.permute.xlu0 0
      %4175 = vperm.xlu0 %4174, %v4065
      %v4176 = vpop.permute.xlu0 %4175
      %4179 = vset.pattern.permute.xlu0 0
      %4180 = vperm.xlu0 %4179, %v4066
      %v4181 = vpop.permute.xlu0 %4180
      %4184 = vset.pattern.permute.xlu0 0
      %4185 = vperm.xlu0 %4184, %v4067
      %v4186 = vpop.permute.xlu0 %4185
      %4189 = vset.pattern.permute.xlu0 0
      %4190 = vperm.xlu0 %4189, %v4068
      %v4191 = vpop.permute.xlu0 %4190
      %4194 = vset.pattern.permute.xlu0 0
      %4195 = vperm.xlu0 %4194, %v4069
      %v4196 = vpop.permute.xlu0 %4195
      %4199 = vset.pattern.permute.xlu0 0
      %4200 = vperm.xlu0 %4199, %v4070
      %v4201 = vpop.permute.xlu0 %4200
      %4204 = vset.pattern.permute.xlu0 0
      %4205 = vperm.xlu0 %4204, %v4071
      %v4206 = vpop.permute.xlu0 %4205
      %4209 = vset.pattern.permute.xlu0 0
      %4210 = vperm.xlu0 %4209, %v4072
      %v4211 = vpop.permute.xlu0 %4210
      %4214 = vset.pattern.permute.xlu0 0
      %4215 = vperm.xlu0 %4214, %v4073
      %v4216 = vpop.permute.xlu0 %4215
      %4219 = vset.pattern.permute.xlu0 0
      %4220 = vperm.xlu0 %4219, %v4074
      %v4221 = vpop.permute.xlu0 %4220
      %4224 = vset.pattern.permute.xlu0 0
      %4225 = vperm.xlu0 %4224, %v4075
      %v4226 = vpop.permute.xlu0 %4225
      %4229 = vset.pattern.permute.xlu0 0
      %4230 = vperm.xlu0 %4229, %v4076
      %v4231 = vpop.permute.xlu0 %4230
      %4234 = vset.pattern.permute.xlu0 0
      %4235 = vperm.xlu0 %4234, %v4077
      %v4236 = vpop.permute.xlu0 %4235
      %4239 = vset.pattern.permute.xlu0 0
      %4240 = vperm.xlu0 %4239, %v4078
      %v4241 = vpop.permute.xlu0 %4240
      %4244 = vset.pattern.permute.xlu0 0
      %4245 = vperm.xlu0 %4244, %v4079
      %v4246 = vpop.permute.xlu0 %4245
      %4249 = vset.pattern.permute.xlu0 0
      %4250 = vperm.xlu0 %4249, %v4080
      %v4251 = vpop.permute.xlu0 %4250
      %4254 = vset.pattern.permute.xlu0 0
      %4255 = vperm.xlu0 %4254, %v4081
      %v4256 = vpop.permute.xlu0 %4255
      %4259 = vset.pattern.permute.xlu0 0
      %4260 = vperm.xlu0 %4259, %v4082
      %v4261 = vpop.permute.xlu0 %4260
      %v4263 = vmul.f32 %v3649, %v4086
      %v4264 = vmul.f32 %v3650, %v4091
      %v4265 = vmul.f32 %v3651, %v4096
      %v4266 = vmul.f32 %v3652, %v4101
      %v4267 = vmul.f32 %v3653, %v4106
      %v4268 = vmul.f32 %v3654, %v4111
      %v4269 = vmul.f32 %v3655, %v4116
      %v4270 = vmul.f32 %v3656, %v4121
      %v4271 = vmul.f32 %v3657, %v4126
      %v4272 = vmul.f32 %v3658, %v4131
      %v4273 = vmul.f32 %v3659, %v4136
      %v4274 = vmul.f32 %v3660, %v4141
      %v4275 = vmul.f32 %v3661, %v4146
      %v4276 = vmul.f32 %v3662, %v4151
      %v4277 = vmul.f32 %v3663, %v4156
      %v4278 = vmul.f32 %v3664, %v4161
      %v4279 = vmul.f32 %v3665, %v4166
      %v4280 = vmul.f32 %v3666, %v4171
      %v4281 = vmul.f32 %v3667, %v4176
      %v4282 = vmul.f32 %v3668, %v4181
      %v4283 = vmul.f32 %v3669, %v4186
      %v4284 = vmul.f32 %v3670, %v4191
      %v4285 = vmul.f32 %v3671, %v4196
      %v4286 = vmul.f32 %v3672, %v4201
      %v4287 = vmul.f32 %v3673, %v4206
      %v4288 = vmul.f32 %v3674, %v4211
      %v4289 = vmul.f32 %v3675, %v4216
      %v4290 = vmul.f32 %v3676, %v4221
      %v4291 = vmul.f32 %v3677, %v4226
      %v4292 = vmul.f32 %v3678, %v4231
      %v4293 = vmul.f32 %v3679, %v4236
      %v4294 = vmul.f32 %v3680, %v4241
      %v4295 = vmul.f32 %v3681, %v4246
      %v4296 = vmul.f32 %v3682, %v4251
      %v4297 = vmul.f32 %v3683, %v4256
      %v4298 = vmul.f32 %v3684, %v4261
      %v4299 = vmul.f32 %v3724, %v4086
      %v4300 = vmul.f32 %v3727, %v4091
      %v4301 = vmul.f32 %v3732, %v4096
      %v4302 = vmul.f32 %v3735, %v4101
      %v4303 = vmul.f32 %v3740, %v4106
      %v4304 = vmul.f32 %v3743, %v4111
      %v4305 = vmul.f32 %v3748, %v4116
      %v4306 = vmul.f32 %v3751, %v4121
      %v4307 = vmul.f32 %v3756, %v4126
      %v4308 = vmul.f32 %v3759, %v4131
      %v4309 = vmul.f32 %v3764, %v4136
      %v4310 = vmul.f32 %v3767, %v4141
      %v4311 = vmul.f32 %v3772, %v4146
      %v4312 = vmul.f32 %v3775, %v4151
      %v4313 = vmul.f32 %v3780, %v4156
      %v4314 = vmul.f32 %v3783, %v4161
      %v4315 = vmul.f32 %v3788, %v4166
      %v4316 = vmul.f32 %v3791, %v4171
      %v4317 = vmul.f32 %v3796, %v4176
      %v4318 = vmul.f32 %v3799, %v4181
      %v4319 = vmul.f32 %v3804, %v4186
      %v4320 = vmul.f32 %v3807, %v4191
      %v4321 = vmul.f32 %v3812, %v4196
      %v4322 = vmul.f32 %v3815, %v4201
      %v4323 = vmul.f32 %v3820, %v4206
      %v4324 = vmul.f32 %v3823, %v4211
      %v4325 = vmul.f32 %v3828, %v4216
      %v4326 = vmul.f32 %v3831, %v4221
      %v4327 = vmul.f32 %v3836, %v4226
      %v4328 = vmul.f32 %v3839, %v4231
      %v4329 = vmul.f32 %v3844, %v4236
      %v4330 = vmul.f32 %v3847, %v4241
      %v4331 = vmul.f32 %v3852, %v4246
      %v4332 = vmul.f32 %v3855, %v4251
      %v4333 = vmul.f32 %v3860, %v4256
      %v4334 = vmul.f32 %v3863, %v4261
      %vm4335 = vcmask 64512
      %v4336 = vsel %vm4335, %v4263, 0.0
      %v4337 = vsel %vm4335, %v4264, 0.0
      %v4338 = vadd.f32 %v4336, %v4337
      %v4339 = vsel %vm4335, %v4265, 0.0
      %v4340 = vadd.f32 %v4338, %v4339
      %v4341 = vsel %vm4335, %v4266, 0.0
      %v4342 = vadd.f32 %v4340, %v4341
      %v4343 = vsel %vm4335, %v4267, 0.0
      %v4344 = vadd.f32 %v4342, %v4343
      %v4345 = vsel %vm4335, %v4268, 0.0
      %v4346 = vadd.f32 %v4344, %v4345
      %v4347 = vsel %vm4335, %v4269, 0.0
      %v4348 = vadd.f32 %v4346, %v4347
      %v4349 = vsel %vm4335, %v4270, 0.0
      %v4350 = vadd.f32 %v4348, %v4349
      %v4351 = vsel %vm4335, %v4271, 0.0
      %v4352 = vadd.f32 %v4350, %v4351
      %v4353 = vsel %vm4335, %v4272, 0.0
      %v4354 = vadd.f32 %v4352, %v4353
      %v4355 = vsel %vm4335, %v4273, 0.0
      %v4356 = vadd.f32 %v4354, %v4355
      %v4357 = vsel %vm4335, %v4274, 0.0
      %v4358 = vadd.f32 %v4356, %v4357
      %v4359 = vsel %vm4335, %v4275, 0.0
      %v4360 = vadd.f32 %v4358, %v4359
      %v4361 = vsel %vm4335, %v4276, 0.0
      %v4362 = vadd.f32 %v4360, %v4361
      %v4363 = vsel %vm4335, %v4277, 0.0
      %v4364 = vadd.f32 %v4362, %v4363
      %v4365 = vsel %vm4335, %v4278, 0.0
      %v4366 = vadd.f32 %v4364, %v4365
      %v4367 = vsel %vm4335, %v4279, 0.0
      %v4368 = vadd.f32 %v4366, %v4367
      %v4369 = vsel %vm4335, %v4280, 0.0
      %v4370 = vadd.f32 %v4368, %v4369
      %v4371 = vsel %vm4335, %v4281, 0.0
      %v4372 = vadd.f32 %v4370, %v4371
      %v4373 = vsel %vm4335, %v4282, 0.0
      %v4374 = vadd.f32 %v4372, %v4373
      %v4375 = vsel %vm4335, %v4283, 0.0
      %v4376 = vadd.f32 %v4374, %v4375
      %v4377 = vsel %vm4335, %v4284, 0.0
      %v4378 = vadd.f32 %v4376, %v4377
      %v4379 = vsel %vm4335, %v4285, 0.0
      %v4380 = vadd.f32 %v4378, %v4379
      %v4381 = vsel %vm4335, %v4286, 0.0
      %v4382 = vadd.f32 %v4380, %v4381
      %v4383 = vsel %vm4335, %v4287, 0.0
      %v4384 = vadd.f32 %v4382, %v4383
      %v4385 = vsel %vm4335, %v4288, 0.0
      %v4386 = vadd.f32 %v4384, %v4385
      %v4387 = vsel %vm4335, %v4289, 0.0
      %v4388 = vadd.f32 %v4386, %v4387
      %v4389 = vsel %vm4335, %v4290, 0.0
      %v4390 = vadd.f32 %v4388, %v4389
      %v4391 = vsel %vm4335, %v4291, 0.0
      %v4392 = vadd.f32 %v4390, %v4391
      %v4393 = vsel %vm4335, %v4292, 0.0
      %v4394 = vadd.f32 %v4392, %v4393
      %v4395 = vsel %vm4335, %v4293, 0.0
      %v4396 = vadd.f32 %v4394, %v4395
      %v4397 = vsel %vm4335, %v4294, 0.0
      %v4398 = vadd.f32 %v4396, %v4397
      %v4399 = vsel %vm4335, %v4295, 0.0
      %v4400 = vadd.f32 %v4398, %v4399
      %v4401 = vsel %vm4335, %v4296, 0.0
      %v4402 = vadd.f32 %v4400, %v4401
      %v4403 = vsel %vm4335, %v4297, 0.0
      %v4404 = vadd.f32 %v4402, %v4403
      %v4405 = vsel %vm4335, %v4298, 0.0
      %v4406 = vadd.f32 %v4404, %v4405
      %v4407 = vrot.slane %v4406, 4
      %v4408 = vadd.f32 %v4406, %v4407
      %v4409 = vrot.slane %v4408, 2
      %v4410 = vadd.f32 %v4408, %v4409
      %v4411 = vrot.slane %v4410, 1
      %v4412 = vadd.f32 %v4410, %v4411
      %vm4413 = vcmask 57344
      %4414 = vst.msk [vmem:[%s235] sm:$0x1] %vm4413, %v4412
      %v4415 = vmul.f32 %v4263, %v3649
      %v4416 = vmul.f32 %v4264, %v3650
      %v4417 = vmul.f32 %v4265, %v3651
      %v4418 = vmul.f32 %v4266, %v3652
      %v4419 = vmul.f32 %v4267, %v3653
      %v4420 = vmul.f32 %v4268, %v3654
      %v4421 = vmul.f32 %v4269, %v3655
      %v4422 = vmul.f32 %v4270, %v3656
      %v4423 = vmul.f32 %v4271, %v3657
      %v4424 = vmul.f32 %v4272, %v3658
      %v4425 = vmul.f32 %v4273, %v3659
      %v4426 = vmul.f32 %v4274, %v3660
      %v4427 = vmul.f32 %v4275, %v3661
      %v4428 = vmul.f32 %v4276, %v3662
      %v4429 = vmul.f32 %v4277, %v3663
      %v4430 = vmul.f32 %v4278, %v3664
      %v4431 = vmul.f32 %v4279, %v3665
      %v4432 = vmul.f32 %v4280, %v3666
      %v4433 = vmul.f32 %v4281, %v3667
      %v4434 = vmul.f32 %v4282, %v3668
      %v4435 = vmul.f32 %v4283, %v3669
      %v4436 = vmul.f32 %v4284, %v3670
      %v4437 = vmul.f32 %v4285, %v3671
      %v4438 = vmul.f32 %v4286, %v3672
      %v4439 = vmul.f32 %v4287, %v3673
      %v4440 = vmul.f32 %v4288, %v3674
      %v4441 = vmul.f32 %v4289, %v3675
      %v4442 = vmul.f32 %v4290, %v3676
      %v4443 = vmul.f32 %v4291, %v3677
      %v4444 = vmul.f32 %v4292, %v3678
      %v4445 = vmul.f32 %v4293, %v3679
      %v4446 = vmul.f32 %v4294, %v3680
      %v4447 = vmul.f32 %v4295, %v3681
      %v4448 = vmul.f32 %v4296, %v3682
      %v4449 = vmul.f32 %v4297, %v3683
      %v4450 = vmul.f32 %v4298, %v3684
      %v4451 = vsel %vm4335, %v4415, 0.0
      %v4452 = vsel %vm4335, %v4416, 0.0
      %v4453 = vadd.f32 %v4451, %v4452
      %v4454 = vsel %vm4335, %v4417, 0.0
      %v4455 = vadd.f32 %v4453, %v4454
      %v4456 = vsel %vm4335, %v4418, 0.0
      %v4457 = vadd.f32 %v4455, %v4456
      %v4458 = vsel %vm4335, %v4419, 0.0
      %v4459 = vadd.f32 %v4457, %v4458
      %v4460 = vsel %vm4335, %v4420, 0.0
      %v4461 = vadd.f32 %v4459, %v4460
      %v4462 = vsel %vm4335, %v4421, 0.0
      %v4463 = vadd.f32 %v4461, %v4462
      %v4464 = vsel %vm4335, %v4422, 0.0
      %v4465 = vadd.f32 %v4463, %v4464
      %v4466 = vsel %vm4335, %v4423, 0.0
      %v4467 = vadd.f32 %v4465, %v4466
      %v4468 = vsel %vm4335, %v4424, 0.0
      %v4469 = vadd.f32 %v4467, %v4468
      %v4470 = vsel %vm4335, %v4425, 0.0
      %v4471 = vadd.f32 %v4469, %v4470
      %v4472 = vsel %vm4335, %v4426, 0.0
      %v4473 = vadd.f32 %v4471, %v4472
      %v4474 = vsel %vm4335, %v4427, 0.0
      %v4475 = vadd.f32 %v4473, %v4474
      %v4476 = vsel %vm4335, %v4428, 0.0
      %v4477 = vadd.f32 %v4475, %v4476
      %v4478 = vsel %vm4335, %v4429, 0.0
      %v4479 = vadd.f32 %v4477, %v4478
      %v4480 = vsel %vm4335, %v4430, 0.0
      %v4481 = vadd.f32 %v4479, %v4480
      %v4482 = vsel %vm4335, %v4431, 0.0
      %v4483 = vadd.f32 %v4481, %v4482
      %v4484 = vsel %vm4335, %v4432, 0.0
      %v4485 = vadd.f32 %v4483, %v4484
      %v4486 = vsel %vm4335, %v4433, 0.0
      %v4487 = vadd.f32 %v4485, %v4486
      %v4488 = vsel %vm4335, %v4434, 0.0
      %v4489 = vadd.f32 %v4487, %v4488
      %v4490 = vsel %vm4335, %v4435, 0.0
      %v4491 = vadd.f32 %v4489, %v4490
      %v4492 = vsel %vm4335, %v4436, 0.0
      %v4493 = vadd.f32 %v4491, %v4492
      %v4494 = vsel %vm4335, %v4437, 0.0
      %v4495 = vadd.f32 %v4493, %v4494
      %v4496 = vsel %vm4335, %v4438, 0.0
      %v4497 = vadd.f32 %v4495, %v4496
      %v4498 = vsel %vm4335, %v4439, 0.0
      %v4499 = vadd.f32 %v4497, %v4498
      %v4500 = vsel %vm4335, %v4440, 0.0
      %v4501 = vadd.f32 %v4499, %v4500
      %v4502 = vsel %vm4335, %v4441, 0.0
      %v4503 = vadd.f32 %v4501, %v4502
      %v4504 = vsel %vm4335, %v4442, 0.0
      %v4505 = vadd.f32 %v4503, %v4504
      %v4506 = vsel %vm4335, %v4443, 0.0
      %v4507 = vadd.f32 %v4505, %v4506
      %v4508 = vsel %vm4335, %v4444, 0.0
      %v4509 = vadd.f32 %v4507, %v4508
      %v4510 = vsel %vm4335, %v4445, 0.0
      %v4511 = vadd.f32 %v4509, %v4510
      %v4512 = vsel %vm4335, %v4446, 0.0
      %v4513 = vadd.f32 %v4511, %v4512
      %v4514 = vsel %vm4335, %v4447, 0.0
      %v4515 = vadd.f32 %v4513, %v4514
      %v4516 = vsel %vm4335, %v4448, 0.0
      %v4517 = vadd.f32 %v4515, %v4516
      %v4518 = vsel %vm4335, %v4449, 0.0
      %v4519 = vadd.f32 %v4517, %v4518
      %v4520 = vsel %vm4335, %v4450, 0.0
      %v4521 = vadd.f32 %v4519, %v4520
      %v4522 = vrot.slane %v4521, 4
      %v4523 = vadd.f32 %v4521, %v4522
      %v4524 = vrot.slane %v4523, 2
      %v4525 = vadd.f32 %v4523, %v4524
      %v4526 = vrot.slane %v4525, 1
      %v4527 = vadd.f32 %v4525, %v4526
      %4528 = vst.msk [vmem:[%s235 + $0x1] sm:$0x1] %vm4413, %v4527
      %v4529 = vsel %vm4335, %v4299, 0.0
      %v4530 = vsel %vm4335, %v4300, 0.0
      %v4531 = vadd.f32 %v4529, %v4530
      %v4532 = vsel %vm4335, %v4301, 0.0
      %v4533 = vadd.f32 %v4531, %v4532
      %v4534 = vsel %vm4335, %v4302, 0.0
      %v4535 = vadd.f32 %v4533, %v4534
      %v4536 = vsel %vm4335, %v4303, 0.0
      %v4537 = vadd.f32 %v4535, %v4536
      %v4538 = vsel %vm4335, %v4304, 0.0
      %v4539 = vadd.f32 %v4537, %v4538
      %v4540 = vsel %vm4335, %v4305, 0.0
      %v4541 = vadd.f32 %v4539, %v4540
      %v4542 = vsel %vm4335, %v4306, 0.0
      %v4543 = vadd.f32 %v4541, %v4542
      %v4544 = vsel %vm4335, %v4307, 0.0
      %v4545 = vadd.f32 %v4543, %v4544
      %v4546 = vsel %vm4335, %v4308, 0.0
      %v4547 = vadd.f32 %v4545, %v4546
      %v4548 = vsel %vm4335, %v4309, 0.0
      %v4549 = vadd.f32 %v4547, %v4548
      %v4550 = vsel %vm4335, %v4310, 0.0
      %v4551 = vadd.f32 %v4549, %v4550
      %v4552 = vsel %vm4335, %v4311, 0.0
      %v4553 = vadd.f32 %v4551, %v4552
      %v4554 = vsel %vm4335, %v4312, 0.0
      %v4555 = vadd.f32 %v4553, %v4554
      %v4556 = vsel %vm4335, %v4313, 0.0
      %v4557 = vadd.f32 %v4555, %v4556
      %v4558 = vsel %vm4335, %v4314, 0.0
      %v4559 = vadd.f32 %v4557, %v4558
      %v4560 = vsel %vm4335, %v4315, 0.0
      %v4561 = vadd.f32 %v4559, %v4560
      %v4562 = vsel %vm4335, %v4316, 0.0
      %v4563 = vadd.f32 %v4561, %v4562
      %v4564 = vsel %vm4335, %v4317, 0.0
      %v4565 = vadd.f32 %v4563, %v4564
      %v4566 = vsel %vm4335, %v4318, 0.0
      %v4567 = vadd.f32 %v4565, %v4566
      %v4568 = vsel %vm4335, %v4319, 0.0
      %v4569 = vadd.f32 %v4567, %v4568
      %v4570 = vsel %vm4335, %v4320, 0.0
      %v4571 = vadd.f32 %v4569, %v4570
      %v4572 = vsel %vm4335, %v4321, 0.0
      %v4573 = vadd.f32 %v4571, %v4572
      %v4574 = vsel %vm4335, %v4322, 0.0
      %v4575 = vadd.f32 %v4573, %v4574
      %v4576 = vsel %vm4335, %v4323, 0.0
      %v4577 = vadd.f32 %v4575, %v4576
      %v4578 = vsel %vm4335, %v4324, 0.0
      %v4579 = vadd.f32 %v4577, %v4578
      %v4580 = vsel %vm4335, %v4325, 0.0
      %v4581 = vadd.f32 %v4579, %v4580
      %v4582 = vsel %vm4335, %v4326, 0.0
      %v4583 = vadd.f32 %v4581, %v4582
      %v4584 = vsel %vm4335, %v4327, 0.0
      %v4585 = vadd.f32 %v4583, %v4584
      %v4586 = vsel %vm4335, %v4328, 0.0
      %v4587 = vadd.f32 %v4585, %v4586
      %v4588 = vsel %vm4335, %v4329, 0.0
      %v4589 = vadd.f32 %v4587, %v4588
      %v4590 = vsel %vm4335, %v4330, 0.0
      %v4591 = vadd.f32 %v4589, %v4590
      %v4592 = vsel %vm4335, %v4331, 0.0
      %v4593 = vadd.f32 %v4591, %v4592
      %v4594 = vsel %vm4335, %v4332, 0.0
      %v4595 = vadd.f32 %v4593, %v4594
      %v4596 = vsel %vm4335, %v4333, 0.0
      %v4597 = vadd.f32 %v4595, %v4596
      %v4598 = vsel %vm4335, %v4334, 0.0
      %v4599 = vadd.f32 %v4597, %v4598
      %v4600 = vrot.slane %v4599, 4
      %v4601 = vadd.f32 %v4599, %v4600
      %v4602 = vrot.slane %v4601, 2
      %v4603 = vadd.f32 %v4601, %v4602
      %v4604 = vrot.slane %v4603, 1
      %v4605 = vadd.f32 %v4603, %v4604
      %4606 = vst.msk [vmem:[%s235 + $0x2] sm:$0x1] %vm4413, %v4605
      %v4607 = vmul.f32 %v4299, %v3724
      %v4608 = vmul.f32 %v4300, %v3727
      %v4609 = vmul.f32 %v4301, %v3732
      %v4610 = vmul.f32 %v4302, %v3735
      %v4611 = vmul.f32 %v4303, %v3740
      %v4612 = vmul.f32 %v4304, %v3743
      %v4613 = vmul.f32 %v4305, %v3748
      %v4614 = vmul.f32 %v4306, %v3751
      %v4615 = vmul.f32 %v4307, %v3756
      %v4616 = vmul.f32 %v4308, %v3759
      %v4617 = vmul.f32 %v4309, %v3764
      %v4618 = vmul.f32 %v4310, %v3767
      %v4619 = vmul.f32 %v4311, %v3772
      %v4620 = vmul.f32 %v4312, %v3775
      %v4621 = vmul.f32 %v4313, %v3780
      %v4622 = vmul.f32 %v4314, %v3783
      %v4623 = vmul.f32 %v4315, %v3788
      %v4624 = vmul.f32 %v4316, %v3791
      %v4625 = vmul.f32 %v4317, %v3796
      %v4626 = vmul.f32 %v4318, %v3799
      %v4627 = vmul.f32 %v4319, %v3804
      %v4628 = vmul.f32 %v4320, %v3807
      %v4629 = vmul.f32 %v4321, %v3812
      %v4630 = vmul.f32 %v4322, %v3815
      %v4631 = vmul.f32 %v4323, %v3820
      %v4632 = vmul.f32 %v4324, %v3823
      %v4633 = vmul.f32 %v4325, %v3828
      %v4634 = vmul.f32 %v4326, %v3831
      %v4635 = vmul.f32 %v4327, %v3836
      %v4636 = vmul.f32 %v4328, %v3839
      %v4637 = vmul.f32 %v4329, %v3844
      %v4638 = vmul.f32 %v4330, %v3847
      %v4639 = vmul.f32 %v4331, %v3852
      %v4640 = vmul.f32 %v4332, %v3855
      %v4641 = vmul.f32 %v4333, %v3860
      %v4642 = vmul.f32 %v4334, %v3863
      %v4643 = vsel %vm4335, %v4607, 0.0
      %v4644 = vsel %vm4335, %v4608, 0.0
      %v4645 = vadd.f32 %v4643, %v4644
      %v4646 = vsel %vm4335, %v4609, 0.0
      %v4647 = vadd.f32 %v4645, %v4646
      %v4648 = vsel %vm4335, %v4610, 0.0
      %v4649 = vadd.f32 %v4647, %v4648
      %v4650 = vsel %vm4335, %v4611, 0.0
      %v4651 = vadd.f32 %v4649, %v4650
      %v4652 = vsel %vm4335, %v4612, 0.0
      %v4653 = vadd.f32 %v4651, %v4652
      %v4654 = vsel %vm4335, %v4613, 0.0
      %v4655 = vadd.f32 %v4653, %v4654
      %v4656 = vsel %vm4335, %v4614, 0.0
      %v4657 = vadd.f32 %v4655, %v4656
      %v4658 = vsel %vm4335, %v4615, 0.0
      %v4659 = vadd.f32 %v4657, %v4658
      %v4660 = vsel %vm4335, %v4616, 0.0
      %v4661 = vadd.f32 %v4659, %v4660
      %v4662 = vsel %vm4335, %v4617, 0.0
      %v4663 = vadd.f32 %v4661, %v4662
      %v4664 = vsel %vm4335, %v4618, 0.0
      %v4665 = vadd.f32 %v4663, %v4664
      %v4666 = vsel %vm4335, %v4619, 0.0
      %v4667 = vadd.f32 %v4665, %v4666
      %v4668 = vsel %vm4335, %v4620, 0.0
      %v4669 = vadd.f32 %v4667, %v4668
      %v4670 = vsel %vm4335, %v4621, 0.0
      %v4671 = vadd.f32 %v4669, %v4670
      %v4672 = vsel %vm4335, %v4622, 0.0
      %v4673 = vadd.f32 %v4671, %v4672
      %v4674 = vsel %vm4335, %v4623, 0.0
      %v4675 = vadd.f32 %v4673, %v4674
      %v4676 = vsel %vm4335, %v4624, 0.0
      %v4677 = vadd.f32 %v4675, %v4676
      %v4678 = vsel %vm4335, %v4625, 0.0
      %v4679 = vadd.f32 %v4677, %v4678
      %v4680 = vsel %vm4335, %v4626, 0.0
      %v4681 = vadd.f32 %v4679, %v4680
      %v4682 = vsel %vm4335, %v4627, 0.0
      %v4683 = vadd.f32 %v4681, %v4682
      %v4684 = vsel %vm4335, %v4628, 0.0
      %v4685 = vadd.f32 %v4683, %v4684
      %v4686 = vsel %vm4335, %v4629, 0.0
      %v4687 = vadd.f32 %v4685, %v4686
      %v4688 = vsel %vm4335, %v4630, 0.0
      %v4689 = vadd.f32 %v4687, %v4688
      %v4690 = vsel %vm4335, %v4631, 0.0
      %v4691 = vadd.f32 %v4689, %v4690
      %v4692 = vsel %vm4335, %v4632, 0.0
      %v4693 = vadd.f32 %v4691, %v4692
      %v4694 = vsel %vm4335, %v4633, 0.0
      %v4695 = vadd.f32 %v4693, %v4694
      %v4696 = vsel %vm4335, %v4634, 0.0
      %v4697 = vadd.f32 %v4695, %v4696
      %v4698 = vsel %vm4335, %v4635, 0.0
      %v4699 = vadd.f32 %v4697, %v4698
      %v4700 = vsel %vm4335, %v4636, 0.0
      %v4701 = vadd.f32 %v4699, %v4700
      %v4702 = vsel %vm4335, %v4637, 0.0
      %v4703 = vadd.f32 %v4701, %v4702
      %v4704 = vsel %vm4335, %v4638, 0.0
      %v4705 = vadd.f32 %v4703, %v4704
      %v4706 = vsel %vm4335, %v4639, 0.0
      %v4707 = vadd.f32 %v4705, %v4706
      %v4708 = vsel %vm4335, %v4640, 0.0
      %v4709 = vadd.f32 %v4707, %v4708
      %v4710 = vsel %vm4335, %v4641, 0.0
      %v4711 = vadd.f32 %v4709, %v4710
      %v4712 = vsel %vm4335, %v4642, 0.0
      %v4713 = vadd.f32 %v4711, %v4712
      %v4714 = vrot.slane %v4713, 4
      %v4715 = vadd.f32 %v4713, %v4714
      %v4716 = vrot.slane %v4715, 2
      %v4717 = vadd.f32 %v4715, %v4716
      %v4718 = vrot.slane %v4717, 1
      %v4719 = vadd.f32 %v4717, %v4718
      %4720 = vst.msk [vmem:[%s235 + $0x3] sm:$0x1] %vm4413, %v4719
      %p4721 = scmp.lt.s32.totalorder %s17, 1
      %s4722 = scalar_select %p4721, %s17, 1
      %s4723 = smul.addr %s4722, 36
      %s4724 = smul.addr %s4723, 4
      %s4725 = scalar_lea.vmem %s4, %s4724
      %p4726 = scmp.lt.s32.totalorder %s17, 1
      %s4727 = scalar_select %p4726, %s17, 1
      %s4728 = smul.addr %s4727, 4
      %s4729 = scalar_lea.vmem %s5, %s4728
      // Predicated region
      $region37: #{resblock_forward.3} parent=35 // pred_check
        %p4730 = pneg %p124
      $region38: #{resblock_forward.3} parent=35 // pred_check_branch
        %4732 = sbr.rel (%p4730) target = $region40
      $region39: #{resblock_forward.3} parent=35 // pred_region
        _
      $region40: #{resblock_forward.3} parent=35 // pred_fallthru
        _
      // Predicated region
      $region41: #{resblock_forward.3} parent=35 // pred_check
        %p4733 = pneg %p150
      $region42: #{resblock_forward.3} parent=35 // pred_check_branch
        %4735 = sbr.rel (%p4733) target = $region44
      $region43: #{resblock_forward.3} parent=35 // pred_region
        _
      $region44: #{resblock_forward.3} parent=35 // pred_fallthru
        _
    $region36: #{resblock_forward.3} parent=5 // pred_fallthru
      _
    %p4736 = scmp.le.s32.totalorder 2, %s12
    // Predicated region
    $region45: #{resblock_forward.3} parent=5 // pred_check
      %p4737 = pneg %p4736
    $region46: #{resblock_forward.3} parent=5 // pred_check_branch
      %4739 = sbr.rel (%p4737) target = $region48
    $region47: #{resblock_forward.3} parent=5 // pred_region
      %s4740 = ssub.s32 %s12, 2
      // Predicated region
      $region49: #{resblock_forward.3} parent=47 // pred_check
        %p4741 = pneg %p130
      $region50: #{resblock_forward.3} parent=47 // pred_check_branch
        %4743 = sbr.rel (%p4741) target = $region52
      $region51: #{resblock_forward.3} parent=47 // pred_region
        %p4744 = scmp.lt.s32.totalorder %s18, 1
        %s4745 = scalar_select %p4744, %s18, 1
        %s4746 = smul.addr %s4745, 36
        %s4747 = smul.addr %s4746, 4
        %s4748 = scalar_lea.vmem %s4, %s4747
      $region52: #{resblock_forward.3} parent=47 // pred_fallthru
        _
      // Predicated region
      $region53: #{resblock_forward.3} parent=47 // pred_check
        %p4749 = pneg %p156
      $region54: #{resblock_forward.3} parent=47 // pred_check_branch
        %4751 = sbr.rel (%p4749) target = $region56
      $region55: #{resblock_forward.3} parent=47 // pred_region
        %p4752 = scmp.lt.s32.totalorder %s18, 1
        %s4753 = scalar_select %p4752, %s18, 1
        %s4754 = smul.addr %s4753, 4
        %s4755 = scalar_lea.vmem %s5, %s4754
      $region56: #{resblock_forward.3} parent=47 // pred_fallthru
        _
    $region48: #{resblock_forward.3} parent=5 // pred_fallthru
      _
  $region6: #{resblock_forward.3} parent=0 // loop_footer
    %s16 = sadd.s32 1, %s12
  $region7: #{resblock_forward.3} parent=0 // loop_footer_branch
    %11 = sbr.rel target = $region3
  $region8: #{resblock_forward.3} parent=0 // loop_exit
    _

// kernel: resblock_forward.4
$region0: #{resblock_forward.4}
  #allocation0 [shape = 'u32[]', space=smem, size = 0x4, offset = 0x4, fixed_abs, tag = 'smem constant byte address 0x4 - core index']
  #allocation1 [shape = 'u32[144,128]{1,0:T(1,128)}', space=vmem, size = 0x12000, scoped, tag = 'internal scratch']
  #allocation2 [shape = 'bf16[342,8]{1,0:T(8,128)(2,1)}', space=vmem, size = 0x15800, scoped, tag = 'scratch operand']
  %s0 = inlined_call_operand.vmem [shape: bf16[2,288,8], index: 0, kind: input, shape index: {}]
  %s1 = inlined_call_operand.vmem [shape: f32[288,1], index: 1, kind: input, shape index: {}]
  %s2 = inlined_call_operand.vmem [shape: f32[1,8], index: 2, kind: input, shape index: {}]
  %s3 = inlined_call_operand.vmem [shape: f32[1,8], index: 3, kind: input, shape index: {}]
  %s4 = inlined_call_operand.vmem [shape: bf16[9,8,8], index: 4, kind: input, shape index: {}]
  %s5 = inlined_call_operand.vmem [shape: bf16[2,288,8], index: 5, kind: output, shape index: {0}]
  %s6 = inlined_call_operand.vmem [shape: f32[2,2,8], index: 6, kind: output, shape index: {1}]
  %7 = xla_tuple %s5, %s6
  %s8 = sld [smem:[#allocation0]]
  $region61: #{resblock_forward.4} parent=0
    _
  %s10 = ssub.s32 1, %s8
  %s11 = scalar_select 0, %s10, %s8
  loop: start=0, step=1, limit=4
  $region2: #{resblock_forward.4} parent=0 // loop_pre_header
    _
  $region3: #{resblock_forward.4} parent=0 // loop_header
    %s13 = sphi 0, %s17
    %p14 = scmp.ge.s32.totalorder %s13, 4
    %s23 = sphi 0, %s25
    %s26 = sphi 0, %s23
    %s27 = sphi 0, %s26
    %s43 = sphi 0, %s27
    %s47 = sphi 0, %s47
    %s49 = sphi 0, %s47
    %s50 = sphi 0, %s49
    %s64 = sphi 0, %s50
    %s68 = sphi 0, %s68
    %s70 = sphi 0, %s68
    %s71 = sphi 0, %s70
    %s85 = sphi 0, %s71
    %s89 = sphi 0, %s89
    %s91 = sphi 0, %s89
    %s92 = sphi 0, %s91
    %s106 = sphi 0, %s92
    %s110 = sphi 0, %s110
    %s112 = sphi 0, %s110
    %s113 = sphi 0, %s112
    %s127 = sphi 0, %s113
    %s133 = sphi 0, %s135
    %s136 = sphi 0, %s133
    %s137 = sphi 0, %s136
    %s153 = sphi 0, %s137
    %s159 = sphi 0, %s161
    %s162 = sphi 0, %s159
    %s163 = sphi 0, %s162
    %s179 = sphi 0, %s163
  $region4: #{resblock_forward.4} parent=0 // loop_header_branch
    %16 = sbr.rel (%p14) target = $region8
  $region5: #{resblock_forward.4} parent=0 // loop_body
    %s18 = ssub.s32 %s13, 1
    %s19 = ssub.s32 %s13, 2
    %s20 = sadd.s32 %s13, 1
    %s21 = ssub.s32 %s13, %s20
    %p22 = scmp.eq.s32.totalorder %s21, 0
    %s24 = sadd.s32 %s23, 1
    %s25 = scalar_select %p22, %s23, %s24
    %p28 = pneg %p22
    %p29 = scmp.eq.s32.totalorder %s13, 1
    %p30 = por %p28, %p29
    %p31 = scmp.ne.s32.totalorder %s23, %s26
    %p32 = scmp.eq.s32.totalorder %s13, 0
    %p33 = por %p31, %p32
    %p34 = scmp.ne.s32.totalorder %s23, %s26
    %p35 = scmp.eq.s32.totalorder %s18, 1
    %p36 = por %p34, %p35
    %p37 = scmp.ne.s32.totalorder %s26, %s27
    %p38 = scmp.eq.s32.totalorder %s18, 0
    %p39 = por %p37, %p38
    %p40 = scmp.ne.s32.totalorder %s26, %s27
    %p41 = scmp.eq.s32.totalorder %s19, 1
    %p42 = por %p40, %p41
    %p44 = scmp.ne.s32.totalorder %s27, %s43
    %p45 = scmp.eq.s32.totalorder %s19, 0
    %p46 = por %p44, %p45
    %s48 = sadd.s32 %s47, 1
    %p51 = scmp.eq.s32.totalorder %s13, 1
    %p52 = scmp.ne.s32.totalorder %s47, %s49
    %p53 = scmp.eq.s32.totalorder %s13, 0
    %p54 = por %p52, %p53
    %p55 = scmp.ne.s32.totalorder %s47, %s49
    %p56 = scmp.eq.s32.totalorder %s18, 1
    %p57 = por %p55, %p56
    %p58 = scmp.ne.s32.totalorder %s49, %s50
    %p59 = scmp.eq.s32.totalorder %s18, 0
    %p60 = por %p58, %p59
    %p61 = scmp.ne.s32.totalorder %s49, %s50
    %p62 = scmp.eq.s32.totalorder %s19, 1
    %p63 = por %p61, %p62
    %p65 = scmp.ne.s32.totalorder %s50, %s64
    %p66 = scmp.eq.s32.totalorder %s19, 0
    %p67 = por %p65, %p66
    %s69 = sadd.s32 %s68, 1
    %p72 = scmp.eq.s32.totalorder %s13, 1
    %p73 = scmp.ne.s32.totalorder %s68, %s70
    %p74 = scmp.eq.s32.totalorder %s13, 0
    %p75 = por %p73, %p74
    %p76 = scmp.ne.s32.totalorder %s68, %s70
    %p77 = scmp.eq.s32.totalorder %s18, 1
    %p78 = por %p76, %p77
    %p79 = scmp.ne.s32.totalorder %s70, %s71
    %p80 = scmp.eq.s32.totalorder %s18, 0
    %p81 = por %p79, %p80
    %p82 = scmp.ne.s32.totalorder %s70, %s71
    %p83 = scmp.eq.s32.totalorder %s19, 1
    %p84 = por %p82, %p83
    %p86 = scmp.ne.s32.totalorder %s71, %s85
    %p87 = scmp.eq.s32.totalorder %s19, 0
    %p88 = por %p86, %p87
    %s90 = sadd.s32 %s89, 1
    %p93 = scmp.eq.s32.totalorder %s13, 1
    %p94 = scmp.ne.s32.totalorder %s89, %s91
    %p95 = scmp.eq.s32.totalorder %s13, 0
    %p96 = por %p94, %p95
    %p97 = scmp.ne.s32.totalorder %s89, %s91
    %p98 = scmp.eq.s32.totalorder %s18, 1
    %p99 = por %p97, %p98
    %p100 = scmp.ne.s32.totalorder %s91, %s92
    %p101 = scmp.eq.s32.totalorder %s18, 0
    %p102 = por %p100, %p101
    %p103 = scmp.ne.s32.totalorder %s91, %s92
    %p104 = scmp.eq.s32.totalorder %s19, 1
    %p105 = por %p103, %p104
    %p107 = scmp.ne.s32.totalorder %s92, %s106
    %p108 = scmp.eq.s32.totalorder %s19, 0
    %p109 = por %p107, %p108
    %s111 = sadd.s32 %s110, 1
    %p114 = scmp.eq.s32.totalorder %s13, 1
    %p115 = scmp.ne.s32.totalorder %s110, %s112
    %p116 = scmp.eq.s32.totalorder %s13, 0
    %p117 = por %p115, %p116
    %p118 = scmp.ne.s32.totalorder %s110, %s112
    %p119 = scmp.eq.s32.totalorder %s18, 1
    %p120 = por %p118, %p119
    %p121 = scmp.ne.s32.totalorder %s112, %s113
    %p122 = scmp.eq.s32.totalorder %s18, 0
    %p123 = por %p121, %p122
    %p124 = scmp.ne.s32.totalorder %s112, %s113
    %p125 = scmp.eq.s32.totalorder %s19, 1
    %p126 = por %p124, %p125
    %p128 = scmp.ne.s32.totalorder %s113, %s127
    %p129 = scmp.eq.s32.totalorder %s19, 0
    %p130 = por %p128, %p129
    %s131 = ssub.s32 %s13, %s20
    %p132 = scmp.eq.s32.totalorder %s131, 0
    %s134 = sadd.s32 %s133, 1
    %s135 = scalar_select %p132, %s133, %s134
    %p138 = pneg %p132
    %p139 = scmp.eq.s32.totalorder %s13, 1
    %p140 = por %p138, %p139
    %p141 = scmp.ne.s32.totalorder %s133, %s136
    %p142 = scmp.eq.s32.totalorder %s13, 0
    %p143 = por %p141, %p142
    %p144 = scmp.ne.s32.totalorder %s133, %s136
    %p145 = scmp.eq.s32.totalorder %s18, 1
    %p146 = por %p144, %p145
    %p147 = scmp.ne.s32.totalorder %s136, %s137
    %p148 = scmp.eq.s32.totalorder %s18, 0
    %p149 = por %p147, %p148
    %p150 = scmp.ne.s32.totalorder %s136, %s137
    %p151 = scmp.eq.s32.totalorder %s19, 1
    %p152 = por %p150, %p151
    %p154 = scmp.ne.s32.totalorder %s137, %s153
    %p155 = scmp.eq.s32.totalorder %s19, 0
    %p156 = por %p154, %p155
    %s157 = ssub.s32 %s13, %s20
    %p158 = scmp.eq.s32.totalorder %s157, 0
    %s160 = sadd.s32 %s159, 1
    %s161 = scalar_select %p158, %s159, %s160
    %p164 = pneg %p158
    %p165 = scmp.eq.s32.totalorder %s13, 1
    %p166 = por %p164, %p165
    %p167 = scmp.ne.s32.totalorder %s159, %s162
    %p168 = scmp.eq.s32.totalorder %s13, 0
    %p169 = por %p167, %p168
    %p170 = scmp.ne.s32.totalorder %s159, %s162
    %p171 = scmp.eq.s32.totalorder %s18, 1
    %p172 = por %p170, %p171
    %p173 = scmp.ne.s32.totalorder %s162, %s163
    %p174 = scmp.eq.s32.totalorder %s18, 0
    %p175 = por %p173, %p174
    %p176 = scmp.ne.s32.totalorder %s162, %s163
    %p177 = scmp.eq.s32.totalorder %s19, 1
    %p178 = por %p176, %p177
    %p180 = scmp.ne.s32.totalorder %s163, %s179
    %p181 = scmp.eq.s32.totalorder %s19, 0
    %p182 = por %p180, %p181
    %p183 = scmp.le.s32.totalorder 1, %s13
    %p184 = scmp.lt.s32.totalorder %s13, 3
    %p185 = pnand %p183, %p184
    %p186 = pneg %p185
    // Predicated region
    $region9: #{resblock_forward.4} parent=5 // pred_check
      _
    $region10: #{resblock_forward.4} parent=5 // pred_check_branch
      %188 = sbr.rel (%p185) target = $region12
    $region11: #{resblock_forward.4} parent=5 // pred_region
      %s189 = ssub.s32 %s13, 1
      // Predicated region
      $region13: #{resblock_forward.4} parent=11 // pred_check
        %p190 = pneg %p60
      $region14: #{resblock_forward.4} parent=11 // pred_check_branch
        %192 = sbr.rel (%p190) target = $region16
      $region15: #{resblock_forward.4} parent=11 // pred_region
        _
      $region16: #{resblock_forward.4} parent=11 // pred_fallthru
        _
      // Predicated region
      $region17: #{resblock_forward.4} parent=11 // pred_check
        %p193 = pneg %p81
      $region18: #{resblock_forward.4} parent=11 // pred_check_branch
        %195 = sbr.rel (%p193) target = $region20
      $region19: #{resblock_forward.4} parent=11 // pred_region
        _
      $region20: #{resblock_forward.4} parent=11 // pred_fallthru
        _
      // Predicated region
      $region21: #{resblock_forward.4} parent=11 // pred_check
        %p196 = pneg %p102
      $region22: #{resblock_forward.4} parent=11 // pred_check_branch
        %198 = sbr.rel (%p196) target = $region24
      $region23: #{resblock_forward.4} parent=11 // pred_region
        _
      $region24: #{resblock_forward.4} parent=11 // pred_fallthru
        _
      // Predicated region
      $region25: #{resblock_forward.4} parent=11 // pred_check
        %p199 = pneg %p123
      $region26: #{resblock_forward.4} parent=11 // pred_check_branch
        %201 = sbr.rel (%p199) target = $region28
      $region27: #{resblock_forward.4} parent=11 // pred_region
        _
      $region28: #{resblock_forward.4} parent=11 // pred_fallthru
        _
    $region12: #{resblock_forward.4} parent=5 // pred_fallthru
      _
    %p202 = scmp.lt.s32.totalorder %s13, 2
    // Predicated region
    $region29: #{resblock_forward.4} parent=5 // pred_check
      %p203 = pneg %p202
    $region30: #{resblock_forward.4} parent=5 // pred_check_branch
      %205 = sbr.rel (%p203) target = $region32
    $region31: #{resblock_forward.4} parent=5 // pred_region
      // Predicated region
      $region33: #{resblock_forward.4} parent=31 // pred_check
        %p206 = pneg %p33
      $region34: #{resblock_forward.4} parent=31 // pred_check_branch
        %208 = sbr.rel (%p206) target = $region36
      $region35: #{resblock_forward.4} parent=31 // pred_region
        %p209 = scmp.lt.s32.totalorder %s13, 1
        %s210 = scalar_select %p209, %s13, 1
        %s211 = smul.addr %s210, 36
        %s212 = smul.addr %s211, 4
        %s213 = scalar_lea.vmem %s0, %s212
      $region36: #{resblock_forward.4} parent=31 // pred_fallthru
        _
    $region32: #{resblock_forward.4} parent=5 // pred_fallthru
      _
    %p214 = scmp.le.s32.totalorder 1, %s13
    %p215 = scmp.lt.s32.totalorder %s13, 3
    %p216 = pnand %p214, %p215
    %p217 = pneg %p216
    // Predicated region
    $region37: #{resblock_forward.4} parent=5 // pred_check
      _
    $region38: #{resblock_forward.4} parent=5 // pred_check_branch
      %219 = sbr.rel (%p216) target = $region40
    $region39: #{resblock_forward.4} parent=5 // pred_region
      %s220 = ssub.s32 %s13, 1
      %p221 = scmp.lt.s32.totalorder %s18, 1
      %s222 = scalar_select %p221, %s18, 1
      %s223 = smul.addr %s222, 36
      %s224 = smul.addr %s223, 4
      %s225 = scalar_lea.vmem %s0, %s224
      %p226 = pneg %p39
      %p227 = pneg %p36
      %p228 = pneg %p60
      %p229 = pneg %p57
      %p230 = pneg %p81
      %p231 = pneg %p78
      %p232 = pneg %p102
      %p233 = pneg %p99
      %p234 = pneg %p123
      %p235 = pneg %p120
      %p236 = pneg %p149
      %p237 = pneg %p146
      %p238 = scmp.lt.s32.totalorder %s18, 1
      %s239 = scalar_select %p238, %s18, 1
      %s240 = smul.addr %s239, 36
      %s241 = smul.addr %s240, 4
      %s242 = scalar_lea.vmem %s5, %s241
      %p243 = pneg %p175
      %p244 = pneg %p172
      %p245 = scmp.lt.s32.totalorder %s18, 1
      %s246 = scalar_select %p245, %s18, 1
      %s247 = smul.addr %s246, 2
      %s248 = scalar_lea.vmem %s6, %s247
      %p249 = scmp.lt.s32.totalorder %s18, 1
      %s250 = scalar_select %p249, %s18, 1
      %s251 = smul.addr %s250, 36
      %s252 = smul.addr %s251, 4
      %s253 = scalar_lea.vmem %s0, %s252
      %p254 = scmp.lt.s32.totalorder %s18, 1
      %s255 = scalar_select %p254, %s18, 1
      %s256 = smul.addr %s255, 36
      %s257 = smul.addr %s256, 4
      %s258 = scalar_lea.vmem %s5, %s257
      %p259 = scmp.lt.s32.totalorder %s18, 1
      %s260 = scalar_select %p259, %s18, 1
      %s261 = smul.addr %s260, 2
      %s262 = scalar_lea.vmem %s6, %s261
      %v264 = vld [vmem:[%s1] sm:$0xff]
      %v265 = vld [vmem:[%s1 + $0x8] sm:$0xff]
      %v266 = vld [vmem:[%s1 + $0x10] sm:$0xff]
      %v267 = vld [vmem:[%s1 + $0x18] sm:$0xff]
      %v268 = vld [vmem:[%s1 + $0x20] sm:$0xff]
      %v269 = vld [vmem:[%s1 + $0x28] sm:$0xff]
      %v270 = vld [vmem:[%s1 + $0x30] sm:$0xff]
      %v271 = vld [vmem:[%s1 + $0x38] sm:$0xff]
      %v272 = vld [vmem:[%s1 + $0x40] sm:$0xff]
      %v273 = vld [vmem:[%s1 + $0x48] sm:$0xff]
      %v274 = vld [vmem:[%s1 + $0x50] sm:$0xff]
      %v275 = vld [vmem:[%s1 + $0x58] sm:$0xff]
      %v276 = vld [vmem:[%s1 + $0x60] sm:$0xff]
      %v277 = vld [vmem:[%s1 + $0x68] sm:$0xff]
      %v278 = vld [vmem:[%s1 + $0x70] sm:$0xff]
      %v279 = vld [vmem:[%s1 + $0x78] sm:$0xff]
      %v280 = vld [vmem:[%s1 + $0x80] sm:$0xff]
      %v281 = vld [vmem:[%s1 + $0x88] sm:$0xff]
      %v282 = vld [vmem:[%s1 + $0x90] sm:$0xff]
      %v283 = vld [vmem:[%s1 + $0x98] sm:$0xff]
      %v284 = vld [vmem:[%s1 + $0xa0] sm:$0xff]
      %v285 = vld [vmem:[%s1 + $0xa8] sm:$0xff]
      %v286 = vld [vmem:[%s1 + $0xb0] sm:$0xff]
      %v287 = vld [vmem:[%s1 + $0xb8] sm:$0xff]
      %v288 = vld [vmem:[%s1 + $0xc0] sm:$0xff]
      %v289 = vld [vmem:[%s1 + $0xc8] sm:$0xff]
      %v290 = vld [vmem:[%s1 + $0xd0] sm:$0xff]
      %v291 = vld [vmem:[%s1 + $0xd8] sm:$0xff]
      %v292 = vld [vmem:[%s1 + $0xe0] sm:$0xff]
      %v293 = vld [vmem:[%s1 + $0xe8] sm:$0xff]
      %v294 = vld [vmem:[%s1 + $0xf0] sm:$0xff]
      %v295 = vld [vmem:[%s1 + $0xf8] sm:$0xff]
      %v296 = vld [vmem:[%s1 + $0x100] sm:$0xff]
      %v297 = vld [vmem:[%s1 + $0x108] sm:$0xff]
      %v298 = vld [vmem:[%s1 + $0x110] sm:$0xff]
      %v299 = vld [vmem:[%s1 + $0x118] sm:$0xff]
      %301 = vset.pattern.permute.xlu0 0
      %302 = vperm.xlu0 %301, %v264
      %v303 = vpop.permute.xlu0 %302
      %306 = vset.pattern.permute.xlu0 0
      %307 = vperm.xlu0 %306, %v265
      %v308 = vpop.permute.xlu0 %307
      %311 = vset.pattern.permute.xlu0 0
      %312 = vperm.xlu0 %311, %v266
      %v313 = vpop.permute.xlu0 %312
      %316 = vset.pattern.permute.xlu0 0
      %317 = vperm.xlu0 %316, %v267
      %v318 = vpop.permute.xlu0 %317
      %321 = vset.pattern.permute.xlu0 0
      %322 = vperm.xlu0 %321, %v268
      %v323 = vpop.permute.xlu0 %322
      %326 = vset.pattern.permute.xlu0 0
      %327 = vperm.xlu0 %326, %v269
      %v328 = vpop.permute.xlu0 %327
      %331 = vset.pattern.permute.xlu0 0
      %332 = vperm.xlu0 %331, %v270
      %v333 = vpop.permute.xlu0 %332
      %336 = vset.pattern.permute.xlu0 0
      %337 = vperm.xlu0 %336, %v271
      %v338 = vpop.permute.xlu0 %337
      %341 = vset.pattern.permute.xlu0 0
      %342 = vperm.xlu0 %341, %v272
      %v343 = vpop.permute.xlu0 %342
      %346 = vset.pattern.permute.xlu0 0
      %347 = vperm.xlu0 %346, %v273
      %v348 = vpop.permute.xlu0 %347
      %351 = vset.pattern.permute.xlu0 0
      %352 = vperm.xlu0 %351, %v274
      %v353 = vpop.permute.xlu0 %352
      %356 = vset.pattern.permute.xlu0 0
      %357 = vperm.xlu0 %356, %v275
      %v358 = vpop.permute.xlu0 %357
      %361 = vset.pattern.permute.xlu0 0
      %362 = vperm.xlu0 %361, %v276
      %v363 = vpop.permute.xlu0 %362
      %366 = vset.pattern.permute.xlu0 0
      %367 = vperm.xlu0 %366, %v277
      %v368 = vpop.permute.xlu0 %367
      %371 = vset.pattern.permute.xlu0 0
      %372 = vperm.xlu0 %371, %v278
      %v373 = vpop.permute.xlu0 %372
      %376 = vset.pattern.permute.xlu0 0
      %377 = vperm.xlu0 %376, %v279
      %v378 = vpop.permute.xlu0 %377
      %381 = vset.pattern.permute.xlu0 0
      %382 = vperm.xlu0 %381, %v280
      %v383 = vpop.permute.xlu0 %382
      %386 = vset.pattern.permute.xlu0 0
      %387 = vperm.xlu0 %386, %v281
      %v388 = vpop.permute.xlu0 %387
      %391 = vset.pattern.permute.xlu0 0
      %392 = vperm.xlu0 %391, %v282
      %v393 = vpop.permute.xlu0 %392
      %396 = vset.pattern.permute.xlu0 0
      %397 = vperm.xlu0 %396, %v283
      %v398 = vpop.permute.xlu0 %397
      %401 = vset.pattern.permute.xlu0 0
      %402 = vperm.xlu0 %401, %v284
      %v403 = vpop.permute.xlu0 %402
      %406 = vset.pattern.permute.xlu0 0
      %407 = vperm.xlu0 %406, %v285
      %v408 = vpop.permute.xlu0 %407
      %411 = vset.pattern.permute.xlu0 0
      %412 = vperm.xlu0 %411, %v286
      %v413 = vpop.permute.xlu0 %412
      %416 = vset.pattern.permute.xlu0 0
      %417 = vperm.xlu0 %416, %v287
      %v418 = vpop.permute.xlu0 %417
      %421 = vset.pattern.permute.xlu0 0
      %422 = vperm.xlu0 %421, %v288
      %v423 = vpop.permute.xlu0 %422
      %426 = vset.pattern.permute.xlu0 0
      %427 = vperm.xlu0 %426, %v289
      %v428 = vpop.permute.xlu0 %427
      %431 = vset.pattern.permute.xlu0 0
      %432 = vperm.xlu0 %431, %v290
      %v433 = vpop.permute.xlu0 %432
      %436 = vset.pattern.permute.xlu0 0
      %437 = vperm.xlu0 %436, %v291
      %v438 = vpop.permute.xlu0 %437
      %441 = vset.pattern.permute.xlu0 0
      %442 = vperm.xlu0 %441, %v292
      %v443 = vpop.permute.xlu0 %442
      %446 = vset.pattern.permute.xlu0 0
      %447 = vperm.xlu0 %446, %v293
      %v448 = vpop.permute.xlu0 %447
      %451 = vset.pattern.permute.xlu0 0
      %452 = vperm.xlu0 %451, %v294
      %v453 = vpop.permute.xlu0 %452
      %456 = vset.pattern.permute.xlu0 0
      %457 = vperm.xlu0 %456, %v295
      %v458 = vpop.permute.xlu0 %457
      %461 = vset.pattern.permute.xlu0 0
      %462 = vperm.xlu0 %461, %v296
      %v463 = vpop.permute.xlu0 %462
      %466 = vset.pattern.permute.xlu0 0
      %467 = vperm.xlu0 %466, %v297
      %v468 = vpop.permute.xlu0 %467
      %471 = vset.pattern.permute.xlu0 0
      %472 = vperm.xlu0 %471, %v298
      %v473 = vpop.permute.xlu0 %472
      %476 = vset.pattern.permute.xlu0 0
      %477 = vperm.xlu0 %476, %v299
      %v478 = vpop.permute.xlu0 %477
      %v480 = vld [vmem:[%s253] sm:$0xf]
      %v481 = vld [vmem:[%s253 + $0x4] sm:$0xf]
      %v482 = vld [vmem:[%s253 + $0x8] sm:$0xf]
      %v483 = vld [vmem:[%s253 + $0xc] sm:$0xf]
      %v484 = vld [vmem:[%s253 + $0x10] sm:$0xf]
      %v485 = vld [vmem:[%s253 + $0x14] sm:$0xf]
      %v486 = vld [vmem:[%s253 + $0x18] sm:$0xf]
      %v487 = vld [vmem:[%s253 + $0x1c] sm:$0xf]
      %v488 = vld [vmem:[%s253 + $0x20] sm:$0xf]
      %v489 = vld [vmem:[%s253 + $0x24] sm:$0xf]
      %v490 = vld [vmem:[%s253 + $0x28] sm:$0xf]
      %v491 = vld [vmem:[%s253 + $0x2c] sm:$0xf]
      %v492 = vld [vmem:[%s253 + $0x30] sm:$0xf]
      %v493 = vld [vmem:[%s253 + $0x34] sm:$0xf]
      %v494 = vld [vmem:[%s253 + $0x38] sm:$0xf]
      %v495 = vld [vmem:[%s253 + $0x3c] sm:$0xf]
      %v496 = vld [vmem:[%s253 + $0x40] sm:$0xf]
      %v497 = vld [vmem:[%s253 + $0x44] sm:$0xf]
      %v498 = vld [vmem:[%s253 + $0x48] sm:$0xf]
      %v499 = vld [vmem:[%s253 + $0x4c] sm:$0xf]
      %v500 = vld [vmem:[%s253 + $0x50] sm:$0xf]
      %v501 = vld [vmem:[%s253 + $0x54] sm:$0xf]
      %v502 = vld [vmem:[%s253 + $0x58] sm:$0xf]
      %v503 = vld [vmem:[%s253 + $0x5c] sm:$0xf]
      %v504 = vld [vmem:[%s253 + $0x60] sm:$0xf]
      %v505 = vld [vmem:[%s253 + $0x64] sm:$0xf]
      %v506 = vld [vmem:[%s253 + $0x68] sm:$0xf]
      %v507 = vld [vmem:[%s253 + $0x6c] sm:$0xf]
      %v508 = vld [vmem:[%s253 + $0x70] sm:$0xf]
      %v509 = vld [vmem:[%s253 + $0x74] sm:$0xf]
      %v510 = vld [vmem:[%s253 + $0x78] sm:$0xf]
      %v511 = vld [vmem:[%s253 + $0x7c] sm:$0xf]
      %v512 = vld [vmem:[%s253 + $0x80] sm:$0xf]
      %v513 = vld [vmem:[%s253 + $0x84] sm:$0xf]
      %v514 = vld [vmem:[%s253 + $0x88] sm:$0xf]
      %v515 = vld [vmem:[%s253 + $0x8c] sm:$0xf]
      %v516 = vunpack.c.l.bf16 %v480
      %v517 = vunpack.c.l.bf16 %v481
      %v518 = vunpack.c.l.bf16 %v482
      %v519 = vunpack.c.l.bf16 %v483
      %v520 = vunpack.c.l.bf16 %v484
      %v521 = vunpack.c.l.bf16 %v485
      %v522 = vunpack.c.l.bf16 %v486
      %v523 = vunpack.c.l.bf16 %v487
      %v524 = vunpack.c.l.bf16 %v488
      %v525 = vunpack.c.l.bf16 %v489
      %v526 = vunpack.c.l.bf16 %v490
      %v527 = vunpack.c.l.bf16 %v491
      %v528 = vunpack.c.l.bf16 %v492
      %v529 = vunpack.c.l.bf16 %v493
      %v530 = vunpack.c.l.bf16 %v494
      %v531 = vunpack.c.l.bf16 %v495
      %v532 = vunpack.c.l.bf16 %v496
      %v533 = vunpack.c.l.bf16 %v497
      %v534 = vunpack.c.l.bf16 %v498
      %v535 = vunpack.c.l.bf16 %v499
      %v536 = vunpack.c.l.bf16 %v500
      %v537 = vunpack.c.l.bf16 %v501
      %v538 = vunpack.c.l.bf16 %v502
      %v539 = vunpack.c.l.bf16 %v503
      %v540 = vunpack.c.l.bf16 %v504
      %v541 = vunpack.c.l.bf16 %v505
      %v542 = vunpack.c.l.bf16 %v506
      %v543 = vunpack.c.l.bf16 %v507
      %v544 = vunpack.c.l.bf16 %v508
      %v545 = vunpack.c.l.bf16 %v509
      %v546 = vunpack.c.l.bf16 %v510
      %v547 = vunpack.c.l.bf16 %v511
      %v548 = vunpack.c.l.bf16 %v512
      %v549 = vunpack.c.l.bf16 %v513
      %v550 = vunpack.c.l.bf16 %v514
      %v551 = vunpack.c.l.bf16 %v515
      %v552 = vld [vmem:[%s2] sm:$0x1]
      %v554 = vlaneseq
      %v555 = vshrl.u32 %v554, 7
      %v556 = vsub.s32 0, %v555
      %v557 = vrot.slane %v552, %v556
      %v559 = vmul.f32 %v516, %v557
      %v560 = vmul.f32 %v517, %v557
      %v561 = vmul.f32 %v518, %v557
      %v562 = vmul.f32 %v519, %v557
      %v563 = vmul.f32 %v520, %v557
      %v564 = vmul.f32 %v521, %v557
      %v565 = vmul.f32 %v522, %v557
      %v566 = vmul.f32 %v523, %v557
      %v567 = vmul.f32 %v524, %v557
      %v568 = vmul.f32 %v525, %v557
      %v569 = vmul.f32 %v526, %v557
      %v570 = vmul.f32 %v527, %v557
      %v571 = vmul.f32 %v528, %v557
      %v572 = vmul.f32 %v529, %v557
      %v573 = vmul.f32 %v530, %v557
      %v574 = vmul.f32 %v531, %v557
      %v575 = vmul.f32 %v532, %v557
      %v576 = vmul.f32 %v533, %v557
      %v577 = vmul.f32 %v534, %v557
      %v578 = vmul.f32 %v535, %v557
      %v579 = vmul.f32 %v536, %v557
      %v580 = vmul.f32 %v537, %v557
      %v581 = vmul.f32 %v538, %v557
      %v582 = vmul.f32 %v539, %v557
      %v583 = vmul.f32 %v540, %v557
      %v584 = vmul.f32 %v541, %v557
      %v585 = vmul.f32 %v542, %v557
      %v586 = vmul.f32 %v543, %v557
      %v587 = vmul.f32 %v544, %v557
      %v588 = vmul.f32 %v545, %v557
      %v589 = vmul.f32 %v546, %v557
      %v590 = vmul.f32 %v547, %v557
      %v591 = vmul.f32 %v548, %v557
      %v592 = vmul.f32 %v549, %v557
      %v593 = vmul.f32 %v550, %v557
      %v594 = vmul.f32 %v551, %v557
      %v595 = vld [vmem:[%s3] sm:$0x1]
      %v597 = vlaneseq
      %v598 = vshrl.u32 %v597, 7
      %v599 = vsub.s32 0, %v598
      %v600 = vrot.slane %v595, %v599
      %v602 = vadd.f32 %v559, %v600
      %v603 = vadd.f32 %v560, %v600
      %v604 = vadd.f32 %v561, %v600
      %v605 = vadd.f32 %v562, %v600
      %v606 = vadd.f32 %v563, %v600
      %v607 = vadd.f32 %v564, %v600
      %v608 = vadd.f32 %v565, %v600
      %v609 = vadd.f32 %v566, %v600
      %v610 = vadd.f32 %v567, %v600
      %v611 = vadd.f32 %v568, %v600
      %v612 = vadd.f32 %v569, %v600
      %v613 = vadd.f32 %v570, %v600
      %v614 = vadd.f32 %v571, %v600
      %v615 = vadd.f32 %v572, %v600
      %v616 = vadd.f32 %v573, %v600
      %v617 = vadd.f32 %v574, %v600
      %v618 = vadd.f32 %v575, %v600
      %v619 = vadd.f32 %v576, %v600
      %v620 = vadd.f32 %v577, %v600
      %v621 = vadd.f32 %v578, %v600
      %v622 = vadd.f32 %v579, %v600
      %v623 = vadd.f32 %v580, %v600
      %v624 = vadd.f32 %v581, %v600
      %v625 = vadd.f32 %v582, %v600
      %v626 = vadd.f32 %v583, %v600
      %v627 = vadd.f32 %v584, %v600
      %v628 = vadd.f32 %v585, %v600
      %v629 = vadd.f32 %v586, %v600
      %v630 = vadd.f32 %v587, %v600
      %v631 = vadd.f32 %v588, %v600
      %v632 = vadd.f32 %v589, %v600
      %v633 = vadd.f32 %v590, %v600
      %v634 = vadd.f32 %v591, %v600
      %v635 = vadd.f32 %v592, %v600
      %v636 = vadd.f32 %v593, %v600
      %v637 = vadd.f32 %v594, %v600
      %v638 = vmax.f32 %v602, 0.0
      %v639 = vmax.f32 %v603, 0.0
      %v640 = vmax.f32 %v604, 0.0
      %v641 = vmax.f32 %v605, 0.0
      %v642 = vmax.f32 %v606, 0.0
      %v643 = vmax.f32 %v607, 0.0
      %v644 = vmax.f32 %v608, 0.0
      %v645 = vmax.f32 %v609, 0.0
      %v646 = vmax.f32 %v610, 0.0
      %v647 = vmax.f32 %v611, 0.0
      %v648 = vmax.f32 %v612, 0.0
      %v649 = vmax.f32 %v613, 0.0
      %v650 = vmax.f32 %v614, 0.0
      %v651 = vmax.f32 %v615, 0.0
      %v652 = vmax.f32 %v616, 0.0
      %v653 = vmax.f32 %v617, 0.0
      %v654 = vmax.f32 %v618, 0.0
      %v655 = vmax.f32 %v619, 0.0
      %v656 = vmax.f32 %v620, 0.0
      %v657 = vmax.f32 %v621, 0.0
      %v658 = vmax.f32 %v622, 0.0
      %v659 = vmax.f32 %v623, 0.0
      %v660 = vmax.f32 %v624, 0.0
      %v661 = vmax.f32 %v625, 0.0
      %v662 = vmax.f32 %v626, 0.0
      %v663 = vmax.f32 %v627, 0.0
      %v664 = vmax.f32 %v628, 0.0
      %v665 = vmax.f32 %v629, 0.0
      %v666 = vmax.f32 %v630, 0.0
      %v667 = vmax.f32 %v631, 0.0
      %v668 = vmax.f32 %v632, 0.0
      %v669 = vmax.f32 %v633, 0.0
      %v670 = vmax.f32 %v634, 0.0
      %v671 = vmax.f32 %v635, 0.0
      %v672 = vmax.f32 %v636, 0.0
      %v673 = vmax.f32 %v637, 0.0
      %v674 = vmul.f32 %v638, %v303
      %v675 = vmul.f32 %v639, %v308
      %v676 = vmul.f32 %v640, %v313
      %v677 = vmul.f32 %v641, %v318
      %v678 = vmul.f32 %v642, %v323
      %v679 = vmul.f32 %v643, %v328
      %v680 = vmul.f32 %v644, %v333
      %v681 = vmul.f32 %v645, %v338
      %v682 = vmul.f32 %v646, %v343
      %v683 = vmul.f32 %v647, %v348
      %v684 = vmul.f32 %v648, %v353
      %v685 = vmul.f32 %v649, %v358
      %v686 = vmul.f32 %v650, %v363
      %v687 = vmul.f32 %v651, %v368
      %v688 = vmul.f32 %v652, %v373
      %v689 = vmul.f32 %v653, %v378
      %v690 = vmul.f32 %v654, %v383
      %v691 = vmul.f32 %v655, %v388
      %v692 = vmul.f32 %v656, %v393
      %v693 = vmul.f32 %v657, %v398
      %v694 = vmul.f32 %v658, %v403
      %v695 = vmul.f32 %v659, %v408
      %v696 = vmul.f32 %v660, %v413
      %v697 = vmul.f32 %v661, %v418
      %v698 = vmul.f32 %v662, %v423
      %v699 = vmul.f32 %v663, %v428
      %v700 = vmul.f32 %v664, %v433
      %v701 = vmul.f32 %v665, %v438
      %v702 = vmul.f32 %v666, %v443
      %v703 = vmul.f32 %v667, %v448
      %v704 = vmul.f32 %v668, %v453
      %v705 = vmul.f32 %v669, %v458
      %v706 = vmul.f32 %v670, %v463
      %v707 = vmul.f32 %v671, %v468
      %v708 = vmul.f32 %v672, %v473
      %v709 = vmul.f32 %v673, %v478
      %vm710 = vcmask 60416
      %711 = vst.msk [vmem:[#allocation2] sm:$0xf] %vm710, 0
      %712 = vst.msk [vmem:[#allocation2 + $0x4] sm:$0xf] %vm710, 0
      %vm713 = vcmask 58368
      %vm714 = vsmask.f32 1280
      %vm715 = vmand %vm713, %vm714
      %v716 = vld [vmem:[#allocation2 + $0x8] sm:$0x3]
      %v717 = vsel %vm715, 0, %v716
      %718 = vst [vmem:[#allocation2 + $0x8] sm:$0x3] %v717
      %vm719 = vcmask 60417
      %vm720 = vsmask.f32 7942
      %vm721 = vmand %vm719, %vm720
      %v722 = vld [vmem:[#allocation2 + $0x98] sm:$0xe]
      %v723 = vsel %vm721, 0, %v722
      %724 = vst [vmem:[#allocation2 + $0x98] sm:$0xe] %v723
      %725 = vst.msk [vmem:[#allocation2 + $0x9c] sm:$0xf] %vm710, 0
      %726 = vst.msk [vmem:[#allocation2 + $0xa0] sm:$0xf] %vm710, 0
      %727 = vst.msk [vmem:[#allocation2 + $0xa4] sm:$0xf] %vm710, 0
      %vm728 = vcmask 59392
      %729 = vst.msk [vmem:[#allocation2 + $0xa8] sm:$0x7] %vm728, 0
      %v730 = vpack.c.bf16 %v675, %v674
      %v731 = vpack.c.bf16 %v677, %v676
      %v732 = vpack.c.bf16 %v679, %v678
      %v733 = vpack.c.bf16 %v681, %v680
      %v734 = vpack.c.bf16 %v683, %v682
      %v735 = vpack.c.bf16 %v685, %v684
      %v736 = vpack.c.bf16 %v687, %v686
      %v737 = vpack.c.bf16 %v689, %v688
      %v738 = vpack.c.bf16 %v691, %v690
      %v739 = vpack.c.bf16 %v693, %v692
      %v740 = vpack.c.bf16 %v695, %v694
      %v741 = vpack.c.bf16 %v697, %v696
      %v742 = vpack.c.bf16 %v699, %v698
      %v743 = vpack.c.bf16 %v701, %v700
      %v744 = vpack.c.bf16 %v703, %v702
      %v745 = vpack.c.bf16 %v705, %v704
      %v746 = vpack.c.bf16 %v707, %v706
      %v747 = vpack.c.bf16 %v709, %v708
      %v766 = vunpack.c.l.b16 %v730
      %v767 = vunpack.c.h.b16 %v730
      %v768 = vunpack.c.l.b16 %v731
      %v769 = vunpack.c.h.b16 %v731
      %v770 = vunpack.c.l.b16 %v732
      %v771 = vunpack.c.h.b16 %v732
      %v772 = vunpack.c.l.b16 %v733
      %v773 = vunpack.c.h.b16 %v733
      %v774 = vunpack.c.l.b16 %v734
      %v775 = vunpack.c.h.b16 %v734
      %v776 = vunpack.c.l.b16 %v735
      %v777 = vunpack.c.h.b16 %v735
      %v778 = vunpack.c.l.b16 %v736
      %v779 = vunpack.c.h.b16 %v736
      %v780 = vunpack.c.l.b16 %v737
      %v781 = vunpack.c.h.b16 %v737
      %v782 = vunpack.c.l.b16 %v738
      %v783 = vunpack.c.h.b16 %v738
      %v784 = vunpack.c.l.b16 %v739
      %v785 = vunpack.c.h.b16 %v739
      %v786 = vunpack.c.l.b16 %v740
      %v787 = vunpack.c.h.b16 %v740
      %v788 = vunpack.c.l.b16 %v741
      %v789 = vunpack.c.h.b16 %v741
      %v790 = vunpack.c.l.b16 %v742
      %v791 = vunpack.c.h.b16 %v742
      %v792 = vunpack.c.l.b16 %v743
      %v793 = vunpack.c.h.b16 %v743
      %v794 = vunpack.c.l.b16 %v744
      %v795 = vunpack.c.h.b16 %v744
      %v796 = vunpack.c.l.b16 %v745
      %v797 = vunpack.c.h.b16 %v745
      %v798 = vunpack.c.l.b16 %v746
      %v799 = vunpack.c.h.b16 %v746
      %v800 = vunpack.c.l.b16 %v747
      %v801 = vunpack.c.h.b16 %v747
      %v802 = vpack.c.b16 %v766, %v766
      %v803 = vpack.c.b16 %v767, %v767
      %v804 = vpack.c.b16 %v768, %v768
      %v805 = vpack.c.b16 %v769, %v769
      %v806 = vpack.c.b16 %v770, %v770
      %v807 = vpack.c.b16 %v771, %v771
      %v808 = vpack.c.b16 %v772, %v772
      %v809 = vpack.c.b16 %v773, %v773
      %v810 = vpack.c.b16 %v774, %v774
      %v811 = vpack.c.b16 %v775, %v775
      %v812 = vpack.c.b16 %v776, %v776
      %v813 = vpack.c.b16 %v777, %v777
      %v814 = vpack.c.b16 %v778, %v778
      %v815 = vpack.c.b16 %v779, %v779
      %v816 = vpack.c.b16 %v780, %v780
      %v817 = vpack.c.b16 %v781, %v781
      %v818 = vpack.c.b16 %v782, %v782
      %v819 = vpack.c.b16 %v783, %v783
      %v820 = vpack.c.b16 %v784, %v784
      %v821 = vpack.c.b16 %v785, %v785
      %v822 = vpack.c.b16 %v786, %v786
      %v823 = vpack.c.b16 %v787, %v787
      %v824 = vpack.c.b16 %v788, %v788
      %v825 = vpack.c.b16 %v789, %v789
      %v826 = vpack.c.b16 %v790, %v790
      %v827 = vpack.c.b16 %v791, %v791
      %v828 = vpack.c.b16 %v792, %v792
      %v829 = vpack.c.b16 %v793, %v793
      %v830 = vpack.c.b16 %v794, %v794
      %v831 = vpack.c.b16 %v795, %v795
      %v832 = vpack.c.b16 %v796, %v796
      %v833 = vpack.c.b16 %v797, %v797
      %v834 = vpack.c.b16 %v798, %v798
      %v835 = vpack.c.b16 %v799, %v799
      %v836 = vpack.c.b16 %v800, %v800
      %v837 = vpack.c.b16 %v801, %v801
      %vm838 = vsmask.f32 5392
      %vm839 = vmor %vm714, %vm838
      %v841 = vshrl.u32 %v802, 16
      %v843 = vrot.slane %v841, 6
      %v844 = vshll.u32 %v802, 16
      %v846 = vrot.slane %v844, 7
      %v847 = vor.u32 %v843, %v846
      %v848 = vrot.slane %v847, 4
      %v850 = vshrl.u32 %v803, 16
      %v852 = vrot.slane %v850, 6
      %v853 = vshll.u32 %v803, 16
      %v855 = vrot.slane %v853, 7
      %v856 = vor.u32 %v852, %v855
      %v857 = vsel %vm839, %v848, %v856
      %v858 = vrot.slane %v856, 4
      %v860 = vshrl.u32 %v804, 16
      %v862 = vrot.slane %v860, 6
      %v863 = vshll.u32 %v804, 16
      %v865 = vrot.slane %v863, 7
      %v866 = vor.u32 %v862, %v865
      %v867 = vsel %vm839, %v858, %v866
      %v868 = vrot.slane %v866, 4
      %v870 = vshrl.u32 %v805, 16
      %v872 = vrot.slane %v870, 6
      %v873 = vshll.u32 %v805, 16
      %v875 = vrot.slane %v873, 7
      %v876 = vor.u32 %v872, %v875
      %v877 = vsel %vm839, %v868, %v876
      %v878 = vrot.slane %v876, 4
      %v880 = vshrl.u32 %v806, 16
      %v882 = vrot.slane %v880, 6
      %v883 = vshll.u32 %v806, 16
      %v885 = vrot.slane %v883, 7
      %v886 = vor.u32 %v882, %v885
      %v887 = vsel %vm839, %v878, %v886
      %v888 = vrot.slane %v886, 4
      %v890 = vshrl.u32 %v807, 16
      %v892 = vrot.slane %v890, 6
      %v893 = vshll.u32 %v807, 16
      %v895 = vrot.slane %v893, 7
      %v896 = vor.u32 %v892, %v895
      %v897 = vsel %vm839, %v888, %v896
      %v898 = vrot.slane %v896, 4
      %v900 = vshrl.u32 %v808, 16
      %v902 = vrot.slane %v900, 6
      %v903 = vshll.u32 %v808, 16
      %v905 = vrot.slane %v903, 7
      %v906 = vor.u32 %v902, %v905
      %v907 = vsel %vm839, %v898, %v906
      %v908 = vrot.slane %v906, 4
      %v910 = vshrl.u32 %v809, 16
      %v912 = vrot.slane %v910, 6
      %v913 = vshll.u32 %v809, 16
      %v915 = vrot.slane %v913, 7
      %v916 = vor.u32 %v912, %v915
      %v917 = vsel %vm839, %v908, %v916
      %v918 = vrot.slane %v916, 4
      %v920 = vshrl.u32 %v810, 16
      %v922 = vrot.slane %v920, 6
      %v923 = vshll.u32 %v810, 16
      %v925 = vrot.slane %v923, 7
      %v926 = vor.u32 %v922, %v925
      %v927 = vsel %vm839, %v918, %v926
      %v928 = vrot.slane %v926, 4
      %v930 = vshrl.u32 %v811, 16
      %v932 = vrot.slane %v930, 6
      %v933 = vshll.u32 %v811, 16
      %v935 = vrot.slane %v933, 7
      %v936 = vor.u32 %v932, %v935
      %v937 = vsel %vm839, %v928, %v936
      %v938 = vrot.slane %v936, 4
      %v940 = vshrl.u32 %v812, 16
      %v942 = vrot.slane %v940, 6
      %v943 = vshll.u32 %v812, 16
      %v945 = vrot.slane %v943, 7
      %v946 = vor.u32 %v942, %v945
      %v947 = vsel %vm839, %v938, %v946
      %v948 = vrot.slane %v946, 4
      %v950 = vshrl.u32 %v813, 16
      %v952 = vrot.slane %v950, 6
      %v953 = vshll.u32 %v813, 16
      %v955 = vrot.slane %v953, 7
      %v956 = vor.u32 %v952, %v955
      %v957 = vsel %vm839, %v948, %v956
      %v958 = vrot.slane %v956, 4
      %v960 = vshrl.u32 %v814, 16
      %v962 = vrot.slane %v960, 6
      %v963 = vshll.u32 %v814, 16
      %v965 = vrot.slane %v963, 7
      %v966 = vor.u32 %v962, %v965
      %v967 = vsel %vm839, %v958, %v966
      %v968 = vrot.slane %v966, 4
      %v970 = vshrl.u32 %v815, 16
      %v972 = vrot.slane %v970, 6
      %v973 = vshll.u32 %v815, 16
      %v975 = vrot.slane %v973, 7
      %v976 = vor.u32 %v972, %v975
      %v977 = vsel %vm839, %v968, %v976
      %v978 = vrot.slane %v976, 4
      %v980 = vshrl.u32 %v816, 16
      %v982 = vrot.slane %v980, 6
      %v983 = vshll.u32 %v816, 16
      %v985 = vrot.slane %v983, 7
      %v986 = vor.u32 %v982, %v985
      %v987 = vsel %vm839, %v978, %v986
      %v988 = vrot.slane %v986, 4
      %v990 = vshrl.u32 %v817, 16
      %v992 = vrot.slane %v990, 6
      %v993 = vshll.u32 %v817, 16
      %v995 = vrot.slane %v993, 7
      %v996 = vor.u32 %v992, %v995
      %v997 = vsel %vm839, %v988, %v996
      %v998 = vrot.slane %v996, 4
      %v1000 = vshrl.u32 %v818, 16
      %v1002 = vrot.slane %v1000, 6
      %v1003 = vshll.u32 %v818, 16
      %v1005 = vrot.slane %v1003, 7
      %v1006 = vor.u32 %v1002, %v1005
      %v1007 = vsel %vm839, %v998, %v1006
      %v1008 = vrot.slane %v1006, 4
      %v1010 = vshrl.u32 %v819, 16
      %v1012 = vrot.slane %v1010, 6
      %v1013 = vshll.u32 %v819, 16
      %v1015 = vrot.slane %v1013, 7
      %v1016 = vor.u32 %v1012, %v1015
      %v1017 = vsel %vm839, %v1008, %v1016
      %v1018 = vrot.slane %v1016, 4
      %v1020 = vshrl.u32 %v820, 16
      %v1022 = vrot.slane %v1020, 6
      %v1023 = vshll.u32 %v820, 16
      %v1025 = vrot.slane %v1023, 7
      %v1026 = vor.u32 %v1022, %v1025
      %v1027 = vsel %vm839, %v1018, %v1026
      %v1028 = vrot.slane %v1026, 4
      %v1030 = vshrl.u32 %v821, 16
      %v1032 = vrot.slane %v1030, 6
      %v1033 = vshll.u32 %v821, 16
      %v1035 = vrot.slane %v1033, 7
      %v1036 = vor.u32 %v1032, %v1035
      %v1037 = vsel %vm839, %v1028, %v1036
      %v1038 = vrot.slane %v1036, 4
      %v1040 = vshrl.u32 %v822, 16
      %v1042 = vrot.slane %v1040, 6
      %v1043 = vshll.u32 %v822, 16
      %v1045 = vrot.slane %v1043, 7
      %v1046 = vor.u32 %v1042, %v1045
      %v1047 = vsel %vm839, %v1038, %v1046
      %v1048 = vrot.slane %v1046, 4
      %v1050 = vshrl.u32 %v823, 16
      %v1052 = vrot.slane %v1050, 6
      %v1053 = vshll.u32 %v823, 16
      %v1055 = vrot.slane %v1053, 7
      %v1056 = vor.u32 %v1052, %v1055
      %v1057 = vsel %vm839, %v1048, %v1056
      %v1058 = vrot.slane %v1056, 4
      %v1060 = vshrl.u32 %v824, 16
      %v1062 = vrot.slane %v1060, 6
      %v1063 = vshll.u32 %v824, 16
      %v1065 = vrot.slane %v1063, 7
      %v1066 = vor.u32 %v1062, %v1065
      %v1067 = vsel %vm839, %v1058, %v1066
      %v1068 = vrot.slane %v1066, 4
      %v1070 = vshrl.u32 %v825, 16
      %v1072 = vrot.slane %v1070, 6
      %v1073 = vshll.u32 %v825, 16
      %v1075 = vrot.slane %v1073, 7
      %v1076 = vor.u32 %v1072, %v1075
      %v1077 = vsel %vm839, %v1068, %v1076
      %v1078 = vrot.slane %v1076, 4
      %v1080 = vshrl.u32 %v826, 16
      %v1082 = vrot.slane %v1080, 6
      %v1083 = vshll.u32 %v826, 16
      %v1085 = vrot.slane %v1083, 7
      %v1086 = vor.u32 %v1082, %v1085
      %v1087 = vsel %vm839, %v1078, %v1086
      %v1088 = vrot.slane %v1086, 4
      %v1090 = vshrl.u32 %v827, 16
      %v1092 = vrot.slane %v1090, 6
      %v1093 = vshll.u32 %v827, 16
      %v1095 = vrot.slane %v1093, 7
      %v1096 = vor.u32 %v1092, %v1095
      %v1097 = vsel %vm839, %v1088, %v1096
      %v1098 = vrot.slane %v1096, 4
      %v1100 = vshrl.u32 %v828, 16
      %v1102 = vrot.slane %v1100, 6
      %v1103 = vshll.u32 %v828, 16
      %v1105 = vrot.slane %v1103, 7
      %v1106 = vor.u32 %v1102, %v1105
      %v1107 = vsel %vm839, %v1098, %v1106
      %v1108 = vrot.slane %v1106, 4
      %v1110 = vshrl.u32 %v829, 16
      %v1112 = vrot.slane %v1110, 6
      %v1113 = vshll.u32 %v829, 16
      %v1115 = vrot.slane %v1113, 7
      %v1116 = vor.u32 %v1112, %v1115
      %v1117 = vsel %vm839, %v1108, %v1116
      %v1118 = vrot.slane %v1116, 4
      %v1120 = vshrl.u32 %v830, 16
      %v1122 = vrot.slane %v1120, 6
      %v1123 = vshll.u32 %v830, 16
      %v1125 = vrot.slane %v1123, 7
      %v1126 = vor.u32 %v1122, %v1125
      %v1127 = vsel %vm839, %v1118, %v1126
      %v1128 = vrot.slane %v1126, 4
      %v1130 = vshrl.u32 %v831, 16
      %v1132 = vrot.slane %v1130, 6
      %v1133 = vshll.u32 %v831, 16
      %v1135 = vrot.slane %v1133, 7
      %v1136 = vor.u32 %v1132, %v1135
      %v1137 = vsel %vm839, %v1128, %v1136
      %v1138 = vrot.slane %v1136, 4
      %v1140 = vshrl.u32 %v832, 16
      %v1142 = vrot.slane %v1140, 6
      %v1143 = vshll.u32 %v832, 16
      %v1145 = vrot.slane %v1143, 7
      %v1146 = vor.u32 %v1142, %v1145
      %v1147 = vsel %vm839, %v1138, %v1146
      %v1148 = vrot.slane %v1146, 4
      %v1150 = vshrl.u32 %v833, 16
      %v1152 = vrot.slane %v1150, 6
      %v1153 = vshll.u32 %v833, 16
      %v1155 = vrot.slane %v1153, 7
      %v1156 = vor.u32 %v1152, %v1155
      %v1157 = vsel %vm839, %v1148, %v1156
      %v1158 = vrot.slane %v1156, 4
      %v1160 = vshrl.u32 %v834, 16
      %v1162 = vrot.slane %v1160, 6
      %v1163 = vshll.u32 %v834, 16
      %v1165 = vrot.slane %v1163, 7
      %v1166 = vor.u32 %v1162, %v1165
      %v1167 = vsel %vm839, %v1158, %v1166
      %v1168 = vrot.slane %v1166, 4
      %v1170 = vshrl.u32 %v835, 16
      %v1172 = vrot.slane %v1170, 6
      %v1173 = vshll.u32 %v835, 16
      %v1175 = vrot.slane %v1173, 7
      %v1176 = vor.u32 %v1172, %v1175
      %v1177 = vsel %vm839, %v1168, %v1176
      %v1178 = vrot.slane %v1176, 4
      %v1180 = vshrl.u32 %v836, 16
      %v1182 = vrot.slane %v1180, 6
      %v1183 = vshll.u32 %v836, 16
      %v1185 = vrot.slane %v1183, 7
      %v1186 = vor.u32 %v1182, %v1185
      %v1187 = vsel %vm839, %v1178, %v1186
      %v1188 = vrot.slane %v1186, 4
      %v1190 = vshrl.u32 %v837, 16
      %v1192 = vrot.slane %v1190, 6
      %v1193 = vshll.u32 %v837, 16
      %v1195 = vrot.slane %v1193, 7
      %v1196 = vor.u32 %v1192, %v1195
      %v1197 = vsel %vm839, %v1188, %v1196
      %v1198 = vrot.slane %v1196, 4
      %v1236 = vld [vmem:[#allocation2 + $0x8] sm:$0xe]
      %v1237 = vsel %vm721, %v847, %v1236
      %1238 = vst [vmem:[#allocation2 + $0x8] sm:$0xe] %v1237
      %1239 = vst.msk [vmem:[#allocation2 + $0xc] sm:$0xf] %vm710, %v857
      %1240 = vst.msk [vmem:[#allocation2 + $0x10] sm:$0xf] %vm710, %v867
      %1241 = vst.msk [vmem:[#allocation2 + $0x14] sm:$0xf] %vm710, %v877
      %1242 = vst.msk [vmem:[#allocation2 + $0x18] sm:$0xf] %vm710, %v887
      %1243 = vst.msk [vmem:[#allocation2 + $0x1c] sm:$0xf] %vm710, %v897
      %1244 = vst.msk [vmem:[#allocation2 + $0x20] sm:$0xf] %vm710, %v907
      %1245 = vst.msk [vmem:[#allocation2 + $0x24] sm:$0xf] %vm710, %v917
      %1246 = vst.msk [vmem:[#allocation2 + $0x28] sm:$0xf] %vm710, %v927
      %1247 = vst.msk [vmem:[#allocation2 + $0x2c] sm:$0xf] %vm710, %v937
      %1248 = vst.msk [vmem:[#allocation2 + $0x30] sm:$0xf] %vm710, %v947
      %1249 = vst.msk [vmem:[#allocation2 + $0x34] sm:$0xf] %vm710, %v957
      %1250 = vst.msk [vmem:[#allocation2 + $0x38] sm:$0xf] %vm710, %v967
      %1251 = vst.msk [vmem:[#allocation2 + $0x3c] sm:$0xf] %vm710, %v977
      %1252 = vst.msk [vmem:[#allocation2 + $0x40] sm:$0xf] %vm710, %v987
      %1253 = vst.msk [vmem:[#allocation2 + $0x44] sm:$0xf] %vm710, %v997
      %1254 = vst.msk [vmem:[#allocation2 + $0x48] sm:$0xf] %vm710, %v1007
      %1255 = vst.msk [vmem:[#allocation2 + $0x4c] sm:$0xf] %vm710, %v1017
      %1256 = vst.msk [vmem:[#allocation2 + $0x50] sm:$0xf] %vm710, %v1027
      %1257 = vst.msk [vmem:[#allocation2 + $0x54] sm:$0xf] %vm710, %v1037
      %1258 = vst.msk [vmem:[#allocation2 + $0x58] sm:$0xf] %vm710, %v1047
      %1259 = vst.msk [vmem:[#allocation2 + $0x5c] sm:$0xf] %vm710, %v1057
      %1260 = vst.msk [vmem:[#allocation2 + $0x60] sm:$0xf] %vm710, %v1067
      %1261 = vst.msk [vmem:[#allocation2 + $0x64] sm:$0xf] %vm710, %v1077
      %1262 = vst.msk [vmem:[#allocation2 + $0x68] sm:$0xf] %vm710, %v1087
      %1263 = vst.msk [vmem:[#allocation2 + $0x6c] sm:$0xf] %vm710, %v1097
      %1264 = vst.msk [vmem:[#allocation2 + $0x70] sm:$0xf] %vm710, %v1107
      %1265 = vst.msk [vmem:[#allocation2 + $0x74] sm:$0xf] %vm710, %v1117
      %1266 = vst.msk [vmem:[#allocation2 + $0x78] sm:$0xf] %vm710, %v1127
      %1267 = vst.msk [vmem:[#allocation2 + $0x7c] sm:$0xf] %vm710, %v1137
      %1268 = vst.msk [vmem:[#allocation2 + $0x80] sm:$0xf] %vm710, %v1147
      %1269 = vst.msk [vmem:[#allocation2 + $0x84] sm:$0xf] %vm710, %v1157
      %1270 = vst.msk [vmem:[#allocation2 + $0x88] sm:$0xf] %vm710, %v1167
      %1271 = vst.msk [vmem:[#allocation2 + $0x8c] sm:$0xf] %vm710, %v1177
      %1272 = vst.msk [vmem:[#allocation2 + $0x90] sm:$0xf] %vm710, %v1187
      %1273 = vst.msk [vmem:[#allocation2 + $0x94] sm:$0xf] %vm710, %v1197
      %v1274 = vld [vmem:[#allocation2 + $0x98] sm:$0x3]
      %v1275 = vsel %vm715, %v1198, %v1274
      %1276 = vst [vmem:[#allocation2 + $0x98] sm:$0x3] %v1275
      %v1277 = vld [vmem:[#allocation2] sm:$0xf]
      %v1278 = vld [vmem:[#allocation2 + $0x4] sm:$0xf]
      %v1279 = vld [vmem:[#allocation2 + $0x8] sm:$0xf]
      %v1280 = vld [vmem:[#allocation2 + $0xc] sm:$0xf]
      %v1281 = vld [vmem:[#allocation2 + $0x10] sm:$0xf]
      %v1282 = vld [vmem:[#allocation2 + $0x14] sm:$0xf]
      %v1283 = vld [vmem:[#allocation2 + $0x18] sm:$0xf]
      %v1284 = vld [vmem:[#allocation2 + $0x1c] sm:$0xf]
      %v1285 = vld [vmem:[#allocation2 + $0x20] sm:$0xf]
      %v1286 = vld [vmem:[#allocation2 + $0x24] sm:$0xf]
      %v1287 = vld [vmem:[#allocation2 + $0x28] sm:$0xf]
      %v1288 = vld [vmem:[#allocation2 + $0x2c] sm:$0xf]
      %v1289 = vld [vmem:[#allocation2 + $0x30] sm:$0xf]
      %v1290 = vld [vmem:[#allocation2 + $0x34] sm:$0xf]
      %v1291 = vld [vmem:[#allocation2 + $0x38] sm:$0xf]
      %v1292 = vld [vmem:[#allocation2 + $0x3c] sm:$0xf]
      %v1293 = vld [vmem:[#allocation2 + $0x40] sm:$0xf]
      %v1294 = vld [vmem:[#allocation2 + $0x44] sm:$0xf]
      %v1295 = vld [vmem:[#allocation2 + $0x48] sm:$0xf]
      %v1296 = vld [vmem:[#allocation2 + $0x4c] sm:$0xf]
      %v1297 = vld [vmem:[#allocation2 + $0x50] sm:$0xf]
      %v1298 = vld [vmem:[#allocation2 + $0x54] sm:$0xf]
      %v1299 = vld [vmem:[#allocation2 + $0x58] sm:$0xf]
      %v1300 = vld [vmem:[#allocation2 + $0x5c] sm:$0xf]
      %v1301 = vld [vmem:[#allocation2 + $0x60] sm:$0xf]
      %v1302 = vld [vmem:[#allocation2 + $0x64] sm:$0xf]
      %v1303 = vld [vmem:[#allocation2 + $0x68] sm:$0xf]
      %v1304 = vld [vmem:[#allocation2 + $0x6c] sm:$0xf]
      %v1305 = vld [vmem:[#allocation2 + $0x70] sm:$0xf]
      %v1306 = vld [vmem:[#allocation2 + $0x74] sm:$0xf]
      %v1307 = vld [vmem:[#allocation2 + $0x78] sm:$0xf]
      %v1308 = vld [vmem:[#allocation2 + $0x7c] sm:$0xf]
      %v1309 = vld [vmem:[#allocation2 + $0x80] sm:$0xf]
      %v1310 = vld [vmem:[#allocation2 + $0x84] sm:$0xf]
      %v1311 = vld [vmem:[#allocation2 + $0x88] sm:$0xf]
      %v1312 = vld [vmem:[#allocation2 + $0x8c] sm:$0xf]
      %v1313 = vld [vmem:[%s4] sm:$0xf]
      %v1314 = vld [vmem:[#allocation2 + $0x90] sm:$0x1]
      %s1315 = scalar_lea.vmem %s4, 4
      %v1316 = vld [vmem:[%s1315] sm:$0xf]
      %v1354 = vunpack.c.l.b16 %v1277
      %v1355 = vunpack.c.l.b16 %v1278
      %v1356 = vunpack.c.l.b16 %v1279
      %v1357 = vunpack.c.l.b16 %v1280
      %v1358 = vunpack.c.l.b16 %v1281
      %v1359 = vunpack.c.l.b16 %v1282
      %v1360 = vunpack.c.l.b16 %v1283
      %v1361 = vunpack.c.l.b16 %v1284
      %v1362 = vunpack.c.l.b16 %v1285
      %v1363 = vunpack.c.l.b16 %v1286
      %v1364 = vunpack.c.l.b16 %v1287
      %v1365 = vunpack.c.l.b16 %v1288
      %v1366 = vunpack.c.l.b16 %v1289
      %v1367 = vunpack.c.l.b16 %v1290
      %v1368 = vunpack.c.l.b16 %v1291
      %v1369 = vunpack.c.l.b16 %v1292
      %v1370 = vunpack.c.l.b16 %v1293
      %v1371 = vunpack.c.l.b16 %v1294
      %v1372 = vunpack.c.l.b16 %v1295
      %v1373 = vunpack.c.l.b16 %v1296
      %v1374 = vunpack.c.l.b16 %v1297
      %v1375 = vunpack.c.l.b16 %v1298
      %v1376 = vunpack.c.l.b16 %v1299
      %v1377 = vunpack.c.l.b16 %v1300
      %v1378 = vunpack.c.l.b16 %v1301
      %v1379 = vunpack.c.l.b16 %v1302
      %v1380 = vunpack.c.l.b16 %v1303
      %v1381 = vunpack.c.l.b16 %v1304
      %v1382 = vunpack.c.l.b16 %v1305
      %v1383 = vunpack.c.l.b16 %v1306
      %v1384 = vunpack.c.l.b16 %v1307
      %v1385 = vunpack.c.l.b16 %v1308
      %v1386 = vunpack.c.l.b16 %v1309
      %v1387 = vunpack.c.l.b16 %v1310
      %v1388 = vunpack.c.l.b16 %v1311
      %v1389 = vunpack.c.l.b16 %v1312
      %v1390 = vunpack.c.l.b16 %v1314
      %v1391 = vpack.c.b16 %v1355, %v1354
      %v1392 = vpack.c.b16 %v1357, %v1356
      %v1393 = vpack.c.b16 %v1359, %v1358
      %v1394 = vpack.c.b16 %v1361, %v1360
      %v1395 = vpack.c.b16 %v1363, %v1362
      %v1396 = vpack.c.b16 %v1365, %v1364
      %v1397 = vpack.c.b16 %v1367, %v1366
      %v1398 = vpack.c.b16 %v1369, %v1368
      %v1399 = vpack.c.b16 %v1371, %v1370
      %v1400 = vpack.c.b16 %v1373, %v1372
      %v1401 = vpack.c.b16 %v1375, %v1374
      %v1402 = vpack.c.b16 %v1377, %v1376
      %v1403 = vpack.c.b16 %v1379, %v1378
      %v1404 = vpack.c.b16 %v1381, %v1380
      %v1405 = vpack.c.b16 %v1383, %v1382
      %v1406 = vpack.c.b16 %v1385, %v1384
      %v1407 = vpack.c.b16 %v1387, %v1386
      %v1408 = vpack.c.b16 %v1389, %v1388
      %v1409 = vpack.c.b16 %v1390, %v1390
      %vm1410 = vsmask.f32 7424
      %v1412 = vshrl.u32 %v1391, 16
      %v1414 = vshll.u32 %v1391, 16
      %v1416 = vrot.slane %v1414, 1
      %v1417 = vor.u32 %v1412, %v1416
      %v1419 = vshll.u32 %v1392, 16
      %v1421 = vrot.slane %v1419, 1
      %v1422 = vsel %vm1410, %v1417, %v1421
      %v1423 = vshrl.u32 %v1392, 16
      %v1425 = vor.u32 %v1423, %v1421
      %v1427 = vshll.u32 %v1393, 16
      %v1429 = vrot.slane %v1427, 1
      %v1430 = vsel %vm1410, %v1425, %v1429
      %v1431 = vshrl.u32 %v1393, 16
      %v1433 = vor.u32 %v1431, %v1429
      %v1435 = vshll.u32 %v1394, 16
      %v1437 = vrot.slane %v1435, 1
      %v1438 = vsel %vm1410, %v1433, %v1437
      %v1439 = vshrl.u32 %v1394, 16
      %v1441 = vor.u32 %v1439, %v1437
      %v1443 = vshll.u32 %v1395, 16
      %v1445 = vrot.slane %v1443, 1
      %v1446 = vsel %vm1410, %v1441, %v1445
      %v1447 = vshrl.u32 %v1395, 16
      %v1449 = vor.u32 %v1447, %v1445
      %v1451 = vshll.u32 %v1396, 16
      %v1453 = vrot.slane %v1451, 1
      %v1454 = vsel %vm1410, %v1449, %v1453
      %v1455 = vshrl.u32 %v1396, 16
      %v1457 = vor.u32 %v1455, %v1453
      %v1459 = vshll.u32 %v1397, 16
      %v1461 = vrot.slane %v1459, 1
      %v1462 = vsel %vm1410, %v1457, %v1461
      %v1463 = vshrl.u32 %v1397, 16
      %v1465 = vor.u32 %v1463, %v1461
      %v1467 = vshll.u32 %v1398, 16
      %v1469 = vrot.slane %v1467, 1
      %v1470 = vsel %vm1410, %v1465, %v1469
      %v1471 = vshrl.u32 %v1398, 16
      %v1473 = vor.u32 %v1471, %v1469
      %v1475 = vshll.u32 %v1399, 16
      %v1477 = vrot.slane %v1475, 1
      %v1478 = vsel %vm1410, %v1473, %v1477
      %v1479 = vshrl.u32 %v1399, 16
      %v1481 = vor.u32 %v1479, %v1477
      %v1483 = vshll.u32 %v1400, 16
      %v1485 = vrot.slane %v1483, 1
      %v1486 = vsel %vm1410, %v1481, %v1485
      %v1487 = vshrl.u32 %v1400, 16
      %v1489 = vor.u32 %v1487, %v1485
      %v1491 = vshll.u32 %v1401, 16
      %v1493 = vrot.slane %v1491, 1
      %v1494 = vsel %vm1410, %v1489, %v1493
      %v1495 = vshrl.u32 %v1401, 16
      %v1497 = vor.u32 %v1495, %v1493
      %v1499 = vshll.u32 %v1402, 16
      %v1501 = vrot.slane %v1499, 1
      %v1502 = vsel %vm1410, %v1497, %v1501
      %v1503 = vshrl.u32 %v1402, 16
      %v1505 = vor.u32 %v1503, %v1501
      %v1507 = vshll.u32 %v1403, 16
      %v1509 = vrot.slane %v1507, 1
      %v1510 = vsel %vm1410, %v1505, %v1509
      %v1511 = vshrl.u32 %v1403, 16
      %v1513 = vor.u32 %v1511, %v1509
      %v1515 = vshll.u32 %v1404, 16
      %v1517 = vrot.slane %v1515, 1
      %v1518 = vsel %vm1410, %v1513, %v1517
      %v1519 = vshrl.u32 %v1404, 16
      %v1521 = vor.u32 %v1519, %v1517
      %v1523 = vshll.u32 %v1405, 16
      %v1525 = vrot.slane %v1523, 1
      %v1526 = vsel %vm1410, %v1521, %v1525
      %v1527 = vshrl.u32 %v1405, 16
      %v1529 = vor.u32 %v1527, %v1525
      %v1531 = vshll.u32 %v1406, 16
      %v1533 = vrot.slane %v1531, 1
      %v1534 = vsel %vm1410, %v1529, %v1533
      %v1535 = vshrl.u32 %v1406, 16
      %v1537 = vor.u32 %v1535, %v1533
      %v1539 = vshll.u32 %v1407, 16
      %v1541 = vrot.slane %v1539, 1
      %v1542 = vsel %vm1410, %v1537, %v1541
      %v1543 = vshrl.u32 %v1407, 16
      %v1545 = vor.u32 %v1543, %v1541
      %v1547 = vshll.u32 %v1408, 16
      %v1549 = vrot.slane %v1547, 1
      %v1550 = vsel %vm1410, %v1545, %v1549
      %v1551 = vshrl.u32 %v1408, 16
      %v1553 = vor.u32 %v1551, %v1549
      %v1555 = vshll.u32 %v1409, 16
      %v1557 = vrot.slane %v1555, 1
      %v1558 = vsel %vm1410, %v1553, %v1557
      %vm1559 = vcmask 64512
      %v1561 = vsel %vm1559, %v1422, 0
      %v1564 = vsel %vm1559, %v1430, 0
      %v1567 = vsel %vm1559, %v1438, 0
      %v1570 = vsel %vm1559, %v1446, 0
      %v1573 = vsel %vm1559, %v1454, 0
      %v1576 = vsel %vm1559, %v1462, 0
      %v1579 = vsel %vm1559, %v1470, 0
      %v1582 = vsel %vm1559, %v1478, 0
      %v1585 = vsel %vm1559, %v1486, 0
      %v1588 = vsel %vm1559, %v1494, 0
      %v1591 = vsel %vm1559, %v1502, 0
      %v1594 = vsel %vm1559, %v1510, 0
      %v1597 = vsel %vm1559, %v1518, 0
      %v1600 = vsel %vm1559, %v1526, 0
      %v1603 = vsel %vm1559, %v1534, 0
      %v1606 = vsel %vm1559, %v1542, 0
      %v1609 = vsel %vm1559, %v1550, 0
      %v1612 = vsel %vm1559, %v1558, 0
      %vm1614 = vcmask 1043456
      %v1616 = vsel %vm1614, %v1316, 0
      %1618 = vmatprep.subr.bf16.mxu0 0
      %1619 = vmatpush1.bf16.msra.mxu0 %v1616
      %1620 = vmatprep.subr.bf16.mxu0 0
      %1621 = vmatpush1.bf16.msra.mxu0 0
      %1622 = vmatprep.subr.bf16.mxu0 0
      %1623 = vmatpush1.bf16.msra.mxu0 0
      %1624 = vmatprep.subr.bf16.mxu0 0
      %1625 = vmatpush1.bf16.msra.mxu0 0
      %1626 = vmatprep.subr.bf16.mxu0 0
      %1627 = vmatpush1.bf16.msra.mxu0 0
      %1628 = vmatprep.subr.bf16.mxu0 0
      %1629 = vmatpush1.bf16.msra.mxu0 0
      %1630 = vmatprep.subr.bf16.mxu0 0
      %1631 = vmatpush1.bf16.msra.mxu0 0
      %1632 = vmatprep.subr.bf16.mxu0 0
      %1633 = vmatpush1.bf16.msra.mxu0 0
      %1634 = vmatprep.subr.bf16.mxu0 0
      %1635 = vmatpush1.bf16.msra.mxu0 0
      %1636 = vmatprep.subr.bf16.mxu0 0
      %1637 = vmatpush1.bf16.msra.mxu0 0
      %1638 = vmatprep.subr.bf16.mxu0 0
      %1639 = vmatpush1.bf16.msra.mxu0 0
      %1640 = vmatprep.subr.bf16.mxu0 0
      %1641 = vmatpush1.bf16.msra.mxu0 0
      %1642 = vmatprep.subr.bf16.mxu0 0
      %1643 = vmatpush1.bf16.msra.mxu0 0
      %1644 = vmatprep.subr.bf16.mxu0 0
      %1645 = vmatpush1.bf16.msra.mxu0 0
      %1646 = vmatprep.subr.bf16.mxu0 0
      %1647 = vmatpush1.bf16.msra.mxu0 0
      %1648 = vmatprep.subr.bf16.mxu0 0
      %1649 = vmatpush1.bf16.msra.mxu0 0
      %1650 = vmatprep.mubr.bf16.mxu0 0
      %1651 = vmatmul.mubr.bf16.gmra.mrb[0].mxu0 %v1561
      %v1652 = vpop.f32.mrb[0].mxu0
      %v1653 = vadd.f32 0.0, %v1652
      %v1654 = vpop.f32.mrb[0].mxu0
      %v1655 = vpop.f32.mrb[0].mxu0
      %v1656 = vadd.f32 0.0, %v1655
      %v1657 = vpop.f32.mrb[0].mxu0
      %1658 = vmatprep.mubr.bf16.mxu0 0
      %1659 = vmatmul.mubr.bf16.gmra.mrb[0].mxu0 %v1564
      %v1660 = vpop.f32.mrb[0].mxu0
      %v1661 = vadd.f32 0.0, %v1660
      %v1662 = vpop.f32.mrb[0].mxu0
      %v1663 = vpop.f32.mrb[0].mxu0
      %v1664 = vadd.f32 0.0, %v1663
      %v1665 = vpop.f32.mrb[0].mxu0
      %1666 = vmatprep.mubr.bf16.mxu0 0
      %1667 = vmatmul.mubr.bf16.gmra.mrb[0].mxu0 %v1567
      %v1668 = vpop.f32.mrb[0].mxu0
      %v1669 = vadd.f32 0.0, %v1668
      %v1670 = vpop.f32.mrb[0].mxu0
      %v1671 = vpop.f32.mrb[0].mxu0
      %v1672 = vadd.f32 0.0, %v1671
      %v1673 = vpop.f32.mrb[0].mxu0
      %1674 = vmatprep.mubr.bf16.mxu0 0
      %1675 = vmatmul.mubr.bf16.gmra.mrb[0].mxu0 %v1570
      %v1676 = vpop.f32.mrb[0].mxu0
      %v1677 = vadd.f32 0.0, %v1676
      %v1678 = vpop.f32.mrb[0].mxu0
      %v1679 = vpop.f32.mrb[0].mxu0
      %v1680 = vadd.f32 0.0, %v1679
      %v1681 = vpop.f32.mrb[0].mxu0
      %1682 = vmatprep.mubr.bf16.mxu0 0
      %1683 = vmatmul.mubr.bf16.gmra.mrb[0].mxu0 %v1573
      %v1684 = vpop.f32.mrb[0].mxu0
      %v1685 = vadd.f32 0.0, %v1684
      %v1686 = vpop.f32.mrb[0].mxu0
      %v1687 = vpop.f32.mrb[0].mxu0
      %v1688 = vadd.f32 0.0, %v1687
      %v1689 = vpop.f32.mrb[0].mxu0
      %1690 = vmatprep.mubr.bf16.mxu0 0
      %1691 = vmatmul.mubr.bf16.gmra.mrb[0].mxu0 %v1576
      %v1692 = vpop.f32.mrb[0].mxu0
      %v1693 = vadd.f32 0.0, %v1692
      %v1694 = vpop.f32.mrb[0].mxu0
      %v1695 = vpop.f32.mrb[0].mxu0
      %v1696 = vadd.f32 0.0, %v1695
      %v1697 = vpop.f32.mrb[0].mxu0
      %1698 = vmatprep.mubr.bf16.mxu0 0
      %1699 = vmatmul.mubr.bf16.gmra.mrb[0].mxu0 %v1579
      %v1700 = vpop.f32.mrb[0].mxu0
      %v1701 = vadd.f32 0.0, %v1700
      %v1702 = vpop.f32.mrb[0].mxu0
      %v1703 = vpop.f32.mrb[0].mxu0
      %v1704 = vadd.f32 0.0, %v1703
      %v1705 = vpop.f32.mrb[0].mxu0
      %1706 = vmatprep.mubr.bf16.mxu0 0
      %1707 = vmatmul.mubr.bf16.gmra.mrb[0].mxu0 %v1582
      %v1708 = vpop.f32.mrb[0].mxu0
      %v1709 = vadd.f32 0.0, %v1708
      %v1710 = vpop.f32.mrb[0].mxu0
      %v1711 = vpop.f32.mrb[0].mxu0
      %v1712 = vadd.f32 0.0, %v1711
      %v1713 = vpop.f32.mrb[0].mxu0
      %1714 = vmatprep.mubr.bf16.mxu0 0
      %1715 = vmatmul.mubr.bf16.gmra.mrb[0].mxu0 %v1585
      %v1716 = vpop.f32.mrb[0].mxu0
      %v1717 = vadd.f32 0.0, %v1716
      %v1718 = vpop.f32.mrb[0].mxu0
      %v1719 = vpop.f32.mrb[0].mxu0
      %v1720 = vadd.f32 0.0, %v1719
      %v1721 = vpop.f32.mrb[0].mxu0
      %1722 = vmatprep.mubr.bf16.mxu0 0
      %1723 = vmatmul.mubr.bf16.gmra.mrb[0].mxu0 %v1588
      %v1724 = vpop.f32.mrb[0].mxu0
      %v1725 = vadd.f32 0.0, %v1724
      %v1726 = vpop.f32.mrb[0].mxu0
      %v1727 = vpop.f32.mrb[0].mxu0
      %v1728 = vadd.f32 0.0, %v1727
      %v1729 = vpop.f32.mrb[0].mxu0
      %1730 = vmatprep.mubr.bf16.mxu0 0
      %1731 = vmatmul.mubr.bf16.gmra.mrb[0].mxu0 %v1591
      %v1732 = vpop.f32.mrb[0].mxu0
      %v1733 = vadd.f32 0.0, %v1732
      %v1734 = vpop.f32.mrb[0].mxu0
      %v1735 = vpop.f32.mrb[0].mxu0
      %v1736 = vadd.f32 0.0, %v1735
      %v1737 = vpop.f32.mrb[0].mxu0
      %1738 = vmatprep.mubr.bf16.mxu0 0
      %1739 = vmatmul.mubr.bf16.gmra.mrb[0].mxu0 %v1594
      %v1740 = vpop.f32.mrb[0].mxu0
      %v1741 = vadd.f32 0.0, %v1740
      %v1742 = vpop.f32.mrb[0].mxu0
      %v1743 = vpop.f32.mrb[0].mxu0
      %v1744 = vadd.f32 0.0, %v1743
      %v1745 = vpop.f32.mrb[0].mxu0
      %1746 = vmatprep.mubr.bf16.mxu0 0
      %1747 = vmatmul.mubr.bf16.gmra.mrb[0].mxu0 %v1597
      %v1748 = vpop.f32.mrb[0].mxu0
      %v1749 = vadd.f32 0.0, %v1748
      %v1750 = vpop.f32.mrb[0].mxu0
      %v1751 = vpop.f32.mrb[0].mxu0
      %v1752 = vadd.f32 0.0, %v1751
      %v1753 = vpop.f32.mrb[0].mxu0
      %1754 = vmatprep.mubr.bf16.mxu0 0
      %1755 = vmatmul.mubr.bf16.gmra.mrb[0].mxu0 %v1600
      %v1756 = vpop.f32.mrb[0].mxu0
      %v1757 = vadd.f32 0.0, %v1756
      %v1758 = vpop.f32.mrb[0].mxu0
      %v1759 = vpop.f32.mrb[0].mxu0
      %v1760 = vadd.f32 0.0, %v1759
      %v1761 = vpop.f32.mrb[0].mxu0
      %1762 = vmatprep.mubr.bf16.mxu0 0
      %1763 = vmatmul.mubr.bf16.gmra.mrb[0].mxu0 %v1603
      %v1764 = vpop.f32.mrb[0].mxu0
      %v1765 = vadd.f32 0.0, %v1764
      %v1766 = vpop.f32.mrb[0].mxu0
      %v1767 = vpop.f32.mrb[0].mxu0
      %v1768 = vadd.f32 0.0, %v1767
      %v1769 = vpop.f32.mrb[0].mxu0
      %1770 = vmatprep.mubr.bf16.mxu0 0
      %1771 = vmatmul.mubr.bf16.gmra.mrb[0].mxu0 %v1606
      %v1772 = vpop.f32.mrb[0].mxu0
      %v1773 = vadd.f32 0.0, %v1772
      %v1774 = vpop.f32.mrb[0].mxu0
      %v1775 = vpop.f32.mrb[0].mxu0
      %v1776 = vadd.f32 0.0, %v1775
      %v1777 = vpop.f32.mrb[0].mxu0
      %1778 = vmatprep.mubr.bf16.mxu0 0
      %1779 = vmatmul.mubr.bf16.gmra.mrb[0].mxu0 %v1609
      %v1780 = vpop.f32.mrb[0].mxu0
      %v1781 = vadd.f32 0.0, %v1780
      %v1782 = vpop.f32.mrb[0].mxu0
      %v1783 = vpop.f32.mrb[0].mxu0
      %v1784 = vadd.f32 0.0, %v1783
      %v1785 = vpop.f32.mrb[0].mxu0
      %1786 = vmatprep.mubr.bf16.mxu0 0
      %1787 = vmatmul.mubr.bf16.gmra.mrb[0].mxu0 %v1612
      %v1788 = vpop.f32.mrb[0].mxu0
      %v1789 = vadd.f32 0.0, %v1788
      %v1790 = vpop.f32.mrb[0].mxu0
      %v1791 = vpop.f32.mrb[0].mxu0
      %v1792 = vadd.f32 0.0, %v1791
      %v1793 = vpop.f32.mrb[0].mxu0
      %1794 = vdwg.mxu0
      %v1795 = vsel %vm1559, %v1391, 0
      %v1797 = vsel %vm1559, %v1392, 0
      %v1799 = vsel %vm1559, %v1393, 0
      %v1801 = vsel %vm1559, %v1394, 0
      %v1803 = vsel %vm1559, %v1395, 0
      %v1805 = vsel %vm1559, %v1396, 0
      %v1807 = vsel %vm1559, %v1397, 0
      %v1809 = vsel %vm1559, %v1398, 0
      %v1811 = vsel %vm1559, %v1399, 0
      %v1813 = vsel %vm1559, %v1400, 0
      %v1815 = vsel %vm1559, %v1401, 0
      %v1817 = vsel %vm1559, %v1402, 0
      %v1819 = vsel %vm1559, %v1403, 0
      %v1821 = vsel %vm1559, %v1404, 0
      %v1823 = vsel %vm1559, %v1405, 0
      %v1825 = vsel %vm1559, %v1406, 0
      %v1827 = vsel %vm1559, %v1407, 0
      %v1829 = vsel %vm1559, %v1408, 0
      %v1832 = vsel %vm1614, %v1313, 0
      %1834 = vmatprep.subr.bf16.mxu0 0
      %1835 = vmatpush1.bf16.msra.mxu0 %v1832
      %1836 = vmatprep.subr.bf16.mxu0 0
      %1837 = vmatpush1.bf16.msra.mxu0 0
      %1838 = vmatprep.subr.bf16.mxu0 0
      %1839 = vmatpush1.bf16.msra.mxu0 0
      %1840 = vmatprep.subr.bf16.mxu0 0
      %1841 = vmatpush1.bf16.msra.mxu0 0
      %1842 = vmatprep.subr.bf16.mxu0 0
      %1843 = vmatpush1.bf16.msra.mxu0 0
      %1844 = vmatprep.subr.bf16.mxu0 0
      %1845 = vmatpush1.bf16.msra.mxu0 0
      %1846 = vmatprep.subr.bf16.mxu0 0
      %1847 = vmatpush1.bf16.msra.mxu0 0
      %1848 = vmatprep.subr.bf16.mxu0 0
      %1849 = vmatpush1.bf16.msra.mxu0 0
      %1850 = vmatprep.subr.bf16.mxu0 0
      %1851 = vmatpush1.bf16.msra.mxu0 0
      %1852 = vmatprep.subr.bf16.mxu0 0
      %1853 = vmatpush1.bf16.msra.mxu0 0
      %1854 = vmatprep.subr.bf16.mxu0 0
      %1855 = vmatpush1.bf16.msra.mxu0 0
      %1856 = vmatprep.subr.bf16.mxu0 0
      %1857 = vmatpush1.bf16.msra.mxu0 0
      %1858 = vmatprep.subr.bf16.mxu0 0
      %1859 = vmatpush1.bf16.msra.mxu0 0
      %1860 = vmatprep.subr.bf16.mxu0 0
      %1861 = vmatpush1.bf16.msra.mxu0 0
      %1862 = vmatprep.subr.bf16.mxu0 0
      %1863 = vmatpush1.bf16.msra.mxu0 0
      %1864 = vmatprep.subr.bf16.mxu0 0
      %1865 = vmatpush1.bf16.msra.mxu0 0
      %1866 = vmatprep.mubr.bf16.mxu0 0
      %1867 = vmatmul.mubr.bf16.gmra.mrb[0].mxu0 %v1795
      %v1868 = vpop.f32.mrb[0].mxu0
      %v1869 = vadd.f32 %v1653, %v1868
      %v1870 = vpop.f32.mrb[0].mxu0
      %v1871 = vpop.f32.mrb[0].mxu0
      %v1872 = vadd.f32 %v1656, %v1871
      %v1873 = vpop.f32.mrb[0].mxu0
      %1874 = vmatprep.mubr.bf16.mxu0 0
      %1875 = vmatmul.mubr.bf16.gmra.mrb[0].mxu0 %v1797
      %v1876 = vpop.f32.mrb[0].mxu0
      %v1877 = vadd.f32 %v1661, %v1876
      %v1878 = vpop.f32.mrb[0].mxu0
      %v1879 = vpop.f32.mrb[0].mxu0
      %v1880 = vadd.f32 %v1664, %v1879
      %v1881 = vpop.f32.mrb[0].mxu0
      %1882 = vmatprep.mubr.bf16.mxu0 0
      %1883 = vmatmul.mubr.bf16.gmra.mrb[0].mxu0 %v1799
      %v1884 = vpop.f32.mrb[0].mxu0
      %v1885 = vadd.f32 %v1669, %v1884
      %v1886 = vpop.f32.mrb[0].mxu0
      %v1887 = vpop.f32.mrb[0].mxu0
      %v1888 = vadd.f32 %v1672, %v1887
      %v1889 = vpop.f32.mrb[0].mxu0
      %1890 = vmatprep.mubr.bf16.mxu0 0
      %1891 = vmatmul.mubr.bf16.gmra.mrb[0].mxu0 %v1801
      %v1892 = vpop.f32.mrb[0].mxu0
      %v1893 = vadd.f32 %v1677, %v1892
      %v1894 = vpop.f32.mrb[0].mxu0
      %v1895 = vpop.f32.mrb[0].mxu0
      %v1896 = vadd.f32 %v1680, %v1895
      %v1897 = vpop.f32.mrb[0].mxu0
      %1898 = vmatprep.mubr.bf16.mxu0 0
      %1899 = vmatmul.mubr.bf16.gmra.mrb[0].mxu0 %v1803
      %v1900 = vpop.f32.mrb[0].mxu0
      %v1901 = vadd.f32 %v1685, %v1900
      %v1902 = vpop.f32.mrb[0].mxu0
      %v1903 = vpop.f32.mrb[0].mxu0
      %v1904 = vadd.f32 %v1688, %v1903
      %v1905 = vpop.f32.mrb[0].mxu0
      %1906 = vmatprep.mubr.bf16.mxu0 0
      %1907 = vmatmul.mubr.bf16.gmra.mrb[0].mxu0 %v1805
      %v1908 = vpop.f32.mrb[0].mxu0
      %v1909 = vadd.f32 %v1693, %v1908
      %v1910 = vpop.f32.mrb[0].mxu0
      %v1911 = vpop.f32.mrb[0].mxu0
      %v1912 = vadd.f32 %v1696, %v1911
      %v1913 = vpop.f32.mrb[0].mxu0
      %1914 = vmatprep.mubr.bf16.mxu0 0
      %1915 = vmatmul.mubr.bf16.gmra.mrb[0].mxu0 %v1807
      %v1916 = vpop.f32.mrb[0].mxu0
      %v1917 = vadd.f32 %v1701, %v1916
      %v1918 = vpop.f32.mrb[0].mxu0
      %v1919 = vpop.f32.mrb[0].mxu0
      %v1920 = vadd.f32 %v1704, %v1919
      %v1921 = vpop.f32.mrb[0].mxu0
      %1922 = vmatprep.mubr.bf16.mxu0 0
      %1923 = vmatmul.mubr.bf16.gmra.mrb[0].mxu0 %v1809
      %v1924 = vpop.f32.mrb[0].mxu0
      %v1925 = vadd.f32 %v1709, %v1924
      %v1926 = vpop.f32.mrb[0].mxu0
      %v1927 = vpop.f32.mrb[0].mxu0
      %v1928 = vadd.f32 %v1712, %v1927
      %v1929 = vpop.f32.mrb[0].mxu0
      %1930 = vmatprep.mubr.bf16.mxu0 0
      %1931 = vmatmul.mubr.bf16.gmra.mrb[0].mxu0 %v1811
      %v1932 = vpop.f32.mrb[0].mxu0
      %v1933 = vadd.f32 %v1717, %v1932
      %v1934 = vpop.f32.mrb[0].mxu0
      %v1935 = vpop.f32.mrb[0].mxu0
      %v1936 = vadd.f32 %v1720, %v1935
      %v1937 = vpop.f32.mrb[0].mxu0
      %1938 = vmatprep.mubr.bf16.mxu0 0
      %1939 = vmatmul.mubr.bf16.gmra.mrb[0].mxu0 %v1813
      %v1940 = vpop.f32.mrb[0].mxu0
      %v1941 = vadd.f32 %v1725, %v1940
      %v1942 = vpop.f32.mrb[0].mxu0
      %v1943 = vpop.f32.mrb[0].mxu0
      %v1944 = vadd.f32 %v1728, %v1943
      %v1945 = vpop.f32.mrb[0].mxu0
      %1946 = vmatprep.mubr.bf16.mxu0 0
      %1947 = vmatmul.mubr.bf16.gmra.mrb[0].mxu0 %v1815
      %v1948 = vpop.f32.mrb[0].mxu0
      %v1949 = vadd.f32 %v1733, %v1948
      %v1950 = vpop.f32.mrb[0].mxu0
      %v1951 = vpop.f32.mrb[0].mxu0
      %v1952 = vadd.f32 %v1736, %v1951
      %v1953 = vpop.f32.mrb[0].mxu0
      %1954 = vmatprep.mubr.bf16.mxu0 0
      %1955 = vmatmul.mubr.bf16.gmra.mrb[0].mxu0 %v1817
      %v1956 = vpop.f32.mrb[0].mxu0
      %v1957 = vadd.f32 %v1741, %v1956
      %v1958 = vpop.f32.mrb[0].mxu0
      %v1959 = vpop.f32.mrb[0].mxu0
      %v1960 = vadd.f32 %v1744, %v1959
      %v1961 = vpop.f32.mrb[0].mxu0
      %1962 = vmatprep.mubr.bf16.mxu0 0
      %1963 = vmatmul.mubr.bf16.gmra.mrb[0].mxu0 %v1819
      %v1964 = vpop.f32.mrb[0].mxu0
      %v1965 = vadd.f32 %v1749, %v1964
      %v1966 = vpop.f32.mrb[0].mxu0
      %v1967 = vpop.f32.mrb[0].mxu0
      %v1968 = vadd.f32 %v1752, %v1967
      %v1969 = vpop.f32.mrb[0].mxu0
      %1970 = vmatprep.mubr.bf16.mxu0 0
      %1971 = vmatmul.mubr.bf16.gmra.mrb[0].mxu0 %v1821
      %v1972 = vpop.f32.mrb[0].mxu0
      %v1973 = vadd.f32 %v1757, %v1972
      %v1974 = vpop.f32.mrb[0].mxu0
      %v1975 = vpop.f32.mrb[0].mxu0
      %v1976 = vadd.f32 %v1760, %v1975
      %v1977 = vpop.f32.mrb[0].mxu0
      %1978 = vmatprep.mubr.bf16.mxu0 0
      %1979 = vmatmul.mubr.bf16.gmra.mrb[0].mxu0 %v1823
      %v1980 = vpop.f32.mrb[0].mxu0
      %v1981 = vadd.f32 %v1765, %v1980
      %v1982 = vpop.f32.mrb[0].mxu0
      %v1983 = vpop.f32.mrb[0].mxu0
      %v1984 = vadd.f32 %v1768, %v1983
      %v1985 = vpop.f32.mrb[0].mxu0
      %1986 = vmatprep.mubr.bf16.mxu0 0
      %1987 = vmatmul.mubr.bf16.gmra.mrb[0].mxu0 %v1825
      %v1988 = vpop.f32.mrb[0].mxu0
      %v1989 = vadd.f32 %v1773, %v1988
      %v1990 = vpop.f32.mrb[0].mxu0
      %v1991 = vpop.f32.mrb[0].mxu0
      %v1992 = vadd.f32 %v1776, %v1991
      %v1993 = vpop.f32.mrb[0].mxu0
      %1994 = vmatprep.mubr.bf16.mxu0 0
      %1995 = vmatmul.mubr.bf16.gmra.mrb[0].mxu0 %v1827
      %v1996 = vpop.f32.mrb[0].mxu0
      %v1997 = vadd.f32 %v1781, %v1996
      %v1998 = vpop.f32.mrb[0].mxu0
      %v1999 = vpop.f32.mrb[0].mxu0
      %v2000 = vadd.f32 %v1784, %v1999
      %v2001 = vpop.f32.mrb[0].mxu0
      %2002 = vmatprep.mubr.bf16.mxu0 0
      %2003 = vmatmul.mubr.bf16.gmra.mrb[0].mxu0 %v1829
      %v2004 = vpop.f32.mrb[0].mxu0
      %v2005 = vadd.f32 %v1789, %v2004
      %v2006 = vpop.f32.mrb[0].mxu0
      %v2007 = vpop.f32.mrb[0].mxu0
      %v2008 = vadd.f32 %v1792, %v2007
      %v2009 = vpop.f32.mrb[0].mxu0
      %2010 = vdwg.mxu0
      %v2011 = vld [vmem:[#allocation2] sm:$0xe]
      %s2012 = scalar_lea.vmem %s4, 8
      %v2013 = vld [vmem:[%s2012] sm:$0xf]
      %v2015 = vunpack.c.l.b16 %v2011
      %v2016 = vpack.c.b16 %v1355, %v2015
      %vm2017 = vcmask 1046528
      %v2018 = vrot.slane %v2016, 1
      %v2019 = vrot.slane %v1392, 1
      %v2020 = vsel %vm2017, %v2018, %v2019
      %v2021 = vrot.slane %v1393, 1
      %v2022 = vsel %vm2017, %v2019, %v2021
      %v2023 = vrot.slane %v1394, 1
      %v2024 = vsel %vm2017, %v2021, %v2023
      %v2025 = vrot.slane %v1395, 1
      %v2026 = vsel %vm2017, %v2023, %v2025
      %v2027 = vrot.slane %v1396, 1
      %v2028 = vsel %vm2017, %v2025, %v2027
      %v2029 = vrot.slane %v1397, 1
      %v2030 = vsel %vm2017, %v2027, %v2029
      %v2031 = vrot.slane %v1398, 1
      %v2032 = vsel %vm2017, %v2029, %v2031
      %v2033 = vrot.slane %v1399, 1
      %v2034 = vsel %vm2017, %v2031, %v2033
      %v2035 = vrot.slane %v1400, 1
      %v2036 = vsel %vm2017, %v2033, %v2035
      %v2037 = vrot.slane %v1401, 1
      %v2038 = vsel %vm2017, %v2035, %v2037
      %v2039 = vrot.slane %v1402, 1
      %v2040 = vsel %vm2017, %v2037, %v2039
      %v2041 = vrot.slane %v1403, 1
      %v2042 = vsel %vm2017, %v2039, %v2041
      %v2043 = vrot.slane %v1404, 1
      %v2044 = vsel %vm2017, %v2041, %v2043
      %v2045 = vrot.slane %v1405, 1
      %v2046 = vsel %vm2017, %v2043, %v2045
      %v2047 = vrot.slane %v1406, 1
      %v2048 = vsel %vm2017, %v2045, %v2047
      %v2049 = vrot.slane %v1407, 1
      %v2050 = vsel %vm2017, %v2047, %v2049
      %v2051 = vrot.slane %v1408, 1
      %v2052 = vsel %vm2017, %v2049, %v2051
      %v2053 = vrot.slane %v1409, 1
      %v2054 = vsel %vm2017, %v2051, %v2053
      %v2056 = vsel %vm1559, %v2020, 0
      %v2059 = vsel %vm1559, %v2022, 0
      %v2062 = vsel %vm1559, %v2024, 0
      %v2065 = vsel %vm1559, %v2026, 0
      %v2068 = vsel %vm1559, %v2028, 0
      %v2071 = vsel %vm1559, %v2030, 0
      %v2074 = vsel %vm1559, %v2032, 0
      %v2077 = vsel %vm1559, %v2034, 0
      %v2080 = vsel %vm1559, %v2036, 0
      %v2083 = vsel %vm1559, %v2038, 0
      %v2086 = vsel %vm1559, %v2040, 0
      %v2089 = vsel %vm1559, %v2042, 0
      %v2092 = vsel %vm1559, %v2044, 0
      %v2095 = vsel %vm1559, %v2046, 0
      %v2098 = vsel %vm1559, %v2048, 0
      %v2101 = vsel %vm1559, %v2050, 0
      %v2104 = vsel %vm1559, %v2052, 0
      %v2107 = vsel %vm1559, %v2054, 0
      %v2110 = vsel %vm1614, %v2013, 0
      %2112 = vmatprep.subr.bf16.mxu0 0
      %2113 = vmatpush1.bf16.msra.mxu0 %v2110
      %2114 = vmatprep.subr.bf16.mxu0 0
      %2115 = vmatpush1.bf16.msra.mxu0 0
      %2116 = vmatprep.subr.bf16.mxu0 0
      %2117 = vmatpush1.bf16.msra.mxu0 0
      %2118 = vmatprep.subr.bf16.mxu0 0
      %2119 = vmatpush1.bf16.msra.mxu0 0
      %2120 = vmatprep.subr.bf16.mxu0 0
      %2121 = vmatpush1.bf16.msra.mxu0 0
      %2122 = vmatprep.subr.bf16.mxu0 0
      %2123 = vmatpush1.bf16.msra.mxu0 0
      %2124 = vmatprep.subr.bf16.mxu0 0
      %2125 = vmatpush1.bf16.msra.mxu0 0
      %2126 = vmatprep.subr.bf16.mxu0 0
      %2127 = vmatpush1.bf16.msra.mxu0 0
      %2128 = vmatprep.subr.bf16.mxu0 0
      %2129 = vmatpush1.bf16.msra.mxu0 0
      %2130 = vmatprep.subr.bf16.mxu0 0
      %2131 = vmatpush1.bf16.msra.mxu0 0
      %2132 = vmatprep.subr.bf16.mxu0 0
      %2133 = vmatpush1.bf16.msra.mxu0 0
      %2134 = vmatprep.subr.bf16.mxu0 0
      %2135 = vmatpush1.bf16.msra.mxu0 0
      %2136 = vmatprep.subr.bf16.mxu0 0
      %2137 = vmatpush1.bf16.msra.mxu0 0
      %2138 = vmatprep.subr.bf16.mxu0 0
      %2139 = vmatpush1.bf16.msra.mxu0 0
      %2140 = vmatprep.subr.bf16.mxu0 0
      %2141 = vmatpush1.bf16.msra.mxu0 0
      %2142 = vmatprep.subr.bf16.mxu0 0
      %2143 = vmatpush1.bf16.msra.mxu0 0
      %2144 = vmatprep.mubr.bf16.mxu0 0
      %2145 = vmatmul.mubr.bf16.gmra.mrb[0].mxu0 %v2056
      %v2146 = vpop.f32.mrb[0].mxu0
      %v2147 = vadd.f32 0.0, %v2146
      %v2148 = vpop.f32.mrb[0].mxu0
      %v2149 = vpop.f32.mrb[0].mxu0
      %v2150 = vadd.f32 0.0, %v2149
      %v2151 = vpop.f32.mrb[0].mxu0
      %2152 = vmatprep.mubr.bf16.mxu0 0
      %2153 = vmatmul.mubr.bf16.gmra.mrb[0].mxu0 %v2059
      %v2154 = vpop.f32.mrb[0].mxu0
      %v2155 = vadd.f32 0.0, %v2154
      %v2156 = vpop.f32.mrb[0].mxu0
      %v2157 = vpop.f32.mrb[0].mxu0
      %v2158 = vadd.f32 0.0, %v2157
      %v2159 = vpop.f32.mrb[0].mxu0
      %2160 = vmatprep.mubr.bf16.mxu0 0
      %2161 = vmatmul.mubr.bf16.gmra.mrb[0].mxu0 %v2062
      %v2162 = vpop.f32.mrb[0].mxu0
      %v2163 = vadd.f32 0.0, %v2162
      %v2164 = vpop.f32.mrb[0].mxu0
      %v2165 = vpop.f32.mrb[0].mxu0
      %v2166 = vadd.f32 0.0, %v2165
      %v2167 = vpop.f32.mrb[0].mxu0
      %2168 = vmatprep.mubr.bf16.mxu0 0
      %2169 = vmatmul.mubr.bf16.gmra.mrb[0].mxu0 %v2065
      %v2170 = vpop.f32.mrb[0].mxu0
      %v2171 = vadd.f32 0.0, %v2170
      %v2172 = vpop.f32.mrb[0].mxu0
      %v2173 = vpop.f32.mrb[0].mxu0
      %v2174 = vadd.f32 0.0, %v2173
      %v2175 = vpop.f32.mrb[0].mxu0
      %2176 = vmatprep.mubr.bf16.mxu0 0
      %2177 = vmatmul.mubr.bf16.gmra.mrb[0].mxu0 %v2068
      %v2178 = vpop.f32.mrb[0].mxu0
      %v2179 = vadd.f32 0.0, %v2178
      %v2180 = vpop.f32.mrb[0].mxu0
      %v2181 = vpop.f32.mrb[0].mxu0
      %v2182 = vadd.f32 0.0, %v2181
      %v2183 = vpop.f32.mrb[0].mxu0
      %2184 = vmatprep.mubr.bf16.mxu0 0
      %2185 = vmatmul.mubr.bf16.gmra.mrb[0].mxu0 %v2071
      %v2186 = vpop.f32.mrb[0].mxu0
      %v2187 = vadd.f32 0.0, %v2186
      %v2188 = vpop.f32.mrb[0].mxu0
      %v2189 = vpop.f32.mrb[0].mxu0
      %v2190 = vadd.f32 0.0, %v2189
      %v2191 = vpop.f32.mrb[0].mxu0
      %2192 = vmatprep.mubr.bf16.mxu0 0
      %2193 = vmatmul.mubr.bf16.gmra.mrb[0].mxu0 %v2074
      %v2194 = vpop.f32.mrb[0].mxu0
      %v2195 = vadd.f32 0.0, %v2194
      %v2196 = vpop.f32.mrb[0].mxu0
      %v2197 = vpop.f32.mrb[0].mxu0
      %v2198 = vadd.f32 0.0, %v2197
      %v2199 = vpop.f32.mrb[0].mxu0
      %2200 = vmatprep.mubr.bf16.mxu0 0
      %2201 = vmatmul.mubr.bf16.gmra.mrb[0].mxu0 %v2077
      %v2202 = vpop.f32.mrb[0].mxu0
      %v2203 = vadd.f32 0.0, %v2202
      %v2204 = vpop.f32.mrb[0].mxu0
      %v2205 = vpop.f32.mrb[0].mxu0
      %v2206 = vadd.f32 0.0, %v2205
      %v2207 = vpop.f32.mrb[0].mxu0
      %2208 = vmatprep.mubr.bf16.mxu0 0
      %2209 = vmatmul.mubr.bf16.gmra.mrb[0].mxu0 %v2080
      %v2210 = vpop.f32.mrb[0].mxu0
      %v2211 = vadd.f32 0.0, %v2210
      %v2212 = vpop.f32.mrb[0].mxu0
      %v2213 = vpop.f32.mrb[0].mxu0
      %v2214 = vadd.f32 0.0, %v2213
      %v2215 = vpop.f32.mrb[0].mxu0
      %2216 = vmatprep.mubr.bf16.mxu0 0
      %2217 = vmatmul.mubr.bf16.gmra.mrb[0].mxu0 %v2083
      %v2218 = vpop.f32.mrb[0].mxu0
      %v2219 = vadd.f32 0.0, %v2218
      %v2220 = vpop.f32.mrb[0].mxu0
      %v2221 = vpop.f32.mrb[0].mxu0
      %v2222 = vadd.f32 0.0, %v2221
      %v2223 = vpop.f32.mrb[0].mxu0
      %2224 = vmatprep.mubr.bf16.mxu0 0
      %2225 = vmatmul.mubr.bf16.gmra.mrb[0].mxu0 %v2086
      %v2226 = vpop.f32.mrb[0].mxu0
      %v2227 = vadd.f32 0.0, %v2226
      %v2228 = vpop.f32.mrb[0].mxu0
      %v2229 = vpop.f32.mrb[0].mxu0
      %v2230 = vadd.f32 0.0, %v2229
      %v2231 = vpop.f32.mrb[0].mxu0
      %2232 = vmatprep.mubr.bf16.mxu0 0
      %2233 = vmatmul.mubr.bf16.gmra.mrb[0].mxu0 %v2089
      %v2234 = vpop.f32.mrb[0].mxu0
      %v2235 = vadd.f32 0.0, %v2234
      %v2236 = vpop.f32.mrb[0].mxu0
      %v2237 = vpop.f32.mrb[0].mxu0
      %v2238 = vadd.f32 0.0, %v2237
      %v2239 = vpop.f32.mrb[0].mxu0
      %2240 = vmatprep.mubr.bf16.mxu0 0
      %2241 = vmatmul.mubr.bf16.gmra.mrb[0].mxu0 %v2092
      %v2242 = vpop.f32.mrb[0].mxu0
      %v2243 = vadd.f32 0.0, %v2242
      %v2244 = vpop.f32.mrb[0].mxu0
      %v2245 = vpop.f32.mrb[0].mxu0
      %v2246 = vadd.f32 0.0, %v2245
      %v2247 = vpop.f32.mrb[0].mxu0
      %2248 = vmatprep.mubr.bf16.mxu0 0
      %2249 = vmatmul.mubr.bf16.gmra.mrb[0].mxu0 %v2095
      %v2250 = vpop.f32.mrb[0].mxu0
      %v2251 = vadd.f32 0.0, %v2250
      %v2252 = vpop.f32.mrb[0].mxu0
      %v2253 = vpop.f32.mrb[0].mxu0
      %v2254 = vadd.f32 0.0, %v2253
      %v2255 = vpop.f32.mrb[0].mxu0
      %2256 = vmatprep.mubr.bf16.mxu0 0
      %2257 = vmatmul.mubr.bf16.gmra.mrb[0].mxu0 %v2098
      %v2258 = vpop.f32.mrb[0].mxu0
      %v2259 = vadd.f32 0.0, %v2258
      %v2260 = vpop.f32.mrb[0].mxu0
      %v2261 = vpop.f32.mrb[0].mxu0
      %v2262 = vadd.f32 0.0, %v2261
      %v2263 = vpop.f32.mrb[0].mxu0
      %2264 = vmatprep.mubr.bf16.mxu0 0
      %2265 = vmatmul.mubr.bf16.gmra.mrb[0].mxu0 %v2101
      %v2266 = vpop.f32.mrb[0].mxu0
      %v2267 = vadd.f32 0.0, %v2266
      %v2268 = vpop.f32.mrb[0].mxu0
      %v2269 = vpop.f32.mrb[0].mxu0
      %v2270 = vadd.f32 0.0, %v2269
      %v2271 = vpop.f32.mrb[0].mxu0
      %2272 = vmatprep.mubr.bf16.mxu0 0
      %2273 = vmatmul.mubr.bf16.gmra.mrb[0].mxu0 %v2104
      %v2274 = vpop.f32.mrb[0].mxu0
      %v2275 = vadd.f32 0.0, %v2274
      %v2276 = vpop.f32.mrb[0].mxu0
      %v2277 = vpop.f32.mrb[0].mxu0
      %v2278 = vadd.f32 0.0, %v2277
      %v2279 = vpop.f32.mrb[0].mxu0
      %2280 = vmatprep.mubr.bf16.mxu0 0
      %2281 = vmatmul.mubr.bf16.gmra.mrb[0].mxu0 %v2107
      %v2282 = vpop.f32.mrb[0].mxu0
      %v2283 = vadd.f32 0.0, %v2282
      %v2284 = vpop.f32.mrb[0].mxu0
      %v2285 = vpop.f32.mrb[0].mxu0
      %v2286 = vadd.f32 0.0, %v2285
      %v2287 = vpop.f32.mrb[0].mxu0
      %2288 = vdwg.mxu0
      %v2289 = vadd.f32 %v1869, %v2147
      %v2290 = vadd.f32 %v1872, %v2150
      %v2291 = vadd.f32 %v1877, %v2155
      %v2292 = vadd.f32 %v1880, %v2158
      %v2293 = vadd.f32 %v1885, %v2163
      %v2294 = vadd.f32 %v1888, %v2166
      %v2295 = vadd.f32 %v1893, %v2171
      %v2296 = vadd.f32 %v1896, %v2174
      %v2297 = vadd.f32 %v1901, %v2179
      %v2298 = vadd.f32 %v1904, %v2182
      %v2299 = vadd.f32 %v1909, %v2187
      %v2300 = vadd.f32 %v1912, %v2190
      %v2301 = vadd.f32 %v1917, %v2195
      %v2302 = vadd.f32 %v1920, %v2198
      %v2303 = vadd.f32 %v1925, %v2203
      %v2304 = vadd.f32 %v1928, %v2206
      %v2305 = vadd.f32 %v1933, %v2211
      %v2306 = vadd.f32 %v1936, %v2214
      %v2307 = vadd.f32 %v1941, %v2219
      %v2308 = vadd.f32 %v1944, %v2222
      %v2309 = vadd.f32 %v1949, %v2227
      %v2310 = vadd.f32 %v1952, %v2230
      %v2311 = vadd.f32 %v1957, %v2235
      %v2312 = vadd.f32 %v1960, %v2238
      %v2313 = vadd.f32 %v1965, %v2243
      %v2314 = vadd.f32 %v1968, %v2246
      %v2315 = vadd.f32 %v1973, %v2251
      %v2316 = vadd.f32 %v1976, %v2254
      %v2317 = vadd.f32 %v1981, %v2259
      %v2318 = vadd.f32 %v1984, %v2262
      %v2319 = vadd.f32 %v1989, %v2267
      %v2320 = vadd.f32 %v1992, %v2270
      %v2321 = vadd.f32 %v1997, %v2275
      %v2322 = vadd.f32 %v2000, %v2278
      %v2323 = vadd.f32 %v2005, %v2283
      %v2324 = vadd.f32 %v2008, %v2286
      %v2325 = vld [vmem:[#allocation2 + $0x8] sm:$0xe]
      %v2326 = vld [vmem:[#allocation2 + $0xc] sm:$0xf]
      %v2327 = vld [vmem:[#allocation2 + $0x10] sm:$0xf]
      %v2328 = vld [vmem:[#allocation2 + $0x14] sm:$0xf]
      %v2329 = vld [vmem:[#allocation2 + $0x18] sm:$0xf]
      %v2330 = vld [vmem:[#allocation2 + $0x1c] sm:$0xf]
      %v2331 = vld [vmem:[#allocation2 + $0x20] sm:$0xf]
      %v2332 = vld [vmem:[#allocation2 + $0x24] sm:$0xf]
      %v2333 = vld [vmem:[#allocation2 + $0x28] sm:$0xf]
      %v2334 = vld [vmem:[#allocation2 + $0x2c] sm:$0xf]
      %v2335 = vld [vmem:[#allocation2 + $0x30] sm:$0xf]
      %v2336 = vld [vmem:[#allocation2 + $0x34] sm:$0xf]
      %v2337 = vld [vmem:[#allocation2 + $0x38] sm:$0xf]
      %v2338 = vld [vmem:[#allocation2 + $0x3c] sm:$0xf]
      %v2339 = vld [vmem:[#allocation2 + $0x40] sm:$0xf]
      %v2340 = vld [vmem:[#allocation2 + $0x44] sm:$0xf]
      %v2341 = vld [vmem:[#allocation2 + $0x48] sm:$0xf]
      %v2342 = vld [vmem:[#allocation2 + $0x4c] sm:$0xf]
      %v2343 = vld [vmem:[#allocation2 + $0x50] sm:$0xf]
      %v2344 = vld [vmem:[#allocation2 + $0x54] sm:$0xf]
      %v2345 = vld [vmem:[#allocation2 + $0x58] sm:$0xf]
      %v2346 = vld [vmem:[#allocation2 + $0x5c] sm:$0xf]
      %v2347 = vld [vmem:[#allocation2 + $0x60] sm:$0xf]
      %v2348 = vld [vmem:[#allocation2 + $0x64] sm:$0xf]
      %v2349 = vld [vmem:[#allocation2 + $0x68] sm:$0xf]
      %v2350 = vld [vmem:[#allocation2 + $0x6c] sm:$0xf]
      %v2351 = vld [vmem:[#allocation2 + $0x70] sm:$0xf]
      %v2352 = vld [vmem:[#allocation2 + $0x74] sm:$0xf]
      %v2353 = vld [vmem:[#allocation2 + $0x78] sm:$0xf]
      %v2354 = vld [vmem:[#allocation2 + $0x7c] sm:$0xf]
      %v2355 = vld [vmem:[#allocation2 + $0x80] sm:$0xf]
      %v2356 = vld [vmem:[#allocation2 + $0x84] sm:$0xf]
      %v2357 = vld [vmem:[#allocation2 + $0x88] sm:$0xf]
      %v2358 = vld [vmem:[#allocation2 + $0x8c] sm:$0xf]
      %v2359 = vld [vmem:[#allocation2 + $0x90] sm:$0xf]
      %v2360 = vld [vmem:[#allocation2 + $0x94] sm:$0xf]
      %v2361 = vld [vmem:[#allocation2 + $0x98] sm:$0x1]
      %s2362 = scalar_lea.vmem %s4, 12
      %v2363 = vld [vmem:[%s2362] sm:$0xf]
      %v2401 = vunpack.c.l.b16 %v2325
      %v2402 = vunpack.c.l.b16 %v2326
      %v2403 = vunpack.c.l.b16 %v2327
      %v2404 = vunpack.c.l.b16 %v2328
      %v2405 = vunpack.c.l.b16 %v2329
      %v2406 = vunpack.c.l.b16 %v2330
      %v2407 = vunpack.c.l.b16 %v2331
      %v2408 = vunpack.c.l.b16 %v2332
      %v2409 = vunpack.c.l.b16 %v2333
      %v2410 = vunpack.c.l.b16 %v2334
      %v2411 = vunpack.c.l.b16 %v2335
      %v2412 = vunpack.c.l.b16 %v2336
      %v2413 = vunpack.c.l.b16 %v2337
      %v2414 = vunpack.c.l.b16 %v2338
      %v2415 = vunpack.c.l.b16 %v2339
      %v2416 = vunpack.c.l.b16 %v2340
      %v2417 = vunpack.c.l.b16 %v2341
      %v2418 = vunpack.c.l.b16 %v2342
      %v2419 = vunpack.c.l.b16 %v2343
      %v2420 = vunpack.c.l.b16 %v2344
      %v2421 = vunpack.c.l.b16 %v2345
      %v2422 = vunpack.c.l.b16 %v2346
      %v2423 = vunpack.c.l.b16 %v2347
      %v2424 = vunpack.c.l.b16 %v2348
      %v2425 = vunpack.c.l.b16 %v2349
      %v2426 = vunpack.c.l.b16 %v2350
      %v2427 = vunpack.c.l.b16 %v2351
      %v2428 = vunpack.c.l.b16 %v2352
      %v2429 = vunpack.c.l.b16 %v2353
      %v2430 = vunpack.c.l.b16 %v2354
      %v2431 = vunpack.c.l.b16 %v2355
      %v2432 = vunpack.c.l.b16 %v2356
      %v2433 = vunpack.c.l.b16 %v2357
      %v2434 = vunpack.c.l.b16 %v2358
      %v2435 = vunpack.c.l.b16 %v2359
      %v2436 = vunpack.c.l.b16 %v2360
      %v2437 = vunpack.c.l.b16 %v2361
      %v2438 = vpack.c.b16 %v2402, %v2401
      %v2439 = vpack.c.b16 %v2404, %v2403
      %v2440 = vpack.c.b16 %v2406, %v2405
      %v2441 = vpack.c.b16 %v2408, %v2407
      %v2442 = vpack.c.b16 %v2410, %v2409
      %v2443 = vpack.c.b16 %v2412, %v2411
      %v2444 = vpack.c.b16 %v2414, %v2413
      %v2445 = vpack.c.b16 %v2416, %v2415
      %v2446 = vpack.c.b16 %v2418, %v2417
      %v2447 = vpack.c.b16 %v2420, %v2419
      %v2448 = vpack.c.b16 %v2422, %v2421
      %v2449 = vpack.c.b16 %v2424, %v2423
      %v2450 = vpack.c.b16 %v2426, %v2425
      %v2451 = vpack.c.b16 %v2428, %v2427
      %v2452 = vpack.c.b16 %v2430, %v2429
      %v2453 = vpack.c.b16 %v2432, %v2431
      %v2454 = vpack.c.b16 %v2434, %v2433
      %v2455 = vpack.c.b16 %v2436, %v2435
      %v2456 = vpack.c.b16 %v2437, %v2437
      %v2457 = vrot.slane %v2438, 1
      %v2458 = vrot.slane %v2439, 1
      %v2459 = vsel %vm2017, %v2457, %v2458
      %v2460 = vrot.slane %v2440, 1
      %v2461 = vsel %vm2017, %v2458, %v2460
      %v2462 = vrot.slane %v2441, 1
      %v2463 = vsel %vm2017, %v2460, %v2462
      %v2464 = vrot.slane %v2442, 1
      %v2465 = vsel %vm2017, %v2462, %v2464
      %v2466 = vrot.slane %v2443, 1
      %v2467 = vsel %vm2017, %v2464, %v2466
      %v2468 = vrot.slane %v2444, 1
      %v2469 = vsel %vm2017, %v2466, %v2468
      %v2470 = vrot.slane %v2445, 1
      %v2471 = vsel %vm2017, %v2468, %v2470
      %v2472 = vrot.slane %v2446, 1
      %v2473 = vsel %vm2017, %v2470, %v2472
      %v2474 = vrot.slane %v2447, 1
      %v2475 = vsel %vm2017, %v2472, %v2474
      %v2476 = vrot.slane %v2448, 1
      %v2477 = vsel %vm2017, %v2474, %v2476
      %v2478 = vrot.slane %v2449, 1
      %v2479 = vsel %vm2017, %v2476, %v2478
      %v2480 = vrot.slane %v2450, 1
      %v2481 = vsel %vm2017, %v2478, %v2480
      %v2482 = vrot.slane %v2451, 1
      %v2483 = vsel %vm2017, %v2480, %v2482
      %v2484 = vrot.slane %v2452, 1
      %v2485 = vsel %vm2017, %v2482, %v2484
      %v2486 = vrot.slane %v2453, 1
      %v2487 = vsel %vm2017, %v2484, %v2486
      %v2488 = vrot.slane %v2454, 1
      %v2489 = vsel %vm2017, %v2486, %v2488
      %v2490 = vrot.slane %v2455, 1
      %v2491 = vsel %vm2017, %v2488, %v2490
      %v2492 = vrot.slane %v2456, 1
      %v2493 = vsel %vm2017, %v2490, %v2492
      %v2495 = vsel %vm1559, %v2459, 0
      %v2498 = vsel %vm1559, %v2461, 0
      %v2501 = vsel %vm1559, %v2463, 0
      %v2504 = vsel %vm1559, %v2465, 0
      %v2507 = vsel %vm1559, %v2467, 0
      %v2510 = vsel %vm1559, %v2469, 0
      %v2513 = vsel %vm1559, %v2471, 0
      %v2516 = vsel %vm1559, %v2473, 0
      %v2519 = vsel %vm1559, %v2475, 0
      %v2522 = vsel %vm1559, %v2477, 0
      %v2525 = vsel %vm1559, %v2479, 0
      %v2528 = vsel %vm1559, %v2481, 0
      %v2531 = vsel %vm1559, %v2483, 0
      %v2534 = vsel %vm1559, %v2485, 0
      %v2537 = vsel %vm1559, %v2487, 0
      %v2540 = vsel %vm1559, %v2489, 0
      %v2543 = vsel %vm1559, %v2491, 0
      %v2546 = vsel %vm1559, %v2493, 0
      %v2549 = vsel %vm1614, %v2363, 0
      %2551 = vmatprep.subr.bf16.mxu0 0
      %2552 = vmatpush1.bf16.msra.mxu0 %v2549
      %2553 = vmatprep.subr.bf16.mxu0 0
      %2554 = vmatpush1.bf16.msra.mxu0 0
      %2555 = vmatprep.subr.bf16.mxu0 0
      %2556 = vmatpush1.bf16.msra.mxu0 0
      %2557 = vmatprep.subr.bf16.mxu0 0
      %2558 = vmatpush1.bf16.msra.mxu0 0
      %2559 = vmatprep.subr.bf16.mxu0 0
      %2560 = vmatpush1.bf16.msra.mxu0 0
      %2561 = vmatprep.subr.bf16.mxu0 0
      %2562 = vmatpush1.bf16.msra.mxu0 0
      %2563 = vmatprep.subr.bf16.mxu0 0
      %2564 = vmatpush1.bf16.msra.mxu0 0
      %2565 = vmatprep.subr.bf16.mxu0 0
      %2566 = vmatpush1.bf16.msra.mxu0 0
      %2567 = vmatprep.subr.bf16.mxu0 0
      %2568 = vmatpush1.bf16.msra.mxu0 0
      %2569 = vmatprep.subr.bf16.mxu0 0
      %2570 = vmatpush1.bf16.msra.mxu0 0
      %2571 = vmatprep.subr.bf16.mxu0 0
      %2572 = vmatpush1.bf16.msra.mxu0 0
      %2573 = vmatprep.subr.bf16.mxu0 0
      %2574 = vmatpush1.bf16.msra.mxu0 0
      %2575 = vmatprep.subr.bf16.mxu0 0
      %2576 = vmatpush1.bf16.msra.mxu0 0
      %2577 = vmatprep.subr.bf16.mxu0 0
      %2578 = vmatpush1.bf16.msra.mxu0 0
      %2579 = vmatprep.subr.bf16.mxu0 0
      %2580 = vmatpush1.bf16.msra.mxu0 0
      %2581 = vmatprep.subr.bf16.mxu0 0
      %2582 = vmatpush1.bf16.msra.mxu0 0
      %2583 = vmatprep.mubr.bf16.mxu0 0
      %2584 = vmatmul.mubr.bf16.gmra.mrb[0].mxu0 %v2495
      %v2585 = vpop.f32.mrb[0].mxu0
      %v2586 = vadd.f32 0.0, %v2585
      %v2587 = vpop.f32.mrb[0].mxu0
      %v2588 = vpop.f32.mrb[0].mxu0
      %v2589 = vadd.f32 0.0, %v2588
      %v2590 = vpop.f32.mrb[0].mxu0
      %2591 = vmatprep.mubr.bf16.mxu0 0
      %2592 = vmatmul.mubr.bf16.gmra.mrb[0].mxu0 %v2498
      %v2593 = vpop.f32.mrb[0].mxu0
      %v2594 = vadd.f32 0.0, %v2593
      %v2595 = vpop.f32.mrb[0].mxu0
      %v2596 = vpop.f32.mrb[0].mxu0
      %v2597 = vadd.f32 0.0, %v2596
      %v2598 = vpop.f32.mrb[0].mxu0
      %2599 = vmatprep.mubr.bf16.mxu0 0
      %2600 = vmatmul.mubr.bf16.gmra.mrb[0].mxu0 %v2501
      %v2601 = vpop.f32.mrb[0].mxu0
      %v2602 = vadd.f32 0.0, %v2601
      %v2603 = vpop.f32.mrb[0].mxu0
      %v2604 = vpop.f32.mrb[0].mxu0
      %v2605 = vadd.f32 0.0, %v2604
      %v2606 = vpop.f32.mrb[0].mxu0
      %2607 = vmatprep.mubr.bf16.mxu0 0
      %2608 = vmatmul.mubr.bf16.gmra.mrb[0].mxu0 %v2504
      %v2609 = vpop.f32.mrb[0].mxu0
      %v2610 = vadd.f32 0.0, %v2609
      %v2611 = vpop.f32.mrb[0].mxu0
      %v2612 = vpop.f32.mrb[0].mxu0
      %v2613 = vadd.f32 0.0, %v2612
      %v2614 = vpop.f32.mrb[0].mxu0
      %2615 = vmatprep.mubr.bf16.mxu0 0
      %2616 = vmatmul.mubr.bf16.gmra.mrb[0].mxu0 %v2507
      %v2617 = vpop.f32.mrb[0].mxu0
      %v2618 = vadd.f32 0.0, %v2617
      %v2619 = vpop.f32.mrb[0].mxu0
      %v2620 = vpop.f32.mrb[0].mxu0
      %v2621 = vadd.f32 0.0, %v2620
      %v2622 = vpop.f32.mrb[0].mxu0
      %2623 = vmatprep.mubr.bf16.mxu0 0
      %2624 = vmatmul.mubr.bf16.gmra.mrb[0].mxu0 %v2510
      %v2625 = vpop.f32.mrb[0].mxu0
      %v2626 = vadd.f32 0.0, %v2625
      %v2627 = vpop.f32.mrb[0].mxu0
      %v2628 = vpop.f32.mrb[0].mxu0
      %v2629 = vadd.f32 0.0, %v2628
      %v2630 = vpop.f32.mrb[0].mxu0
      %2631 = vmatprep.mubr.bf16.mxu0 0
      %2632 = vmatmul.mubr.bf16.gmra.mrb[0].mxu0 %v2513
      %v2633 = vpop.f32.mrb[0].mxu0
      %v2634 = vadd.f32 0.0, %v2633
      %v2635 = vpop.f32.mrb[0].mxu0
      %v2636 = vpop.f32.mrb[0].mxu0
      %v2637 = vadd.f32 0.0, %v2636
      %v2638 = vpop.f32.mrb[0].mxu0
      %2639 = vmatprep.mubr.bf16.mxu0 0
      %2640 = vmatmul.mubr.bf16.gmra.mrb[0].mxu0 %v2516
      %v2641 = vpop.f32.mrb[0].mxu0
      %v2642 = vadd.f32 0.0, %v2641
      %v2643 = vpop.f32.mrb[0].mxu0
      %v2644 = vpop.f32.mrb[0].mxu0
      %v2645 = vadd.f32 0.0, %v2644
      %v2646 = vpop.f32.mrb[0].mxu0
      %2647 = vmatprep.mubr.bf16.mxu0 0
      %2648 = vmatmul.mubr.bf16.gmra.mrb[0].mxu0 %v2519
      %v2649 = vpop.f32.mrb[0].mxu0
      %v2650 = vadd.f32 0.0, %v2649
      %v2651 = vpop.f32.mrb[0].mxu0
      %v2652 = vpop.f32.mrb[0].mxu0
      %v2653 = vadd.f32 0.0, %v2652
      %v2654 = vpop.f32.mrb[0].mxu0
      %2655 = vmatprep.mubr.bf16.mxu0 0
      %2656 = vmatmul.mubr.bf16.gmra.mrb[0].mxu0 %v2522
      %v2657 = vpop.f32.mrb[0].mxu0
      %v2658 = vadd.f32 0.0, %v2657
      %v2659 = vpop.f32.mrb[0].mxu0
      %v2660 = vpop.f32.mrb[0].mxu0
      %v2661 = vadd.f32 0.0, %v2660
      %v2662 = vpop.f32.mrb[0].mxu0
      %2663 = vmatprep.mubr.bf16.mxu0 0
      %2664 = vmatmul.mubr.bf16.gmra.mrb[0].mxu0 %v2525
      %v2665 = vpop.f32.mrb[0].mxu0
      %v2666 = vadd.f32 0.0, %v2665
      %v2667 = vpop.f32.mrb[0].mxu0
      %v2668 = vpop.f32.mrb[0].mxu0
      %v2669 = vadd.f32 0.0, %v2668
      %v2670 = vpop.f32.mrb[0].mxu0
      %2671 = vmatprep.mubr.bf16.mxu0 0
      %2672 = vmatmul.mubr.bf16.gmra.mrb[0].mxu0 %v2528
      %v2673 = vpop.f32.mrb[0].mxu0
      %v2674 = vadd.f32 0.0, %v2673
      %v2675 = vpop.f32.mrb[0].mxu0
      %v2676 = vpop.f32.mrb[0].mxu0
      %v2677 = vadd.f32 0.0, %v2676
      %v2678 = vpop.f32.mrb[0].mxu0
      %2679 = vmatprep.mubr.bf16.mxu0 0
      %2680 = vmatmul.mubr.bf16.gmra.mrb[0].mxu0 %v2531
      %v2681 = vpop.f32.mrb[0].mxu0
      %v2682 = vadd.f32 0.0, %v2681
      %v2683 = vpop.f32.mrb[0].mxu0
      %v2684 = vpop.f32.mrb[0].mxu0
      %v2685 = vadd.f32 0.0, %v2684
      %v2686 = vpop.f32.mrb[0].mxu0
      %2687 = vmatprep.mubr.bf16.mxu0 0
      %2688 = vmatmul.mubr.bf16.gmra.mrb[0].mxu0 %v2534
      %v2689 = vpop.f32.mrb[0].mxu0
      %v2690 = vadd.f32 0.0, %v2689
      %v2691 = vpop.f32.mrb[0].mxu0
      %v2692 = vpop.f32.mrb[0].mxu0
      %v2693 = vadd.f32 0.0, %v2692
      %v2694 = vpop.f32.mrb[0].mxu0
      %2695 = vmatprep.mubr.bf16.mxu0 0
      %2696 = vmatmul.mubr.bf16.gmra.mrb[0].mxu0 %v2537
      %v2697 = vpop.f32.mrb[0].mxu0
      %v2698 = vadd.f32 0.0, %v2697
      %v2699 = vpop.f32.mrb[0].mxu0
      %v2700 = vpop.f32.mrb[0].mxu0
      %v2701 = vadd.f32 0.0, %v2700
      %v2702 = vpop.f32.mrb[0].mxu0
      %2703 = vmatprep.mubr.bf16.mxu0 0
      %2704 = vmatmul.mubr.bf16.gmra.mrb[0].mxu0 %v2540
      %v2705 = vpop.f32.mrb[0].mxu0
      %v2706 = vadd.f32 0.0, %v2705
      %v2707 = vpop.f32.mrb[0].mxu0
      %v2708 = vpop.f32.mrb[0].mxu0
      %v2709 = vadd.f32 0.0, %v2708
      %v2710 = vpop.f32.mrb[0].mxu0
      %2711 = vmatprep.mubr.bf16.mxu0 0
      %2712 = vmatmul.mubr.bf16.gmra.mrb[0].mxu0 %v2543
      %v2713 = vpop.f32.mrb[0].mxu0
      %v2714 = vadd.f32 0.0, %v2713
      %v2715 = vpop.f32.mrb[0].mxu0
      %v2716 = vpop.f32.mrb[0].mxu0
      %v2717 = vadd.f32 0.0, %v2716
      %v2718 = vpop.f32.mrb[0].mxu0
      %2719 = vmatprep.mubr.bf16.mxu0 0
      %2720 = vmatmul.mubr.bf16.gmra.mrb[0].mxu0 %v2546
      %v2721 = vpop.f32.mrb[0].mxu0
      %v2722 = vadd.f32 0.0, %v2721
      %v2723 = vpop.f32.mrb[0].mxu0
      %v2724 = vpop.f32.mrb[0].mxu0
      %v2725 = vadd.f32 0.0, %v2724
      %v2726 = vpop.f32.mrb[0].mxu0
      %2727 = vdwg.mxu0
      %v2728 = vadd.f32 %v2289, %v2586
      %v2729 = vadd.f32 %v2290, %v2589
      %v2730 = vadd.f32 %v2291, %v2594
      %v2731 = vadd.f32 %v2292, %v2597
      %v2732 = vadd.f32 %v2293, %v2602
      %v2733 = vadd.f32 %v2294, %v2605
      %v2734 = vadd.f32 %v2295, %v2610
      %v2735 = vadd.f32 %v2296, %v2613
      %v2736 = vadd.f32 %v2297, %v2618
      %v2737 = vadd.f32 %v2298, %v2621
      %v2738 = vadd.f32 %v2299, %v2626
      %v2739 = vadd.f32 %v2300, %v2629
      %v2740 = vadd.f32 %v2301, %v2634
      %v2741 = vadd.f32 %v2302, %v2637
      %v2742 = vadd.f32 %v2303, %v2642
      %v2743 = vadd.f32 %v2304, %v2645
      %v2744 = vadd.f32 %v2305, %v2650
      %v2745 = vadd.f32 %v2306, %v2653
      %v2746 = vadd.f32 %v2307, %v2658
      %v2747 = vadd.f32 %v2308, %v2661
      %v2748 = vadd.f32 %v2309, %v2666
      %v2749 = vadd.f32 %v2310, %v2669
      %v2750 = vadd.f32 %v2311, %v2674
      %v2751 = vadd.f32 %v2312, %v2677
      %v2752 = vadd.f32 %v2313, %v2682
      %v2753 = vadd.f32 %v2314, %v2685
      %v2754 = vadd.f32 %v2315, %v2690
      %v2755 = vadd.f32 %v2316, %v2693
      %v2756 = vadd.f32 %v2317, %v2698
      %v2757 = vadd.f32 %v2318, %v2701
      %v2758 = vadd.f32 %v2319, %v2706
      %v2759 = vadd.f32 %v2320, %v2709
      %v2760 = vadd.f32 %v2321, %v2714
      %v2761 = vadd.f32 %v2322, %v2717
      %v2762 = vadd.f32 %v2323, %v2722
      %v2763 = vadd.f32 %v2324, %v2725
      %v2764 = vld [vmem:[#allocation2 + $0x98] sm:$0x3]
      %s2765 = scalar_lea.vmem %s4, 16
      %v2766 = vld [vmem:[%s2765] sm:$0xf]
      %v2768 = vunpack.c.l.b16 %v2764
      %v2769 = vpack.c.b16 %v2768, %v2768
      %vm2770 = vsmask.f32 6400
      %v2772 = vshrl.u32 %v2438, 16
      %v2774 = vrot.slane %v2772, 1
      %v2775 = vshll.u32 %v2438, 16
      %v2777 = vrot.slane %v2775, 2
      %v2778 = vor.u32 %v2774, %v2777
      %v2780 = vshrl.u32 %v2439, 16
      %v2782 = vrot.slane %v2780, 1
      %v2783 = vshll.u32 %v2439, 16
      %v2785 = vrot.slane %v2783, 2
      %v2786 = vor.u32 %v2782, %v2785
      %v2787 = vsel %vm2770, %v2778, %v2786
      %v2789 = vshrl.u32 %v2440, 16
      %v2791 = vrot.slane %v2789, 1
      %v2792 = vshll.u32 %v2440, 16
      %v2794 = vrot.slane %v2792, 2
      %v2795 = vor.u32 %v2791, %v2794
      %v2796 = vsel %vm2770, %v2786, %v2795
      %v2798 = vshrl.u32 %v2441, 16
      %v2800 = vrot.slane %v2798, 1
      %v2801 = vshll.u32 %v2441, 16
      %v2803 = vrot.slane %v2801, 2
      %v2804 = vor.u32 %v2800, %v2803
      %v2805 = vsel %vm2770, %v2795, %v2804
      %v2807 = vshrl.u32 %v2442, 16
      %v2809 = vrot.slane %v2807, 1
      %v2810 = vshll.u32 %v2442, 16
      %v2812 = vrot.slane %v2810, 2
      %v2813 = vor.u32 %v2809, %v2812
      %v2814 = vsel %vm2770, %v2804, %v2813
      %v2816 = vshrl.u32 %v2443, 16
      %v2818 = vrot.slane %v2816, 1
      %v2819 = vshll.u32 %v2443, 16
      %v2821 = vrot.slane %v2819, 2
      %v2822 = vor.u32 %v2818, %v2821
      %v2823 = vsel %vm2770, %v2813, %v2822
      %v2825 = vshrl.u32 %v2444, 16
      %v2827 = vrot.slane %v2825, 1
      %v2828 = vshll.u32 %v2444, 16
      %v2830 = vrot.slane %v2828, 2
      %v2831 = vor.u32 %v2827, %v2830
      %v2832 = vsel %vm2770, %v2822, %v2831
      %v2834 = vshrl.u32 %v2445, 16
      %v2836 = vrot.slane %v2834, 1
      %v2837 = vshll.u32 %v2445, 16
      %v2839 = vrot.slane %v2837, 2
      %v2840 = vor.u32 %v2836, %v2839
      %v2841 = vsel %vm2770, %v2831, %v2840
      %v2843 = vshrl.u32 %v2446, 16
      %v2845 = vrot.slane %v2843, 1
      %v2846 = vshll.u32 %v2446, 16
      %v2848 = vrot.slane %v2846, 2
      %v2849 = vor.u32 %v2845, %v2848
      %v2850 = vsel %vm2770, %v2840, %v2849
      %v2852 = vshrl.u32 %v2447, 16
      %v2854 = vrot.slane %v2852, 1
      %v2855 = vshll.u32 %v2447, 16
      %v2857 = vrot.slane %v2855, 2
      %v2858 = vor.u32 %v2854, %v2857
      %v2859 = vsel %vm2770, %v2849, %v2858
      %v2861 = vshrl.u32 %v2448, 16
      %v2863 = vrot.slane %v2861, 1
      %v2864 = vshll.u32 %v2448, 16
      %v2866 = vrot.slane %v2864, 2
      %v2867 = vor.u32 %v2863, %v2866
      %v2868 = vsel %vm2770, %v2858, %v2867
      %v2870 = vshrl.u32 %v2449, 16
      %v2872 = vrot.slane %v2870, 1
      %v2873 = vshll.u32 %v2449, 16
      %v2875 = vrot.slane %v2873, 2
      %v2876 = vor.u32 %v2872, %v2875
      %v2877 = vsel %vm2770, %v2867, %v2876
      %v2879 = vshrl.u32 %v2450, 16
      %v2881 = vrot.slane %v2879, 1
      %v2882 = vshll.u32 %v2450, 16
      %v2884 = vrot.slane %v2882, 2
      %v2885 = vor.u32 %v2881, %v2884
      %v2886 = vsel %vm2770, %v2876, %v2885
      %v2888 = vshrl.u32 %v2451, 16
      %v2890 = vrot.slane %v2888, 1
      %v2891 = vshll.u32 %v2451, 16
      %v2893 = vrot.slane %v2891, 2
      %v2894 = vor.u32 %v2890, %v2893
      %v2895 = vsel %vm2770, %v2885, %v2894
      %v2897 = vshrl.u32 %v2452, 16
      %v2899 = vrot.slane %v2897, 1
      %v2900 = vshll.u32 %v2452, 16
      %v2902 = vrot.slane %v2900, 2
      %v2903 = vor.u32 %v2899, %v2902
      %v2904 = vsel %vm2770, %v2894, %v2903
      %v2906 = vshrl.u32 %v2453, 16
      %v2908 = vrot.slane %v2906, 1
      %v2909 = vshll.u32 %v2453, 16
      %v2911 = vrot.slane %v2909, 2
      %v2912 = vor.u32 %v2908, %v2911
      %v2913 = vsel %vm2770, %v2903, %v2912
      %v2915 = vshrl.u32 %v2454, 16
      %v2917 = vrot.slane %v2915, 1
      %v2918 = vshll.u32 %v2454, 16
      %v2920 = vrot.slane %v2918, 2
      %v2921 = vor.u32 %v2917, %v2920
      %v2922 = vsel %vm2770, %v2912, %v2921
      %v2924 = vshrl.u32 %v2455, 16
      %v2926 = vrot.slane %v2924, 1
      %v2927 = vshll.u32 %v2455, 16
      %v2929 = vrot.slane %v2927, 2
      %v2930 = vor.u32 %v2926, %v2929
      %v2931 = vsel %vm2770, %v2921, %v2930
      %v2933 = vshrl.u32 %v2769, 16
      %v2935 = vrot.slane %v2933, 1
      %v2936 = vshll.u32 %v2769, 16
      %v2938 = vrot.slane %v2936, 2
      %v2939 = vor.u32 %v2935, %v2938
      %v2940 = vsel %vm2770, %v2930, %v2939
      %v2942 = vsel %vm1559, %v2787, 0
      %v2945 = vsel %vm1559, %v2796, 0
      %v2948 = vsel %vm1559, %v2805, 0
      %v2951 = vsel %vm1559, %v2814, 0
      %v2954 = vsel %vm1559, %v2823, 0
      %v2957 = vsel %vm1559, %v2832, 0
      %v2960 = vsel %vm1559, %v2841, 0
      %v2963 = vsel %vm1559, %v2850, 0
      %v2966 = vsel %vm1559, %v2859, 0
      %v2969 = vsel %vm1559, %v2868, 0
      %v2972 = vsel %vm1559, %v2877, 0
      %v2975 = vsel %vm1559, %v2886, 0
      %v2978 = vsel %vm1559, %v2895, 0
      %v2981 = vsel %vm1559, %v2904, 0
      %v2984 = vsel %vm1559, %v2913, 0
      %v2987 = vsel %vm1559, %v2922, 0
      %v2990 = vsel %vm1559, %v2931, 0
      %v2993 = vsel %vm1559, %v2940, 0
      %v2996 = vsel %vm1614, %v2766, 0
      %2998 = vmatprep.subr.bf16.mxu0 0
      %2999 = vmatpush1.bf16.msra.mxu0 %v2996
      %3000 = vmatprep.subr.bf16.mxu0 0
      %3001 = vmatpush1.bf16.msra.mxu0 0
      %3002 = vmatprep.subr.bf16.mxu0 0
      %3003 = vmatpush1.bf16.msra.mxu0 0
      %3004 = vmatprep.subr.bf16.mxu0 0
      %3005 = vmatpush1.bf16.msra.mxu0 0
      %3006 = vmatprep.subr.bf16.mxu0 0
      %3007 = vmatpush1.bf16.msra.mxu0 0
      %3008 = vmatprep.subr.bf16.mxu0 0
      %3009 = vmatpush1.bf16.msra.mxu0 0
      %3010 = vmatprep.subr.bf16.mxu0 0
      %3011 = vmatpush1.bf16.msra.mxu0 0
      %3012 = vmatprep.subr.bf16.mxu0 0
      %3013 = vmatpush1.bf16.msra.mxu0 0
      %3014 = vmatprep.subr.bf16.mxu0 0
      %3015 = vmatpush1.bf16.msra.mxu0 0
      %3016 = vmatprep.subr.bf16.mxu0 0
      %3017 = vmatpush1.bf16.msra.mxu0 0
      %3018 = vmatprep.subr.bf16.mxu0 0
      %3019 = vmatpush1.bf16.msra.mxu0 0
      %3020 = vmatprep.subr.bf16.mxu0 0
      %3021 = vmatpush1.bf16.msra.mxu0 0
      %3022 = vmatprep.subr.bf16.mxu0 0
      %3023 = vmatpush1.bf16.msra.mxu0 0
      %3024 = vmatprep.subr.bf16.mxu0 0
      %3025 = vmatpush1.bf16.msra.mxu0 0
      %3026 = vmatprep.subr.bf16.mxu0 0
      %3027 = vmatpush1.bf16.msra.mxu0 0
      %3028 = vmatprep.subr.bf16.mxu0 0
      %3029 = vmatpush1.bf16.msra.mxu0 0
      %3030 = vmatprep.mubr.bf16.mxu0 0
      %3031 = vmatmul.mubr.bf16.gmra.mrb[0].mxu0 %v2942
      %v3032 = vpop.f32.mrb[0].mxu0
      %v3033 = vadd.f32 0.0, %v3032
      %v3034 = vpop.f32.mrb[0].mxu0
      %v3035 = vpop.f32.mrb[0].mxu0
      %v3036 = vadd.f32 0.0, %v3035
      %v3037 = vpop.f32.mrb[0].mxu0
      %3038 = vmatprep.mubr.bf16.mxu0 0
      %3039 = vmatmul.mubr.bf16.gmra.mrb[0].mxu0 %v2945
      %v3040 = vpop.f32.mrb[0].mxu0
      %v3041 = vadd.f32 0.0, %v3040
      %v3042 = vpop.f32.mrb[0].mxu0
      %v3043 = vpop.f32.mrb[0].mxu0
      %v3044 = vadd.f32 0.0, %v3043
      %v3045 = vpop.f32.mrb[0].mxu0
      %3046 = vmatprep.mubr.bf16.mxu0 0
      %3047 = vmatmul.mubr.bf16.gmra.mrb[0].mxu0 %v2948
      %v3048 = vpop.f32.mrb[0].mxu0
      %v3049 = vadd.f32 0.0, %v3048
      %v3050 = vpop.f32.mrb[0].mxu0
      %v3051 = vpop.f32.mrb[0].mxu0
      %v3052 = vadd.f32 0.0, %v3051
      %v3053 = vpop.f32.mrb[0].mxu0
      %3054 = vmatprep.mubr.bf16.mxu0 0
      %3055 = vmatmul.mubr.bf16.gmra.mrb[0].mxu0 %v2951
      %v3056 = vpop.f32.mrb[0].mxu0
      %v3057 = vadd.f32 0.0, %v3056
      %v3058 = vpop.f32.mrb[0].mxu0
      %v3059 = vpop.f32.mrb[0].mxu0
      %v3060 = vadd.f32 0.0, %v3059
      %v3061 = vpop.f32.mrb[0].mxu0
      %3062 = vmatprep.mubr.bf16.mxu0 0
      %3063 = vmatmul.mubr.bf16.gmra.mrb[0].mxu0 %v2954
      %v3064 = vpop.f32.mrb[0].mxu0
      %v3065 = vadd.f32 0.0, %v3064
      %v3066 = vpop.f32.mrb[0].mxu0
      %v3067 = vpop.f32.mrb[0].mxu0
      %v3068 = vadd.f32 0.0, %v3067
      %v3069 = vpop.f32.mrb[0].mxu0
      %3070 = vmatprep.mubr.bf16.mxu0 0
      %3071 = vmatmul.mubr.bf16.gmra.mrb[0].mxu0 %v2957
      %v3072 = vpop.f32.mrb[0].mxu0
      %v3073 = vadd.f32 0.0, %v3072
      %v3074 = vpop.f32.mrb[0].mxu0
      %v3075 = vpop.f32.mrb[0].mxu0
      %v3076 = vadd.f32 0.0, %v3075
      %v3077 = vpop.f32.mrb[0].mxu0
      %3078 = vmatprep.mubr.bf16.mxu0 0
      %3079 = vmatmul.mubr.bf16.gmra.mrb[0].mxu0 %v2960
      %v3080 = vpop.f32.mrb[0].mxu0
      %v3081 = vadd.f32 0.0, %v3080
      %v3082 = vpop.f32.mrb[0].mxu0
      %v3083 = vpop.f32.mrb[0].mxu0
      %v3084 = vadd.f32 0.0, %v3083
      %v3085 = vpop.f32.mrb[0].mxu0
      %3086 = vmatprep.mubr.bf16.mxu0 0
      %3087 = vmatmul.mubr.bf16.gmra.mrb[0].mxu0 %v2963
      %v3088 = vpop.f32.mrb[0].mxu0
      %v3089 = vadd.f32 0.0, %v3088
      %v3090 = vpop.f32.mrb[0].mxu0
      %v3091 = vpop.f32.mrb[0].mxu0
      %v3092 = vadd.f32 0.0, %v3091
      %v3093 = vpop.f32.mrb[0].mxu0
      %3094 = vmatprep.mubr.bf16.mxu0 0
      %3095 = vmatmul.mubr.bf16.gmra.mrb[0].mxu0 %v2966
      %v3096 = vpop.f32.mrb[0].mxu0
      %v3097 = vadd.f32 0.0, %v3096
      %v3098 = vpop.f32.mrb[0].mxu0
      %v3099 = vpop.f32.mrb[0].mxu0
      %v3100 = vadd.f32 0.0, %v3099
      %v3101 = vpop.f32.mrb[0].mxu0
      %3102 = vmatprep.mubr.bf16.mxu0 0
      %3103 = vmatmul.mubr.bf16.gmra.mrb[0].mxu0 %v2969
      %v3104 = vpop.f32.mrb[0].mxu0
      %v3105 = vadd.f32 0.0, %v3104
      %v3106 = vpop.f32.mrb[0].mxu0
      %v3107 = vpop.f32.mrb[0].mxu0
      %v3108 = vadd.f32 0.0, %v3107
      %v3109 = vpop.f32.mrb[0].mxu0
      %3110 = vmatprep.mubr.bf16.mxu0 0
      %3111 = vmatmul.mubr.bf16.gmra.mrb[0].mxu0 %v2972
      %v3112 = vpop.f32.mrb[0].mxu0
      %v3113 = vadd.f32 0.0, %v3112
      %v3114 = vpop.f32.mrb[0].mxu0
      %v3115 = vpop.f32.mrb[0].mxu0
      %v3116 = vadd.f32 0.0, %v3115
      %v3117 = vpop.f32.mrb[0].mxu0
      %3118 = vmatprep.mubr.bf16.mxu0 0
      %3119 = vmatmul.mubr.bf16.gmra.mrb[0].mxu0 %v2975
      %v3120 = vpop.f32.mrb[0].mxu0
      %v3121 = vadd.f32 0.0, %v3120
      %v3122 = vpop.f32.mrb[0].mxu0
      %v3123 = vpop.f32.mrb[0].mxu0
      %v3124 = vadd.f32 0.0, %v3123
      %v3125 = vpop.f32.mrb[0].mxu0
      %3126 = vmatprep.mubr.bf16.mxu0 0
      %3127 = vmatmul.mubr.bf16.gmra.mrb[0].mxu0 %v2978
      %v3128 = vpop.f32.mrb[0].mxu0
      %v3129 = vadd.f32 0.0, %v3128
      %v3130 = vpop.f32.mrb[0].mxu0
      %v3131 = vpop.f32.mrb[0].mxu0
      %v3132 = vadd.f32 0.0, %v3131
      %v3133 = vpop.f32.mrb[0].mxu0
      %3134 = vmatprep.mubr.bf16.mxu0 0
      %3135 = vmatmul.mubr.bf16.gmra.mrb[0].mxu0 %v2981
      %v3136 = vpop.f32.mrb[0].mxu0
      %v3137 = vadd.f32 0.0, %v3136
      %v3138 = vpop.f32.mrb[0].mxu0
      %v3139 = vpop.f32.mrb[0].mxu0
      %v3140 = vadd.f32 0.0, %v3139
      %v3141 = vpop.f32.mrb[0].mxu0
      %3142 = vmatprep.mubr.bf16.mxu0 0
      %3143 = vmatmul.mubr.bf16.gmra.mrb[0].mxu0 %v2984
      %v3144 = vpop.f32.mrb[0].mxu0
      %v3145 = vadd.f32 0.0, %v3144
      %v3146 = vpop.f32.mrb[0].mxu0
      %v3147 = vpop.f32.mrb[0].mxu0
      %v3148 = vadd.f32 0.0, %v3147
      %v3149 = vpop.f32.mrb[0].mxu0
      %3150 = vmatprep.mubr.bf16.mxu0 0
      %3151 = vmatmul.mubr.bf16.gmra.mrb[0].mxu0 %v2987
      %v3152 = vpop.f32.mrb[0].mxu0
      %v3153 = vadd.f32 0.0, %v3152
      %v3154 = vpop.f32.mrb[0].mxu0
      %v3155 = vpop.f32.mrb[0].mxu0
      %v3156 = vadd.f32 0.0, %v3155
      %v3157 = vpop.f32.mrb[0].mxu0
      %3158 = vmatprep.mubr.bf16.mxu0 0
      %3159 = vmatmul.mubr.bf16.gmra.mrb[0].mxu0 %v2990
      %v3160 = vpop.f32.mrb[0].mxu0
      %v3161 = vadd.f32 0.0, %v3160
      %v3162 = vpop.f32.mrb[0].mxu0
      %v3163 = vpop.f32.mrb[0].mxu0
      %v3164 = vadd.f32 0.0, %v3163
      %v3165 = vpop.f32.mrb[0].mxu0
      %3166 = vmatprep.mubr.bf16.mxu0 0
      %3167 = vmatmul.mubr.bf16.gmra.mrb[0].mxu0 %v2993
      %v3168 = vpop.f32.mrb[0].mxu0
      %v3169 = vadd.f32 0.0, %v3168
      %v3170 = vpop.f32.mrb[0].mxu0
      %v3171 = vpop.f32.mrb[0].mxu0
      %v3172 = vadd.f32 0.0, %v3171
      %v3173 = vpop.f32.mrb[0].mxu0
      %3174 = vdwg.mxu0
      %v3175 = vadd.f32 %v2728, %v3033
      %v3176 = vadd.f32 %v2729, %v3036
      %v3177 = vadd.f32 %v2730, %v3041
      %v3178 = vadd.f32 %v2731, %v3044
      %v3179 = vadd.f32 %v2732, %v3049
      %v3180 = vadd.f32 %v2733, %v3052
      %v3181 = vadd.f32 %v2734, %v3057
      %v3182 = vadd.f32 %v2735, %v3060
      %v3183 = vadd.f32 %v2736, %v3065
      %v3184 = vadd.f32 %v2737, %v3068
      %v3185 = vadd.f32 %v2738, %v3073
      %v3186 = vadd.f32 %v2739, %v3076
      %v3187 = vadd.f32 %v2740, %v3081
      %v3188 = vadd.f32 %v2741, %v3084
      %v3189 = vadd.f32 %v2742, %v3089
      %v3190 = vadd.f32 %v2743, %v3092
      %v3191 = vadd.f32 %v2744, %v3097
      %v3192 = vadd.f32 %v2745, %v3100
      %v3193 = vadd.f32 %v2746, %v3105
      %v3194 = vadd.f32 %v2747, %v3108
      %v3195 = vadd.f32 %v2748, %v3113
      %v3196 = vadd.f32 %v2749, %v3116
      %v3197 = vadd.f32 %v2750, %v3121
      %v3198 = vadd.f32 %v2751, %v3124
      %v3199 = vadd.f32 %v2752, %v3129
      %v3200 = vadd.f32 %v2753, %v3132
      %v3201 = vadd.f32 %v2754, %v3137
      %v3202 = vadd.f32 %v2755, %v3140
      %v3203 = vadd.f32 %v2756, %v3145
      %v3204 = vadd.f32 %v2757, %v3148
      %v3205 = vadd.f32 %v2758, %v3153
      %v3206 = vadd.f32 %v2759, %v3156
      %v3207 = vadd.f32 %v2760, %v3161
      %v3208 = vadd.f32 %v2761, %v3164
      %v3209 = vadd.f32 %v2762, %v3169
      %v3210 = vadd.f32 %v2763, %v3172
      %v3211 = vld [vmem:[#allocation2 + $0x8] sm:$0xc]
      %s3212 = scalar_lea.vmem %s4, 20
      %v3213 = vld [vmem:[%s3212] sm:$0xf]
      %v3215 = vunpack.c.l.b16 %v3211
      %v3216 = vpack.c.b16 %v2402, %v3215
      %vm3217 = vcmask 1045504
      %v3218 = vrot.slane %v3216, 2
      %v3219 = vrot.slane %v2439, 2
      %v3220 = vsel %vm3217, %v3218, %v3219
      %v3221 = vrot.slane %v2440, 2
      %v3222 = vsel %vm3217, %v3219, %v3221
      %v3223 = vrot.slane %v2441, 2
      %v3224 = vsel %vm3217, %v3221, %v3223
      %v3225 = vrot.slane %v2442, 2
      %v3226 = vsel %vm3217, %v3223, %v3225
      %v3227 = vrot.slane %v2443, 2
      %v3228 = vsel %vm3217, %v3225, %v3227
      %v3229 = vrot.slane %v2444, 2
      %v3230 = vsel %vm3217, %v3227, %v3229
      %v3231 = vrot.slane %v2445, 2
      %v3232 = vsel %vm3217, %v3229, %v3231
      %v3233 = vrot.slane %v2446, 2
      %v3234 = vsel %vm3217, %v3231, %v3233
      %v3235 = vrot.slane %v2447, 2
      %v3236 = vsel %vm3217, %v3233, %v3235
      %v3237 = vrot.slane %v2448, 2
      %v3238 = vsel %vm3217, %v3235, %v3237
      %v3239 = vrot.slane %v2449, 2
      %v3240 = vsel %vm3217, %v3237, %v3239
      %v3241 = vrot.slane %v2450, 2
      %v3242 = vsel %vm3217, %v3239, %v3241
      %v3243 = vrot.slane %v2451, 2
      %v3244 = vsel %vm3217, %v3241, %v3243
      %v3245 = vrot.slane %v2452, 2
      %v3246 = vsel %vm3217, %v3243, %v3245
      %v3247 = vrot.slane %v2453, 2
      %v3248 = vsel %vm3217, %v3245, %v3247
      %v3249 = vrot.slane %v2454, 2
      %v3250 = vsel %vm3217, %v3247, %v3249
      %v3251 = vrot.slane %v2455, 2
      %v3252 = vsel %vm3217, %v3249, %v3251
      %v3253 = vrot.slane %v2769, 2
      %v3254 = vsel %vm3217, %v3251, %v3253
      %v3256 = vsel %vm1559, %v3220, 0
      %v3259 = vsel %vm1559, %v3222, 0
      %v3262 = vsel %vm1559, %v3224, 0
      %v3265 = vsel %vm1559, %v3226, 0
      %v3268 = vsel %vm1559, %v3228, 0
      %v3271 = vsel %vm1559, %v3230, 0
      %v3274 = vsel %vm1559, %v3232, 0
      %v3277 = vsel %vm1559, %v3234, 0
      %v3280 = vsel %vm1559, %v3236, 0
      %v3283 = vsel %vm1559, %v3238, 0
      %v3286 = vsel %vm1559, %v3240, 0
      %v3289 = vsel %vm1559, %v3242, 0
      %v3292 = vsel %vm1559, %v3244, 0
      %v3295 = vsel %vm1559, %v3246, 0
      %v3298 = vsel %vm1559, %v3248, 0
      %v3301 = vsel %vm1559, %v3250, 0
      %v3304 = vsel %vm1559, %v3252, 0
      %v3307 = vsel %vm1559, %v3254, 0
      %v3310 = vsel %vm1614, %v3213, 0
      %3312 = vmatprep.subr.bf16.mxu0 0
      %3313 = vmatpush1.bf16.msra.mxu0 %v3310
      %3314 = vmatprep.subr.bf16.mxu0 0
      %3315 = vmatpush1.bf16.msra.mxu0 0
      %3316 = vmatprep.subr.bf16.mxu0 0
      %3317 = vmatpush1.bf16.msra.mxu0 0
      %3318 = vmatprep.subr.bf16.mxu0 0
      %3319 = vmatpush1.bf16.msra.mxu0 0
      %3320 = vmatprep.subr.bf16.mxu0 0
      %3321 = vmatpush1.bf16.msra.mxu0 0
      %3322 = vmatprep.subr.bf16.mxu0 0
      %3323 = vmatpush1.bf16.msra.mxu0 0
      %3324 = vmatprep.subr.bf16.mxu0 0
      %3325 = vmatpush1.bf16.msra.mxu0 0
      %3326 = vmatprep.subr.bf16.mxu0 0
      %3327 = vmatpush1.bf16.msra.mxu0 0
      %3328 = vmatprep.subr.bf16.mxu0 0
      %3329 = vmatpush1.bf16.msra.mxu0 0
      %3330 = vmatprep.subr.bf16.mxu0 0
      %3331 = vmatpush1.bf16.msra.mxu0 0
      %3332 = vmatprep.subr.bf16.mxu0 0
      %3333 = vmatpush1.bf16.msra.mxu0 0
      %3334 = vmatprep.subr.bf16.mxu0 0
      %3335 = vmatpush1.bf16.msra.mxu0 0
      %3336 = vmatprep.subr.bf16.mxu0 0
      %3337 = vmatpush1.bf16.msra.mxu0 0
      %3338 = vmatprep.subr.bf16.mxu0 0
      %3339 = vmatpush1.bf16.msra.mxu0 0
      %3340 = vmatprep.subr.bf16.mxu0 0
      %3341 = vmatpush1.bf16.msra.mxu0 0
      %3342 = vmatprep.subr.bf16.mxu0 0
      %3343 = vmatpush1.bf16.msra.mxu0 0
      %3344 = vmatprep.mubr.bf16.mxu0 0
      %3345 = vmatmul.mubr.bf16.gmra.mrb[0].mxu0 %v3256
      %v3346 = vpop.f32.mrb[0].mxu0
      %v3347 = vadd.f32 0.0, %v3346
      %v3348 = vpop.f32.mrb[0].mxu0
      %v3349 = vpop.f32.mrb[0].mxu0
      %v3350 = vadd.f32 0.0, %v3349
      %v3351 = vpop.f32.mrb[0].mxu0
      %3352 = vmatprep.mubr.bf16.mxu0 0
      %3353 = vmatmul.mubr.bf16.gmra.mrb[0].mxu0 %v3259
      %v3354 = vpop.f32.mrb[0].mxu0
      %v3355 = vadd.f32 0.0, %v3354
      %v3356 = vpop.f32.mrb[0].mxu0
      %v3357 = vpop.f32.mrb[0].mxu0
      %v3358 = vadd.f32 0.0, %v3357
      %v3359 = vpop.f32.mrb[0].mxu0
      %3360 = vmatprep.mubr.bf16.mxu0 0
      %3361 = vmatmul.mubr.bf16.gmra.mrb[0].mxu0 %v3262
      %v3362 = vpop.f32.mrb[0].mxu0
      %v3363 = vadd.f32 0.0, %v3362
      %v3364 = vpop.f32.mrb[0].mxu0
      %v3365 = vpop.f32.mrb[0].mxu0
      %v3366 = vadd.f32 0.0, %v3365
      %v3367 = vpop.f32.mrb[0].mxu0
      %3368 = vmatprep.mubr.bf16.mxu0 0
      %3369 = vmatmul.mubr.bf16.gmra.mrb[0].mxu0 %v3265
      %v3370 = vpop.f32.mrb[0].mxu0
      %v3371 = vadd.f32 0.0, %v3370
      %v3372 = vpop.f32.mrb[0].mxu0
      %v3373 = vpop.f32.mrb[0].mxu0
      %v3374 = vadd.f32 0.0, %v3373
      %v3375 = vpop.f32.mrb[0].mxu0
      %3376 = vmatprep.mubr.bf16.mxu0 0
      %3377 = vmatmul.mubr.bf16.gmra.mrb[0].mxu0 %v3268
      %v3378 = vpop.f32.mrb[0].mxu0
      %v3379 = vadd.f32 0.0, %v3378
      %v3380 = vpop.f32.mrb[0].mxu0
      %v3381 = vpop.f32.mrb[0].mxu0
      %v3382 = vadd.f32 0.0, %v3381
      %v3383 = vpop.f32.mrb[0].mxu0
      %3384 = vmatprep.mubr.bf16.mxu0 0
      %3385 = vmatmul.mubr.bf16.gmra.mrb[0].mxu0 %v3271
      %v3386 = vpop.f32.mrb[0].mxu0
      %v3387 = vadd.f32 0.0, %v3386
      %v3388 = vpop.f32.mrb[0].mxu0
      %v3389 = vpop.f32.mrb[0].mxu0
      %v3390 = vadd.f32 0.0, %v3389
      %v3391 = vpop.f32.mrb[0].mxu0
      %3392 = vmatprep.mubr.bf16.mxu0 0
      %3393 = vmatmul.mubr.bf16.gmra.mrb[0].mxu0 %v3274
      %v3394 = vpop.f32.mrb[0].mxu0
      %v3395 = vadd.f32 0.0, %v3394
      %v3396 = vpop.f32.mrb[0].mxu0
      %v3397 = vpop.f32.mrb[0].mxu0
      %v3398 = vadd.f32 0.0, %v3397
      %v3399 = vpop.f32.mrb[0].mxu0
      %3400 = vmatprep.mubr.bf16.mxu0 0
      %3401 = vmatmul.mubr.bf16.gmra.mrb[0].mxu0 %v3277
      %v3402 = vpop.f32.mrb[0].mxu0
      %v3403 = vadd.f32 0.0, %v3402
      %v3404 = vpop.f32.mrb[0].mxu0
      %v3405 = vpop.f32.mrb[0].mxu0
      %v3406 = vadd.f32 0.0, %v3405
      %v3407 = vpop.f32.mrb[0].mxu0
      %3408 = vmatprep.mubr.bf16.mxu0 0
      %3409 = vmatmul.mubr.bf16.gmra.mrb[0].mxu0 %v3280
      %v3410 = vpop.f32.mrb[0].mxu0
      %v3411 = vadd.f32 0.0, %v3410
      %v3412 = vpop.f32.mrb[0].mxu0
      %v3413 = vpop.f32.mrb[0].mxu0
      %v3414 = vadd.f32 0.0, %v3413
      %v3415 = vpop.f32.mrb[0].mxu0
      %3416 = vmatprep.mubr.bf16.mxu0 0
      %3417 = vmatmul.mubr.bf16.gmra.mrb[0].mxu0 %v3283
      %v3418 = vpop.f32.mrb[0].mxu0
      %v3419 = vadd.f32 0.0, %v3418
      %v3420 = vpop.f32.mrb[0].mxu0
      %v3421 = vpop.f32.mrb[0].mxu0
      %v3422 = vadd.f32 0.0, %v3421
      %v3423 = vpop.f32.mrb[0].mxu0
      %3424 = vmatprep.mubr.bf16.mxu0 0
      %3425 = vmatmul.mubr.bf16.gmra.mrb[0].mxu0 %v3286
      %v3426 = vpop.f32.mrb[0].mxu0
      %v3427 = vadd.f32 0.0, %v3426
      %v3428 = vpop.f32.mrb[0].mxu0
      %v3429 = vpop.f32.mrb[0].mxu0
      %v3430 = vadd.f32 0.0, %v3429
      %v3431 = vpop.f32.mrb[0].mxu0
      %3432 = vmatprep.mubr.bf16.mxu0 0
      %3433 = vmatmul.mubr.bf16.gmra.mrb[0].mxu0 %v3289
      %v3434 = vpop.f32.mrb[0].mxu0
      %v3435 = vadd.f32 0.0, %v3434
      %v3436 = vpop.f32.mrb[0].mxu0
      %v3437 = vpop.f32.mrb[0].mxu0
      %v3438 = vadd.f32 0.0, %v3437
      %v3439 = vpop.f32.mrb[0].mxu0
      %3440 = vmatprep.mubr.bf16.mxu0 0
      %3441 = vmatmul.mubr.bf16.gmra.mrb[0].mxu0 %v3292
      %v3442 = vpop.f32.mrb[0].mxu0
      %v3443 = vadd.f32 0.0, %v3442
      %v3444 = vpop.f32.mrb[0].mxu0
      %v3445 = vpop.f32.mrb[0].mxu0
      %v3446 = vadd.f32 0.0, %v3445
      %v3447 = vpop.f32.mrb[0].mxu0
      %3448 = vmatprep.mubr.bf16.mxu0 0
      %3449 = vmatmul.mubr.bf16.gmra.mrb[0].mxu0 %v3295
      %v3450 = vpop.f32.mrb[0].mxu0
      %v3451 = vadd.f32 0.0, %v3450
      %v3452 = vpop.f32.mrb[0].mxu0
      %v3453 = vpop.f32.mrb[0].mxu0
      %v3454 = vadd.f32 0.0, %v3453
      %v3455 = vpop.f32.mrb[0].mxu0
      %3456 = vmatprep.mubr.bf16.mxu0 0
      %3457 = vmatmul.mubr.bf16.gmra.mrb[0].mxu0 %v3298
      %v3458 = vpop.f32.mrb[0].mxu0
      %v3459 = vadd.f32 0.0, %v3458
      %v3460 = vpop.f32.mrb[0].mxu0
      %v3461 = vpop.f32.mrb[0].mxu0
      %v3462 = vadd.f32 0.0, %v3461
      %v3463 = vpop.f32.mrb[0].mxu0
      %3464 = vmatprep.mubr.bf16.mxu0 0
      %3465 = vmatmul.mubr.bf16.gmra.mrb[0].mxu0 %v3301
      %v3466 = vpop.f32.mrb[0].mxu0
      %v3467 = vadd.f32 0.0, %v3466
      %v3468 = vpop.f32.mrb[0].mxu0
      %v3469 = vpop.f32.mrb[0].mxu0
      %v3470 = vadd.f32 0.0, %v3469
      %v3471 = vpop.f32.mrb[0].mxu0
      %3472 = vmatprep.mubr.bf16.mxu0 0
      %3473 = vmatmul.mubr.bf16.gmra.mrb[0].mxu0 %v3304
      %v3474 = vpop.f32.mrb[0].mxu0
      %v3475 = vadd.f32 0.0, %v3474
      %v3476 = vpop.f32.mrb[0].mxu0
      %v3477 = vpop.f32.mrb[0].mxu0
      %v3478 = vadd.f32 0.0, %v3477
      %v3479 = vpop.f32.mrb[0].mxu0
      %3480 = vmatprep.mubr.bf16.mxu0 0
      %3481 = vmatmul.mubr.bf16.gmra.mrb[0].mxu0 %v3307
      %v3482 = vpop.f32.mrb[0].mxu0
      %v3483 = vadd.f32 0.0, %v3482
      %v3484 = vpop.f32.mrb[0].mxu0
      %v3485 = vpop.f32.mrb[0].mxu0
      %v3486 = vadd.f32 0.0, %v3485
      %v3487 = vpop.f32.mrb[0].mxu0
      %3488 = vdwg.mxu0
      %v3489 = vadd.f32 %v3175, %v3347
      %v3490 = vadd.f32 %v3176, %v3350
      %v3491 = vadd.f32 %v3177, %v3355
      %v3492 = vadd.f32 %v3178, %v3358
      %v3493 = vadd.f32 %v3179, %v3363
      %v3494 = vadd.f32 %v3180, %v3366
      %v3495 = vadd.f32 %v3181, %v3371
      %v3496 = vadd.f32 %v3182, %v3374
      %v3497 = vadd.f32 %v3183, %v3379
      %v3498 = vadd.f32 %v3184, %v3382
      %v3499 = vadd.f32 %v3185, %v3387
      %v3500 = vadd.f32 %v3186, %v3390
      %v3501 = vadd.f32 %v3187, %v3395
      %v3502 = vadd.f32 %v3188, %v3398
      %v3503 = vadd.f32 %v3189, %v3403
      %v3504 = vadd.f32 %v3190, %v3406
      %v3505 = vadd.f32 %v3191, %v3411
      %v3506 = vadd.f32 %v3192, %v3414
      %v3507 = vadd.f32 %v3193, %v3419
      %v3508 = vadd.f32 %v3194, %v3422
      %v3509 = vadd.f32 %v3195, %v3427
      %v3510 = vadd.f32 %v3196, %v3430
      %v3511 = vadd.f32 %v3197, %v3435
      %v3512 = vadd.f32 %v3198, %v3438
      %v3513 = vadd.f32 %v3199, %v3443
      %v3514 = vadd.f32 %v3200, %v3446
      %v3515 = vadd.f32 %v3201, %v3451
      %v3516 = vadd.f32 %v3202, %v3454
      %v3517 = vadd.f32 %v3203, %v3459
      %v3518 = vadd.f32 %v3204, %v3462
      %v3519 = vadd.f32 %v3205, %v3467
      %v3520 = vadd.f32 %v3206, %v3470
      %v3521 = vadd.f32 %v3207, %v3475
      %v3522 = vadd.f32 %v3208, %v3478
      %v3523 = vadd.f32 %v3209, %v3483
      %v3524 = vadd.f32 %v3210, %v3486
      %v3525 = vld [vmem:[#allocation2 + $0x10] sm:$0xc]
      %v3526 = vld [vmem:[#allocation2 + $0x14] sm:$0xf]
      %v3527 = vld [vmem:[#allocation2 + $0x18] sm:$0xf]
      %v3528 = vld [vmem:[#allocation2 + $0x1c] sm:$0xf]
      %v3529 = vld [vmem:[#allocation2 + $0x20] sm:$0xf]
      %v3530 = vld [vmem:[#allocation2 + $0x24] sm:$0xf]
      %v3531 = vld [vmem:[#allocation2 + $0x28] sm:$0xf]
      %v3532 = vld [vmem:[#allocation2 + $0x2c] sm:$0xf]
      %v3533 = vld [vmem:[#allocation2 + $0x30] sm:$0xf]
      %v3534 = vld [vmem:[#allocation2 + $0x34] sm:$0xf]
      %v3535 = vld [vmem:[#allocation2 + $0x38] sm:$0xf]
      %v3536 = vld [vmem:[#allocation2 + $0x3c] sm:$0xf]
      %v3537 = vld [vmem:[#allocation2 + $0x40] sm:$0xf]
      %v3538 = vld [vmem:[#allocation2 + $0x44] sm:$0xf]
      %v3539 = vld [vmem:[#allocation2 + $0x48] sm:$0xf]
      %v3540 = vld [vmem:[#allocation2 + $0x4c] sm:$0xf]
      %v3541 = vld [vmem:[#allocation2 + $0x50] sm:$0xf]
      %v3542 = vld [vmem:[#allocation2 + $0x54] sm:$0xf]
      %v3543 = vld [vmem:[#allocation2 + $0x58] sm:$0xf]
      %v3544 = vld [vmem:[#allocation2 + $0x5c] sm:$0xf]
      %v3545 = vld [vmem:[#allocation2 + $0x60] sm:$0xf]
      %v3546 = vld [vmem:[#allocation2 + $0x64] sm:$0xf]
      %v3547 = vld [vmem:[#allocation2 + $0x68] sm:$0xf]
      %v3548 = vld [vmem:[#allocation2 + $0x6c] sm:$0xf]
      %v3549 = vld [vmem:[#allocation2 + $0x70] sm:$0xf]
      %v3550 = vld [vmem:[#allocation2 + $0x74] sm:$0xf]
      %v3551 = vld [vmem:[#allocation2 + $0x78] sm:$0xf]
      %v3552 = vld [vmem:[#allocation2 + $0x7c] sm:$0xf]
      %v3553 = vld [vmem:[#allocation2 + $0x80] sm:$0xf]
      %v3554 = vld [vmem:[#allocation2 + $0x84] sm:$0xf]
      %v3555 = vld [vmem:[#allocation2 + $0x88] sm:$0xf]
      %v3556 = vld [vmem:[#allocation2 + $0x8c] sm:$0xf]
      %v3557 = vld [vmem:[#allocation2 + $0x90] sm:$0xf]
      %v3558 = vld [vmem:[#allocation2 + $0x94] sm:$0xf]
      %v3559 = vld [vmem:[#allocation2 + $0x98] sm:$0xf]
      %v3560 = vld [vmem:[#allocation2 + $0x9c] sm:$0xf]
      %v3561 = vld [vmem:[#allocation2 + $0xa0] sm:$0x3]
      %s3562 = scalar_lea.vmem %s4, 24
      %v3563 = vld [vmem:[%s3562] sm:$0xf]
      %v3601 = vunpack.c.l.b16 %v3525
      %v3602 = vunpack.c.l.b16 %v3526
      %v3603 = vunpack.c.l.b16 %v3527
      %v3604 = vunpack.c.l.b16 %v3528
      %v3605 = vunpack.c.l.b16 %v3529
      %v3606 = vunpack.c.l.b16 %v3530
      %v3607 = vunpack.c.l.b16 %v3531
      %v3608 = vunpack.c.l.b16 %v3532
      %v3609 = vunpack.c.l.b16 %v3533
      %v3610 = vunpack.c.l.b16 %v3534
      %v3611 = vunpack.c.l.b16 %v3535
      %v3612 = vunpack.c.l.b16 %v3536
      %v3613 = vunpack.c.l.b16 %v3537
      %v3614 = vunpack.c.l.b16 %v3538
      %v3615 = vunpack.c.l.b16 %v3539
      %v3616 = vunpack.c.l.b16 %v3540
      %v3617 = vunpack.c.l.b16 %v3541
      %v3618 = vunpack.c.l.b16 %v3542
      %v3619 = vunpack.c.l.b16 %v3543
      %v3620 = vunpack.c.l.b16 %v3544
      %v3621 = vunpack.c.l.b16 %v3545
      %v3622 = vunpack.c.l.b16 %v3546
      %v3623 = vunpack.c.l.b16 %v3547
      %v3624 = vunpack.c.l.b16 %v3548
      %v3625 = vunpack.c.l.b16 %v3549
      %v3626 = vunpack.c.l.b16 %v3550
      %v3627 = vunpack.c.l.b16 %v3551
      %v3628 = vunpack.c.l.b16 %v3552
      %v3629 = vunpack.c.l.b16 %v3553
      %v3630 = vunpack.c.l.b16 %v3554
      %v3631 = vunpack.c.l.b16 %v3555
      %v3632 = vunpack.c.l.b16 %v3556
      %v3633 = vunpack.c.l.b16 %v3557
      %v3634 = vunpack.c.l.b16 %v3558
      %v3635 = vunpack.c.l.b16 %v3559
      %v3636 = vunpack.c.l.b16 %v3560
      %v3637 = vunpack.c.l.b16 %v3561
      %v3638 = vpack.c.b16 %v3602, %v3601
      %v3639 = vpack.c.b16 %v3604, %v3603
      %v3640 = vpack.c.b16 %v3606, %v3605
      %v3641 = vpack.c.b16 %v3608, %v3607
      %v3642 = vpack.c.b16 %v3610, %v3609
      %v3643 = vpack.c.b16 %v3612, %v3611
      %v3644 = vpack.c.b16 %v3614, %v3613
      %v3645 = vpack.c.b16 %v3616, %v3615
      %v3646 = vpack.c.b16 %v3618, %v3617
      %v3647 = vpack.c.b16 %v3620, %v3619
      %v3648 = vpack.c.b16 %v3622, %v3621
      %v3649 = vpack.c.b16 %v3624, %v3623
      %v3650 = vpack.c.b16 %v3626, %v3625
      %v3651 = vpack.c.b16 %v3628, %v3627
      %v3652 = vpack.c.b16 %v3630, %v3629
      %v3653 = vpack.c.b16 %v3632, %v3631
      %v3654 = vpack.c.b16 %v3634, %v3633
      %v3655 = vpack.c.b16 %v3636, %v3635
      %v3656 = vpack.c.b16 %v3637, %v3637
      %v3657 = vrot.slane %v3638, 2
      %v3658 = vrot.slane %v3639, 2
      %v3659 = vsel %vm3217, %v3657, %v3658
      %v3660 = vrot.slane %v3640, 2
      %v3661 = vsel %vm3217, %v3658, %v3660
      %v3662 = vrot.slane %v3641, 2
      %v3663 = vsel %vm3217, %v3660, %v3662
      %v3664 = vrot.slane %v3642, 2
      %v3665 = vsel %vm3217, %v3662, %v3664
      %v3666 = vrot.slane %v3643, 2
      %v3667 = vsel %vm3217, %v3664, %v3666
      %v3668 = vrot.slane %v3644, 2
      %v3669 = vsel %vm3217, %v3666, %v3668
      %v3670 = vrot.slane %v3645, 2
      %v3671 = vsel %vm3217, %v3668, %v3670
      %v3672 = vrot.slane %v3646, 2
      %v3673 = vsel %vm3217, %v3670, %v3672
      %v3674 = vrot.slane %v3647, 2
      %v3675 = vsel %vm3217, %v3672, %v3674
      %v3676 = vrot.slane %v3648, 2
      %v3677 = vsel %vm3217, %v3674, %v3676
      %v3678 = vrot.slane %v3649, 2
      %v3679 = vsel %vm3217, %v3676, %v3678
      %v3680 = vrot.slane %v3650, 2
      %v3681 = vsel %vm3217, %v3678, %v3680
      %v3682 = vrot.slane %v3651, 2
      %v3683 = vsel %vm3217, %v3680, %v3682
      %v3684 = vrot.slane %v3652, 2
      %v3685 = vsel %vm3217, %v3682, %v3684
      %v3686 = vrot.slane %v3653, 2
      %v3687 = vsel %vm3217, %v3684, %v3686
      %v3688 = vrot.slane %v3654, 2
      %v3689 = vsel %vm3217, %v3686, %v3688
      %v3690 = vrot.slane %v3655, 2
      %v3691 = vsel %vm3217, %v3688, %v3690
      %v3692 = vrot.slane %v3656, 2
      %v3693 = vsel %vm3217, %v3690, %v3692
      %v3695 = vsel %vm1559, %v3659, 0
      %v3698 = vsel %vm1559, %v3661, 0
      %v3701 = vsel %vm1559, %v3663, 0
      %v3704 = vsel %vm1559, %v3665, 0
      %v3707 = vsel %vm1559, %v3667, 0
      %v3710 = vsel %vm1559, %v3669, 0
      %v3713 = vsel %vm1559, %v3671, 0
      %v3716 = vsel %vm1559, %v3673, 0
      %v3719 = vsel %vm1559, %v3675, 0
      %v3722 = vsel %vm1559, %v3677, 0
      %v3725 = vsel %vm1559, %v3679, 0
      %v3728 = vsel %vm1559, %v3681, 0
      %v3731 = vsel %vm1559, %v3683, 0
      %v3734 = vsel %vm1559, %v3685, 0
      %v3737 = vsel %vm1559, %v3687, 0
      %v3740 = vsel %vm1559, %v3689, 0
      %v3743 = vsel %vm1559, %v3691, 0
      %v3746 = vsel %vm1559, %v3693, 0
      %v3749 = vsel %vm1614, %v3563, 0
      %3751 = vmatprep.subr.bf16.mxu0 0
      %3752 = vmatpush1.bf16.msra.mxu0 %v3749
      %3753 = vmatprep.subr.bf16.mxu0 0
      %3754 = vmatpush1.bf16.msra.mxu0 0
      %3755 = vmatprep.subr.bf16.mxu0 0
      %3756 = vmatpush1.bf16.msra.mxu0 0
      %3757 = vmatprep.subr.bf16.mxu0 0
      %3758 = vmatpush1.bf16.msra.mxu0 0
      %3759 = vmatprep.subr.bf16.mxu0 0
      %3760 = vmatpush1.bf16.msra.mxu0 0
      %3761 = vmatprep.subr.bf16.mxu0 0
      %3762 = vmatpush1.bf16.msra.mxu0 0
      %3763 = vmatprep.subr.bf16.mxu0 0
      %3764 = vmatpush1.bf16.msra.mxu0 0
      %3765 = vmatprep.subr.bf16.mxu0 0
      %3766 = vmatpush1.bf16.msra.mxu0 0
      %3767 = vmatprep.subr.bf16.mxu0 0
      %3768 = vmatpush1.bf16.msra.mxu0 0
      %3769 = vmatprep.subr.bf16.mxu0 0
      %3770 = vmatpush1.bf16.msra.mxu0 0
      %3771 = vmatprep.subr.bf16.mxu0 0
      %3772 = vmatpush1.bf16.msra.mxu0 0
      %3773 = vmatprep.subr.bf16.mxu0 0
      %3774 = vmatpush1.bf16.msra.mxu0 0
      %3775 = vmatprep.subr.bf16.mxu0 0
      %3776 = vmatpush1.bf16.msra.mxu0 0
      %3777 = vmatprep.subr.bf16.mxu0 0
      %3778 = vmatpush1.bf16.msra.mxu0 0
      %3779 = vmatprep.subr.bf16.mxu0 0
      %3780 = vmatpush1.bf16.msra.mxu0 0
      %3781 = vmatprep.subr.bf16.mxu0 0
      %3782 = vmatpush1.bf16.msra.mxu0 0
      %3783 = vmatprep.mubr.bf16.mxu0 0
      %3784 = vmatmul.mubr.bf16.gmra.mrb[0].mxu0 %v3695
      %v3785 = vpop.f32.mrb[0].mxu0
      %v3786 = vadd.f32 0.0, %v3785
      %v3787 = vpop.f32.mrb[0].mxu0
      %v3788 = vpop.f32.mrb[0].mxu0
      %v3789 = vadd.f32 0.0, %v3788
      %v3790 = vpop.f32.mrb[0].mxu0
      %3791 = vmatprep.mubr.bf16.mxu0 0
      %3792 = vmatmul.mubr.bf16.gmra.mrb[0].mxu0 %v3698
      %v3793 = vpop.f32.mrb[0].mxu0
      %v3794 = vadd.f32 0.0, %v3793
      %v3795 = vpop.f32.mrb[0].mxu0
      %v3796 = vpop.f32.mrb[0].mxu0
      %v3797 = vadd.f32 0.0, %v3796
      %v3798 = vpop.f32.mrb[0].mxu0
      %3799 = vmatprep.mubr.bf16.mxu0 0
      %3800 = vmatmul.mubr.bf16.gmra.mrb[0].mxu0 %v3701
      %v3801 = vpop.f32.mrb[0].mxu0
      %v3802 = vadd.f32 0.0, %v3801
      %v3803 = vpop.f32.mrb[0].mxu0
      %v3804 = vpop.f32.mrb[0].mxu0
      %v3805 = vadd.f32 0.0, %v3804
      %v3806 = vpop.f32.mrb[0].mxu0
      %3807 = vmatprep.mubr.bf16.mxu0 0
      %3808 = vmatmul.mubr.bf16.gmra.mrb[0].mxu0 %v3704
      %v3809 = vpop.f32.mrb[0].mxu0
      %v3810 = vadd.f32 0.0, %v3809
      %v3811 = vpop.f32.mrb[0].mxu0
      %v3812 = vpop.f32.mrb[0].mxu0
      %v3813 = vadd.f32 0.0, %v3812
      %v3814 = vpop.f32.mrb[0].mxu0
      %3815 = vmatprep.mubr.bf16.mxu0 0
      %3816 = vmatmul.mubr.bf16.gmra.mrb[0].mxu0 %v3707
      %v3817 = vpop.f32.mrb[0].mxu0
      %v3818 = vadd.f32 0.0, %v3817
      %v3819 = vpop.f32.mrb[0].mxu0
      %v3820 = vpop.f32.mrb[0].mxu0
      %v3821 = vadd.f32 0.0, %v3820
      %v3822 = vpop.f32.mrb[0].mxu0
      %3823 = vmatprep.mubr.bf16.mxu0 0
      %3824 = vmatmul.mubr.bf16.gmra.mrb[0].mxu0 %v3710
      %v3825 = vpop.f32.mrb[0].mxu0
      %v3826 = vadd.f32 0.0, %v3825
      %v3827 = vpop.f32.mrb[0].mxu0
      %v3828 = vpop.f32.mrb[0].mxu0
      %v3829 = vadd.f32 0.0, %v3828
      %v3830 = vpop.f32.mrb[0].mxu0
      %3831 = vmatprep.mubr.bf16.mxu0 0
      %3832 = vmatmul.mubr.bf16.gmra.mrb[0].mxu0 %v3713
      %v3833 = vpop.f32.mrb[0].mxu0
      %v3834 = vadd.f32 0.0, %v3833
      %v3835 = vpop.f32.mrb[0].mxu0
      %v3836 = vpop.f32.mrb[0].mxu0
      %v3837 = vadd.f32 0.0, %v3836
      %v3838 = vpop.f32.mrb[0].mxu0
      %3839 = vmatprep.mubr.bf16.mxu0 0
      %3840 = vmatmul.mubr.bf16.gmra.mrb[0].mxu0 %v3716
      %v3841 = vpop.f32.mrb[0].mxu0
      %v3842 = vadd.f32 0.0, %v3841
      %v3843 = vpop.f32.mrb[0].mxu0
      %v3844 = vpop.f32.mrb[0].mxu0
      %v3845 = vadd.f32 0.0, %v3844
      %v3846 = vpop.f32.mrb[0].mxu0
      %3847 = vmatprep.mubr.bf16.mxu0 0
      %3848 = vmatmul.mubr.bf16.gmra.mrb[0].mxu0 %v3719
      %v3849 = vpop.f32.mrb[0].mxu0
      %v3850 = vadd.f32 0.0, %v3849
      %v3851 = vpop.f32.mrb[0].mxu0
      %v3852 = vpop.f32.mrb[0].mxu0
      %v3853 = vadd.f32 0.0, %v3852
      %v3854 = vpop.f32.mrb[0].mxu0
      %3855 = vmatprep.mubr.bf16.mxu0 0
      %3856 = vmatmul.mubr.bf16.gmra.mrb[0].mxu0 %v3722
      %v3857 = vpop.f32.mrb[0].mxu0
      %v3858 = vadd.f32 0.0, %v3857
      %v3859 = vpop.f32.mrb[0].mxu0
      %v3860 = vpop.f32.mrb[0].mxu0
      %v3861 = vadd.f32 0.0, %v3860
      %v3862 = vpop.f32.mrb[0].mxu0
      %3863 = vmatprep.mubr.bf16.mxu0 0
      %3864 = vmatmul.mubr.bf16.gmra.mrb[0].mxu0 %v3725
      %v3865 = vpop.f32.mrb[0].mxu0
      %v3866 = vadd.f32 0.0, %v3865
      %v3867 = vpop.f32.mrb[0].mxu0
      %v3868 = vpop.f32.mrb[0].mxu0
      %v3869 = vadd.f32 0.0, %v3868
      %v3870 = vpop.f32.mrb[0].mxu0
      %3871 = vmatprep.mubr.bf16.mxu0 0
      %3872 = vmatmul.mubr.bf16.gmra.mrb[0].mxu0 %v3728
      %v3873 = vpop.f32.mrb[0].mxu0
      %v3874 = vadd.f32 0.0, %v3873
      %v3875 = vpop.f32.mrb[0].mxu0
      %v3876 = vpop.f32.mrb[0].mxu0
      %v3877 = vadd.f32 0.0, %v3876
      %v3878 = vpop.f32.mrb[0].mxu0
      %3879 = vmatprep.mubr.bf16.mxu0 0
      %3880 = vmatmul.mubr.bf16.gmra.mrb[0].mxu0 %v3731
      %v3881 = vpop.f32.mrb[0].mxu0
      %v3882 = vadd.f32 0.0, %v3881
      %v3883 = vpop.f32.mrb[0].mxu0
      %v3884 = vpop.f32.mrb[0].mxu0
      %v3885 = vadd.f32 0.0, %v3884
      %v3886 = vpop.f32.mrb[0].mxu0
      %3887 = vmatprep.mubr.bf16.mxu0 0
      %3888 = vmatmul.mubr.bf16.gmra.mrb[0].mxu0 %v3734
      %v3889 = vpop.f32.mrb[0].mxu0
      %v3890 = vadd.f32 0.0, %v3889
      %v3891 = vpop.f32.mrb[0].mxu0
      %v3892 = vpop.f32.mrb[0].mxu0
      %v3893 = vadd.f32 0.0, %v3892
      %v3894 = vpop.f32.mrb[0].mxu0
      %3895 = vmatprep.mubr.bf16.mxu0 0
      %3896 = vmatmul.mubr.bf16.gmra.mrb[0].mxu0 %v3737
      %v3897 = vpop.f32.mrb[0].mxu0
      %v3898 = vadd.f32 0.0, %v3897
      %v3899 = vpop.f32.mrb[0].mxu0
      %v3900 = vpop.f32.mrb[0].mxu0
      %v3901 = vadd.f32 0.0, %v3900
      %v3902 = vpop.f32.mrb[0].mxu0
      %3903 = vmatprep.mubr.bf16.mxu0 0
      %3904 = vmatmul.mubr.bf16.gmra.mrb[0].mxu0 %v3740
      %v3905 = vpop.f32.mrb[0].mxu0
      %v3906 = vadd.f32 0.0, %v3905
      %v3907 = vpop.f32.mrb[0].mxu0
      %v3908 = vpop.f32.mrb[0].mxu0
      %v3909 = vadd.f32 0.0, %v3908
      %v3910 = vpop.f32.mrb[0].mxu0
      %3911 = vmatprep.mubr.bf16.mxu0 0
      %3912 = vmatmul.mubr.bf16.gmra.mrb[0].mxu0 %v3743
      %v3913 = vpop.f32.mrb[0].mxu0
      %v3914 = vadd.f32 0.0, %v3913
      %v3915 = vpop.f32.mrb[0].mxu0
      %v3916 = vpop.f32.mrb[0].mxu0
      %v3917 = vadd.f32 0.0, %v3916
      %v3918 = vpop.f32.mrb[0].mxu0
      %3919 = vmatprep.mubr.bf16.mxu0 0
      %3920 = vmatmul.mubr.bf16.gmra.mrb[0].mxu0 %v3746
      %v3921 = vpop.f32.mrb[0].mxu0
      %v3922 = vadd.f32 0.0, %v3921
      %v3923 = vpop.f32.mrb[0].mxu0
      %v3924 = vpop.f32.mrb[0].mxu0
      %v3925 = vadd.f32 0.0, %v3924
      %v3926 = vpop.f32.mrb[0].mxu0
      %3927 = vdwg.mxu0
      %v3928 = vadd.f32 %v3489, %v3786
      %v3929 = vadd.f32 %v3490, %v3789
      %v3930 = vadd.f32 %v3491, %v3794
      %v3931 = vadd.f32 %v3492, %v3797
      %v3932 = vadd.f32 %v3493, %v3802
      %v3933 = vadd.f32 %v3494, %v3805
      %v3934 = vadd.f32 %v3495, %v3810
      %v3935 = vadd.f32 %v3496, %v3813
      %v3936 = vadd.f32 %v3497, %v3818
      %v3937 = vadd.f32 %v3498, %v3821
      %v3938 = vadd.f32 %v3499, %v3826
      %v3939 = vadd.f32 %v3500, %v3829
      %v3940 = vadd.f32 %v3501, %v3834
      %v3941 = vadd.f32 %v3502, %v3837
      %v3942 = vadd.f32 %v3503, %v3842
      %v3943 = vadd.f32 %v3504, %v3845
      %v3944 = vadd.f32 %v3505, %v3850
      %v3945 = vadd.f32 %v3506, %v3853
      %v3946 = vadd.f32 %v3507, %v3858
      %v3947 = vadd.f32 %v3508, %v3861
      %v3948 = vadd.f32 %v3509, %v3866
      %v3949 = vadd.f32 %v3510, %v3869
      %v3950 = vadd.f32 %v3511, %v3874
      %v3951 = vadd.f32 %v3512, %v3877
      %v3952 = vadd.f32 %v3513, %v3882
      %v3953 = vadd.f32 %v3514, %v3885
      %v3954 = vadd.f32 %v3515, %v3890
      %v3955 = vadd.f32 %v3516, %v3893
      %v3956 = vadd.f32 %v3517, %v3898
      %v3957 = vadd.f32 %v3518, %v3901
      %v3958 = vadd.f32 %v3519, %v3906
      %v3959 = vadd.f32 %v3520, %v3909
      %v3960 = vadd.f32 %v3521, %v3914
      %v3961 = vadd.f32 %v3522, %v3917
      %v3962 = vadd.f32 %v3523, %v3922
      %v3963 = vadd.f32 %v3524, %v3925
      %v3964 = vld [vmem:[#allocation2 + $0xa0] sm:$0x7]
      %s3965 = scalar_lea.vmem %s4, 28
      %v3966 = vld [vmem:[%s3965] sm:$0xf]
      %v3968 = vunpack.c.l.b16 %v3964
      %v3969 = vpack.c.b16 %v3968, %v3968
      %vm3970 = vsmask.f32 5376
      %v3972 = vshrl.u32 %v3638, 16
      %v3974 = vrot.slane %v3972, 2
      %v3975 = vshll.u32 %v3638, 16
      %v3977 = vrot.slane %v3975, 3
      %v3978 = vor.u32 %v3974, %v3977
      %v3980 = vshrl.u32 %v3639, 16
      %v3982 = vrot.slane %v3980, 2
      %v3983 = vshll.u32 %v3639, 16
      %v3985 = vrot.slane %v3983, 3
      %v3986 = vor.u32 %v3982, %v3985
      %v3987 = vsel %vm3970, %v3978, %v3986
      %v3989 = vshrl.u32 %v3640, 16
      %v3991 = vrot.slane %v3989, 2
      %v3992 = vshll.u32 %v3640, 16
      %v3994 = vrot.slane %v3992, 3
      %v3995 = vor.u32 %v3991, %v3994
      %v3996 = vsel %vm3970, %v3986, %v3995
      %v3998 = vshrl.u32 %v3641, 16
      %v4000 = vrot.slane %v3998, 2
      %v4001 = vshll.u32 %v3641, 16
      %v4003 = vrot.slane %v4001, 3
      %v4004 = vor.u32 %v4000, %v4003
      %v4005 = vsel %vm3970, %v3995, %v4004
      %v4007 = vshrl.u32 %v3642, 16
      %v4009 = vrot.slane %v4007, 2
      %v4010 = vshll.u32 %v3642, 16
      %v4012 = vrot.slane %v4010, 3
      %v4013 = vor.u32 %v4009, %v4012
      %v4014 = vsel %vm3970, %v4004, %v4013
      %v4016 = vshrl.u32 %v3643, 16
      %v4018 = vrot.slane %v4016, 2
      %v4019 = vshll.u32 %v3643, 16
      %v4021 = vrot.slane %v4019, 3
      %v4022 = vor.u32 %v4018, %v4021
      %v4023 = vsel %vm3970, %v4013, %v4022
      %v4025 = vshrl.u32 %v3644, 16
      %v4027 = vrot.slane %v4025, 2
      %v4028 = vshll.u32 %v3644, 16
      %v4030 = vrot.slane %v4028, 3
      %v4031 = vor.u32 %v4027, %v4030
      %v4032 = vsel %vm3970, %v4022, %v4031
      %v4034 = vshrl.u32 %v3645, 16
      %v4036 = vrot.slane %v4034, 2
      %v4037 = vshll.u32 %v3645, 16
      %v4039 = vrot.slane %v4037, 3
      %v4040 = vor.u32 %v4036, %v4039
      %v4041 = vsel %vm3970, %v4031, %v4040
      %v4043 = vshrl.u32 %v3646, 16
      %v4045 = vrot.slane %v4043, 2
      %v4046 = vshll.u32 %v3646, 16
      %v4048 = vrot.slane %v4046, 3
      %v4049 = vor.u32 %v4045, %v4048
      %v4050 = vsel %vm3970, %v4040, %v4049
      %v4052 = vshrl.u32 %v3647, 16
      %v4054 = vrot.slane %v4052, 2
      %v4055 = vshll.u32 %v3647, 16
      %v4057 = vrot.slane %v4055, 3
      %v4058 = vor.u32 %v4054, %v4057
      %v4059 = vsel %vm3970, %v4049, %v4058
      %v4061 = vshrl.u32 %v3648, 16
      %v4063 = vrot.slane %v4061, 2
      %v4064 = vshll.u32 %v3648, 16
      %v4066 = vrot.slane %v4064, 3
      %v4067 = vor.u32 %v4063, %v4066
      %v4068 = vsel %vm3970, %v4058, %v4067
      %v4070 = vshrl.u32 %v3649, 16
      %v4072 = vrot.slane %v4070, 2
      %v4073 = vshll.u32 %v3649, 16
      %v4075 = vrot.slane %v4073, 3
      %v4076 = vor.u32 %v4072, %v4075
      %v4077 = vsel %vm3970, %v4067, %v4076
      %v4079 = vshrl.u32 %v3650, 16
      %v4081 = vrot.slane %v4079, 2
      %v4082 = vshll.u32 %v3650, 16
      %v4084 = vrot.slane %v4082, 3
      %v4085 = vor.u32 %v4081, %v4084
      %v4086 = vsel %vm3970, %v4076, %v4085
      %v4088 = vshrl.u32 %v3651, 16
      %v4090 = vrot.slane %v4088, 2
      %v4091 = vshll.u32 %v3651, 16
      %v4093 = vrot.slane %v4091, 3
      %v4094 = vor.u32 %v4090, %v4093
      %v4095 = vsel %vm3970, %v4085, %v4094
      %v4097 = vshrl.u32 %v3652, 16
      %v4099 = vrot.slane %v4097, 2
      %v4100 = vshll.u32 %v3652, 16
      %v4102 = vrot.slane %v4100, 3
      %v4103 = vor.u32 %v4099, %v4102
      %v4104 = vsel %vm3970, %v4094, %v4103
      %v4106 = vshrl.u32 %v3653, 16
      %v4108 = vrot.slane %v4106, 2
      %v4109 = vshll.u32 %v3653, 16
      %v4111 = vrot.slane %v4109, 3
      %v4112 = vor.u32 %v4108, %v4111
      %v4113 = vsel %vm3970, %v4103, %v4112
      %v4115 = vshrl.u32 %v3654, 16
      %v4117 = vrot.slane %v4115, 2
      %v4118 = vshll.u32 %v3654, 16
      %v4120 = vrot.slane %v4118, 3
      %v4121 = vor.u32 %v4117, %v4120
      %v4122 = vsel %vm3970, %v4112, %v4121
      %v4124 = vshrl.u32 %v3655, 16
      %v4126 = vrot.slane %v4124, 2
      %v4127 = vshll.u32 %v3655, 16
      %v4129 = vrot.slane %v4127, 3
      %v4130 = vor.u32 %v4126, %v4129
      %v4131 = vsel %vm3970, %v4121, %v4130
      %v4133 = vshrl.u32 %v3969, 16
      %v4135 = vrot.slane %v4133, 2
      %v4136 = vshll.u32 %v3969, 16
      %v4138 = vrot.slane %v4136, 3
      %v4139 = vor.u32 %v4135, %v4138
      %v4140 = vsel %vm3970, %v4130, %v4139
      %v4142 = vsel %vm1559, %v3987, 0
      %v4145 = vsel %vm1559, %v3996, 0
      %v4148 = vsel %vm1559, %v4005, 0
      %v4151 = vsel %vm1559, %v4014, 0
      %v4154 = vsel %vm1559, %v4023, 0
      %v4157 = vsel %vm1559, %v4032, 0
      %v4160 = vsel %vm1559, %v4041, 0
      %v4163 = vsel %vm1559, %v4050, 0
      %v4166 = vsel %vm1559, %v4059, 0
      %v4169 = vsel %vm1559, %v4068, 0
      %v4172 = vsel %vm1559, %v4077, 0
      %v4175 = vsel %vm1559, %v4086, 0
      %v4178 = vsel %vm1559, %v4095, 0
      %v4181 = vsel %vm1559, %v4104, 0
      %v4184 = vsel %vm1559, %v4113, 0
      %v4187 = vsel %vm1559, %v4122, 0
      %v4190 = vsel %vm1559, %v4131, 0
      %v4193 = vsel %vm1559, %v4140, 0
      %v4196 = vsel %vm1614, %v3966, 0
      %4198 = vmatprep.subr.bf16.mxu0 0
      %4199 = vmatpush1.bf16.msra.mxu0 %v4196
      %4200 = vmatprep.subr.bf16.mxu0 0
      %4201 = vmatpush1.bf16.msra.mxu0 0
      %4202 = vmatprep.subr.bf16.mxu0 0
      %4203 = vmatpush1.bf16.msra.mxu0 0
      %4204 = vmatprep.subr.bf16.mxu0 0
      %4205 = vmatpush1.bf16.msra.mxu0 0
      %4206 = vmatprep.subr.bf16.mxu0 0
      %4207 = vmatpush1.bf16.msra.mxu0 0
      %4208 = vmatprep.subr.bf16.mxu0 0
      %4209 = vmatpush1.bf16.msra.mxu0 0
      %4210 = vmatprep.subr.bf16.mxu0 0
      %4211 = vmatpush1.bf16.msra.mxu0 0
      %4212 = vmatprep.subr.bf16.mxu0 0
      %4213 = vmatpush1.bf16.msra.mxu0 0
      %4214 = vmatprep.subr.bf16.mxu0 0
      %4215 = vmatpush1.bf16.msra.mxu0 0
      %4216 = vmatprep.subr.bf16.mxu0 0
      %4217 = vmatpush1.bf16.msra.mxu0 0
      %4218 = vmatprep.subr.bf16.mxu0 0
      %4219 = vmatpush1.bf16.msra.mxu0 0
      %4220 = vmatprep.subr.bf16.mxu0 0
      %4221 = vmatpush1.bf16.msra.mxu0 0
      %4222 = vmatprep.subr.bf16.mxu0 0
      %4223 = vmatpush1.bf16.msra.mxu0 0
      %4224 = vmatprep.subr.bf16.mxu0 0
      %4225 = vmatpush1.bf16.msra.mxu0 0
      %4226 = vmatprep.subr.bf16.mxu0 0
      %4227 = vmatpush1.bf16.msra.mxu0 0
      %4228 = vmatprep.subr.bf16.mxu0 0
      %4229 = vmatpush1.bf16.msra.mxu0 0
      %4230 = vmatprep.mubr.bf16.mxu0 0
      %4231 = vmatmul.mubr.bf16.gmra.mrb[0].mxu0 %v4142
      %v4232 = vpop.f32.mrb[0].mxu0
      %v4233 = vadd.f32 0.0, %v4232
      %v4234 = vpop.f32.mrb[0].mxu0
      %v4235 = vpop.f32.mrb[0].mxu0
      %v4236 = vadd.f32 0.0, %v4235
      %v4237 = vpop.f32.mrb[0].mxu0
      %4238 = vmatprep.mubr.bf16.mxu0 0
      %4239 = vmatmul.mubr.bf16.gmra.mrb[0].mxu0 %v4145
      %v4240 = vpop.f32.mrb[0].mxu0
      %v4241 = vadd.f32 0.0, %v4240
      %v4242 = vpop.f32.mrb[0].mxu0
      %v4243 = vpop.f32.mrb[0].mxu0
      %v4244 = vadd.f32 0.0, %v4243
      %v4245 = vpop.f32.mrb[0].mxu0
      %4246 = vmatprep.mubr.bf16.mxu0 0
      %4247 = vmatmul.mubr.bf16.gmra.mrb[0].mxu0 %v4148
      %v4248 = vpop.f32.mrb[0].mxu0
      %v4249 = vadd.f32 0.0, %v4248
      %v4250 = vpop.f32.mrb[0].mxu0
      %v4251 = vpop.f32.mrb[0].mxu0
      %v4252 = vadd.f32 0.0, %v4251
      %v4253 = vpop.f32.mrb[0].mxu0
      %4254 = vmatprep.mubr.bf16.mxu0 0
      %4255 = vmatmul.mubr.bf16.gmra.mrb[0].mxu0 %v4151
      %v4256 = vpop.f32.mrb[0].mxu0
      %v4257 = vadd.f32 0.0, %v4256
      %v4258 = vpop.f32.mrb[0].mxu0
      %v4259 = vpop.f32.mrb[0].mxu0
      %v4260 = vadd.f32 0.0, %v4259
      %v4261 = vpop.f32.mrb[0].mxu0
      %4262 = vmatprep.mubr.bf16.mxu0 0
      %4263 = vmatmul.mubr.bf16.gmra.mrb[0].mxu0 %v4154
      %v4264 = vpop.f32.mrb[0].mxu0
      %v4265 = vadd.f32 0.0, %v4264
      %v4266 = vpop.f32.mrb[0].mxu0
      %v4267 = vpop.f32.mrb[0].mxu0
      %v4268 = vadd.f32 0.0, %v4267
      %v4269 = vpop.f32.mrb[0].mxu0
      %4270 = vmatprep.mubr.bf16.mxu0 0
      %4271 = vmatmul.mubr.bf16.gmra.mrb[0].mxu0 %v4157
      %v4272 = vpop.f32.mrb[0].mxu0
      %v4273 = vadd.f32 0.0, %v4272
      %v4274 = vpop.f32.mrb[0].mxu0
      %v4275 = vpop.f32.mrb[0].mxu0
      %v4276 = vadd.f32 0.0, %v4275
      %v4277 = vpop.f32.mrb[0].mxu0
      %4278 = vmatprep.mubr.bf16.mxu0 0
      %4279 = vmatmul.mubr.bf16.gmra.mrb[0].mxu0 %v4160
      %v4280 = vpop.f32.mrb[0].mxu0
      %v4281 = vadd.f32 0.0, %v4280
      %v4282 = vpop.f32.mrb[0].mxu0
      %v4283 = vpop.f32.mrb[0].mxu0
      %v4284 = vadd.f32 0.0, %v4283
      %v4285 = vpop.f32.mrb[0].mxu0
      %4286 = vmatprep.mubr.bf16.mxu0 0
      %4287 = vmatmul.mubr.bf16.gmra.mrb[0].mxu0 %v4163
      %v4288 = vpop.f32.mrb[0].mxu0
      %v4289 = vadd.f32 0.0, %v4288
      %v4290 = vpop.f32.mrb[0].mxu0
      %v4291 = vpop.f32.mrb[0].mxu0
      %v4292 = vadd.f32 0.0, %v4291
      %v4293 = vpop.f32.mrb[0].mxu0
      %4294 = vmatprep.mubr.bf16.mxu0 0
      %4295 = vmatmul.mubr.bf16.gmra.mrb[0].mxu0 %v4166
      %v4296 = vpop.f32.mrb[0].mxu0
      %v4297 = vadd.f32 0.0, %v4296
      %v4298 = vpop.f32.mrb[0].mxu0
      %v4299 = vpop.f32.mrb[0].mxu0
      %v4300 = vadd.f32 0.0, %v4299
      %v4301 = vpop.f32.mrb[0].mxu0
      %4302 = vmatprep.mubr.bf16.mxu0 0
      %4303 = vmatmul.mubr.bf16.gmra.mrb[0].mxu0 %v4169
      %v4304 = vpop.f32.mrb[0].mxu0
      %v4305 = vadd.f32 0.0, %v4304
      %v4306 = vpop.f32.mrb[0].mxu0
      %v4307 = vpop.f32.mrb[0].mxu0
      %v4308 = vadd.f32 0.0, %v4307
      %v4309 = vpop.f32.mrb[0].mxu0
      %4310 = vmatprep.mubr.bf16.mxu0 0
      %4311 = vmatmul.mubr.bf16.gmra.mrb[0].mxu0 %v4172
      %v4312 = vpop.f32.mrb[0].mxu0
      %v4313 = vadd.f32 0.0, %v4312
      %v4314 = vpop.f32.mrb[0].mxu0
      %v4315 = vpop.f32.mrb[0].mxu0
      %v4316 = vadd.f32 0.0, %v4315
      %v4317 = vpop.f32.mrb[0].mxu0
      %4318 = vmatprep.mubr.bf16.mxu0 0
      %4319 = vmatmul.mubr.bf16.gmra.mrb[0].mxu0 %v4175
      %v4320 = vpop.f32.mrb[0].mxu0
      %v4321 = vadd.f32 0.0, %v4320
      %v4322 = vpop.f32.mrb[0].mxu0
      %v4323 = vpop.f32.mrb[0].mxu0
      %v4324 = vadd.f32 0.0, %v4323
      %v4325 = vpop.f32.mrb[0].mxu0
      %4326 = vmatprep.mubr.bf16.mxu0 0
      %4327 = vmatmul.mubr.bf16.gmra.mrb[0].mxu0 %v4178
      %v4328 = vpop.f32.mrb[0].mxu0
      %v4329 = vadd.f32 0.0, %v4328
      %v4330 = vpop.f32.mrb[0].mxu0
      %v4331 = vpop.f32.mrb[0].mxu0
      %v4332 = vadd.f32 0.0, %v4331
      %v4333 = vpop.f32.mrb[0].mxu0
      %4334 = vmatprep.mubr.bf16.mxu0 0
      %4335 = vmatmul.mubr.bf16.gmra.mrb[0].mxu0 %v4181
      %v4336 = vpop.f32.mrb[0].mxu0
      %v4337 = vadd.f32 0.0, %v4336
      %v4338 = vpop.f32.mrb[0].mxu0
      %v4339 = vpop.f32.mrb[0].mxu0
      %v4340 = vadd.f32 0.0, %v4339
      %v4341 = vpop.f32.mrb[0].mxu0
      %4342 = vmatprep.mubr.bf16.mxu0 0
      %4343 = vmatmul.mubr.bf16.gmra.mrb[0].mxu0 %v4184
      %v4344 = vpop.f32.mrb[0].mxu0
      %v4345 = vadd.f32 0.0, %v4344
      %v4346 = vpop.f32.mrb[0].mxu0
      %v4347 = vpop.f32.mrb[0].mxu0
      %v4348 = vadd.f32 0.0, %v4347
      %v4349 = vpop.f32.mrb[0].mxu0
      %4350 = vmatprep.mubr.bf16.mxu0 0
      %4351 = vmatmul.mubr.bf16.gmra.mrb[0].mxu0 %v4187
      %v4352 = vpop.f32.mrb[0].mxu0
      %v4353 = vadd.f32 0.0, %v4352
      %v4354 = vpop.f32.mrb[0].mxu0
      %v4355 = vpop.f32.mrb[0].mxu0
      %v4356 = vadd.f32 0.0, %v4355
      %v4357 = vpop.f32.mrb[0].mxu0
      %4358 = vmatprep.mubr.bf16.mxu0 0
      %4359 = vmatmul.mubr.bf16.gmra.mrb[0].mxu0 %v4190
      %v4360 = vpop.f32.mrb[0].mxu0
      %v4361 = vadd.f32 0.0, %v4360
      %v4362 = vpop.f32.mrb[0].mxu0
      %v4363 = vpop.f32.mrb[0].mxu0
      %v4364 = vadd.f32 0.0, %v4363
      %v4365 = vpop.f32.mrb[0].mxu0
      %4366 = vmatprep.mubr.bf16.mxu0 0
      %4367 = vmatmul.mubr.bf16.gmra.mrb[0].mxu0 %v4193
      %v4368 = vpop.f32.mrb[0].mxu0
      %v4369 = vadd.f32 0.0, %v4368
      %v4370 = vpop.f32.mrb[0].mxu0
      %v4371 = vpop.f32.mrb[0].mxu0
      %v4372 = vadd.f32 0.0, %v4371
      %v4373 = vpop.f32.mrb[0].mxu0
      %4374 = vdwg.mxu0
      %v4375 = vadd.f32 %v3928, %v4233
      %v4376 = vadd.f32 %v3929, %v4236
      %v4377 = vadd.f32 %v3930, %v4241
      %v4378 = vadd.f32 %v3931, %v4244
      %v4379 = vadd.f32 %v3932, %v4249
      %v4380 = vadd.f32 %v3933, %v4252
      %v4381 = vadd.f32 %v3934, %v4257
      %v4382 = vadd.f32 %v3935, %v4260
      %v4383 = vadd.f32 %v3936, %v4265
      %v4384 = vadd.f32 %v3937, %v4268
      %v4385 = vadd.f32 %v3938, %v4273
      %v4386 = vadd.f32 %v3939, %v4276
      %v4387 = vadd.f32 %v3940, %v4281
      %v4388 = vadd.f32 %v3941, %v4284
      %v4389 = vadd.f32 %v3942, %v4289
      %v4390 = vadd.f32 %v3943, %v4292
      %v4391 = vadd.f32 %v3944, %v4297
      %v4392 = vadd.f32 %v3945, %v4300
      %v4393 = vadd.f32 %v3946, %v4305
      %v4394 = vadd.f32 %v3947, %v4308
      %v4395 = vadd.f32 %v3948, %v4313
      %v4396 = vadd.f32 %v3949, %v4316
      %v4397 = vadd.f32 %v3950, %v4321
      %v4398 = vadd.f32 %v3951, %v4324
      %v4399 = vadd.f32 %v3952, %v4329
      %v4400 = vadd.f32 %v3953, %v4332
      %v4401 = vadd.f32 %v3954, %v4337
      %v4402 = vadd.f32 %v3955, %v4340
      %v4403 = vadd.f32 %v3956, %v4345
      %v4404 = vadd.f32 %v3957, %v4348
      %v4405 = vadd.f32 %v3958, %v4353
      %v4406 = vadd.f32 %v3959, %v4356
      %v4407 = vadd.f32 %v3960, %v4361
      %v4408 = vadd.f32 %v3961, %v4364
      %v4409 = vadd.f32 %v3962, %v4369
      %v4410 = vadd.f32 %v3963, %v4372
      %v4411 = vld [vmem:[#allocation2 + $0x10] sm:$0x8]
      %s4412 = scalar_lea.vmem %s4, 32
      %v4413 = vld [vmem:[%s4412] sm:$0xf]
      %v4415 = vunpack.c.l.b16 %v4411
      %v4416 = vpack.c.b16 %v3602, %v4415
      %vm4417 = vcmask 1044480
      %v4418 = vrot.slane %v4416, 3
      %v4419 = vrot.slane %v3639, 3
      %v4420 = vsel %vm4417, %v4418, %v4419
      %v4421 = vrot.slane %v3640, 3
      %v4422 = vsel %vm4417, %v4419, %v4421
      %v4423 = vrot.slane %v3641, 3
      %v4424 = vsel %vm4417, %v4421, %v4423
      %v4425 = vrot.slane %v3642, 3
      %v4426 = vsel %vm4417, %v4423, %v4425
      %v4427 = vrot.slane %v3643, 3
      %v4428 = vsel %vm4417, %v4425, %v4427
      %v4429 = vrot.slane %v3644, 3
      %v4430 = vsel %vm4417, %v4427, %v4429
      %v4431 = vrot.slane %v3645, 3
      %v4432 = vsel %vm4417, %v4429, %v4431
      %v4433 = vrot.slane %v3646, 3
      %v4434 = vsel %vm4417, %v4431, %v4433
      %v4435 = vrot.slane %v3647, 3
      %v4436 = vsel %vm4417, %v4433, %v4435
      %v4437 = vrot.slane %v3648, 3
      %v4438 = vsel %vm4417, %v4435, %v4437
      %v4439 = vrot.slane %v3649, 3
      %v4440 = vsel %vm4417, %v4437, %v4439
      %v4441 = vrot.slane %v3650, 3
      %v4442 = vsel %vm4417, %v4439, %v4441
      %v4443 = vrot.slane %v3651, 3
      %v4444 = vsel %vm4417, %v4441, %v4443
      %v4445 = vrot.slane %v3652, 3
      %v4446 = vsel %vm4417, %v4443, %v4445
      %v4447 = vrot.slane %v3653, 3
      %v4448 = vsel %vm4417, %v4445, %v4447
      %v4449 = vrot.slane %v3654, 3
      %v4450 = vsel %vm4417, %v4447, %v4449
      %v4451 = vrot.slane %v3655, 3
      %v4452 = vsel %vm4417, %v4449, %v4451
      %v4453 = vrot.slane %v3969, 3
      %v4454 = vsel %vm4417, %v4451, %v4453
      %v4456 = vsel %vm1559, %v4420, 0
      %v4459 = vsel %vm1559, %v4422, 0
      %v4462 = vsel %vm1559, %v4424, 0
      %v4465 = vsel %vm1559, %v4426, 0
      %v4468 = vsel %vm1559, %v4428, 0
      %v4471 = vsel %vm1559, %v4430, 0
      %v4474 = vsel %vm1559, %v4432, 0
      %v4477 = vsel %vm1559, %v4434, 0
      %v4480 = vsel %vm1559, %v4436, 0
      %v4483 = vsel %vm1559, %v4438, 0
      %v4486 = vsel %vm1559, %v4440, 0
      %v4489 = vsel %vm1559, %v4442, 0
      %v4492 = vsel %vm1559, %v4444, 0
      %v4495 = vsel %vm1559, %v4446, 0
      %v4498 = vsel %vm1559, %v4448, 0
      %v4501 = vsel %vm1559, %v4450, 0
      %v4504 = vsel %vm1559, %v4452, 0
      %v4507 = vsel %vm1559, %v4454, 0
      %v4510 = vsel %vm1614, %v4413, 0
      %4512 = vmatprep.subr.bf16.mxu0 0
      %4513 = vmatpush1.bf16.msra.mxu0 %v4510
      %4514 = vmatprep.subr.bf16.mxu0 0
      %4515 = vmatpush1.bf16.msra.mxu0 0
      %4516 = vmatprep.subr.bf16.mxu0 0
      %4517 = vmatpush1.bf16.msra.mxu0 0
      %4518 = vmatprep.subr.bf16.mxu0 0
      %4519 = vmatpush1.bf16.msra.mxu0 0
      %4520 = vmatprep.subr.bf16.mxu0 0
      %4521 = vmatpush1.bf16.msra.mxu0 0
      %4522 = vmatprep.subr.bf16.mxu0 0
      %4523 = vmatpush1.bf16.msra.mxu0 0
      %4524 = vmatprep.subr.bf16.mxu0 0
      %4525 = vmatpush1.bf16.msra.mxu0 0
      %4526 = vmatprep.subr.bf16.mxu0 0
      %4527 = vmatpush1.bf16.msra.mxu0 0
      %4528 = vmatprep.subr.bf16.mxu0 0
      %4529 = vmatpush1.bf16.msra.mxu0 0
      %4530 = vmatprep.subr.bf16.mxu0 0
      %4531 = vmatpush1.bf16.msra.mxu0 0
      %4532 = vmatprep.subr.bf16.mxu0 0
      %4533 = vmatpush1.bf16.msra.mxu0 0
      %4534 = vmatprep.subr.bf16.mxu0 0
      %4535 = vmatpush1.bf16.msra.mxu0 0
      %4536 = vmatprep.subr.bf16.mxu0 0
      %4537 = vmatpush1.bf16.msra.mxu0 0
      %4538 = vmatprep.subr.bf16.mxu0 0
      %4539 = vmatpush1.bf16.msra.mxu0 0
      %4540 = vmatprep.subr.bf16.mxu0 0
      %4541 = vmatpush1.bf16.msra.mxu0 0
      %4542 = vmatprep.subr.bf16.mxu0 0
      %4543 = vmatpush1.bf16.msra.mxu0 0
      %4544 = vmatprep.mubr.bf16.mxu0 0
      %4545 = vmatmul.mubr.bf16.gmra.mrb[0].mxu0 %v4456
      %v4546 = vpop.f32.mrb[0].mxu0
      %v4547 = vadd.f32 0.0, %v4546
      %v4548 = vpop.f32.mrb[0].mxu0
      %v4549 = vpop.f32.mrb[0].mxu0
      %v4550 = vadd.f32 0.0, %v4549
      %v4551 = vpop.f32.mrb[0].mxu0
      %4552 = vmatprep.mubr.bf16.mxu0 0
      %4553 = vmatmul.mubr.bf16.gmra.mrb[0].mxu0 %v4459
      %v4554 = vpop.f32.mrb[0].mxu0
      %v4555 = vadd.f32 0.0, %v4554
      %v4556 = vpop.f32.mrb[0].mxu0
      %v4557 = vpop.f32.mrb[0].mxu0
      %v4558 = vadd.f32 0.0, %v4557
      %v4559 = vpop.f32.mrb[0].mxu0
      %4560 = vmatprep.mubr.bf16.mxu0 0
      %4561 = vmatmul.mubr.bf16.gmra.mrb[0].mxu0 %v4462
      %v4562 = vpop.f32.mrb[0].mxu0
      %v4563 = vadd.f32 0.0, %v4562
      %v4564 = vpop.f32.mrb[0].mxu0
      %v4565 = vpop.f32.mrb[0].mxu0
      %v4566 = vadd.f32 0.0, %v4565
      %v4567 = vpop.f32.mrb[0].mxu0
      %4568 = vmatprep.mubr.bf16.mxu0 0
      %4569 = vmatmul.mubr.bf16.gmra.mrb[0].mxu0 %v4465
      %v4570 = vpop.f32.mrb[0].mxu0
      %v4571 = vadd.f32 0.0, %v4570
      %v4572 = vpop.f32.mrb[0].mxu0
      %v4573 = vpop.f32.mrb[0].mxu0
      %v4574 = vadd.f32 0.0, %v4573
      %v4575 = vpop.f32.mrb[0].mxu0
      %4576 = vmatprep.mubr.bf16.mxu0 0
      %4577 = vmatmul.mubr.bf16.gmra.mrb[0].mxu0 %v4468
      %v4578 = vpop.f32.mrb[0].mxu0
      %v4579 = vadd.f32 0.0, %v4578
      %v4580 = vpop.f32.mrb[0].mxu0
      %v4581 = vpop.f32.mrb[0].mxu0
      %v4582 = vadd.f32 0.0, %v4581
      %v4583 = vpop.f32.mrb[0].mxu0
      %4584 = vmatprep.mubr.bf16.mxu0 0
      %4585 = vmatmul.mubr.bf16.gmra.mrb[0].mxu0 %v4471
      %v4586 = vpop.f32.mrb[0].mxu0
      %v4587 = vadd.f32 0.0, %v4586
      %v4588 = vpop.f32.mrb[0].mxu0
      %v4589 = vpop.f32.mrb[0].mxu0
      %v4590 = vadd.f32 0.0, %v4589
      %v4591 = vpop.f32.mrb[0].mxu0
      %4592 = vmatprep.mubr.bf16.mxu0 0
      %4593 = vmatmul.mubr.bf16.gmra.mrb[0].mxu0 %v4474
      %v4594 = vpop.f32.mrb[0].mxu0
      %v4595 = vadd.f32 0.0, %v4594
      %v4596 = vpop.f32.mrb[0].mxu0
      %v4597 = vpop.f32.mrb[0].mxu0
      %v4598 = vadd.f32 0.0, %v4597
      %v4599 = vpop.f32.mrb[0].mxu0
      %4600 = vmatprep.mubr.bf16.mxu0 0
      %4601 = vmatmul.mubr.bf16.gmra.mrb[0].mxu0 %v4477
      %v4602 = vpop.f32.mrb[0].mxu0
      %v4603 = vadd.f32 0.0, %v4602
      %v4604 = vpop.f32.mrb[0].mxu0
      %v4605 = vpop.f32.mrb[0].mxu0
      %v4606 = vadd.f32 0.0, %v4605
      %v4607 = vpop.f32.mrb[0].mxu0
      %4608 = vmatprep.mubr.bf16.mxu0 0
      %4609 = vmatmul.mubr.bf16.gmra.mrb[0].mxu0 %v4480
      %v4610 = vpop.f32.mrb[0].mxu0
      %v4611 = vadd.f32 0.0, %v4610
      %v4612 = vpop.f32.mrb[0].mxu0
      %v4613 = vpop.f32.mrb[0].mxu0
      %v4614 = vadd.f32 0.0, %v4613
      %v4615 = vpop.f32.mrb[0].mxu0
      %4616 = vmatprep.mubr.bf16.mxu0 0
      %4617 = vmatmul.mubr.bf16.gmra.mrb[0].mxu0 %v4483
      %v4618 = vpop.f32.mrb[0].mxu0
      %v4619 = vadd.f32 0.0, %v4618
      %v4620 = vpop.f32.mrb[0].mxu0
      %v4621 = vpop.f32.mrb[0].mxu0
      %v4622 = vadd.f32 0.0, %v4621
      %v4623 = vpop.f32.mrb[0].mxu0
      %4624 = vmatprep.mubr.bf16.mxu0 0
      %4625 = vmatmul.mubr.bf16.gmra.mrb[0].mxu0 %v4486
      %v4626 = vpop.f32.mrb[0].mxu0
      %v4627 = vadd.f32 0.0, %v4626
      %v4628 = vpop.f32.mrb[0].mxu0
      %v4629 = vpop.f32.mrb[0].mxu0
      %v4630 = vadd.f32 0.0, %v4629
      %v4631 = vpop.f32.mrb[0].mxu0
      %4632 = vmatprep.mubr.bf16.mxu0 0
      %4633 = vmatmul.mubr.bf16.gmra.mrb[0].mxu0 %v4489
      %v4634 = vpop.f32.mrb[0].mxu0
      %v4635 = vadd.f32 0.0, %v4634
      %v4636 = vpop.f32.mrb[0].mxu0
      %v4637 = vpop.f32.mrb[0].mxu0
      %v4638 = vadd.f32 0.0, %v4637
      %v4639 = vpop.f32.mrb[0].mxu0
      %4640 = vmatprep.mubr.bf16.mxu0 0
      %4641 = vmatmul.mubr.bf16.gmra.mrb[0].mxu0 %v4492
      %v4642 = vpop.f32.mrb[0].mxu0
      %v4643 = vadd.f32 0.0, %v4642
      %v4644 = vpop.f32.mrb[0].mxu0
      %v4645 = vpop.f32.mrb[0].mxu0
      %v4646 = vadd.f32 0.0, %v4645
      %v4647 = vpop.f32.mrb[0].mxu0
      %4648 = vmatprep.mubr.bf16.mxu0 0
      %4649 = vmatmul.mubr.bf16.gmra.mrb[0].mxu0 %v4495
      %v4650 = vpop.f32.mrb[0].mxu0
      %v4651 = vadd.f32 0.0, %v4650
      %v4652 = vpop.f32.mrb[0].mxu0
      %v4653 = vpop.f32.mrb[0].mxu0
      %v4654 = vadd.f32 0.0, %v4653
      %v4655 = vpop.f32.mrb[0].mxu0
      %4656 = vmatprep.mubr.bf16.mxu0 0
      %4657 = vmatmul.mubr.bf16.gmra.mrb[0].mxu0 %v4498
      %v4658 = vpop.f32.mrb[0].mxu0
      %v4659 = vadd.f32 0.0, %v4658
      %v4660 = vpop.f32.mrb[0].mxu0
      %v4661 = vpop.f32.mrb[0].mxu0
      %v4662 = vadd.f32 0.0, %v4661
      %v4663 = vpop.f32.mrb[0].mxu0
      %4664 = vmatprep.mubr.bf16.mxu0 0
      %4665 = vmatmul.mubr.bf16.gmra.mrb[0].mxu0 %v4501
      %v4666 = vpop.f32.mrb[0].mxu0
      %v4667 = vadd.f32 0.0, %v4666
      %v4668 = vpop.f32.mrb[0].mxu0
      %v4669 = vpop.f32.mrb[0].mxu0
      %v4670 = vadd.f32 0.0, %v4669
      %v4671 = vpop.f32.mrb[0].mxu0
      %4672 = vmatprep.mubr.bf16.mxu0 0
      %4673 = vmatmul.mubr.bf16.gmra.mrb[0].mxu0 %v4504
      %v4674 = vpop.f32.mrb[0].mxu0
      %v4675 = vadd.f32 0.0, %v4674
      %v4676 = vpop.f32.mrb[0].mxu0
      %v4677 = vpop.f32.mrb[0].mxu0
      %v4678 = vadd.f32 0.0, %v4677
      %v4679 = vpop.f32.mrb[0].mxu0
      %4680 = vmatprep.mubr.bf16.mxu0 0
      %4681 = vmatmul.mubr.bf16.gmra.mrb[0].mxu0 %v4507
      %v4682 = vpop.f32.mrb[0].mxu0
      %v4683 = vadd.f32 0.0, %v4682
      %v4684 = vpop.f32.mrb[0].mxu0
      %v4685 = vpop.f32.mrb[0].mxu0
      %v4686 = vadd.f32 0.0, %v4685
      %v4687 = vpop.f32.mrb[0].mxu0
      %4688 = vdwg.mxu0
      %v4689 = vadd.f32 %v4375, %v4547
      %v4690 = vadd.f32 %v4376, %v4550
      %v4691 = vadd.f32 %v4377, %v4555
      %v4692 = vadd.f32 %v4378, %v4558
      %v4693 = vadd.f32 %v4379, %v4563
      %v4694 = vadd.f32 %v4380, %v4566
      %v4695 = vadd.f32 %v4381, %v4571
      %v4696 = vadd.f32 %v4382, %v4574
      %v4697 = vadd.f32 %v4383, %v4579
      %v4698 = vadd.f32 %v4384, %v4582
      %v4699 = vadd.f32 %v4385, %v4587
      %v4700 = vadd.f32 %v4386, %v4590
      %v4701 = vadd.f32 %v4387, %v4595
      %v4702 = vadd.f32 %v4388, %v4598
      %v4703 = vadd.f32 %v4389, %v4603
      %v4704 = vadd.f32 %v4390, %v4606
      %v4705 = vadd.f32 %v4391, %v4611
      %v4706 = vadd.f32 %v4392, %v4614
      %v4707 = vadd.f32 %v4393, %v4619
      %v4708 = vadd.f32 %v4394, %v4622
      %v4709 = vadd.f32 %v4395, %v4627
      %v4710 = vadd.f32 %v4396, %v4630
      %v4711 = vadd.f32 %v4397, %v4635
      %v4712 = vadd.f32 %v4398, %v4638
      %v4713 = vadd.f32 %v4399, %v4643
      %v4714 = vadd.f32 %v4400, %v4646
      %v4715 = vadd.f32 %v4401, %v4651
      %v4716 = vadd.f32 %v4402, %v4654
      %v4717 = vadd.f32 %v4403, %v4659
      %v4718 = vadd.f32 %v4404, %v4662
      %v4719 = vadd.f32 %v4405, %v4667
      %v4720 = vadd.f32 %v4406, %v4670
      %v4721 = vadd.f32 %v4407, %v4675
      %v4722 = vadd.f32 %v4408, %v4678
      %v4723 = vadd.f32 %v4409, %v4683
      %v4724 = vadd.f32 %v4410, %v4686
      %v4725 = vpack.c.bf16 %v4690, %v4689
      %v4726 = vpack.c.bf16 %v4692, %v4691
      %v4727 = vpack.c.bf16 %v4694, %v4693
      %v4728 = vpack.c.bf16 %v4696, %v4695
      %v4729 = vpack.c.bf16 %v4698, %v4697
      %v4730 = vpack.c.bf16 %v4700, %v4699
      %v4731 = vpack.c.bf16 %v4702, %v4701
      %v4732 = vpack.c.bf16 %v4704, %v4703
      %v4733 = vpack.c.bf16 %v4706, %v4705
      %v4734 = vpack.c.bf16 %v4708, %v4707
      %v4735 = vpack.c.bf16 %v4710, %v4709
      %v4736 = vpack.c.bf16 %v4712, %v4711
      %v4737 = vpack.c.bf16 %v4714, %v4713
      %v4738 = vpack.c.bf16 %v4716, %v4715
      %v4739 = vpack.c.bf16 %v4718, %v4717
      %v4740 = vpack.c.bf16 %v4720, %v4719
      %v4741 = vpack.c.bf16 %v4722, %v4721
      %v4742 = vpack.c.bf16 %v4724, %v4723
      %v4761 = vunpack.c.l.b16 %v4725
      %v4762 = vunpack.c.h.b16 %v4725
      %v4763 = vunpack.c.l.b16 %v4726
      %v4764 = vunpack.c.h.b16 %v4726
      %v4765 = vunpack.c.l.b16 %v4727
      %v4766 = vunpack.c.h.b16 %v4727
      %v4767 = vunpack.c.l.b16 %v4728
      %v4768 = vunpack.c.h.b16 %v4728
      %v4769 = vunpack.c.l.b16 %v4729
      %v4770 = vunpack.c.h.b16 %v4729
      %v4771 = vunpack.c.l.b16 %v4730
      %v4772 = vunpack.c.h.b16 %v4730
      %v4773 = vunpack.c.l.b16 %v4731
      %v4774 = vunpack.c.h.b16 %v4731
      %v4775 = vunpack.c.l.b16 %v4732
      %v4776 = vunpack.c.h.b16 %v4732
      %v4777 = vunpack.c.l.b16 %v4733
      %v4778 = vunpack.c.h.b16 %v4733
      %v4779 = vunpack.c.l.b16 %v4734
      %v4780 = vunpack.c.h.b16 %v4734
      %v4781 = vunpack.c.l.b16 %v4735
      %v4782 = vunpack.c.h.b16 %v4735
      %v4783 = vunpack.c.l.b16 %v4736
      %v4784 = vunpack.c.h.b16 %v4736
      %v4785 = vunpack.c.l.b16 %v4737
      %v4786 = vunpack.c.h.b16 %v4737
      %v4787 = vunpack.c.l.b16 %v4738
      %v4788 = vunpack.c.h.b16 %v4738
      %v4789 = vunpack.c.l.b16 %v4739
      %v4790 = vunpack.c.h.b16 %v4739
      %v4791 = vunpack.c.l.b16 %v4740
      %v4792 = vunpack.c.h.b16 %v4740
      %v4793 = vunpack.c.l.b16 %v4741
      %v4794 = vunpack.c.h.b16 %v4741
      %v4795 = vunpack.c.l.b16 %v4742
      %v4796 = vunpack.c.h.b16 %v4742
      %v4797 = vpack.c.b16 %v4761, %v4761
      %v4798 = vpack.c.b16 %v4762, %v4762
      %v4799 = vpack.c.b16 %v4763, %v4763
      %v4800 = vpack.c.b16 %v4764, %v4764
      %v4801 = vpack.c.b16 %v4765, %v4765
      %v4802 = vpack.c.b16 %v4766, %v4766
      %v4803 = vpack.c.b16 %v4767, %v4767
      %v4804 = vpack.c.b16 %v4768, %v4768
      %v4805 = vpack.c.b16 %v4769, %v4769
      %v4806 = vpack.c.b16 %v4770, %v4770
      %v4807 = vpack.c.b16 %v4771, %v4771
      %v4808 = vpack.c.b16 %v4772, %v4772
      %v4809 = vpack.c.b16 %v4773, %v4773
      %v4810 = vpack.c.b16 %v4774, %v4774
      %v4811 = vpack.c.b16 %v4775, %v4775
      %v4812 = vpack.c.b16 %v4776, %v4776
      %v4813 = vpack.c.b16 %v4777, %v4777
      %v4814 = vpack.c.b16 %v4778, %v4778
      %v4815 = vpack.c.b16 %v4779, %v4779
      %v4816 = vpack.c.b16 %v4780, %v4780
      %v4817 = vpack.c.b16 %v4781, %v4781
      %v4818 = vpack.c.b16 %v4782, %v4782
      %v4819 = vpack.c.b16 %v4783, %v4783
      %v4820 = vpack.c.b16 %v4784, %v4784
      %v4821 = vpack.c.b16 %v4785, %v4785
      %v4822 = vpack.c.b16 %v4786, %v4786
      %v4823 = vpack.c.b16 %v4787, %v4787
      %v4824 = vpack.c.b16 %v4788, %v4788
      %v4825 = vpack.c.b16 %v4789, %v4789
      %v4826 = vpack.c.b16 %v4790, %v4790
      %v4827 = vpack.c.b16 %v4791, %v4791
      %v4828 = vpack.c.b16 %v4792, %v4792
      %v4829 = vpack.c.b16 %v4793, %v4793
      %v4830 = vpack.c.b16 %v4794, %v4794
      %v4831 = vpack.c.b16 %v4795, %v4795
      %v4832 = vpack.c.b16 %v4796, %v4796
      %4869 = vst.msk [vmem:[%s258] sm:$0xf] %vm710, %v4797
      %4870 = vst.msk [vmem:[%s258 + $0x4] sm:$0xf] %vm710, %v4798
      %4871 = vst.msk [vmem:[%s258 + $0x8] sm:$0xf] %vm710, %v4799
      %4872 = vst.msk [vmem:[%s258 + $0xc] sm:$0xf] %vm710, %v4800
      %4873 = vst.msk [vmem:[%s258 + $0x10] sm:$0xf] %vm710, %v4801
      %4874 = vst.msk [vmem:[%s258 + $0x14] sm:$0xf] %vm710, %v4802
      %4875 = vst.msk [vmem:[%s258 + $0x18] sm:$0xf] %vm710, %v4803
      %4876 = vst.msk [vmem:[%s258 + $0x1c] sm:$0xf] %vm710, %v4804
      %4877 = vst.msk [vmem:[%s258 + $0x20] sm:$0xf] %vm710, %v4805
      %4878 = vst.msk [vmem:[%s258 + $0x24] sm:$0xf] %vm710, %v4806
      %4879 = vst.msk [vmem:[%s258 + $0x28] sm:$0xf] %vm710, %v4807
      %4880 = vst.msk [vmem:[%s258 + $0x2c] sm:$0xf] %vm710, %v4808
      %4881 = vst.msk [vmem:[%s258 + $0x30] sm:$0xf] %vm710, %v4809
      %4882 = vst.msk [vmem:[%s258 + $0x34] sm:$0xf] %vm710, %v4810
      %4883 = vst.msk [vmem:[%s258 + $0x38] sm:$0xf] %vm710, %v4811
      %4884 = vst.msk [vmem:[%s258 + $0x3c] sm:$0xf] %vm710, %v4812
      %4885 = vst.msk [vmem:[%s258 + $0x40] sm:$0xf] %vm710, %v4813
      %4886 = vst.msk [vmem:[%s258 + $0x44] sm:$0xf] %vm710, %v4814
      %4887 = vst.msk [vmem:[%s258 + $0x48] sm:$0xf] %vm710, %v4815
      %4888 = vst.msk [vmem:[%s258 + $0x4c] sm:$0xf] %vm710, %v4816
      %4889 = vst.msk [vmem:[%s258 + $0x50] sm:$0xf] %vm710, %v4817
      %4890 = vst.msk [vmem:[%s258 + $0x54] sm:$0xf] %vm710, %v4818
      %4891 = vst.msk [vmem:[%s258 + $0x58] sm:$0xf] %vm710, %v4819
      %4892 = vst.msk [vmem:[%s258 + $0x5c] sm:$0xf] %vm710, %v4820
      %4893 = vst.msk [vmem:[%s258 + $0x60] sm:$0xf] %vm710, %v4821
      %4894 = vst.msk [vmem:[%s258 + $0x64] sm:$0xf] %vm710, %v4822
      %4895 = vst.msk [vmem:[%s258 + $0x68] sm:$0xf] %vm710, %v4823
      %4896 = vst.msk [vmem:[%s258 + $0x6c] sm:$0xf] %vm710, %v4824
      %4897 = vst.msk [vmem:[%s258 + $0x70] sm:$0xf] %vm710, %v4825
      %4898 = vst.msk [vmem:[%s258 + $0x74] sm:$0xf] %vm710, %v4826
      %4899 = vst.msk [vmem:[%s258 + $0x78] sm:$0xf] %vm710, %v4827
      %4900 = vst.msk [vmem:[%s258 + $0x7c] sm:$0xf] %vm710, %v4828
      %4901 = vst.msk [vmem:[%s258 + $0x80] sm:$0xf] %vm710, %v4829
      %4902 = vst.msk [vmem:[%s258 + $0x84] sm:$0xf] %vm710, %v4830
      %4903 = vst.msk [vmem:[%s258 + $0x88] sm:$0xf] %vm710, %v4831
      %4904 = vst.msk [vmem:[%s258 + $0x8c] sm:$0xf] %vm710, %v4832
      %v4905 = vmul.f32 %v4689, %v303
      %v4906 = vmul.f32 %v4690, %v308
      %v4907 = vmul.f32 %v4691, %v313
      %v4908 = vmul.f32 %v4692, %v318
      %v4909 = vmul.f32 %v4693, %v323
      %v4910 = vmul.f32 %v4694, %v328
      %v4911 = vmul.f32 %v4695, %v333
      %v4912 = vmul.f32 %v4696, %v338
      %v4913 = vmul.f32 %v4697, %v343
      %v4914 = vmul.f32 %v4698, %v348
      %v4915 = vmul.f32 %v4699, %v353
      %v4916 = vmul.f32 %v4700, %v358
      %v4917 = vmul.f32 %v4701, %v363
      %v4918 = vmul.f32 %v4702, %v368
      %v4919 = vmul.f32 %v4703, %v373
      %v4920 = vmul.f32 %v4704, %v378
      %v4921 = vmul.f32 %v4705, %v383
      %v4922 = vmul.f32 %v4706, %v388
      %v4923 = vmul.f32 %v4707, %v393
      %v4924 = vmul.f32 %v4708, %v398
      %v4925 = vmul.f32 %v4709, %v403
      %v4926 = vmul.f32 %v4710, %v408
      %v4927 = vmul.f32 %v4711, %v413
      %v4928 = vmul.f32 %v4712, %v418
      %v4929 = vmul.f32 %v4713, %v423
      %v4930 = vmul.f32 %v4714, %v428
      %v4931 = vmul.f32 %v4715, %v433
      %v4932 = vmul.f32 %v4716, %v438
      %v4933 = vmul.f32 %v4717, %v443
      %v4934 = vmul.f32 %v4718, %v448
      %v4935 = vmul.f32 %v4719, %v453
      %v4936 = vmul.f32 %v4720, %v458
      %v4937 = vmul.f32 %v4721, %v463
      %v4938 = vmul.f32 %v4722, %v468
      %v4939 = vmul.f32 %v4723, %v473
      %v4940 = vmul.f32 %v4724, %v478
      %v4941 = vsel %vm1559, %v4905, 0.0
      %v4942 = vsel %vm1559, %v4906, 0.0
      %v4943 = vadd.f32 %v4941, %v4942
      %v4944 = vsel %vm1559, %v4907, 0.0
      %v4945 = vadd.f32 %v4943, %v4944
      %v4946 = vsel %vm1559, %v4908, 0.0
      %v4947 = vadd.f32 %v4945, %v4946
      %v4948 = vsel %vm1559, %v4909, 0.0
      %v4949 = vadd.f32 %v4947, %v4948
      %v4950 = vsel %vm1559, %v4910, 0.0
      %v4951 = vadd.f32 %v4949, %v4950
      %v4952 = vsel %vm1559, %v4911, 0.0
      %v4953 = vadd.f32 %v4951, %v4952
      %v4954 = vsel %vm1559, %v4912, 0.0
      %v4955 = vadd.f32 %v4953, %v4954
      %v4956 = vsel %vm1559, %v4913, 0.0
      %v4957 = vadd.f32 %v4955, %v4956
      %v4958 = vsel %vm1559, %v4914, 0.0
      %v4959 = vadd.f32 %v4957, %v4958
      %v4960 = vsel %vm1559, %v4915, 0.0
      %v4961 = vadd.f32 %v4959, %v4960
      %v4962 = vsel %vm1559, %v4916, 0.0
      %v4963 = vadd.f32 %v4961, %v4962
      %v4964 = vsel %vm1559, %v4917, 0.0
      %v4965 = vadd.f32 %v4963, %v4964
      %v4966 = vsel %vm1559, %v4918, 0.0
      %v4967 = vadd.f32 %v4965, %v4966
      %v4968 = vsel %vm1559, %v4919, 0.0
      %v4969 = vadd.f32 %v4967, %v4968
      %v4970 = vsel %vm1559, %v4920, 0.0
      %v4971 = vadd.f32 %v4969, %v4970
      %v4972 = vsel %vm1559, %v4921, 0.0
      %v4973 = vadd.f32 %v4971, %v4972
      %v4974 = vsel %vm1559, %v4922, 0.0
      %v4975 = vadd.f32 %v4973, %v4974
      %v4976 = vsel %vm1559, %v4923, 0.0
      %v4977 = vadd.f32 %v4975, %v4976
      %v4978 = vsel %vm1559, %v4924, 0.0
      %v4979 = vadd.f32 %v4977, %v4978
      %v4980 = vsel %vm1559, %v4925, 0.0
      %v4981 = vadd.f32 %v4979, %v4980
      %v4982 = vsel %vm1559, %v4926, 0.0
      %v4983 = vadd.f32 %v4981, %v4982
      %v4984 = vsel %vm1559, %v4927, 0.0
      %v4985 = vadd.f32 %v4983, %v4984
      %v4986 = vsel %vm1559, %v4928, 0.0
      %v4987 = vadd.f32 %v4985, %v4986
      %v4988 = vsel %vm1559, %v4929, 0.0
      %v4989 = vadd.f32 %v4987, %v4988
      %v4990 = vsel %vm1559, %v4930, 0.0
      %v4991 = vadd.f32 %v4989, %v4990
      %v4992 = vsel %vm1559, %v4931, 0.0
      %v4993 = vadd.f32 %v4991, %v4992
      %v4994 = vsel %vm1559, %v4932, 0.0
      %v4995 = vadd.f32 %v4993, %v4994
      %v4996 = vsel %vm1559, %v4933, 0.0
      %v4997 = vadd.f32 %v4995, %v4996
      %v4998 = vsel %vm1559, %v4934, 0.0
      %v4999 = vadd.f32 %v4997, %v4998
      %v5000 = vsel %vm1559, %v4935, 0.0
      %v5001 = vadd.f32 %v4999, %v5000
      %v5002 = vsel %vm1559, %v4936, 0.0
      %v5003 = vadd.f32 %v5001, %v5002
      %v5004 = vsel %vm1559, %v4937, 0.0
      %v5005 = vadd.f32 %v5003, %v5004
      %v5006 = vsel %vm1559, %v4938, 0.0
      %v5007 = vadd.f32 %v5005, %v5006
      %v5008 = vsel %vm1559, %v4939, 0.0
      %v5009 = vadd.f32 %v5007, %v5008
      %v5010 = vsel %vm1559, %v4940, 0.0
      %v5011 = vadd.f32 %v5009, %v5010
      %v5012 = vrot.slane %v5011, 4
      %v5013 = vadd.f32 %v5011, %v5012
      %v5014 = vrot.slane %v5013, 2
      %v5015 = vadd.f32 %v5013, %v5014
      %v5016 = vrot.slane %v5015, 1
      %v5017 = vadd.f32 %v5015, %v5016
      %vm5018 = vcmask 57344
      %5019 = vst.msk [vmem:[%s262] sm:$0x1] %vm5018, %v5017
      %v5020 = vmul.f32 %v4905, %v4689
      %v5021 = vmul.f32 %v4906, %v4690
      %v5022 = vmul.f32 %v4907, %v4691
      %v5023 = vmul.f32 %v4908, %v4692
      %v5024 = vmul.f32 %v4909, %v4693
      %v5025 = vmul.f32 %v4910, %v4694
      %v5026 = vmul.f32 %v4911, %v4695
      %v5027 = vmul.f32 %v4912, %v4696
      %v5028 = vmul.f32 %v4913, %v4697
      %v5029 = vmul.f32 %v4914, %v4698
      %v5030 = vmul.f32 %v4915, %v4699
      %v5031 = vmul.f32 %v4916, %v4700
      %v5032 = vmul.f32 %v4917, %v4701
      %v5033 = vmul.f32 %v4918, %v4702
      %v5034 = vmul.f32 %v4919, %v4703
      %v5035 = vmul.f32 %v4920, %v4704
      %v5036 = vmul.f32 %v4921, %v4705
      %v5037 = vmul.f32 %v4922, %v4706
      %v5038 = vmul.f32 %v4923, %v4707
      %v5039 = vmul.f32 %v4924, %v4708
      %v5040 = vmul.f32 %v4925, %v4709
      %v5041 = vmul.f32 %v4926, %v4710
      %v5042 = vmul.f32 %v4927, %v4711
      %v5043 = vmul.f32 %v4928, %v4712
      %v5044 = vmul.f32 %v4929, %v4713
      %v5045 = vmul.f32 %v4930, %v4714
      %v5046 = vmul.f32 %v4931, %v4715
      %v5047 = vmul.f32 %v4932, %v4716
      %v5048 = vmul.f32 %v4933, %v4717
      %v5049 = vmul.f32 %v4934, %v4718
      %v5050 = vmul.f32 %v4935, %v4719
      %v5051 = vmul.f32 %v4936, %v4720
      %v5052 = vmul.f32 %v4937, %v4721
      %v5053 = vmul.f32 %v4938, %v4722
      %v5054 = vmul.f32 %v4939, %v4723
      %v5055 = vmul.f32 %v4940, %v4724
      %v5056 = vsel %vm1559, %v5020, 0.0
      %v5057 = vsel %vm1559, %v5021, 0.0
      %v5058 = vadd.f32 %v5056, %v5057
      %v5059 = vsel %vm1559, %v5022, 0.0
      %v5060 = vadd.f32 %v5058, %v5059
      %v5061 = vsel %vm1559, %v5023, 0.0
      %v5062 = vadd.f32 %v5060, %v5061
      %v5063 = vsel %vm1559, %v5024, 0.0
      %v5064 = vadd.f32 %v5062, %v5063
      %v5065 = vsel %vm1559, %v5025, 0.0
      %v5066 = vadd.f32 %v5064, %v5065
      %v5067 = vsel %vm1559, %v5026, 0.0
      %v5068 = vadd.f32 %v5066, %v5067
      %v5069 = vsel %vm1559, %v5027, 0.0
      %v5070 = vadd.f32 %v5068, %v5069
      %v5071 = vsel %vm1559, %v5028, 0.0
      %v5072 = vadd.f32 %v5070, %v5071
      %v5073 = vsel %vm1559, %v5029, 0.0
      %v5074 = vadd.f32 %v5072, %v5073
      %v5075 = vsel %vm1559, %v5030, 0.0
      %v5076 = vadd.f32 %v5074, %v5075
      %v5077 = vsel %vm1559, %v5031, 0.0
      %v5078 = vadd.f32 %v5076, %v5077
      %v5079 = vsel %vm1559, %v5032, 0.0
      %v5080 = vadd.f32 %v5078, %v5079
      %v5081 = vsel %vm1559, %v5033, 0.0
      %v5082 = vadd.f32 %v5080, %v5081
      %v5083 = vsel %vm1559, %v5034, 0.0
      %v5084 = vadd.f32 %v5082, %v5083
      %v5085 = vsel %vm1559, %v5035, 0.0
      %v5086 = vadd.f32 %v5084, %v5085
      %v5087 = vsel %vm1559, %v5036, 0.0
      %v5088 = vadd.f32 %v5086, %v5087
      %v5089 = vsel %vm1559, %v5037, 0.0
      %v5090 = vadd.f32 %v5088, %v5089
      %v5091 = vsel %vm1559, %v5038, 0.0
      %v5092 = vadd.f32 %v5090, %v5091
      %v5093 = vsel %vm1559, %v5039, 0.0
      %v5094 = vadd.f32 %v5092, %v5093
      %v5095 = vsel %vm1559, %v5040, 0.0
      %v5096 = vadd.f32 %v5094, %v5095
      %v5097 = vsel %vm1559, %v5041, 0.0
      %v5098 = vadd.f32 %v5096, %v5097
      %v5099 = vsel %vm1559, %v5042, 0.0
      %v5100 = vadd.f32 %v5098, %v5099
      %v5101 = vsel %vm1559, %v5043, 0.0
      %v5102 = vadd.f32 %v5100, %v5101
      %v5103 = vsel %vm1559, %v5044, 0.0
      %v5104 = vadd.f32 %v5102, %v5103
      %v5105 = vsel %vm1559, %v5045, 0.0
      %v5106 = vadd.f32 %v5104, %v5105
      %v5107 = vsel %vm1559, %v5046, 0.0
      %v5108 = vadd.f32 %v5106, %v5107
      %v5109 = vsel %vm1559, %v5047, 0.0
      %v5110 = vadd.f32 %v5108, %v5109
      %v5111 = vsel %vm1559, %v5048, 0.0
      %v5112 = vadd.f32 %v5110, %v5111
      %v5113 = vsel %vm1559, %v5049, 0.0
      %v5114 = vadd.f32 %v5112, %v5113
      %v5115 = vsel %vm1559, %v5050, 0.0
      %v5116 = vadd.f32 %v5114, %v5115
      %v5117 = vsel %vm1559, %v5051, 0.0
      %v5118 = vadd.f32 %v5116, %v5117
      %v5119 = vsel %vm1559, %v5052, 0.0
      %v5120 = vadd.f32 %v5118, %v5119
      %v5121 = vsel %vm1559, %v5053, 0.0
      %v5122 = vadd.f32 %v5120, %v5121
      %v5123 = vsel %vm1559, %v5054, 0.0
      %v5124 = vadd.f32 %v5122, %v5123
      %v5125 = vsel %vm1559, %v5055, 0.0
      %v5126 = vadd.f32 %v5124, %v5125
      %v5127 = vrot.slane %v5126, 4
      %v5128 = vadd.f32 %v5126, %v5127
      %v5129 = vrot.slane %v5128, 2
      %v5130 = vadd.f32 %v5128, %v5129
      %v5131 = vrot.slane %v5130, 1
      %v5132 = vadd.f32 %v5130, %v5131
      %5133 = vst.msk [vmem:[%s262 + $0x1] sm:$0x1] %vm5018, %v5132
      %p5134 = scmp.lt.s32.totalorder %s18, 1
      %s5135 = scalar_select %p5134, %s18, 1
      %s5136 = smul.addr %s5135, 36
      %s5137 = smul.addr %s5136, 4
      %s5138 = scalar_lea.vmem %s5, %s5137
      %p5139 = scmp.lt.s32.totalorder %s18, 1
      %s5140 = scalar_select %p5139, %s18, 1
      %s5141 = smul.addr %s5140, 2
      %s5142 = scalar_lea.vmem %s6, %s5141
      // Predicated region
      $region41: #{resblock_forward.4} parent=39 // pred_check
        %p5143 = pneg %p146
      $region42: #{resblock_forward.4} parent=39 // pred_check_branch
        %5145 = sbr.rel (%p5143) target = $region44
      $region43: #{resblock_forward.4} parent=39 // pred_region
        _
      $region44: #{resblock_forward.4} parent=39 // pred_fallthru
        _
      // Predicated region
      $region45: #{resblock_forward.4} parent=39 // pred_check
        %p5146 = pneg %p172
      $region46: #{resblock_forward.4} parent=39 // pred_check_branch
        %5148 = sbr.rel (%p5146) target = $region48
      $region47: #{resblock_forward.4} parent=39 // pred_region
        _
      $region48: #{resblock_forward.4} parent=39 // pred_fallthru
        _
    $region40: #{resblock_forward.4} parent=5 // pred_fallthru
      _
    %p5149 = scmp.le.s32.totalorder 2, %s13
    // Predicated region
    $region49: #{resblock_forward.4} parent=5 // pred_check
      %p5150 = pneg %p5149
    $region50: #{resblock_forward.4} parent=5 // pred_check_branch
      %5152 = sbr.rel (%p5150) target = $region52
    $region51: #{resblock_forward.4} parent=5 // pred_region
      %s5153 = ssub.s32 %s13, 2
      // Predicated region
      $region53: #{resblock_forward.4} parent=51 // pred_check
        %p5154 = pneg %p152
      $region54: #{resblock_forward.4} parent=51 // pred_check_branch
        %5156 = sbr.rel (%p5154) target = $region56
      $region55: #{resblock_forward.4} parent=51 // pred_region
        %p5157 = scmp.lt.s32.totalorder %s19, 1
        %s5158 = scalar_select %p5157, %s19, 1
        %s5159 = smul.addr %s5158, 36
        %s5160 = smul.addr %s5159, 4
        %s5161 = scalar_lea.vmem %s5, %s5160
      $region56: #{resblock_forward.4} parent=51 // pred_fallthru
        _
      // Predicated region
      $region57: #{resblock_forward.4} parent=51 // pred_check
        %p5162 = pneg %p178
      $region58: #{resblock_forward.4} parent=51 // pred_check_branch
        %5164 = sbr.rel (%p5162) target = $region60
      $region59: #{resblock_forward.4} parent=51 // pred_region
        %p5165 = scmp.lt.s32.totalorder %s19, 1
        %s5166 = scalar_select %p5165, %s19, 1
        %s5167 = smul.addr %s5166, 2
        %s5168 = scalar_lea.vmem %s6, %s5167
      $region60: #{resblock_forward.4} parent=51 // pred_fallthru
        _
    $region52: #{resblock_forward.4} parent=5 // pred_fallthru
      _
  $region6: #{resblock_forward.4} parent=0 // loop_footer
    %s17 = sadd.s32 1, %s13
  $region7: #{resblock_forward.4} parent=0 // loop_footer_branch
    %12 = sbr.rel target = $region3
  $region8: #{resblock_forward.4} parent=0 // loop_exit
    _

</llo_original>
